<compile_context>
chip_gen: v7x
topology: tpu7x:2x2x1
jax: 0.10.0
libtpu: 0.0.40
codegen_flags: <defaults>
</compile_context>

<pallas_src>
import jax
import jax.numpy as jnp
from jax.experimental import pallas as pl
from jax.experimental.pallas import tpu as pltpu

F_IN = 1024      # per-branch feature width (concat would be 2048)
F_HID = 1024     # hidden width
N_CLS = 2        # real number of classes
HEAD_PAD = 128   # classification head padded to one full lane width
ROW_MULT = 16    # row-tile multiple legal for both f32 and bf16 feature tiles


def _cdiv(a, b):
    return (a + b - 1) // b


def _round_up(x, m):
    return _cdiv(x, m) * m


def _vmem_plan():
    """Per-generation (tm_cap, vmem_limit_bytes).

    v5e/v6e have 128 MiB physical VMEM -> allow tm up to 512 and a 64 MiB scoped limit.
    v7x only has 64 MiB physical -> keep the default 32 MiB scoped limit and tm <= 256.
    Falls back to the conservative (v7x-safe) plan if the hardware query is unavailable.
    """
    try:
        cap = getattr(pltpu.get_tpu_info(), "vmem_capacity_bytes", None)
    except Exception:
        cap = None
    if cap is not None and cap >= 100 * 1024 * 1024:      # v5e / v6e
        return 512, 64 * 1024 * 1024
    return 256, 32 * 1024 * 1024                          # v7x / unknown


def _choose_tm(B, tm_cap):
    """Row-tile size: multiple of ROW_MULT, >=2 grid steps when the batch allows it
    (keeps both v7x TensorCores busy), padded-row waste bounded."""
    if B <= ROW_MULT:
        return ROW_MULT
    n_steps = max(_cdiv(B, tm_cap), 2)
    return min(_round_up(_cdiv(B, n_steps), ROW_MULT), tm_cap)


def rnet_kernel(f1_ref, f2_ref, w1a_ref, w1b_ref, b1_ref,
                w2_ref, b2_ref, w3_ref, b3_ref, out_ref):
    # Features arrive in their native dtype; cast (no-op if already bf16) for the MXU.
    f1 = f1_ref[...].astype(jnp.bfloat16)
    f2 = f2_ref[...].astype(jnp.bfloat16)

    # fc1: Linear(2048 -> 1024) with the concat fused as two bf16 matmuls (f32 acc) + ReLU.
    h1 = (jnp.dot(f1, w1a_ref[...], preferred_element_type=jnp.float32)
          + jnp.dot(f2, w1b_ref[...], preferred_element_type=jnp.float32)
          + b1_ref[...])
    h1 = jnp.maximum(h1, 0.0).astype(jnp.bfloat16)   # cast right after ReLU: halves live f32

    # fc2: Linear(1024 -> 1024) + ReLU.
    h2 = jnp.dot(h1, w2_ref[...], preferred_element_type=jnp.float32) + b2_ref[...]
    h2 = jnp.maximum(h2, 0.0).astype(jnp.bfloat16)

    # classification head: Linear(1024 -> 2), padded to 128 lanes; masked softmax over dim=1.
    logits = jnp.dot(h2, w3_ref[...], preferred_element_type=jnp.float32) + b3_ref[...]
    lane = jax.lax.broadcasted_iota(jnp.int32, logits.shape, 1)
    valid = lane < N_CLS
    logits = jnp.where(valid, logits, jnp.float32(-1e30))
    m = jnp.max(logits, axis=1, keepdims=True)
    e = jnp.where(valid, jnp.exp(logits - m), 0.0)
    denom = jnp.sum(e, axis=1, keepdims=True)
    out_ref[...] = e * pl.reciprocal(denom, approx=False)


def rnet_forward(feat1, feat2, params, is_training=True):
    """Mirrors RNet.forward: concat fc1 features, FC stack, softmax classification.
    (The reference module has no dropout; is_training only selects identical branches.)"""
    f1 = feat1["fc1"]          # native dtype straight to the DMA (no f32 upcast copy)
    f2 = feat2["fc1"]
    B = f1.shape[0]

    tm_cap, vmem_limit = _vmem_plan()
    tm = _choose_tm(B, tm_cap)
    Bp = _round_up(B, tm)
    if Bp != B:
        pad = Bp - B
        f1 = jnp.pad(f1, ((0, pad), (0, 0)))
        f2 = jnp.pad(f2, ((0, pad), (0, 0)))

    # Weights / biases: constant index_map + single-buffered (never re-fetched across tiles).
    def _wspec(shape):
        return pl.BlockSpec(shape, lambda i: (0, 0), pipeline_mode=pl.Buffered(1))

    # Advisory cost so XLA can overlap neighbours with the weight DMA.
    layer_macs = 2 * F_IN * F_HID + F_HID * F_HID + F_HID * HEAD_PAD
    weight_bytes = layer_macs * 2 + (2 * F_HID + HEAD_PAD) * 4           # bf16 W + f32 b
    act_bytes = Bp * 2 * F_IN * jnp.dtype(f1.dtype).itemsize + Bp * HEAD_PAD * 4
    cost = pl.CostEstimate(flops=2 * Bp * layer_macs,
                           transcendentals=Bp * HEAD_PAD,
                           bytes_accessed=weight_bytes + act_bytes)

    out = pl.pallas_call(
        rnet_kernel,
        out_shape=jax.ShapeDtypeStruct((Bp, HEAD_PAD), jnp.float32),
        grid_spec=pltpu.PrefetchScalarGridSpec(
            num_scalar_prefetch=0,
            grid=(Bp // tm,),
            in_specs=[
                pl.BlockSpec((tm, F_IN), lambda i: (i, 0)),      # feat1 tile (native dtype)
                pl.BlockSpec((tm, F_IN), lambda i: (i, 0)),      # feat2 tile (native dtype)
                _wspec((F_IN, F_HID)),                           # w1 (top half, bf16)
                _wspec((F_IN, F_HID)),                           # w1 (bottom half, bf16)
                _wspec((1, F_HID)),                              # b1
                _wspec((F_HID, F_HID)),                          # w2 (bf16)
                _wspec((1, F_HID)),                              # b2
                _wspec((F_HID, HEAD_PAD)),                       # w3 (padded head, bf16)
                _wspec((1, HEAD_PAD)),                           # b3 (padded)
            ],
            out_specs=pl.BlockSpec((tm, HEAD_PAD), lambda i: (i, 0)),
        ),
        compiler_params=pltpu.CompilerParams(
            dimension_semantics=("parallel",),
            vmem_limit_bytes=vmem_limit,
        ),
        cost_estimate=cost,
    )(f1, f2, params["w1a"], params["w1b"], params["b1"],
      params["w2"], params["b2"], params["w3"], params["b3"])

    cls = out[:B, :N_CLS]
    return {"cls": cls}


def init_params(key):
    """nn.Linear-style init (U(-1/sqrt(fan_in), 1/sqrt(fan_in))).
    Weights stored (in_features, out_features) in bf16; w1 split into two 1024x1024 halves
    (concat fusion); head padded to 128 output lanes with zeros. Biases stay f32."""
    k = jax.random.split(key, 6)

    b1_bound = 1.0 / jnp.sqrt(2 * F_IN)
    w1 = jax.random.uniform(k[0], (2 * F_IN, F_HID), jnp.float32, -b1_bound, b1_bound)
    b1 = jax.random.uniform(k[1], (1, F_HID), jnp.float32, -b1_bound, b1_bound)

    b2_bound = 1.0 / jnp.sqrt(F_HID)
    w2 = jax.random.uniform(k[2], (F_HID, F_HID), jnp.float32, -b2_bound, b2_bound)
    b2 = jax.random.uniform(k[3], (1, F_HID), jnp.float32, -b2_bound, b2_bound)

    w3 = jax.random.uniform(k[4], (F_HID, N_CLS), jnp.float32, -b2_bound, b2_bound)
    b3 = jax.random.uniform(k[5], (1, N_CLS), jnp.float32, -b2_bound, b2_bound)
    w3p = jnp.zeros((F_HID, HEAD_PAD), jnp.float32).at[:, :N_CLS].set(w3)
    b3p = jnp.zeros((1, HEAD_PAD), jnp.float32).at[:, :N_CLS].set(b3)

    return {
        "w1a": w1[:F_IN].astype(jnp.bfloat16),
        "w1b": w1[F_IN:].astype(jnp.bfloat16),
        "b1": b1,
        "w2": w2.astype(jnp.bfloat16),
        "b2": b2,
        "w3": w3p.astype(jnp.bfloat16),
        "b3": b3p,
    }


def rnet_reference(feat1, feat2, params):
    """Pure-JAX reference mirroring the kernel's mixed precision (bf16 MXU, f32 accumulate)."""
    f1 = feat1["fc1"].astype(jnp.bfloat16)
    f2 = feat2["fc1"].astype(jnp.bfloat16)
    h1 = (jnp.dot(f1, params["w1a"], preferred_element_type=jnp.float32)
          + jnp.dot(f2, params["w1b"], preferred_element_type=jnp.float32)
          + params["b1"])
    h1 = jnp.maximum(h1, 0.0).astype(jnp.bfloat16)
    h2 = jnp.dot(h1, params["w2"], preferred_element_type=jnp.float32) + params["b2"]
    h2 = jnp.maximum(h2, 0.0).astype(jnp.bfloat16)
    logits = jnp.dot(h2, params["w3"], preferred_element_type=jnp.float32) + params["b3"]
    return jax.nn.softmax(logits[:, :N_CLS], axis=1)


if __name__ == "__main__":
    key = jax.random.PRNGKey(0)
    kp, kf1, kf2 = jax.random.split(key, 3)

    params = init_params(kp)

    B = 8  # small serving batch; feature dims (1024 per branch) are fixed by the module
    feat1 = {"fc1": jax.random.normal(kf1, (B, F_IN), jnp.float32).astype(jnp.bfloat16)}
    feat2 = {"fc1": jax.random.normal(kf2, (B, F_IN), jnp.float32).astype(jnp.bfloat16)}

    out = rnet_forward(feat1, feat2, params, is_training=True)
    cls = jax.block_until_ready(out["cls"])

    ref = rnet_reference(feat1, feat2, params)
    assert cls.shape == (B, N_CLS)
    assert jnp.allclose(jnp.sum(cls, axis=1), 1.0, atol=1e-5), "softmax rows must sum to 1"
    assert jnp.allclose(cls, ref, atol=2e-4, rtol=2e-4), "mismatch vs reference"

    print("KERNEL_OK")
</pallas_src>

<mosaic_0001>
module attributes {stable_mosaic.version = 11 : i64} {
  func.func @rnet_kernel(%arg0: i32, %arg1: memref<16x1024xbf16, #tpu.memory_space<vmem>>, %arg2: memref<16x1024xbf16, #tpu.memory_space<vmem>>, %arg3: memref<1024x1024xbf16, #tpu.memory_space<vmem>>, %arg4: memref<1024x1024xbf16, #tpu.memory_space<vmem>>, %arg5: memref<1x1024xf32, #tpu.memory_space<vmem>>, %arg6: memref<1024x1024xbf16, #tpu.memory_space<vmem>>, %arg7: memref<1x1024xf32, #tpu.memory_space<vmem>>, %arg8: memref<1024x128xbf16, #tpu.memory_space<vmem>>, %arg9: memref<1x128xf32, #tpu.memory_space<vmem>>, %arg10: memref<16x128xf32, #tpu.memory_space<vmem>>) attributes {dimension_semantics = [#tpu.dimension_semantics<parallel>], iteration_bounds = array<i64: 1>, scalar_prefetch = 0 : i64, scratch_operands = 0 : i64, tpu.core_type = #tpu.core_type<tc>, window_params = [{transform_indices = @transform_0, window_bounds = array<i64: 16, 1024>}, {transform_indices = @transform_1, window_bounds = array<i64: 16, 1024>}, {pipeline_mode = #tpu.pipeline_mode<synchronous>, transform_indices = @transform_2, window_bounds = array<i64: 1024, 1024>}, {pipeline_mode = #tpu.pipeline_mode<synchronous>, transform_indices = @transform_3, window_bounds = array<i64: 1024, 1024>}, {pipeline_mode = #tpu.pipeline_mode<synchronous>, transform_indices = @transform_4, window_bounds = array<i64: 1, 1024>}, {pipeline_mode = #tpu.pipeline_mode<synchronous>, transform_indices = @transform_5, window_bounds = array<i64: 1024, 1024>}, {pipeline_mode = #tpu.pipeline_mode<synchronous>, transform_indices = @transform_6, window_bounds = array<i64: 1, 1024>}, {pipeline_mode = #tpu.pipeline_mode<synchronous>, transform_indices = @transform_7, window_bounds = array<i64: 1024, 128>}, {pipeline_mode = #tpu.pipeline_mode<synchronous>, transform_indices = @transform_8, window_bounds = array<i64: 1, 128>}, {transform_indices = @transform_9, window_bounds = array<i64: 16, 128>}]} {
    %c0 = arith.constant 0 : index
    %c0_0 = arith.constant 0 : index
    %0 = vector.load %arg1[%c0, %c0_0] : memref<16x1024xbf16, #tpu.memory_space<vmem>>, vector<16x1024xbf16>
    %c0_1 = arith.constant 0 : index
    %c0_2 = arith.constant 0 : index
    %1 = vector.load %arg2[%c0_1, %c0_2] : memref<16x1024xbf16, #tpu.memory_space<vmem>>, vector<16x1024xbf16>
    %c0_3 = arith.constant 0 : index
    %c0_4 = arith.constant 0 : index
    %2 = vector.load %arg3[%c0_3, %c0_4] : memref<1024x1024xbf16, #tpu.memory_space<vmem>>, vector<1024x1024xbf16>
    %cst = arith.constant dense<0.000000e+00> : vector<16x1024xf32>
    %3 = tpu.matmul %0, %2, %cst {dimension_numbers = #tpu.dot_dimension_numbers<[1], [0], [0], [1], [0, 0, 1, 1], [], []>} : vector<16x1024xbf16>, vector<1024x1024xbf16>, vector<16x1024xf32> -> vector<16x1024xf32>
    %c0_5 = arith.constant 0 : index
    %c0_6 = arith.constant 0 : index
    %4 = vector.load %arg4[%c0_5, %c0_6] : memref<1024x1024xbf16, #tpu.memory_space<vmem>>, vector<1024x1024xbf16>
    %cst_7 = arith.constant dense<0.000000e+00> : vector<16x1024xf32>
    %5 = tpu.matmul %1, %4, %cst_7 {dimension_numbers = #tpu.dot_dimension_numbers<[1], [0], [0], [1], [0, 0, 1, 1], [], []>} : vector<16x1024xbf16>, vector<1024x1024xbf16>, vector<16x1024xf32> -> vector<16x1024xf32>
    %6 = arith.addf %3, %5 : vector<16x1024xf32>
    %c0_8 = arith.constant 0 : index
    %c0_9 = arith.constant 0 : index
    %7 = vector.load %arg5[%c0_8, %c0_9] : memref<1x1024xf32, #tpu.memory_space<vmem>>, vector<1x1024xf32>
    %8 = vector.broadcast %7 : vector<1x1024xf32> to vector<16x1024xf32>
    %9 = arith.addf %6, %8 : vector<16x1024xf32>
    %cst_10 = arith.constant 0.000000e+00 : f32
    %10 = vector.broadcast %cst_10 : f32 to vector<16x1024xf32>
    %11 = arith.maximumf %9, %10 : vector<16x1024xf32>
    %12 = arith.truncf %11 : vector<16x1024xf32> to vector<16x1024xbf16>
    %c0_11 = arith.constant 0 : index
    %c0_12 = arith.constant 0 : index
    %13 = vector.load %arg6[%c0_11, %c0_12] : memref<1024x1024xbf16, #tpu.memory_space<vmem>>, vector<1024x1024xbf16>
    %cst_13 = arith.constant dense<0.000000e+00> : vector<16x1024xf32>
    %14 = tpu.matmul %12, %13, %cst_13 {dimension_numbers = #tpu.dot_dimension_numbers<[1], [0], [0], [1], [0, 0, 1, 1], [], []>} : vector<16x1024xbf16>, vector<1024x1024xbf16>, vector<16x1024xf32> -> vector<16x1024xf32>
    %c0_14 = arith.constant 0 : index
    %c0_15 = arith.constant 0 : index
    %15 = vector.load %arg7[%c0_14, %c0_15] : memref<1x1024xf32, #tpu.memory_space<vmem>>, vector<1x1024xf32>
    %16 = vector.broadcast %15 : vector<1x1024xf32> to vector<16x1024xf32>
    %17 = arith.addf %14, %16 : vector<16x1024xf32>
    %cst_16 = arith.constant 0.000000e+00 : f32
    %18 = vector.broadcast %cst_16 : f32 to vector<16x1024xf32>
    %19 = arith.maximumf %17, %18 : vector<16x1024xf32>
    %20 = arith.truncf %19 : vector<16x1024xf32> to vector<16x1024xbf16>
    %c0_17 = arith.constant 0 : index
    %c0_18 = arith.constant 0 : index
    %21 = vector.load %arg8[%c0_17, %c0_18] : memref<1024x128xbf16, #tpu.memory_space<vmem>>, vector<1024x128xbf16>
    %cst_19 = arith.constant dense<0.000000e+00> : vector<16x128xf32>
    %22 = tpu.matmul %20, %21, %cst_19 {dimension_numbers = #tpu.dot_dimension_numbers<[1], [0], [0], [1], [0, 0, 1, 1], [], []>} : vector<16x1024xbf16>, vector<1024x128xbf16>, vector<16x128xf32> -> vector<16x128xf32>
    %c0_20 = arith.constant 0 : index
    %c0_21 = arith.constant 0 : index
    %23 = vector.load %arg9[%c0_20, %c0_21] : memref<1x128xf32, #tpu.memory_space<vmem>>, vector<1x128xf32>
    %24 = vector.broadcast %23 : vector<1x128xf32> to vector<16x128xf32>
    %25 = arith.addf %22, %24 : vector<16x128xf32>
    %26 = tpu.iota {dimensions = array<i32: 1>} : vector<16x128xi32>
    %c2_i32 = arith.constant 2 : i32
    %27 = vector.broadcast %c2_i32 : i32 to vector<16x128xi32>
    %28 = arith.cmpi slt, %26, %27 : vector<16x128xi32>
    %cst_22 = arith.constant -1.000000e+30 : f32
    %29 = vector.broadcast %cst_22 : f32 to vector<16x128xf32>
    %30 = arith.select %28, %25, %29 : vector<16x128xi1>, vector<16x128xf32>
    %cst_23 = arith.constant dense<0xFF800000> : vector<16xf32>
    %31 = vector.multi_reduction <maximumf>, %30, %cst_23 [1] : vector<16x128xf32> to vector<16xf32>
    %32 = vector.shape_cast %31 : vector<16xf32> to vector<16x1xf32>
    %33 = vector.broadcast %32 : vector<16x1xf32> to vector<16x128xf32>
    %34 = arith.subf %30, %33 : vector<16x128xf32>
    %35 = math.exp %34 : vector<16x128xf32>
    %cst_24 = arith.constant 0.000000e+00 : f32
    %36 = vector.broadcast %cst_24 : f32 to vector<16x128xf32>
    %37 = arith.select %28, %35, %36 : vector<16x128xi1>, vector<16x128xf32>
    %cst_25 = arith.constant dense<0.000000e+00> : vector<16xf32>
    %38 = vector.multi_reduction <add>, %37, %cst_25 [1] : vector<16x128xf32> to vector<16xf32>
    %39 = vector.shape_cast %38 : vector<16xf32> to vector<16x1xf32>
    %40 = tpu.reciprocal %39 : vector<16x1xf32> -> vector<16x1xf32>
    %41 = vector.broadcast %40 : vector<16x1xf32> to vector<16x128xf32>
    %42 = arith.mulf %37, %41 : vector<16x128xf32>
    %c0_26 = arith.constant 0 : index
    %c0_27 = arith.constant 0 : index
    %43 = vector.load %arg10[%c0_26, %c0_27] : memref<16x128xf32, #tpu.memory_space<vmem>>, vector<16x128xf32>
    tpu.vector_store %arg10[%c0_26, %c0_27], %42 {strides = array<i32>} : memref<16x128xf32, #tpu.memory_space<vmem>>, vector<16x128xf32>,
    return
  }
  func.func @transform_0(%arg0: i32) -> (i32, i32) {
    %c0_i32 = arith.constant 0 : i32
    %c0_i32_0 = arith.constant 0 : i32
    return %arg0, %c0_i32 : i32, i32
  }
  func.func @transform_1(%arg0: i32) -> (i32, i32) {
    %c0_i32 = arith.constant 0 : i32
    %c0_i32_0 = arith.constant 0 : i32
    return %arg0, %c0_i32 : i32, i32
  }
  func.func @transform_2(%arg0: i32) -> (i32, i32) {
    %c0_i32 = arith.constant 0 : i32
    %c0_i32_0 = arith.constant 0 : i32
    %c0_i32_1 = arith.constant 0 : i32
    return %c0_i32, %c0_i32_0 : i32, i32
  }
  func.func @transform_3(%arg0: i32) -> (i32, i32) {
    %c0_i32 = arith.constant 0 : i32
    %c0_i32_0 = arith.constant 0 : i32
    %c0_i32_1 = arith.constant 0 : i32
    return %c0_i32, %c0_i32_0 : i32, i32
  }
  func.func @transform_4(%arg0: i32) -> (i32, i32) {
    %c0_i32 = arith.constant 0 : i32
    %c0_i32_0 = arith.constant 0 : i32
    %c0_i32_1 = arith.constant 0 : i32
    return %c0_i32, %c0_i32_0 : i32, i32
  }
  func.func @transform_5(%arg0: i32) -> (i32, i32) {
    %c0_i32 = arith.constant 0 : i32
    %c0_i32_0 = arith.constant 0 : i32
    %c0_i32_1 = arith.constant 0 : i32
    return %c0_i32, %c0_i32_0 : i32, i32
  }
  func.func @transform_6(%arg0: i32) -> (i32, i32) {
    %c0_i32 = arith.constant 0 : i32
    %c0_i32_0 = arith.constant 0 : i32
    %c0_i32_1 = arith.constant 0 : i32
    return %c0_i32, %c0_i32_0 : i32, i32
  }
  func.func @transform_7(%arg0: i32) -> (i32, i32) {
    %c0_i32 = arith.constant 0 : i32
    %c0_i32_0 = arith.constant 0 : i32
    %c0_i32_1 = arith.constant 0 : i32
    return %c0_i32, %c0_i32_0 : i32, i32
  }
  func.func @transform_8(%arg0: i32) -> (i32, i32) {
    %c0_i32 = arith.constant 0 : i32
    %c0_i32_0 = arith.constant 0 : i32
    %c0_i32_1 = arith.constant 0 : i32
    return %c0_i32, %c0_i32_0 : i32, i32
  }
  func.func @transform_9(%arg0: i32) -> (i32, i32) {
    %c0_i32 = arith.constant 0 : i32
    %c0_i32_0 = arith.constant 0 : i32
    return %arg0, %c0_i32 : i32, i32
  }
}

</mosaic_0001>

<llo_original>
// kernel: tpu_custom_call.1
$region0: #{tpu_custom_call.1}
  #allocation0 [shape = 'u32[]', space=smem, size = 0x4, offset = 0x4, fixed_abs, tag = 'smem constant byte address 0x4 - core index']
  #allocation1 [shape = 'u32[144,128]{1,0:T(1,128)}', space=vmem, size = 0x12000, scoped, tag = 'internal scratch']
  %s0 = inlined_call_operand.hbm [shape: bf16[16,1024], index: 0, kind: input, shape index: {}]
  %s1 = inlined_call_operand.hbm [shape: bf16[16,1024], index: 1, kind: input, shape index: {}]
  %s2 = inlined_call_operand.hbm [shape: bf16[1024,1024], index: 2, kind: input, shape index: {}]
  %s3 = inlined_call_operand.hbm [shape: bf16[1024,1024], index: 3, kind: input, shape index: {}]
  %s4 = inlined_call_operand.hbm [shape: f32[1,1024], index: 4, kind: input, shape index: {}]
  %s5 = inlined_call_operand.hbm [shape: bf16[1024,1024], index: 5, kind: input, shape index: {}]
  %s6 = inlined_call_operand.hbm [shape: f32[1,1024], index: 6, kind: input, shape index: {}]
  %s7 = inlined_call_operand.hbm [shape: bf16[1024,128], index: 7, kind: input, shape index: {}]
  %s8 = inlined_call_operand.hbm [shape: f32[1,128], index: 8, kind: input, shape index: {}]
  %s9 = inlined_call_operand.hbm [shape: f32[16,128], index: 9, kind: output, shape index: {}]
  %s10 = sld [smem:[#allocation0]]
  $region82: #{tpu_custom_call.1} parent=0
    _
  %s12 = ssub.s32 1, %s10
  %s13 = scalar_select 0, %s12, %s10
  $region1: #{tpu_custom_call.1} parent=0
    #allocation2 [shape = 'u8[32768]{0}', space=vmem, size = 0x8000, scoped, tag = 'input window, operand 0, single buffered']
    #allocation3 [shape = 's32[1]{0}', space=sflag, size = 0x4, scoped, tag = 'scoped memory for tpu_custom_call.1']
    #allocation4 [shape = 's32[1]{0}', space=sflag, size = 0x4, scoped, tag = 'scoped memory for tpu_custom_call.1']
    #allocation5 [shape = 'u8[32768]{0}', space=vmem, size = 0x8000, scoped, tag = 'input window, operand 1, single buffered']
    #allocation6 [shape = 's32[1]{0}', space=sflag, size = 0x4, scoped, tag = 'scoped memory for tpu_custom_call.1']
    #allocation7 [shape = 'u8[2097152]{0}', space=vmem, size = 0x200000, scoped, tag = 'input window, operand 2, single buffered']
    #allocation8 [shape = 'u8[2097152]{0}', space=vmem, size = 0x200000, scoped, tag = 'input window, operand 3, single buffered']
    #allocation9 [shape = 's32[1]{0}', space=sflag, size = 0x4, scoped, tag = 'scoped memory for tpu_custom_call.1']
    #allocation10 [shape = 'u8[4096]{0}', space=vmem, size = 0x1000, scoped, tag = 'input window, operand 4, single buffered']
    #allocation11 [shape = 'u8[2097152]{0}', space=vmem, size = 0x200000, scoped, tag = 'input window, operand 5, single buffered']
    #allocation12 [shape = 's32[1]{0}', space=sflag, size = 0x4, scoped, tag = 'scoped memory for tpu_custom_call.1']
    #allocation13 [shape = 'u8[4096]{0}', space=vmem, size = 0x1000, scoped, tag = 'input window, operand 6, single buffered']
    #allocation14 [shape = 'u8[262144]{0}', space=vmem, size = 0x40000, scoped, tag = 'input window, operand 7, single buffered']
    #allocation15 [shape = 's32[1]{0}', space=sflag, size = 0x4, scoped, tag = 'scoped memory for tpu_custom_call.1']
    #allocation16 [shape = 'u8[512]{0}', space=vmem, size = 0x400, scoped, tag = 'input window, operand 8, single buffered']
    #allocation17 [shape = 'u8[8192]{0}', space=vmem, size = 0x2000, scoped, tag = 'output window, operand 0, single buffered']
    %14 = vsyncpa [#allocation3], 0
    %15 = vsyncpa [#allocation6], 0
    %16 = vsyncpa [#allocation9], 0
    %17 = vsyncpa [#allocation12], 0
    %18 = vsyncpa [#allocation15], 0
    %19 = vsyncpa [#allocation4], 0
    // Predicated region
    $region2: #{tpu_custom_call.1} parent=1 // pred_check
      _
    $region3: #{tpu_custom_call.1} parent=1 // pred_check_branch
      %21 = sbr.rel (0) target = $region5
    $region4: #{tpu_custom_call.1} parent=1 // pred_region
      %s23 = ssub.s32 1024, 1024
      %24 = vsyncadd [#allocation3], %s23
      %s25 = sshll.u32 [#allocation2], 4
      %s26 = int_to_ptr.vmem [resolvable:$true] %s25
      %31 = dma.hbm_to_vmem [thread:$0]  %s0, 1024, %s26, [#allocation3], 512, 512, 32
    $region5: #{tpu_custom_call.1} parent=1 // pred_fallthru
      _
    // Predicated region
    $region6: #{tpu_custom_call.1} parent=1 // pred_check
      _
    $region7: #{tpu_custom_call.1} parent=1 // pred_check_branch
      %33 = sbr.rel (0) target = $region9
    $region8: #{tpu_custom_call.1} parent=1 // pred_region
      %s35 = ssub.s32 1024, 1024
      %36 = vsyncadd [#allocation6], %s35
      %s37 = sshll.u32 [#allocation5], 4
      %s38 = int_to_ptr.vmem [resolvable:$true] %s37
      %43 = dma.hbm_to_vmem [thread:$0]  %s1, 1024, %s38, [#allocation6], 512, 512, 32
    $region9: #{tpu_custom_call.1} parent=1 // pred_fallthru
      _
    // Predicated region
    $region10: #{tpu_custom_call.1} parent=1 // pred_check
      _
    $region11: #{tpu_custom_call.1} parent=1 // pred_check_branch
      %45 = sbr.rel (0) target = $region13
    $region12: #{tpu_custom_call.1} parent=1 // pred_region
      %s47 = ssub.s32 65536, 65536
      %48 = vsyncadd [#allocation6], %s47
      %s49 = sshll.u32 [#allocation7], 4
      %s50 = int_to_ptr.vmem [resolvable:$true] %s49
      %55 = dma.hbm_to_vmem [thread:$0]  %s2, 65536, %s50, [#allocation6], 512, 512, 32
    $region13: #{tpu_custom_call.1} parent=1 // pred_fallthru
      _
    // Predicated region
    $region14: #{tpu_custom_call.1} parent=1 // pred_check
      _
    $region15: #{tpu_custom_call.1} parent=1 // pred_check_branch
      %57 = sbr.rel (0) target = $region17
    $region16: #{tpu_custom_call.1} parent=1 // pred_region
      %s59 = ssub.s32 65536, 65536
      %60 = vsyncadd [#allocation9], %s59
      %s61 = sshll.u32 [#allocation8], 4
      %s62 = int_to_ptr.vmem [resolvable:$true] %s61
      %67 = dma.hbm_to_vmem [thread:$0]  %s3, 65536, %s62, [#allocation9], 512, 512, 32
    $region17: #{tpu_custom_call.1} parent=1 // pred_fallthru
      _
    // Predicated region
    $region18: #{tpu_custom_call.1} parent=1 // pred_check
      _
    $region19: #{tpu_custom_call.1} parent=1 // pred_check_branch
      %69 = sbr.rel (0) target = $region21
    $region20: #{tpu_custom_call.1} parent=1 // pred_region
      %s71 = ssub.s32 128, 128
      %72 = vsyncadd [#allocation9], %s71
      %s74 = sshll.u32 [#allocation10], 4
      %s75 = int_to_ptr.vmem [resolvable:$true] %s74
      %77 = dma.hbm_to_vmem [thread:$0]  %s4, 128, %s75, [#allocation9]
    $region21: #{tpu_custom_call.1} parent=1 // pred_fallthru
      _
    // Predicated region
    $region22: #{tpu_custom_call.1} parent=1 // pred_check
      _
    $region23: #{tpu_custom_call.1} parent=1 // pred_check_branch
      %79 = sbr.rel (0) target = $region25
    $region24: #{tpu_custom_call.1} parent=1 // pred_region
      %s81 = ssub.s32 65536, 65536
      %82 = vsyncadd [#allocation12], %s81
      %s83 = sshll.u32 [#allocation11], 4
      %s84 = int_to_ptr.vmem [resolvable:$true] %s83
      %89 = dma.hbm_to_vmem [thread:$0]  %s5, 65536, %s84, [#allocation12], 512, 512, 32
    $region25: #{tpu_custom_call.1} parent=1 // pred_fallthru
      _
    // Predicated region
    $region26: #{tpu_custom_call.1} parent=1 // pred_check
      _
    $region27: #{tpu_custom_call.1} parent=1 // pred_check_branch
      %91 = sbr.rel (0) target = $region29
    $region28: #{tpu_custom_call.1} parent=1 // pred_region
      %s93 = ssub.s32 128, 128
      %94 = vsyncadd [#allocation12], %s93
      %s96 = sshll.u32 [#allocation13], 4
      %s97 = int_to_ptr.vmem [resolvable:$true] %s96
      %99 = dma.hbm_to_vmem [thread:$0]  %s6, 128, %s97, [#allocation12]
    $region29: #{tpu_custom_call.1} parent=1 // pred_fallthru
      _
    // Predicated region
    $region30: #{tpu_custom_call.1} parent=1 // pred_check
      _
    $region31: #{tpu_custom_call.1} parent=1 // pred_check_branch
      %101 = sbr.rel (0) target = $region33
    $region32: #{tpu_custom_call.1} parent=1 // pred_region
      %s103 = ssub.s32 8192, 8192
      %104 = vsyncadd [#allocation15], %s103
      %s105 = sshll.u32 [#allocation14], 4
      %s106 = int_to_ptr.vmem [resolvable:$true] %s105
      %111 = dma.hbm_to_vmem [thread:$0]  %s7, 8192, %s106, [#allocation15], 64, 64, 4
    $region33: #{tpu_custom_call.1} parent=1 // pred_fallthru
      _
    // Predicated region
    $region34: #{tpu_custom_call.1} parent=1 // pred_check
      _
    $region35: #{tpu_custom_call.1} parent=1 // pred_check_branch
      %113 = sbr.rel (0) target = $region37
    $region36: #{tpu_custom_call.1} parent=1 // pred_region
      %s115 = ssub.s32 16, 16
      %116 = vsyncadd [#allocation15], %s115
      %s118 = sshll.u32 [#allocation16], 4
      %s119 = int_to_ptr.vmem [resolvable:$true] %s118
      %121 = dma.hbm_to_vmem [thread:$0]  %s8, 16, %s119, [#allocation15]
    $region37: #{tpu_custom_call.1} parent=1 // pred_fallthru
      _
    // Predicated region
    $region38: #{tpu_custom_call.1} parent=1 // pred_check
      _
    $region39: #{tpu_custom_call.1} parent=1 // pred_check_branch
      %123 = sbr.rel (0) target = $region41
    $region40: #{tpu_custom_call.1} parent=1 // pred_region
      %124 = dma.done [#allocation3], 1024
    $region41: #{tpu_custom_call.1} parent=1 // pred_fallthru
      _
    // Predicated region
    $region42: #{tpu_custom_call.1} parent=1 // pred_check
      _
    $region43: #{tpu_custom_call.1} parent=1 // pred_check_branch
      %126 = sbr.rel (0) target = $region45
    $region44: #{tpu_custom_call.1} parent=1 // pred_region
      %127 = dma.done [#allocation6], 1024
    $region45: #{tpu_custom_call.1} parent=1 // pred_fallthru
      _
    // Predicated region
    $region46: #{tpu_custom_call.1} parent=1 // pred_check
      _
    $region47: #{tpu_custom_call.1} parent=1 // pred_check_branch
      %129 = sbr.rel (0) target = $region49
    $region48: #{tpu_custom_call.1} parent=1 // pred_region
      %130 = dma.done [#allocation6], 65536
    $region49: #{tpu_custom_call.1} parent=1 // pred_fallthru
      _
    // Predicated region
    $region50: #{tpu_custom_call.1} parent=1 // pred_check
      _
    $region51: #{tpu_custom_call.1} parent=1 // pred_check_branch
      %132 = sbr.rel (0) target = $region53
    $region52: #{tpu_custom_call.1} parent=1 // pred_region
      %133 = dma.done [#allocation9], 65536
    $region53: #{tpu_custom_call.1} parent=1 // pred_fallthru
      _
    // Predicated region
    $region54: #{tpu_custom_call.1} parent=1 // pred_check
      _
    $region55: #{tpu_custom_call.1} parent=1 // pred_check_branch
      %135 = sbr.rel (0) target = $region57
    $region56: #{tpu_custom_call.1} parent=1 // pred_region
      %136 = dma.done [#allocation9], 128
    $region57: #{tpu_custom_call.1} parent=1 // pred_fallthru
      _
    // Predicated region
    $region58: #{tpu_custom_call.1} parent=1 // pred_check
      _
    $region59: #{tpu_custom_call.1} parent=1 // pred_check_branch
      %138 = sbr.rel (0) target = $region61
    $region60: #{tpu_custom_call.1} parent=1 // pred_region
      %139 = dma.done [#allocation12], 65536
    $region61: #{tpu_custom_call.1} parent=1 // pred_fallthru
      _
    // Predicated region
    $region62: #{tpu_custom_call.1} parent=1 // pred_check
      _
    $region63: #{tpu_custom_call.1} parent=1 // pred_check_branch
      %141 = sbr.rel (0) target = $region65
    $region64: #{tpu_custom_call.1} parent=1 // pred_region
      %142 = dma.done [#allocation12], 128
    $region65: #{tpu_custom_call.1} parent=1 // pred_fallthru
      _
    // Predicated region
    $region66: #{tpu_custom_call.1} parent=1 // pred_check
      _
    $region67: #{tpu_custom_call.1} parent=1 // pred_check_branch
      %144 = sbr.rel (0) target = $region69
    $region68: #{tpu_custom_call.1} parent=1 // pred_region
      %145 = dma.done [#allocation15], 8192
    $region69: #{tpu_custom_call.1} parent=1 // pred_fallthru
      _
    // Predicated region
    $region70: #{tpu_custom_call.1} parent=1 // pred_check
      _
    $region71: #{tpu_custom_call.1} parent=1 // pred_check_branch
      %147 = sbr.rel (0) target = $region73
    $region72: #{tpu_custom_call.1} parent=1 // pred_region
      %148 = dma.done [#allocation15], 16
    $region73: #{tpu_custom_call.1} parent=1 // pred_fallthru
      _
    %v150 = vld [vmem:[#allocation2] sm:$0xff]
    %v151 = vld [vmem:[#allocation2 + $0x8] sm:$0xff]
    %v152 = vld [vmem:[#allocation2 + $0x10] sm:$0xff]
    %v153 = vld [vmem:[#allocation2 + $0x18] sm:$0xff]
    %v154 = vld [vmem:[#allocation2 + $0x20] sm:$0xff]
    %v155 = vld [vmem:[#allocation2 + $0x28] sm:$0xff]
    %v156 = vld [vmem:[#allocation2 + $0x30] sm:$0xff]
    %v157 = vld [vmem:[#allocation2 + $0x38] sm:$0xff]
    %v158 = vld [vmem:[#allocation5] sm:$0xff]
    %v159 = vld [vmem:[#allocation5 + $0x8] sm:$0xff]
    %v160 = vld [vmem:[#allocation5 + $0x10] sm:$0xff]
    %v161 = vld [vmem:[#allocation5 + $0x18] sm:$0xff]
    %v162 = vld [vmem:[#allocation5 + $0x20] sm:$0xff]
    %v163 = vld [vmem:[#allocation5 + $0x28] sm:$0xff]
    %v164 = vld [vmem:[#allocation5 + $0x30] sm:$0xff]
    %v165 = vld [vmem:[#allocation5 + $0x38] sm:$0xff]
    %v166 = vld [vmem:[#allocation7] sm:$0xff]
    %v167 = vld [vmem:[#allocation7 + $0x8] sm:$0xff]
    %v168 = vld [vmem:[#allocation7 + $0x10] sm:$0xff]
    %v169 = vld [vmem:[#allocation7 + $0x18] sm:$0xff]
    %v170 = vld [vmem:[#allocation7 + $0x20] sm:$0xff]
    %v171 = vld [vmem:[#allocation7 + $0x28] sm:$0xff]
    %v172 = vld [vmem:[#allocation7 + $0x30] sm:$0xff]
    %v173 = vld [vmem:[#allocation7 + $0x38] sm:$0xff]
    %v174 = vld [vmem:[#allocation7 + $0x40] sm:$0xff]
    %v175 = vld [vmem:[#allocation7 + $0x48] sm:$0xff]
    %v176 = vld [vmem:[#allocation7 + $0x50] sm:$0xff]
    %v177 = vld [vmem:[#allocation7 + $0x58] sm:$0xff]
    %v178 = vld [vmem:[#allocation7 + $0x60] sm:$0xff]
    %v179 = vld [vmem:[#allocation7 + $0x68] sm:$0xff]
    %v180 = vld [vmem:[#allocation7 + $0x70] sm:$0xff]
    %v181 = vld [vmem:[#allocation7 + $0x78] sm:$0xff]
    %v182 = vld [vmem:[#allocation7 + $0x80] sm:$0xff]
    %v183 = vld [vmem:[#allocation7 + $0x88] sm:$0xff]
    %v184 = vld [vmem:[#allocation7 + $0x90] sm:$0xff]
    %v185 = vld [vmem:[#allocation7 + $0x98] sm:$0xff]
    %v186 = vld [vmem:[#allocation7 + $0xa0] sm:$0xff]
    %v187 = vld [vmem:[#allocation7 + $0xa8] sm:$0xff]
    %v188 = vld [vmem:[#allocation7 + $0xb0] sm:$0xff]
    %v189 = vld [vmem:[#allocation7 + $0xb8] sm:$0xff]
    %v190 = vld [vmem:[#allocation7 + $0xc0] sm:$0xff]
    %v191 = vld [vmem:[#allocation7 + $0xc8] sm:$0xff]
    %v192 = vld [vmem:[#allocation7 + $0xd0] sm:$0xff]
    %v193 = vld [vmem:[#allocation7 + $0xd8] sm:$0xff]
    %v194 = vld [vmem:[#allocation7 + $0xe0] sm:$0xff]
    %v195 = vld [vmem:[#allocation7 + $0xe8] sm:$0xff]
    %v196 = vld [vmem:[#allocation7 + $0xf0] sm:$0xff]
    %v197 = vld [vmem:[#allocation7 + $0xf8] sm:$0xff]
    %v198 = vld [vmem:[#allocation7 + $0x100] sm:$0xff]
    %v199 = vld [vmem:[#allocation7 + $0x108] sm:$0xff]
    %v200 = vld [vmem:[#allocation7 + $0x110] sm:$0xff]
    %v201 = vld [vmem:[#allocation7 + $0x118] sm:$0xff]
    %v202 = vld [vmem:[#allocation7 + $0x120] sm:$0xff]
    %v203 = vld [vmem:[#allocation7 + $0x128] sm:$0xff]
    %v204 = vld [vmem:[#allocation7 + $0x130] sm:$0xff]
    %v205 = vld [vmem:[#allocation7 + $0x138] sm:$0xff]
    %v206 = vld [vmem:[#allocation7 + $0x140] sm:$0xff]
    %v207 = vld [vmem:[#allocation7 + $0x148] sm:$0xff]
    %v208 = vld [vmem:[#allocation7 + $0x150] sm:$0xff]
    %v209 = vld [vmem:[#allocation7 + $0x158] sm:$0xff]
    %v210 = vld [vmem:[#allocation7 + $0x160] sm:$0xff]
    %v211 = vld [vmem:[#allocation7 + $0x168] sm:$0xff]
    %v212 = vld [vmem:[#allocation7 + $0x170] sm:$0xff]
    %v213 = vld [vmem:[#allocation7 + $0x178] sm:$0xff]
    %v214 = vld [vmem:[#allocation7 + $0x180] sm:$0xff]
    %v215 = vld [vmem:[#allocation7 + $0x188] sm:$0xff]
    %v216 = vld [vmem:[#allocation7 + $0x190] sm:$0xff]
    %v217 = vld [vmem:[#allocation7 + $0x198] sm:$0xff]
    %v218 = vld [vmem:[#allocation7 + $0x1a0] sm:$0xff]
    %v219 = vld [vmem:[#allocation7 + $0x1a8] sm:$0xff]
    %v220 = vld [vmem:[#allocation7 + $0x1b0] sm:$0xff]
    %v221 = vld [vmem:[#allocation7 + $0x1b8] sm:$0xff]
    %v222 = vld [vmem:[#allocation7 + $0x1c0] sm:$0xff]
    %v223 = vld [vmem:[#allocation7 + $0x1c8] sm:$0xff]
    %v224 = vld [vmem:[#allocation7 + $0x1d0] sm:$0xff]
    %v225 = vld [vmem:[#allocation7 + $0x1d8] sm:$0xff]
    %v226 = vld [vmem:[#allocation7 + $0x1e0] sm:$0xff]
    %v227 = vld [vmem:[#allocation7 + $0x1e8] sm:$0xff]
    %v228 = vld [vmem:[#allocation7 + $0x1f0] sm:$0xff]
    %v229 = vld [vmem:[#allocation7 + $0x1f8] sm:$0xff]
    %v230 = vld [vmem:[#allocation7 + $0x200] sm:$0xff]
    %v231 = vld [vmem:[#allocation7 + $0x208] sm:$0xff]
    %v232 = vld [vmem:[#allocation7 + $0x210] sm:$0xff]
    %v233 = vld [vmem:[#allocation7 + $0x218] sm:$0xff]
    %v234 = vld [vmem:[#allocation7 + $0x220] sm:$0xff]
    %v235 = vld [vmem:[#allocation7 + $0x228] sm:$0xff]
    %v236 = vld [vmem:[#allocation7 + $0x230] sm:$0xff]
    %v237 = vld [vmem:[#allocation7 + $0x238] sm:$0xff]
    %v238 = vld [vmem:[#allocation7 + $0x240] sm:$0xff]
    %v239 = vld [vmem:[#allocation7 + $0x248] sm:$0xff]
    %v240 = vld [vmem:[#allocation7 + $0x250] sm:$0xff]
    %v241 = vld [vmem:[#allocation7 + $0x258] sm:$0xff]
    %v242 = vld [vmem:[#allocation7 + $0x260] sm:$0xff]
    %v243 = vld [vmem:[#allocation7 + $0x268] sm:$0xff]
    %v244 = vld [vmem:[#allocation7 + $0x270] sm:$0xff]
    %v245 = vld [vmem:[#allocation7 + $0x278] sm:$0xff]
    %v246 = vld [vmem:[#allocation7 + $0x280] sm:$0xff]
    %v247 = vld [vmem:[#allocation7 + $0x288] sm:$0xff]
    %v248 = vld [vmem:[#allocation7 + $0x290] sm:$0xff]
    %v249 = vld [vmem:[#allocation7 + $0x298] sm:$0xff]
    %v250 = vld [vmem:[#allocation7 + $0x2a0] sm:$0xff]
    %v251 = vld [vmem:[#allocation7 + $0x2a8] sm:$0xff]
    %v252 = vld [vmem:[#allocation7 + $0x2b0] sm:$0xff]
    %v253 = vld [vmem:[#allocation7 + $0x2b8] sm:$0xff]
    %v254 = vld [vmem:[#allocation7 + $0x2c0] sm:$0xff]
    %v255 = vld [vmem:[#allocation7 + $0x2c8] sm:$0xff]
    %v256 = vld [vmem:[#allocation7 + $0x2d0] sm:$0xff]
    %v257 = vld [vmem:[#allocation7 + $0x2d8] sm:$0xff]
    %v258 = vld [vmem:[#allocation7 + $0x2e0] sm:$0xff]
    %v259 = vld [vmem:[#allocation7 + $0x2e8] sm:$0xff]
    %v260 = vld [vmem:[#allocation7 + $0x2f0] sm:$0xff]
    %v261 = vld [vmem:[#allocation7 + $0x2f8] sm:$0xff]
    %v262 = vld [vmem:[#allocation7 + $0x300] sm:$0xff]
    %v263 = vld [vmem:[#allocation7 + $0x308] sm:$0xff]
    %v264 = vld [vmem:[#allocation7 + $0x310] sm:$0xff]
    %v265 = vld [vmem:[#allocation7 + $0x318] sm:$0xff]
    %v266 = vld [vmem:[#allocation7 + $0x320] sm:$0xff]
    %v267 = vld [vmem:[#allocation7 + $0x328] sm:$0xff]
    %v268 = vld [vmem:[#allocation7 + $0x330] sm:$0xff]
    %v269 = vld [vmem:[#allocation7 + $0x338] sm:$0xff]
    %v270 = vld [vmem:[#allocation7 + $0x340] sm:$0xff]
    %v271 = vld [vmem:[#allocation7 + $0x348] sm:$0xff]
    %v272 = vld [vmem:[#allocation7 + $0x350] sm:$0xff]
    %v273 = vld [vmem:[#allocation7 + $0x358] sm:$0xff]
    %v274 = vld [vmem:[#allocation7 + $0x360] sm:$0xff]
    %v275 = vld [vmem:[#allocation7 + $0x368] sm:$0xff]
    %v276 = vld [vmem:[#allocation7 + $0x370] sm:$0xff]
    %v277 = vld [vmem:[#allocation7 + $0x378] sm:$0xff]
    %v278 = vld [vmem:[#allocation7 + $0x380] sm:$0xff]
    %v279 = vld [vmem:[#allocation7 + $0x388] sm:$0xff]
    %v280 = vld [vmem:[#allocation7 + $0x390] sm:$0xff]
    %v281 = vld [vmem:[#allocation7 + $0x398] sm:$0xff]
    %v282 = vld [vmem:[#allocation7 + $0x3a0] sm:$0xff]
    %v283 = vld [vmem:[#allocation7 + $0x3a8] sm:$0xff]
    %v284 = vld [vmem:[#allocation7 + $0x3b0] sm:$0xff]
    %v285 = vld [vmem:[#allocation7 + $0x3b8] sm:$0xff]
    %v286 = vld [vmem:[#allocation7 + $0x3c0] sm:$0xff]
    %v287 = vld [vmem:[#allocation7 + $0x3c8] sm:$0xff]
    %v288 = vld [vmem:[#allocation7 + $0x3d0] sm:$0xff]
    %v289 = vld [vmem:[#allocation7 + $0x3d8] sm:$0xff]
    %v290 = vld [vmem:[#allocation7 + $0x3e0] sm:$0xff]
    %v291 = vld [vmem:[#allocation7 + $0x3e8] sm:$0xff]
    %v292 = vld [vmem:[#allocation7 + $0x3f0] sm:$0xff]
    %v293 = vld [vmem:[#allocation7 + $0x3f8] sm:$0xff]
    %v294 = vld [vmem:[#allocation7 + $0x400] sm:$0xff]
    %v295 = vld [vmem:[#allocation7 + $0x408] sm:$0xff]
    %v296 = vld [vmem:[#allocation7 + $0x410] sm:$0xff]
    %v297 = vld [vmem:[#allocation7 + $0x418] sm:$0xff]
    %v298 = vld [vmem:[#allocation7 + $0x420] sm:$0xff]
    %v299 = vld [vmem:[#allocation7 + $0x428] sm:$0xff]
    %v300 = vld [vmem:[#allocation7 + $0x430] sm:$0xff]
    %v301 = vld [vmem:[#allocation7 + $0x438] sm:$0xff]
    %v302 = vld [vmem:[#allocation7 + $0x440] sm:$0xff]
    %v303 = vld [vmem:[#allocation7 + $0x448] sm:$0xff]
    %v304 = vld [vmem:[#allocation7 + $0x450] sm:$0xff]
    %v305 = vld [vmem:[#allocation7 + $0x458] sm:$0xff]
    %v306 = vld [vmem:[#allocation7 + $0x460] sm:$0xff]
    %v307 = vld [vmem:[#allocation7 + $0x468] sm:$0xff]
    %v308 = vld [vmem:[#allocation7 + $0x470] sm:$0xff]
    %v309 = vld [vmem:[#allocation7 + $0x478] sm:$0xff]
    %v310 = vld [vmem:[#allocation7 + $0x480] sm:$0xff]
    %v311 = vld [vmem:[#allocation7 + $0x488] sm:$0xff]
    %v312 = vld [vmem:[#allocation7 + $0x490] sm:$0xff]
    %v313 = vld [vmem:[#allocation7 + $0x498] sm:$0xff]
    %v314 = vld [vmem:[#allocation7 + $0x4a0] sm:$0xff]
    %v315 = vld [vmem:[#allocation7 + $0x4a8] sm:$0xff]
    %v316 = vld [vmem:[#allocation7 + $0x4b0] sm:$0xff]
    %v317 = vld [vmem:[#allocation7 + $0x4b8] sm:$0xff]
    %v318 = vld [vmem:[#allocation7 + $0x4c0] sm:$0xff]
    %v319 = vld [vmem:[#allocation7 + $0x4c8] sm:$0xff]
    %v320 = vld [vmem:[#allocation7 + $0x4d0] sm:$0xff]
    %v321 = vld [vmem:[#allocation7 + $0x4d8] sm:$0xff]
    %v322 = vld [vmem:[#allocation7 + $0x4e0] sm:$0xff]
    %v323 = vld [vmem:[#allocation7 + $0x4e8] sm:$0xff]
    %v324 = vld [vmem:[#allocation7 + $0x4f0] sm:$0xff]
    %v325 = vld [vmem:[#allocation7 + $0x4f8] sm:$0xff]
    %v326 = vld [vmem:[#allocation7 + $0x500] sm:$0xff]
    %v327 = vld [vmem:[#allocation7 + $0x508] sm:$0xff]
    %v328 = vld [vmem:[#allocation7 + $0x510] sm:$0xff]
    %v329 = vld [vmem:[#allocation7 + $0x518] sm:$0xff]
    %v330 = vld [vmem:[#allocation7 + $0x520] sm:$0xff]
    %v331 = vld [vmem:[#allocation7 + $0x528] sm:$0xff]
    %v332 = vld [vmem:[#allocation7 + $0x530] sm:$0xff]
    %v333 = vld [vmem:[#allocation7 + $0x538] sm:$0xff]
    %v334 = vld [vmem:[#allocation7 + $0x540] sm:$0xff]
    %v335 = vld [vmem:[#allocation7 + $0x548] sm:$0xff]
    %v336 = vld [vmem:[#allocation7 + $0x550] sm:$0xff]
    %v337 = vld [vmem:[#allocation7 + $0x558] sm:$0xff]
    %v338 = vld [vmem:[#allocation7 + $0x560] sm:$0xff]
    %v339 = vld [vmem:[#allocation7 + $0x568] sm:$0xff]
    %v340 = vld [vmem:[#allocation7 + $0x570] sm:$0xff]
    %v341 = vld [vmem:[#allocation7 + $0x578] sm:$0xff]
    %v342 = vld [vmem:[#allocation7 + $0x580] sm:$0xff]
    %v343 = vld [vmem:[#allocation7 + $0x588] sm:$0xff]
    %v344 = vld [vmem:[#allocation7 + $0x590] sm:$0xff]
    %v345 = vld [vmem:[#allocation7 + $0x598] sm:$0xff]
    %v346 = vld [vmem:[#allocation7 + $0x5a0] sm:$0xff]
    %v347 = vld [vmem:[#allocation7 + $0x5a8] sm:$0xff]
    %v348 = vld [vmem:[#allocation7 + $0x5b0] sm:$0xff]
    %v349 = vld [vmem:[#allocation7 + $0x5b8] sm:$0xff]
    %v350 = vld [vmem:[#allocation7 + $0x5c0] sm:$0xff]
    %v351 = vld [vmem:[#allocation7 + $0x5c8] sm:$0xff]
    %v352 = vld [vmem:[#allocation7 + $0x5d0] sm:$0xff]
    %v353 = vld [vmem:[#allocation7 + $0x5d8] sm:$0xff]
    %v354 = vld [vmem:[#allocation7 + $0x5e0] sm:$0xff]
    %v355 = vld [vmem:[#allocation7 + $0x5e8] sm:$0xff]
    %v356 = vld [vmem:[#allocation7 + $0x5f0] sm:$0xff]
    %v357 = vld [vmem:[#allocation7 + $0x5f8] sm:$0xff]
    %v358 = vld [vmem:[#allocation7 + $0x600] sm:$0xff]
    %v359 = vld [vmem:[#allocation7 + $0x608] sm:$0xff]
    %v360 = vld [vmem:[#allocation7 + $0x610] sm:$0xff]
    %v361 = vld [vmem:[#allocation7 + $0x618] sm:$0xff]
    %v362 = vld [vmem:[#allocation7 + $0x620] sm:$0xff]
    %v363 = vld [vmem:[#allocation7 + $0x628] sm:$0xff]
    %v364 = vld [vmem:[#allocation7 + $0x630] sm:$0xff]
    %v365 = vld [vmem:[#allocation7 + $0x638] sm:$0xff]
    %v366 = vld [vmem:[#allocation7 + $0x640] sm:$0xff]
    %v367 = vld [vmem:[#allocation7 + $0x648] sm:$0xff]
    %v368 = vld [vmem:[#allocation7 + $0x650] sm:$0xff]
    %v369 = vld [vmem:[#allocation7 + $0x658] sm:$0xff]
    %v370 = vld [vmem:[#allocation7 + $0x660] sm:$0xff]
    %v371 = vld [vmem:[#allocation7 + $0x668] sm:$0xff]
    %v372 = vld [vmem:[#allocation7 + $0x670] sm:$0xff]
    %v373 = vld [vmem:[#allocation7 + $0x678] sm:$0xff]
    %v374 = vld [vmem:[#allocation7 + $0x680] sm:$0xff]
    %v375 = vld [vmem:[#allocation7 + $0x688] sm:$0xff]
    %v376 = vld [vmem:[#allocation7 + $0x690] sm:$0xff]
    %v377 = vld [vmem:[#allocation7 + $0x698] sm:$0xff]
    %v378 = vld [vmem:[#allocation7 + $0x6a0] sm:$0xff]
    %v379 = vld [vmem:[#allocation7 + $0x6a8] sm:$0xff]
    %v380 = vld [vmem:[#allocation7 + $0x6b0] sm:$0xff]
    %v381 = vld [vmem:[#allocation7 + $0x6b8] sm:$0xff]
    %v382 = vld [vmem:[#allocation7 + $0x6c0] sm:$0xff]
    %v383 = vld [vmem:[#allocation7 + $0x6c8] sm:$0xff]
    %v384 = vld [vmem:[#allocation7 + $0x6d0] sm:$0xff]
    %v385 = vld [vmem:[#allocation7 + $0x6d8] sm:$0xff]
    %v386 = vld [vmem:[#allocation7 + $0x6e0] sm:$0xff]
    %v387 = vld [vmem:[#allocation7 + $0x6e8] sm:$0xff]
    %v388 = vld [vmem:[#allocation7 + $0x6f0] sm:$0xff]
    %v389 = vld [vmem:[#allocation7 + $0x6f8] sm:$0xff]
    %v390 = vld [vmem:[#allocation7 + $0x700] sm:$0xff]
    %v391 = vld [vmem:[#allocation7 + $0x708] sm:$0xff]
    %v392 = vld [vmem:[#allocation7 + $0x710] sm:$0xff]
    %v393 = vld [vmem:[#allocation7 + $0x718] sm:$0xff]
    %v394 = vld [vmem:[#allocation7 + $0x720] sm:$0xff]
    %v395 = vld [vmem:[#allocation7 + $0x728] sm:$0xff]
    %v396 = vld [vmem:[#allocation7 + $0x730] sm:$0xff]
    %v397 = vld [vmem:[#allocation7 + $0x738] sm:$0xff]
    %v398 = vld [vmem:[#allocation7 + $0x740] sm:$0xff]
    %v399 = vld [vmem:[#allocation7 + $0x748] sm:$0xff]
    %v400 = vld [vmem:[#allocation7 + $0x750] sm:$0xff]
    %v401 = vld [vmem:[#allocation7 + $0x758] sm:$0xff]
    %v402 = vld [vmem:[#allocation7 + $0x760] sm:$0xff]
    %v403 = vld [vmem:[#allocation7 + $0x768] sm:$0xff]
    %v404 = vld [vmem:[#allocation7 + $0x770] sm:$0xff]
    %v405 = vld [vmem:[#allocation7 + $0x778] sm:$0xff]
    %v406 = vld [vmem:[#allocation7 + $0x780] sm:$0xff]
    %v407 = vld [vmem:[#allocation7 + $0x788] sm:$0xff]
    %v408 = vld [vmem:[#allocation7 + $0x790] sm:$0xff]
    %v409 = vld [vmem:[#allocation7 + $0x798] sm:$0xff]
    %v410 = vld [vmem:[#allocation7 + $0x7a0] sm:$0xff]
    %v411 = vld [vmem:[#allocation7 + $0x7a8] sm:$0xff]
    %v412 = vld [vmem:[#allocation7 + $0x7b0] sm:$0xff]
    %v413 = vld [vmem:[#allocation7 + $0x7b8] sm:$0xff]
    %v414 = vld [vmem:[#allocation7 + $0x7c0] sm:$0xff]
    %v415 = vld [vmem:[#allocation7 + $0x7c8] sm:$0xff]
    %v416 = vld [vmem:[#allocation7 + $0x7d0] sm:$0xff]
    %v417 = vld [vmem:[#allocation7 + $0x7d8] sm:$0xff]
    %v418 = vld [vmem:[#allocation7 + $0x7e0] sm:$0xff]
    %v419 = vld [vmem:[#allocation7 + $0x7e8] sm:$0xff]
    %v420 = vld [vmem:[#allocation7 + $0x7f0] sm:$0xff]
    %v421 = vld [vmem:[#allocation7 + $0x7f8] sm:$0xff]
    %v422 = vld [vmem:[#allocation7 + $0x800] sm:$0xff]
    %v423 = vld [vmem:[#allocation7 + $0x808] sm:$0xff]
    %v424 = vld [vmem:[#allocation7 + $0x810] sm:$0xff]
    %v425 = vld [vmem:[#allocation7 + $0x818] sm:$0xff]
    %v426 = vld [vmem:[#allocation7 + $0x820] sm:$0xff]
    %v427 = vld [vmem:[#allocation7 + $0x828] sm:$0xff]
    %v428 = vld [vmem:[#allocation7 + $0x830] sm:$0xff]
    %v429 = vld [vmem:[#allocation7 + $0x838] sm:$0xff]
    %v430 = vld [vmem:[#allocation7 + $0x840] sm:$0xff]
    %v431 = vld [vmem:[#allocation7 + $0x848] sm:$0xff]
    %v432 = vld [vmem:[#allocation7 + $0x850] sm:$0xff]
    %v433 = vld [vmem:[#allocation7 + $0x858] sm:$0xff]
    %v434 = vld [vmem:[#allocation7 + $0x860] sm:$0xff]
    %v435 = vld [vmem:[#allocation7 + $0x868] sm:$0xff]
    %v436 = vld [vmem:[#allocation7 + $0x870] sm:$0xff]
    %v437 = vld [vmem:[#allocation7 + $0x878] sm:$0xff]
    %v438 = vld [vmem:[#allocation7 + $0x880] sm:$0xff]
    %v439 = vld [vmem:[#allocation7 + $0x888] sm:$0xff]
    %v440 = vld [vmem:[#allocation7 + $0x890] sm:$0xff]
    %v441 = vld [vmem:[#allocation7 + $0x898] sm:$0xff]
    %v442 = vld [vmem:[#allocation7 + $0x8a0] sm:$0xff]
    %v443 = vld [vmem:[#allocation7 + $0x8a8] sm:$0xff]
    %v444 = vld [vmem:[#allocation7 + $0x8b0] sm:$0xff]
    %v445 = vld [vmem:[#allocation7 + $0x8b8] sm:$0xff]
    %v446 = vld [vmem:[#allocation7 + $0x8c0] sm:$0xff]
    %v447 = vld [vmem:[#allocation7 + $0x8c8] sm:$0xff]
    %v448 = vld [vmem:[#allocation7 + $0x8d0] sm:$0xff]
    %v449 = vld [vmem:[#allocation7 + $0x8d8] sm:$0xff]
    %v450 = vld [vmem:[#allocation7 + $0x8e0] sm:$0xff]
    %v451 = vld [vmem:[#allocation7 + $0x8e8] sm:$0xff]
    %v452 = vld [vmem:[#allocation7 + $0x8f0] sm:$0xff]
    %v453 = vld [vmem:[#allocation7 + $0x8f8] sm:$0xff]
    %v454 = vld [vmem:[#allocation7 + $0x900] sm:$0xff]
    %v455 = vld [vmem:[#allocation7 + $0x908] sm:$0xff]
    %v456 = vld [vmem:[#allocation7 + $0x910] sm:$0xff]
    %v457 = vld [vmem:[#allocation7 + $0x918] sm:$0xff]
    %v458 = vld [vmem:[#allocation7 + $0x920] sm:$0xff]
    %v459 = vld [vmem:[#allocation7 + $0x928] sm:$0xff]
    %v460 = vld [vmem:[#allocation7 + $0x930] sm:$0xff]
    %v461 = vld [vmem:[#allocation7 + $0x938] sm:$0xff]
    %v462 = vld [vmem:[#allocation7 + $0x940] sm:$0xff]
    %v463 = vld [vmem:[#allocation7 + $0x948] sm:$0xff]
    %v464 = vld [vmem:[#allocation7 + $0x950] sm:$0xff]
    %v465 = vld [vmem:[#allocation7 + $0x958] sm:$0xff]
    %v466 = vld [vmem:[#allocation7 + $0x960] sm:$0xff]
    %v467 = vld [vmem:[#allocation7 + $0x968] sm:$0xff]
    %v468 = vld [vmem:[#allocation7 + $0x970] sm:$0xff]
    %v469 = vld [vmem:[#allocation7 + $0x978] sm:$0xff]
    %v470 = vld [vmem:[#allocation7 + $0x980] sm:$0xff]
    %v471 = vld [vmem:[#allocation7 + $0x988] sm:$0xff]
    %v472 = vld [vmem:[#allocation7 + $0x990] sm:$0xff]
    %v473 = vld [vmem:[#allocation7 + $0x998] sm:$0xff]
    %v474 = vld [vmem:[#allocation7 + $0x9a0] sm:$0xff]
    %v475 = vld [vmem:[#allocation7 + $0x9a8] sm:$0xff]
    %v476 = vld [vmem:[#allocation7 + $0x9b0] sm:$0xff]
    %v477 = vld [vmem:[#allocation7 + $0x9b8] sm:$0xff]
    %v478 = vld [vmem:[#allocation7 + $0x9c0] sm:$0xff]
    %v479 = vld [vmem:[#allocation7 + $0x9c8] sm:$0xff]
    %v480 = vld [vmem:[#allocation7 + $0x9d0] sm:$0xff]
    %v481 = vld [vmem:[#allocation7 + $0x9d8] sm:$0xff]
    %v482 = vld [vmem:[#allocation7 + $0x9e0] sm:$0xff]
    %v483 = vld [vmem:[#allocation7 + $0x9e8] sm:$0xff]
    %v484 = vld [vmem:[#allocation7 + $0x9f0] sm:$0xff]
    %v485 = vld [vmem:[#allocation7 + $0x9f8] sm:$0xff]
    %v486 = vld [vmem:[#allocation7 + $0xa00] sm:$0xff]
    %v487 = vld [vmem:[#allocation7 + $0xa08] sm:$0xff]
    %v488 = vld [vmem:[#allocation7 + $0xa10] sm:$0xff]
    %v489 = vld [vmem:[#allocation7 + $0xa18] sm:$0xff]
    %v490 = vld [vmem:[#allocation7 + $0xa20] sm:$0xff]
    %v491 = vld [vmem:[#allocation7 + $0xa28] sm:$0xff]
    %v492 = vld [vmem:[#allocation7 + $0xa30] sm:$0xff]
    %v493 = vld [vmem:[#allocation7 + $0xa38] sm:$0xff]
    %v494 = vld [vmem:[#allocation7 + $0xa40] sm:$0xff]
    %v495 = vld [vmem:[#allocation7 + $0xa48] sm:$0xff]
    %v496 = vld [vmem:[#allocation7 + $0xa50] sm:$0xff]
    %v497 = vld [vmem:[#allocation7 + $0xa58] sm:$0xff]
    %v498 = vld [vmem:[#allocation7 + $0xa60] sm:$0xff]
    %v499 = vld [vmem:[#allocation7 + $0xa68] sm:$0xff]
    %v500 = vld [vmem:[#allocation7 + $0xa70] sm:$0xff]
    %v501 = vld [vmem:[#allocation7 + $0xa78] sm:$0xff]
    %v502 = vld [vmem:[#allocation7 + $0xa80] sm:$0xff]
    %v503 = vld [vmem:[#allocation7 + $0xa88] sm:$0xff]
    %v504 = vld [vmem:[#allocation7 + $0xa90] sm:$0xff]
    %v505 = vld [vmem:[#allocation7 + $0xa98] sm:$0xff]
    %v506 = vld [vmem:[#allocation7 + $0xaa0] sm:$0xff]
    %v507 = vld [vmem:[#allocation7 + $0xaa8] sm:$0xff]
    %v508 = vld [vmem:[#allocation7 + $0xab0] sm:$0xff]
    %v509 = vld [vmem:[#allocation7 + $0xab8] sm:$0xff]
    %v510 = vld [vmem:[#allocation7 + $0xac0] sm:$0xff]
    %v511 = vld [vmem:[#allocation7 + $0xac8] sm:$0xff]
    %v512 = vld [vmem:[#allocation7 + $0xad0] sm:$0xff]
    %v513 = vld [vmem:[#allocation7 + $0xad8] sm:$0xff]
    %v514 = vld [vmem:[#allocation7 + $0xae0] sm:$0xff]
    %v515 = vld [vmem:[#allocation7 + $0xae8] sm:$0xff]
    %v516 = vld [vmem:[#allocation7 + $0xaf0] sm:$0xff]
    %v517 = vld [vmem:[#allocation7 + $0xaf8] sm:$0xff]
    %v518 = vld [vmem:[#allocation7 + $0xb00] sm:$0xff]
    %v519 = vld [vmem:[#allocation7 + $0xb08] sm:$0xff]
    %v520 = vld [vmem:[#allocation7 + $0xb10] sm:$0xff]
    %v521 = vld [vmem:[#allocation7 + $0xb18] sm:$0xff]
    %v522 = vld [vmem:[#allocation7 + $0xb20] sm:$0xff]
    %v523 = vld [vmem:[#allocation7 + $0xb28] sm:$0xff]
    %v524 = vld [vmem:[#allocation7 + $0xb30] sm:$0xff]
    %v525 = vld [vmem:[#allocation7 + $0xb38] sm:$0xff]
    %v526 = vld [vmem:[#allocation7 + $0xb40] sm:$0xff]
    %v527 = vld [vmem:[#allocation7 + $0xb48] sm:$0xff]
    %v528 = vld [vmem:[#allocation7 + $0xb50] sm:$0xff]
    %v529 = vld [vmem:[#allocation7 + $0xb58] sm:$0xff]
    %v530 = vld [vmem:[#allocation7 + $0xb60] sm:$0xff]
    %v531 = vld [vmem:[#allocation7 + $0xb68] sm:$0xff]
    %v532 = vld [vmem:[#allocation7 + $0xb70] sm:$0xff]
    %v533 = vld [vmem:[#allocation7 + $0xb78] sm:$0xff]
    %v534 = vld [vmem:[#allocation7 + $0xb80] sm:$0xff]
    %v535 = vld [vmem:[#allocation7 + $0xb88] sm:$0xff]
    %v536 = vld [vmem:[#allocation7 + $0xb90] sm:$0xff]
    %v537 = vld [vmem:[#allocation7 + $0xb98] sm:$0xff]
    %v538 = vld [vmem:[#allocation7 + $0xba0] sm:$0xff]
    %v539 = vld [vmem:[#allocation7 + $0xba8] sm:$0xff]
    %v540 = vld [vmem:[#allocation7 + $0xbb0] sm:$0xff]
    %v541 = vld [vmem:[#allocation7 + $0xbb8] sm:$0xff]
    %v542 = vld [vmem:[#allocation7 + $0xbc0] sm:$0xff]
    %v543 = vld [vmem:[#allocation7 + $0xbc8] sm:$0xff]
    %v544 = vld [vmem:[#allocation7 + $0xbd0] sm:$0xff]
    %v545 = vld [vmem:[#allocation7 + $0xbd8] sm:$0xff]
    %v546 = vld [vmem:[#allocation7 + $0xbe0] sm:$0xff]
    %v547 = vld [vmem:[#allocation7 + $0xbe8] sm:$0xff]
    %v548 = vld [vmem:[#allocation7 + $0xbf0] sm:$0xff]
    %v549 = vld [vmem:[#allocation7 + $0xbf8] sm:$0xff]
    %v550 = vld [vmem:[#allocation7 + $0xc00] sm:$0xff]
    %v551 = vld [vmem:[#allocation7 + $0xc08] sm:$0xff]
    %v552 = vld [vmem:[#allocation7 + $0xc10] sm:$0xff]
    %v553 = vld [vmem:[#allocation7 + $0xc18] sm:$0xff]
    %v554 = vld [vmem:[#allocation7 + $0xc20] sm:$0xff]
    %v555 = vld [vmem:[#allocation7 + $0xc28] sm:$0xff]
    %v556 = vld [vmem:[#allocation7 + $0xc30] sm:$0xff]
    %v557 = vld [vmem:[#allocation7 + $0xc38] sm:$0xff]
    %v558 = vld [vmem:[#allocation7 + $0xc40] sm:$0xff]
    %v559 = vld [vmem:[#allocation7 + $0xc48] sm:$0xff]
    %v560 = vld [vmem:[#allocation7 + $0xc50] sm:$0xff]
    %v561 = vld [vmem:[#allocation7 + $0xc58] sm:$0xff]
    %v562 = vld [vmem:[#allocation7 + $0xc60] sm:$0xff]
    %v563 = vld [vmem:[#allocation7 + $0xc68] sm:$0xff]
    %v564 = vld [vmem:[#allocation7 + $0xc70] sm:$0xff]
    %v565 = vld [vmem:[#allocation7 + $0xc78] sm:$0xff]
    %v566 = vld [vmem:[#allocation7 + $0xc80] sm:$0xff]
    %v567 = vld [vmem:[#allocation7 + $0xc88] sm:$0xff]
    %v568 = vld [vmem:[#allocation7 + $0xc90] sm:$0xff]
    %v569 = vld [vmem:[#allocation7 + $0xc98] sm:$0xff]
    %v570 = vld [vmem:[#allocation7 + $0xca0] sm:$0xff]
    %v571 = vld [vmem:[#allocation7 + $0xca8] sm:$0xff]
    %v572 = vld [vmem:[#allocation7 + $0xcb0] sm:$0xff]
    %v573 = vld [vmem:[#allocation7 + $0xcb8] sm:$0xff]
    %v574 = vld [vmem:[#allocation7 + $0xcc0] sm:$0xff]
    %v575 = vld [vmem:[#allocation7 + $0xcc8] sm:$0xff]
    %v576 = vld [vmem:[#allocation7 + $0xcd0] sm:$0xff]
    %v577 = vld [vmem:[#allocation7 + $0xcd8] sm:$0xff]
    %v578 = vld [vmem:[#allocation7 + $0xce0] sm:$0xff]
    %v579 = vld [vmem:[#allocation7 + $0xce8] sm:$0xff]
    %v580 = vld [vmem:[#allocation7 + $0xcf0] sm:$0xff]
    %v581 = vld [vmem:[#allocation7 + $0xcf8] sm:$0xff]
    %v582 = vld [vmem:[#allocation7 + $0xd00] sm:$0xff]
    %v583 = vld [vmem:[#allocation7 + $0xd08] sm:$0xff]
    %v584 = vld [vmem:[#allocation7 + $0xd10] sm:$0xff]
    %v585 = vld [vmem:[#allocation7 + $0xd18] sm:$0xff]
    %v586 = vld [vmem:[#allocation7 + $0xd20] sm:$0xff]
    %v587 = vld [vmem:[#allocation7 + $0xd28] sm:$0xff]
    %v588 = vld [vmem:[#allocation7 + $0xd30] sm:$0xff]
    %v589 = vld [vmem:[#allocation7 + $0xd38] sm:$0xff]
    %v590 = vld [vmem:[#allocation7 + $0xd40] sm:$0xff]
    %v591 = vld [vmem:[#allocation7 + $0xd48] sm:$0xff]
    %v592 = vld [vmem:[#allocation7 + $0xd50] sm:$0xff]
    %v593 = vld [vmem:[#allocation7 + $0xd58] sm:$0xff]
    %v594 = vld [vmem:[#allocation7 + $0xd60] sm:$0xff]
    %v595 = vld [vmem:[#allocation7 + $0xd68] sm:$0xff]
    %v596 = vld [vmem:[#allocation7 + $0xd70] sm:$0xff]
    %v597 = vld [vmem:[#allocation7 + $0xd78] sm:$0xff]
    %v598 = vld [vmem:[#allocation7 + $0xd80] sm:$0xff]
    %v599 = vld [vmem:[#allocation7 + $0xd88] sm:$0xff]
    %v600 = vld [vmem:[#allocation7 + $0xd90] sm:$0xff]
    %v601 = vld [vmem:[#allocation7 + $0xd98] sm:$0xff]
    %v602 = vld [vmem:[#allocation7 + $0xda0] sm:$0xff]
    %v603 = vld [vmem:[#allocation7 + $0xda8] sm:$0xff]
    %v604 = vld [vmem:[#allocation7 + $0xdb0] sm:$0xff]
    %v605 = vld [vmem:[#allocation7 + $0xdb8] sm:$0xff]
    %v606 = vld [vmem:[#allocation7 + $0xdc0] sm:$0xff]
    %v607 = vld [vmem:[#allocation7 + $0xdc8] sm:$0xff]
    %v608 = vld [vmem:[#allocation7 + $0xdd0] sm:$0xff]
    %v609 = vld [vmem:[#allocation7 + $0xdd8] sm:$0xff]
    %v610 = vld [vmem:[#allocation7 + $0xde0] sm:$0xff]
    %v611 = vld [vmem:[#allocation7 + $0xde8] sm:$0xff]
    %v612 = vld [vmem:[#allocation7 + $0xdf0] sm:$0xff]
    %v613 = vld [vmem:[#allocation7 + $0xdf8] sm:$0xff]
    %v614 = vld [vmem:[#allocation7 + $0xe00] sm:$0xff]
    %v615 = vld [vmem:[#allocation7 + $0xe08] sm:$0xff]
    %v616 = vld [vmem:[#allocation7 + $0xe10] sm:$0xff]
    %v617 = vld [vmem:[#allocation7 + $0xe18] sm:$0xff]
    %v618 = vld [vmem:[#allocation7 + $0xe20] sm:$0xff]
    %v619 = vld [vmem:[#allocation7 + $0xe28] sm:$0xff]
    %v620 = vld [vmem:[#allocation7 + $0xe30] sm:$0xff]
    %v621 = vld [vmem:[#allocation7 + $0xe38] sm:$0xff]
    %v622 = vld [vmem:[#allocation7 + $0xe40] sm:$0xff]
    %v623 = vld [vmem:[#allocation7 + $0xe48] sm:$0xff]
    %v624 = vld [vmem:[#allocation7 + $0xe50] sm:$0xff]
    %v625 = vld [vmem:[#allocation7 + $0xe58] sm:$0xff]
    %v626 = vld [vmem:[#allocation7 + $0xe60] sm:$0xff]
    %v627 = vld [vmem:[#allocation7 + $0xe68] sm:$0xff]
    %v628 = vld [vmem:[#allocation7 + $0xe70] sm:$0xff]
    %v629 = vld [vmem:[#allocation7 + $0xe78] sm:$0xff]
    %v630 = vld [vmem:[#allocation7 + $0xe80] sm:$0xff]
    %v631 = vld [vmem:[#allocation7 + $0xe88] sm:$0xff]
    %v632 = vld [vmem:[#allocation7 + $0xe90] sm:$0xff]
    %v633 = vld [vmem:[#allocation7 + $0xe98] sm:$0xff]
    %v634 = vld [vmem:[#allocation7 + $0xea0] sm:$0xff]
    %v635 = vld [vmem:[#allocation7 + $0xea8] sm:$0xff]
    %v636 = vld [vmem:[#allocation7 + $0xeb0] sm:$0xff]
    %v637 = vld [vmem:[#allocation7 + $0xeb8] sm:$0xff]
    %v638 = vld [vmem:[#allocation7 + $0xec0] sm:$0xff]
    %v639 = vld [vmem:[#allocation7 + $0xec8] sm:$0xff]
    %v640 = vld [vmem:[#allocation7 + $0xed0] sm:$0xff]
    %v641 = vld [vmem:[#allocation7 + $0xed8] sm:$0xff]
    %v642 = vld [vmem:[#allocation7 + $0xee0] sm:$0xff]
    %v643 = vld [vmem:[#allocation7 + $0xee8] sm:$0xff]
    %v644 = vld [vmem:[#allocation7 + $0xef0] sm:$0xff]
    %v645 = vld [vmem:[#allocation7 + $0xef8] sm:$0xff]
    %v646 = vld [vmem:[#allocation7 + $0xf00] sm:$0xff]
    %v647 = vld [vmem:[#allocation7 + $0xf08] sm:$0xff]
    %v648 = vld [vmem:[#allocation7 + $0xf10] sm:$0xff]
    %v649 = vld [vmem:[#allocation7 + $0xf18] sm:$0xff]
    %v650 = vld [vmem:[#allocation7 + $0xf20] sm:$0xff]
    %v651 = vld [vmem:[#allocation7 + $0xf28] sm:$0xff]
    %v652 = vld [vmem:[#allocation7 + $0xf30] sm:$0xff]
    %v653 = vld [vmem:[#allocation7 + $0xf38] sm:$0xff]
    %v654 = vld [vmem:[#allocation7 + $0xf40] sm:$0xff]
    %v655 = vld [vmem:[#allocation7 + $0xf48] sm:$0xff]
    %v656 = vld [vmem:[#allocation7 + $0xf50] sm:$0xff]
    %v657 = vld [vmem:[#allocation7 + $0xf58] sm:$0xff]
    %v658 = vld [vmem:[#allocation7 + $0xf60] sm:$0xff]
    %v659 = vld [vmem:[#allocation7 + $0xf68] sm:$0xff]
    %v660 = vld [vmem:[#allocation7 + $0xf70] sm:$0xff]
    %v661 = vld [vmem:[#allocation7 + $0xf78] sm:$0xff]
    %v662 = vld [vmem:[#allocation7 + $0xf80] sm:$0xff]
    %v663 = vld [vmem:[#allocation7 + $0xf88] sm:$0xff]
    %v664 = vld [vmem:[#allocation7 + $0xf90] sm:$0xff]
    %v665 = vld [vmem:[#allocation7 + $0xf98] sm:$0xff]
    %v666 = vld [vmem:[#allocation7 + $0xfa0] sm:$0xff]
    %v667 = vld [vmem:[#allocation7 + $0xfa8] sm:$0xff]
    %v668 = vld [vmem:[#allocation7 + $0xfb0] sm:$0xff]
    %v669 = vld [vmem:[#allocation7 + $0xfb8] sm:$0xff]
    %v670 = vld [vmem:[#allocation7 + $0xfc0] sm:$0xff]
    %v671 = vld [vmem:[#allocation7 + $0xfc8] sm:$0xff]
    %v672 = vld [vmem:[#allocation7 + $0xfd0] sm:$0xff]
    %v673 = vld [vmem:[#allocation7 + $0xfd8] sm:$0xff]
    %v674 = vld [vmem:[#allocation7 + $0xfe0] sm:$0xff]
    %v675 = vld [vmem:[#allocation7 + $0xfe8] sm:$0xff]
    %v676 = vld [vmem:[#allocation7 + $0xff0] sm:$0xff]
    %v677 = vld [vmem:[#allocation7 + $0xff8] sm:$0xff]
    %v678 = vld [vmem:[#allocation8] sm:$0xff]
    %v679 = vld [vmem:[#allocation8 + $0x8] sm:$0xff]
    %v680 = vld [vmem:[#allocation8 + $0x10] sm:$0xff]
    %v681 = vld [vmem:[#allocation8 + $0x18] sm:$0xff]
    %v682 = vld [vmem:[#allocation8 + $0x20] sm:$0xff]
    %v683 = vld [vmem:[#allocation8 + $0x28] sm:$0xff]
    %v684 = vld [vmem:[#allocation8 + $0x30] sm:$0xff]
    %v685 = vld [vmem:[#allocation8 + $0x38] sm:$0xff]
    %v686 = vld [vmem:[#allocation8 + $0x40] sm:$0xff]
    %v687 = vld [vmem:[#allocation8 + $0x48] sm:$0xff]
    %v688 = vld [vmem:[#allocation8 + $0x50] sm:$0xff]
    %v689 = vld [vmem:[#allocation8 + $0x58] sm:$0xff]
    %v690 = vld [vmem:[#allocation8 + $0x60] sm:$0xff]
    %v691 = vld [vmem:[#allocation8 + $0x68] sm:$0xff]
    %v692 = vld [vmem:[#allocation8 + $0x70] sm:$0xff]
    %v693 = vld [vmem:[#allocation8 + $0x78] sm:$0xff]
    %v694 = vld [vmem:[#allocation8 + $0x80] sm:$0xff]
    %v695 = vld [vmem:[#allocation8 + $0x88] sm:$0xff]
    %v696 = vld [vmem:[#allocation8 + $0x90] sm:$0xff]
    %v697 = vld [vmem:[#allocation8 + $0x98] sm:$0xff]
    %v698 = vld [vmem:[#allocation8 + $0xa0] sm:$0xff]
    %v699 = vld [vmem:[#allocation8 + $0xa8] sm:$0xff]
    %v700 = vld [vmem:[#allocation8 + $0xb0] sm:$0xff]
    %v701 = vld [vmem:[#allocation8 + $0xb8] sm:$0xff]
    %v702 = vld [vmem:[#allocation8 + $0xc0] sm:$0xff]
    %v703 = vld [vmem:[#allocation8 + $0xc8] sm:$0xff]
    %v704 = vld [vmem:[#allocation8 + $0xd0] sm:$0xff]
    %v705 = vld [vmem:[#allocation8 + $0xd8] sm:$0xff]
    %v706 = vld [vmem:[#allocation8 + $0xe0] sm:$0xff]
    %v707 = vld [vmem:[#allocation8 + $0xe8] sm:$0xff]
    %v708 = vld [vmem:[#allocation8 + $0xf0] sm:$0xff]
    %v709 = vld [vmem:[#allocation8 + $0xf8] sm:$0xff]
    %v710 = vld [vmem:[#allocation8 + $0x100] sm:$0xff]
    %v711 = vld [vmem:[#allocation8 + $0x108] sm:$0xff]
    %v712 = vld [vmem:[#allocation8 + $0x110] sm:$0xff]
    %v713 = vld [vmem:[#allocation8 + $0x118] sm:$0xff]
    %v714 = vld [vmem:[#allocation8 + $0x120] sm:$0xff]
    %v715 = vld [vmem:[#allocation8 + $0x128] sm:$0xff]
    %v716 = vld [vmem:[#allocation8 + $0x130] sm:$0xff]
    %v717 = vld [vmem:[#allocation8 + $0x138] sm:$0xff]
    %v718 = vld [vmem:[#allocation8 + $0x140] sm:$0xff]
    %v719 = vld [vmem:[#allocation8 + $0x148] sm:$0xff]
    %v720 = vld [vmem:[#allocation8 + $0x150] sm:$0xff]
    %v721 = vld [vmem:[#allocation8 + $0x158] sm:$0xff]
    %v722 = vld [vmem:[#allocation8 + $0x160] sm:$0xff]
    %v723 = vld [vmem:[#allocation8 + $0x168] sm:$0xff]
    %v724 = vld [vmem:[#allocation8 + $0x170] sm:$0xff]
    %v725 = vld [vmem:[#allocation8 + $0x178] sm:$0xff]
    %v726 = vld [vmem:[#allocation8 + $0x180] sm:$0xff]
    %v727 = vld [vmem:[#allocation8 + $0x188] sm:$0xff]
    %v728 = vld [vmem:[#allocation8 + $0x190] sm:$0xff]
    %v729 = vld [vmem:[#allocation8 + $0x198] sm:$0xff]
    %v730 = vld [vmem:[#allocation8 + $0x1a0] sm:$0xff]
    %v731 = vld [vmem:[#allocation8 + $0x1a8] sm:$0xff]
    %v732 = vld [vmem:[#allocation8 + $0x1b0] sm:$0xff]
    %v733 = vld [vmem:[#allocation8 + $0x1b8] sm:$0xff]
    %v734 = vld [vmem:[#allocation8 + $0x1c0] sm:$0xff]
    %v735 = vld [vmem:[#allocation8 + $0x1c8] sm:$0xff]
    %v736 = vld [vmem:[#allocation8 + $0x1d0] sm:$0xff]
    %v737 = vld [vmem:[#allocation8 + $0x1d8] sm:$0xff]
    %v738 = vld [vmem:[#allocation8 + $0x1e0] sm:$0xff]
    %v739 = vld [vmem:[#allocation8 + $0x1e8] sm:$0xff]
    %v740 = vld [vmem:[#allocation8 + $0x1f0] sm:$0xff]
    %v741 = vld [vmem:[#allocation8 + $0x1f8] sm:$0xff]
    %v742 = vld [vmem:[#allocation8 + $0x200] sm:$0xff]
    %v743 = vld [vmem:[#allocation8 + $0x208] sm:$0xff]
    %v744 = vld [vmem:[#allocation8 + $0x210] sm:$0xff]
    %v745 = vld [vmem:[#allocation8 + $0x218] sm:$0xff]
    %v746 = vld [vmem:[#allocation8 + $0x220] sm:$0xff]
    %v747 = vld [vmem:[#allocation8 + $0x228] sm:$0xff]
    %v748 = vld [vmem:[#allocation8 + $0x230] sm:$0xff]
    %v749 = vld [vmem:[#allocation8 + $0x238] sm:$0xff]
    %v750 = vld [vmem:[#allocation8 + $0x240] sm:$0xff]
    %v751 = vld [vmem:[#allocation8 + $0x248] sm:$0xff]
    %v752 = vld [vmem:[#allocation8 + $0x250] sm:$0xff]
    %v753 = vld [vmem:[#allocation8 + $0x258] sm:$0xff]
    %v754 = vld [vmem:[#allocation8 + $0x260] sm:$0xff]
    %v755 = vld [vmem:[#allocation8 + $0x268] sm:$0xff]
    %v756 = vld [vmem:[#allocation8 + $0x270] sm:$0xff]
    %v757 = vld [vmem:[#allocation8 + $0x278] sm:$0xff]
    %v758 = vld [vmem:[#allocation8 + $0x280] sm:$0xff]
    %v759 = vld [vmem:[#allocation8 + $0x288] sm:$0xff]
    %v760 = vld [vmem:[#allocation8 + $0x290] sm:$0xff]
    %v761 = vld [vmem:[#allocation8 + $0x298] sm:$0xff]
    %v762 = vld [vmem:[#allocation8 + $0x2a0] sm:$0xff]
    %v763 = vld [vmem:[#allocation8 + $0x2a8] sm:$0xff]
    %v764 = vld [vmem:[#allocation8 + $0x2b0] sm:$0xff]
    %v765 = vld [vmem:[#allocation8 + $0x2b8] sm:$0xff]
    %v766 = vld [vmem:[#allocation8 + $0x2c0] sm:$0xff]
    %v767 = vld [vmem:[#allocation8 + $0x2c8] sm:$0xff]
    %v768 = vld [vmem:[#allocation8 + $0x2d0] sm:$0xff]
    %v769 = vld [vmem:[#allocation8 + $0x2d8] sm:$0xff]
    %v770 = vld [vmem:[#allocation8 + $0x2e0] sm:$0xff]
    %v771 = vld [vmem:[#allocation8 + $0x2e8] sm:$0xff]
    %v772 = vld [vmem:[#allocation8 + $0x2f0] sm:$0xff]
    %v773 = vld [vmem:[#allocation8 + $0x2f8] sm:$0xff]
    %v774 = vld [vmem:[#allocation8 + $0x300] sm:$0xff]
    %v775 = vld [vmem:[#allocation8 + $0x308] sm:$0xff]
    %v776 = vld [vmem:[#allocation8 + $0x310] sm:$0xff]
    %v777 = vld [vmem:[#allocation8 + $0x318] sm:$0xff]
    %v778 = vld [vmem:[#allocation8 + $0x320] sm:$0xff]
    %v779 = vld [vmem:[#allocation8 + $0x328] sm:$0xff]
    %v780 = vld [vmem:[#allocation8 + $0x330] sm:$0xff]
    %v781 = vld [vmem:[#allocation8 + $0x338] sm:$0xff]
    %v782 = vld [vmem:[#allocation8 + $0x340] sm:$0xff]
    %v783 = vld [vmem:[#allocation8 + $0x348] sm:$0xff]
    %v784 = vld [vmem:[#allocation8 + $0x350] sm:$0xff]
    %v785 = vld [vmem:[#allocation8 + $0x358] sm:$0xff]
    %v786 = vld [vmem:[#allocation8 + $0x360] sm:$0xff]
    %v787 = vld [vmem:[#allocation8 + $0x368] sm:$0xff]
    %v788 = vld [vmem:[#allocation8 + $0x370] sm:$0xff]
    %v789 = vld [vmem:[#allocation8 + $0x378] sm:$0xff]
    %v790 = vld [vmem:[#allocation8 + $0x380] sm:$0xff]
    %v791 = vld [vmem:[#allocation8 + $0x388] sm:$0xff]
    %v792 = vld [vmem:[#allocation8 + $0x390] sm:$0xff]
    %v793 = vld [vmem:[#allocation8 + $0x398] sm:$0xff]
    %v794 = vld [vmem:[#allocation8 + $0x3a0] sm:$0xff]
    %v795 = vld [vmem:[#allocation8 + $0x3a8] sm:$0xff]
    %v796 = vld [vmem:[#allocation8 + $0x3b0] sm:$0xff]
    %v797 = vld [vmem:[#allocation8 + $0x3b8] sm:$0xff]
    %v798 = vld [vmem:[#allocation8 + $0x3c0] sm:$0xff]
    %v799 = vld [vmem:[#allocation8 + $0x3c8] sm:$0xff]
    %v800 = vld [vmem:[#allocation8 + $0x3d0] sm:$0xff]
    %v801 = vld [vmem:[#allocation8 + $0x3d8] sm:$0xff]
    %v802 = vld [vmem:[#allocation8 + $0x3e0] sm:$0xff]
    %v803 = vld [vmem:[#allocation8 + $0x3e8] sm:$0xff]
    %v804 = vld [vmem:[#allocation8 + $0x3f0] sm:$0xff]
    %v805 = vld [vmem:[#allocation8 + $0x3f8] sm:$0xff]
    %v806 = vld [vmem:[#allocation8 + $0x400] sm:$0xff]
    %v807 = vld [vmem:[#allocation8 + $0x408] sm:$0xff]
    %v808 = vld [vmem:[#allocation8 + $0x410] sm:$0xff]
    %v809 = vld [vmem:[#allocation8 + $0x418] sm:$0xff]
    %v810 = vld [vmem:[#allocation8 + $0x420] sm:$0xff]
    %v811 = vld [vmem:[#allocation8 + $0x428] sm:$0xff]
    %v812 = vld [vmem:[#allocation8 + $0x430] sm:$0xff]
    %v813 = vld [vmem:[#allocation8 + $0x438] sm:$0xff]
    %v814 = vld [vmem:[#allocation8 + $0x440] sm:$0xff]
    %v815 = vld [vmem:[#allocation8 + $0x448] sm:$0xff]
    %v816 = vld [vmem:[#allocation8 + $0x450] sm:$0xff]
    %v817 = vld [vmem:[#allocation8 + $0x458] sm:$0xff]
    %v818 = vld [vmem:[#allocation8 + $0x460] sm:$0xff]
    %v819 = vld [vmem:[#allocation8 + $0x468] sm:$0xff]
    %v820 = vld [vmem:[#allocation8 + $0x470] sm:$0xff]
    %v821 = vld [vmem:[#allocation8 + $0x478] sm:$0xff]
    %v822 = vld [vmem:[#allocation8 + $0x480] sm:$0xff]
    %v823 = vld [vmem:[#allocation8 + $0x488] sm:$0xff]
    %v824 = vld [vmem:[#allocation8 + $0x490] sm:$0xff]
    %v825 = vld [vmem:[#allocation8 + $0x498] sm:$0xff]
    %v826 = vld [vmem:[#allocation8 + $0x4a0] sm:$0xff]
    %v827 = vld [vmem:[#allocation8 + $0x4a8] sm:$0xff]
    %v828 = vld [vmem:[#allocation8 + $0x4b0] sm:$0xff]
    %v829 = vld [vmem:[#allocation8 + $0x4b8] sm:$0xff]
    %v830 = vld [vmem:[#allocation8 + $0x4c0] sm:$0xff]
    %v831 = vld [vmem:[#allocation8 + $0x4c8] sm:$0xff]
    %v832 = vld [vmem:[#allocation8 + $0x4d0] sm:$0xff]
    %v833 = vld [vmem:[#allocation8 + $0x4d8] sm:$0xff]
    %v834 = vld [vmem:[#allocation8 + $0x4e0] sm:$0xff]
    %v835 = vld [vmem:[#allocation8 + $0x4e8] sm:$0xff]
    %v836 = vld [vmem:[#allocation8 + $0x4f0] sm:$0xff]
    %v837 = vld [vmem:[#allocation8 + $0x4f8] sm:$0xff]
    %v838 = vld [vmem:[#allocation8 + $0x500] sm:$0xff]
    %v839 = vld [vmem:[#allocation8 + $0x508] sm:$0xff]
    %v840 = vld [vmem:[#allocation8 + $0x510] sm:$0xff]
    %v841 = vld [vmem:[#allocation8 + $0x518] sm:$0xff]
    %v842 = vld [vmem:[#allocation8 + $0x520] sm:$0xff]
    %v843 = vld [vmem:[#allocation8 + $0x528] sm:$0xff]
    %v844 = vld [vmem:[#allocation8 + $0x530] sm:$0xff]
    %v845 = vld [vmem:[#allocation8 + $0x538] sm:$0xff]
    %v846 = vld [vmem:[#allocation8 + $0x540] sm:$0xff]
    %v847 = vld [vmem:[#allocation8 + $0x548] sm:$0xff]
    %v848 = vld [vmem:[#allocation8 + $0x550] sm:$0xff]
    %v849 = vld [vmem:[#allocation8 + $0x558] sm:$0xff]
    %v850 = vld [vmem:[#allocation8 + $0x560] sm:$0xff]
    %v851 = vld [vmem:[#allocation8 + $0x568] sm:$0xff]
    %v852 = vld [vmem:[#allocation8 + $0x570] sm:$0xff]
    %v853 = vld [vmem:[#allocation8 + $0x578] sm:$0xff]
    %v854 = vld [vmem:[#allocation8 + $0x580] sm:$0xff]
    %v855 = vld [vmem:[#allocation8 + $0x588] sm:$0xff]
    %v856 = vld [vmem:[#allocation8 + $0x590] sm:$0xff]
    %v857 = vld [vmem:[#allocation8 + $0x598] sm:$0xff]
    %v858 = vld [vmem:[#allocation8 + $0x5a0] sm:$0xff]
    %v859 = vld [vmem:[#allocation8 + $0x5a8] sm:$0xff]
    %v860 = vld [vmem:[#allocation8 + $0x5b0] sm:$0xff]
    %v861 = vld [vmem:[#allocation8 + $0x5b8] sm:$0xff]
    %v862 = vld [vmem:[#allocation8 + $0x5c0] sm:$0xff]
    %v863 = vld [vmem:[#allocation8 + $0x5c8] sm:$0xff]
    %v864 = vld [vmem:[#allocation8 + $0x5d0] sm:$0xff]
    %v865 = vld [vmem:[#allocation8 + $0x5d8] sm:$0xff]
    %v866 = vld [vmem:[#allocation8 + $0x5e0] sm:$0xff]
    %v867 = vld [vmem:[#allocation8 + $0x5e8] sm:$0xff]
    %v868 = vld [vmem:[#allocation8 + $0x5f0] sm:$0xff]
    %v869 = vld [vmem:[#allocation8 + $0x5f8] sm:$0xff]
    %v870 = vld [vmem:[#allocation8 + $0x600] sm:$0xff]
    %v871 = vld [vmem:[#allocation8 + $0x608] sm:$0xff]
    %v872 = vld [vmem:[#allocation8 + $0x610] sm:$0xff]
    %v873 = vld [vmem:[#allocation8 + $0x618] sm:$0xff]
    %v874 = vld [vmem:[#allocation8 + $0x620] sm:$0xff]
    %v875 = vld [vmem:[#allocation8 + $0x628] sm:$0xff]
    %v876 = vld [vmem:[#allocation8 + $0x630] sm:$0xff]
    %v877 = vld [vmem:[#allocation8 + $0x638] sm:$0xff]
    %v878 = vld [vmem:[#allocation8 + $0x640] sm:$0xff]
    %v879 = vld [vmem:[#allocation8 + $0x648] sm:$0xff]
    %v880 = vld [vmem:[#allocation8 + $0x650] sm:$0xff]
    %v881 = vld [vmem:[#allocation8 + $0x658] sm:$0xff]
    %v882 = vld [vmem:[#allocation8 + $0x660] sm:$0xff]
    %v883 = vld [vmem:[#allocation8 + $0x668] sm:$0xff]
    %v884 = vld [vmem:[#allocation8 + $0x670] sm:$0xff]
    %v885 = vld [vmem:[#allocation8 + $0x678] sm:$0xff]
    %v886 = vld [vmem:[#allocation8 + $0x680] sm:$0xff]
    %v887 = vld [vmem:[#allocation8 + $0x688] sm:$0xff]
    %v888 = vld [vmem:[#allocation8 + $0x690] sm:$0xff]
    %v889 = vld [vmem:[#allocation8 + $0x698] sm:$0xff]
    %v890 = vld [vmem:[#allocation8 + $0x6a0] sm:$0xff]
    %v891 = vld [vmem:[#allocation8 + $0x6a8] sm:$0xff]
    %v892 = vld [vmem:[#allocation8 + $0x6b0] sm:$0xff]
    %v893 = vld [vmem:[#allocation8 + $0x6b8] sm:$0xff]
    %v894 = vld [vmem:[#allocation8 + $0x6c0] sm:$0xff]
    %v895 = vld [vmem:[#allocation8 + $0x6c8] sm:$0xff]
    %v896 = vld [vmem:[#allocation8 + $0x6d0] sm:$0xff]
    %v897 = vld [vmem:[#allocation8 + $0x6d8] sm:$0xff]
    %v898 = vld [vmem:[#allocation8 + $0x6e0] sm:$0xff]
    %v899 = vld [vmem:[#allocation8 + $0x6e8] sm:$0xff]
    %v900 = vld [vmem:[#allocation8 + $0x6f0] sm:$0xff]
    %v901 = vld [vmem:[#allocation8 + $0x6f8] sm:$0xff]
    %v902 = vld [vmem:[#allocation8 + $0x700] sm:$0xff]
    %v903 = vld [vmem:[#allocation8 + $0x708] sm:$0xff]
    %v904 = vld [vmem:[#allocation8 + $0x710] sm:$0xff]
    %v905 = vld [vmem:[#allocation8 + $0x718] sm:$0xff]
    %v906 = vld [vmem:[#allocation8 + $0x720] sm:$0xff]
    %v907 = vld [vmem:[#allocation8 + $0x728] sm:$0xff]
    %v908 = vld [vmem:[#allocation8 + $0x730] sm:$0xff]
    %v909 = vld [vmem:[#allocation8 + $0x738] sm:$0xff]
    %v910 = vld [vmem:[#allocation8 + $0x740] sm:$0xff]
    %v911 = vld [vmem:[#allocation8 + $0x748] sm:$0xff]
    %v912 = vld [vmem:[#allocation8 + $0x750] sm:$0xff]
    %v913 = vld [vmem:[#allocation8 + $0x758] sm:$0xff]
    %v914 = vld [vmem:[#allocation8 + $0x760] sm:$0xff]
    %v915 = vld [vmem:[#allocation8 + $0x768] sm:$0xff]
    %v916 = vld [vmem:[#allocation8 + $0x770] sm:$0xff]
    %v917 = vld [vmem:[#allocation8 + $0x778] sm:$0xff]
    %v918 = vld [vmem:[#allocation8 + $0x780] sm:$0xff]
    %v919 = vld [vmem:[#allocation8 + $0x788] sm:$0xff]
    %v920 = vld [vmem:[#allocation8 + $0x790] sm:$0xff]
    %v921 = vld [vmem:[#allocation8 + $0x798] sm:$0xff]
    %v922 = vld [vmem:[#allocation8 + $0x7a0] sm:$0xff]
    %v923 = vld [vmem:[#allocation8 + $0x7a8] sm:$0xff]
    %v924 = vld [vmem:[#allocation8 + $0x7b0] sm:$0xff]
    %v925 = vld [vmem:[#allocation8 + $0x7b8] sm:$0xff]
    %v926 = vld [vmem:[#allocation8 + $0x7c0] sm:$0xff]
    %v927 = vld [vmem:[#allocation8 + $0x7c8] sm:$0xff]
    %v928 = vld [vmem:[#allocation8 + $0x7d0] sm:$0xff]
    %v929 = vld [vmem:[#allocation8 + $0x7d8] sm:$0xff]
    %v930 = vld [vmem:[#allocation8 + $0x7e0] sm:$0xff]
    %v931 = vld [vmem:[#allocation8 + $0x7e8] sm:$0xff]
    %v932 = vld [vmem:[#allocation8 + $0x7f0] sm:$0xff]
    %v933 = vld [vmem:[#allocation8 + $0x7f8] sm:$0xff]
    %v934 = vld [vmem:[#allocation8 + $0x800] sm:$0xff]
    %v935 = vld [vmem:[#allocation8 + $0x808] sm:$0xff]
    %v936 = vld [vmem:[#allocation8 + $0x810] sm:$0xff]
    %v937 = vld [vmem:[#allocation8 + $0x818] sm:$0xff]
    %v938 = vld [vmem:[#allocation8 + $0x820] sm:$0xff]
    %v939 = vld [vmem:[#allocation8 + $0x828] sm:$0xff]
    %v940 = vld [vmem:[#allocation8 + $0x830] sm:$0xff]
    %v941 = vld [vmem:[#allocation8 + $0x838] sm:$0xff]
    %v942 = vld [vmem:[#allocation8 + $0x840] sm:$0xff]
    %v943 = vld [vmem:[#allocation8 + $0x848] sm:$0xff]
    %v944 = vld [vmem:[#allocation8 + $0x850] sm:$0xff]
    %v945 = vld [vmem:[#allocation8 + $0x858] sm:$0xff]
    %v946 = vld [vmem:[#allocation8 + $0x860] sm:$0xff]
    %v947 = vld [vmem:[#allocation8 + $0x868] sm:$0xff]
    %v948 = vld [vmem:[#allocation8 + $0x870] sm:$0xff]
    %v949 = vld [vmem:[#allocation8 + $0x878] sm:$0xff]
    %v950 = vld [vmem:[#allocation8 + $0x880] sm:$0xff]
    %v951 = vld [vmem:[#allocation8 + $0x888] sm:$0xff]
    %v952 = vld [vmem:[#allocation8 + $0x890] sm:$0xff]
    %v953 = vld [vmem:[#allocation8 + $0x898] sm:$0xff]
    %v954 = vld [vmem:[#allocation8 + $0x8a0] sm:$0xff]
    %v955 = vld [vmem:[#allocation8 + $0x8a8] sm:$0xff]
    %v956 = vld [vmem:[#allocation8 + $0x8b0] sm:$0xff]
    %v957 = vld [vmem:[#allocation8 + $0x8b8] sm:$0xff]
    %v958 = vld [vmem:[#allocation8 + $0x8c0] sm:$0xff]
    %v959 = vld [vmem:[#allocation8 + $0x8c8] sm:$0xff]
    %v960 = vld [vmem:[#allocation8 + $0x8d0] sm:$0xff]
    %v961 = vld [vmem:[#allocation8 + $0x8d8] sm:$0xff]
    %v962 = vld [vmem:[#allocation8 + $0x8e0] sm:$0xff]
    %v963 = vld [vmem:[#allocation8 + $0x8e8] sm:$0xff]
    %v964 = vld [vmem:[#allocation8 + $0x8f0] sm:$0xff]
    %v965 = vld [vmem:[#allocation8 + $0x8f8] sm:$0xff]
    %v966 = vld [vmem:[#allocation8 + $0x900] sm:$0xff]
    %v967 = vld [vmem:[#allocation8 + $0x908] sm:$0xff]
    %v968 = vld [vmem:[#allocation8 + $0x910] sm:$0xff]
    %v969 = vld [vmem:[#allocation8 + $0x918] sm:$0xff]
    %v970 = vld [vmem:[#allocation8 + $0x920] sm:$0xff]
    %v971 = vld [vmem:[#allocation8 + $0x928] sm:$0xff]
    %v972 = vld [vmem:[#allocation8 + $0x930] sm:$0xff]
    %v973 = vld [vmem:[#allocation8 + $0x938] sm:$0xff]
    %v974 = vld [vmem:[#allocation8 + $0x940] sm:$0xff]
    %v975 = vld [vmem:[#allocation8 + $0x948] sm:$0xff]
    %v976 = vld [vmem:[#allocation8 + $0x950] sm:$0xff]
    %v977 = vld [vmem:[#allocation8 + $0x958] sm:$0xff]
    %v978 = vld [vmem:[#allocation8 + $0x960] sm:$0xff]
    %v979 = vld [vmem:[#allocation8 + $0x968] sm:$0xff]
    %v980 = vld [vmem:[#allocation8 + $0x970] sm:$0xff]
    %v981 = vld [vmem:[#allocation8 + $0x978] sm:$0xff]
    %v982 = vld [vmem:[#allocation8 + $0x980] sm:$0xff]
    %v983 = vld [vmem:[#allocation8 + $0x988] sm:$0xff]
    %v984 = vld [vmem:[#allocation8 + $0x990] sm:$0xff]
    %v985 = vld [vmem:[#allocation8 + $0x998] sm:$0xff]
    %v986 = vld [vmem:[#allocation8 + $0x9a0] sm:$0xff]
    %v987 = vld [vmem:[#allocation8 + $0x9a8] sm:$0xff]
    %v988 = vld [vmem:[#allocation8 + $0x9b0] sm:$0xff]
    %v989 = vld [vmem:[#allocation8 + $0x9b8] sm:$0xff]
    %v990 = vld [vmem:[#allocation8 + $0x9c0] sm:$0xff]
    %v991 = vld [vmem:[#allocation8 + $0x9c8] sm:$0xff]
    %v992 = vld [vmem:[#allocation8 + $0x9d0] sm:$0xff]
    %v993 = vld [vmem:[#allocation8 + $0x9d8] sm:$0xff]
    %v994 = vld [vmem:[#allocation8 + $0x9e0] sm:$0xff]
    %v995 = vld [vmem:[#allocation8 + $0x9e8] sm:$0xff]
    %v996 = vld [vmem:[#allocation8 + $0x9f0] sm:$0xff]
    %v997 = vld [vmem:[#allocation8 + $0x9f8] sm:$0xff]
    %v998 = vld [vmem:[#allocation8 + $0xa00] sm:$0xff]
    %v999 = vld [vmem:[#allocation8 + $0xa08] sm:$0xff]
    %v1000 = vld [vmem:[#allocation8 + $0xa10] sm:$0xff]
    %v1001 = vld [vmem:[#allocation8 + $0xa18] sm:$0xff]
    %v1002 = vld [vmem:[#allocation8 + $0xa20] sm:$0xff]
    %v1003 = vld [vmem:[#allocation8 + $0xa28] sm:$0xff]
    %v1004 = vld [vmem:[#allocation8 + $0xa30] sm:$0xff]
    %v1005 = vld [vmem:[#allocation8 + $0xa38] sm:$0xff]
    %v1006 = vld [vmem:[#allocation8 + $0xa40] sm:$0xff]
    %v1007 = vld [vmem:[#allocation8 + $0xa48] sm:$0xff]
    %v1008 = vld [vmem:[#allocation8 + $0xa50] sm:$0xff]
    %v1009 = vld [vmem:[#allocation8 + $0xa58] sm:$0xff]
    %v1010 = vld [vmem:[#allocation8 + $0xa60] sm:$0xff]
    %v1011 = vld [vmem:[#allocation8 + $0xa68] sm:$0xff]
    %v1012 = vld [vmem:[#allocation8 + $0xa70] sm:$0xff]
    %v1013 = vld [vmem:[#allocation8 + $0xa78] sm:$0xff]
    %v1014 = vld [vmem:[#allocation8 + $0xa80] sm:$0xff]
    %v1015 = vld [vmem:[#allocation8 + $0xa88] sm:$0xff]
    %v1016 = vld [vmem:[#allocation8 + $0xa90] sm:$0xff]
    %v1017 = vld [vmem:[#allocation8 + $0xa98] sm:$0xff]
    %v1018 = vld [vmem:[#allocation8 + $0xaa0] sm:$0xff]
    %v1019 = vld [vmem:[#allocation8 + $0xaa8] sm:$0xff]
    %v1020 = vld [vmem:[#allocation8 + $0xab0] sm:$0xff]
    %v1021 = vld [vmem:[#allocation8 + $0xab8] sm:$0xff]
    %v1022 = vld [vmem:[#allocation8 + $0xac0] sm:$0xff]
    %v1023 = vld [vmem:[#allocation8 + $0xac8] sm:$0xff]
    %v1024 = vld [vmem:[#allocation8 + $0xad0] sm:$0xff]
    %v1025 = vld [vmem:[#allocation8 + $0xad8] sm:$0xff]
    %v1026 = vld [vmem:[#allocation8 + $0xae0] sm:$0xff]
    %v1027 = vld [vmem:[#allocation8 + $0xae8] sm:$0xff]
    %v1028 = vld [vmem:[#allocation8 + $0xaf0] sm:$0xff]
    %v1029 = vld [vmem:[#allocation8 + $0xaf8] sm:$0xff]
    %v1030 = vld [vmem:[#allocation8 + $0xb00] sm:$0xff]
    %v1031 = vld [vmem:[#allocation8 + $0xb08] sm:$0xff]
    %v1032 = vld [vmem:[#allocation8 + $0xb10] sm:$0xff]
    %v1033 = vld [vmem:[#allocation8 + $0xb18] sm:$0xff]
    %v1034 = vld [vmem:[#allocation8 + $0xb20] sm:$0xff]
    %v1035 = vld [vmem:[#allocation8 + $0xb28] sm:$0xff]
    %v1036 = vld [vmem:[#allocation8 + $0xb30] sm:$0xff]
    %v1037 = vld [vmem:[#allocation8 + $0xb38] sm:$0xff]
    %v1038 = vld [vmem:[#allocation8 + $0xb40] sm:$0xff]
    %v1039 = vld [vmem:[#allocation8 + $0xb48] sm:$0xff]
    %v1040 = vld [vmem:[#allocation8 + $0xb50] sm:$0xff]
    %v1041 = vld [vmem:[#allocation8 + $0xb58] sm:$0xff]
    %v1042 = vld [vmem:[#allocation8 + $0xb60] sm:$0xff]
    %v1043 = vld [vmem:[#allocation8 + $0xb68] sm:$0xff]
    %v1044 = vld [vmem:[#allocation8 + $0xb70] sm:$0xff]
    %v1045 = vld [vmem:[#allocation8 + $0xb78] sm:$0xff]
    %v1046 = vld [vmem:[#allocation8 + $0xb80] sm:$0xff]
    %v1047 = vld [vmem:[#allocation8 + $0xb88] sm:$0xff]
    %v1048 = vld [vmem:[#allocation8 + $0xb90] sm:$0xff]
    %v1049 = vld [vmem:[#allocation8 + $0xb98] sm:$0xff]
    %v1050 = vld [vmem:[#allocation8 + $0xba0] sm:$0xff]
    %v1051 = vld [vmem:[#allocation8 + $0xba8] sm:$0xff]
    %v1052 = vld [vmem:[#allocation8 + $0xbb0] sm:$0xff]
    %v1053 = vld [vmem:[#allocation8 + $0xbb8] sm:$0xff]
    %v1054 = vld [vmem:[#allocation8 + $0xbc0] sm:$0xff]
    %v1055 = vld [vmem:[#allocation8 + $0xbc8] sm:$0xff]
    %v1056 = vld [vmem:[#allocation8 + $0xbd0] sm:$0xff]
    %v1057 = vld [vmem:[#allocation8 + $0xbd8] sm:$0xff]
    %v1058 = vld [vmem:[#allocation8 + $0xbe0] sm:$0xff]
    %v1059 = vld [vmem:[#allocation8 + $0xbe8] sm:$0xff]
    %v1060 = vld [vmem:[#allocation8 + $0xbf0] sm:$0xff]
    %v1061 = vld [vmem:[#allocation8 + $0xbf8] sm:$0xff]
    %v1062 = vld [vmem:[#allocation8 + $0xc00] sm:$0xff]
    %v1063 = vld [vmem:[#allocation8 + $0xc08] sm:$0xff]
    %v1064 = vld [vmem:[#allocation8 + $0xc10] sm:$0xff]
    %v1065 = vld [vmem:[#allocation8 + $0xc18] sm:$0xff]
    %v1066 = vld [vmem:[#allocation8 + $0xc20] sm:$0xff]
    %v1067 = vld [vmem:[#allocation8 + $0xc28] sm:$0xff]
    %v1068 = vld [vmem:[#allocation8 + $0xc30] sm:$0xff]
    %v1069 = vld [vmem:[#allocation8 + $0xc38] sm:$0xff]
    %v1070 = vld [vmem:[#allocation8 + $0xc40] sm:$0xff]
    %v1071 = vld [vmem:[#allocation8 + $0xc48] sm:$0xff]
    %v1072 = vld [vmem:[#allocation8 + $0xc50] sm:$0xff]
    %v1073 = vld [vmem:[#allocation8 + $0xc58] sm:$0xff]
    %v1074 = vld [vmem:[#allocation8 + $0xc60] sm:$0xff]
    %v1075 = vld [vmem:[#allocation8 + $0xc68] sm:$0xff]
    %v1076 = vld [vmem:[#allocation8 + $0xc70] sm:$0xff]
    %v1077 = vld [vmem:[#allocation8 + $0xc78] sm:$0xff]
    %v1078 = vld [vmem:[#allocation8 + $0xc80] sm:$0xff]
    %v1079 = vld [vmem:[#allocation8 + $0xc88] sm:$0xff]
    %v1080 = vld [vmem:[#allocation8 + $0xc90] sm:$0xff]
    %v1081 = vld [vmem:[#allocation8 + $0xc98] sm:$0xff]
    %v1082 = vld [vmem:[#allocation8 + $0xca0] sm:$0xff]
    %v1083 = vld [vmem:[#allocation8 + $0xca8] sm:$0xff]
    %v1084 = vld [vmem:[#allocation8 + $0xcb0] sm:$0xff]
    %v1085 = vld [vmem:[#allocation8 + $0xcb8] sm:$0xff]
    %v1086 = vld [vmem:[#allocation8 + $0xcc0] sm:$0xff]
    %v1087 = vld [vmem:[#allocation8 + $0xcc8] sm:$0xff]
    %v1088 = vld [vmem:[#allocation8 + $0xcd0] sm:$0xff]
    %v1089 = vld [vmem:[#allocation8 + $0xcd8] sm:$0xff]
    %v1090 = vld [vmem:[#allocation8 + $0xce0] sm:$0xff]
    %v1091 = vld [vmem:[#allocation8 + $0xce8] sm:$0xff]
    %v1092 = vld [vmem:[#allocation8 + $0xcf0] sm:$0xff]
    %v1093 = vld [vmem:[#allocation8 + $0xcf8] sm:$0xff]
    %v1094 = vld [vmem:[#allocation8 + $0xd00] sm:$0xff]
    %v1095 = vld [vmem:[#allocation8 + $0xd08] sm:$0xff]
    %v1096 = vld [vmem:[#allocation8 + $0xd10] sm:$0xff]
    %v1097 = vld [vmem:[#allocation8 + $0xd18] sm:$0xff]
    %v1098 = vld [vmem:[#allocation8 + $0xd20] sm:$0xff]
    %v1099 = vld [vmem:[#allocation8 + $0xd28] sm:$0xff]
    %v1100 = vld [vmem:[#allocation8 + $0xd30] sm:$0xff]
    %v1101 = vld [vmem:[#allocation8 + $0xd38] sm:$0xff]
    %v1102 = vld [vmem:[#allocation8 + $0xd40] sm:$0xff]
    %v1103 = vld [vmem:[#allocation8 + $0xd48] sm:$0xff]
    %v1104 = vld [vmem:[#allocation8 + $0xd50] sm:$0xff]
    %v1105 = vld [vmem:[#allocation8 + $0xd58] sm:$0xff]
    %v1106 = vld [vmem:[#allocation8 + $0xd60] sm:$0xff]
    %v1107 = vld [vmem:[#allocation8 + $0xd68] sm:$0xff]
    %v1108 = vld [vmem:[#allocation8 + $0xd70] sm:$0xff]
    %v1109 = vld [vmem:[#allocation8 + $0xd78] sm:$0xff]
    %v1110 = vld [vmem:[#allocation8 + $0xd80] sm:$0xff]
    %v1111 = vld [vmem:[#allocation8 + $0xd88] sm:$0xff]
    %v1112 = vld [vmem:[#allocation8 + $0xd90] sm:$0xff]
    %v1113 = vld [vmem:[#allocation8 + $0xd98] sm:$0xff]
    %v1114 = vld [vmem:[#allocation8 + $0xda0] sm:$0xff]
    %v1115 = vld [vmem:[#allocation8 + $0xda8] sm:$0xff]
    %v1116 = vld [vmem:[#allocation8 + $0xdb0] sm:$0xff]
    %v1117 = vld [vmem:[#allocation8 + $0xdb8] sm:$0xff]
    %v1118 = vld [vmem:[#allocation8 + $0xdc0] sm:$0xff]
    %v1119 = vld [vmem:[#allocation8 + $0xdc8] sm:$0xff]
    %v1120 = vld [vmem:[#allocation8 + $0xdd0] sm:$0xff]
    %v1121 = vld [vmem:[#allocation8 + $0xdd8] sm:$0xff]
    %v1122 = vld [vmem:[#allocation8 + $0xde0] sm:$0xff]
    %v1123 = vld [vmem:[#allocation8 + $0xde8] sm:$0xff]
    %v1124 = vld [vmem:[#allocation8 + $0xdf0] sm:$0xff]
    %v1125 = vld [vmem:[#allocation8 + $0xdf8] sm:$0xff]
    %v1126 = vld [vmem:[#allocation8 + $0xe00] sm:$0xff]
    %v1127 = vld [vmem:[#allocation8 + $0xe08] sm:$0xff]
    %v1128 = vld [vmem:[#allocation8 + $0xe10] sm:$0xff]
    %v1129 = vld [vmem:[#allocation8 + $0xe18] sm:$0xff]
    %v1130 = vld [vmem:[#allocation8 + $0xe20] sm:$0xff]
    %v1131 = vld [vmem:[#allocation8 + $0xe28] sm:$0xff]
    %v1132 = vld [vmem:[#allocation8 + $0xe30] sm:$0xff]
    %v1133 = vld [vmem:[#allocation8 + $0xe38] sm:$0xff]
    %v1134 = vld [vmem:[#allocation8 + $0xe40] sm:$0xff]
    %v1135 = vld [vmem:[#allocation8 + $0xe48] sm:$0xff]
    %v1136 = vld [vmem:[#allocation8 + $0xe50] sm:$0xff]
    %v1137 = vld [vmem:[#allocation8 + $0xe58] sm:$0xff]
    %v1138 = vld [vmem:[#allocation8 + $0xe60] sm:$0xff]
    %v1139 = vld [vmem:[#allocation8 + $0xe68] sm:$0xff]
    %v1140 = vld [vmem:[#allocation8 + $0xe70] sm:$0xff]
    %v1141 = vld [vmem:[#allocation8 + $0xe78] sm:$0xff]
    %v1142 = vld [vmem:[#allocation8 + $0xe80] sm:$0xff]
    %v1143 = vld [vmem:[#allocation8 + $0xe88] sm:$0xff]
    %v1144 = vld [vmem:[#allocation8 + $0xe90] sm:$0xff]
    %v1145 = vld [vmem:[#allocation8 + $0xe98] sm:$0xff]
    %v1146 = vld [vmem:[#allocation8 + $0xea0] sm:$0xff]
    %v1147 = vld [vmem:[#allocation8 + $0xea8] sm:$0xff]
    %v1148 = vld [vmem:[#allocation8 + $0xeb0] sm:$0xff]
    %v1149 = vld [vmem:[#allocation8 + $0xeb8] sm:$0xff]
    %v1150 = vld [vmem:[#allocation8 + $0xec0] sm:$0xff]
    %v1151 = vld [vmem:[#allocation8 + $0xec8] sm:$0xff]
    %v1152 = vld [vmem:[#allocation8 + $0xed0] sm:$0xff]
    %v1153 = vld [vmem:[#allocation8 + $0xed8] sm:$0xff]
    %v1154 = vld [vmem:[#allocation8 + $0xee0] sm:$0xff]
    %v1155 = vld [vmem:[#allocation8 + $0xee8] sm:$0xff]
    %v1156 = vld [vmem:[#allocation8 + $0xef0] sm:$0xff]
    %v1157 = vld [vmem:[#allocation8 + $0xef8] sm:$0xff]
    %v1158 = vld [vmem:[#allocation8 + $0xf00] sm:$0xff]
    %v1159 = vld [vmem:[#allocation8 + $0xf08] sm:$0xff]
    %v1160 = vld [vmem:[#allocation8 + $0xf10] sm:$0xff]
    %v1161 = vld [vmem:[#allocation8 + $0xf18] sm:$0xff]
    %v1162 = vld [vmem:[#allocation8 + $0xf20] sm:$0xff]
    %v1163 = vld [vmem:[#allocation8 + $0xf28] sm:$0xff]
    %v1164 = vld [vmem:[#allocation8 + $0xf30] sm:$0xff]
    %v1165 = vld [vmem:[#allocation8 + $0xf38] sm:$0xff]
    %v1166 = vld [vmem:[#allocation8 + $0xf40] sm:$0xff]
    %v1167 = vld [vmem:[#allocation8 + $0xf48] sm:$0xff]
    %v1168 = vld [vmem:[#allocation8 + $0xf50] sm:$0xff]
    %v1169 = vld [vmem:[#allocation8 + $0xf58] sm:$0xff]
    %v1170 = vld [vmem:[#allocation8 + $0xf60] sm:$0xff]
    %v1171 = vld [vmem:[#allocation8 + $0xf68] sm:$0xff]
    %v1172 = vld [vmem:[#allocation8 + $0xf70] sm:$0xff]
    %v1173 = vld [vmem:[#allocation8 + $0xf78] sm:$0xff]
    %v1174 = vld [vmem:[#allocation8 + $0xf80] sm:$0xff]
    %v1175 = vld [vmem:[#allocation8 + $0xf88] sm:$0xff]
    %v1176 = vld [vmem:[#allocation8 + $0xf90] sm:$0xff]
    %v1177 = vld [vmem:[#allocation8 + $0xf98] sm:$0xff]
    %v1178 = vld [vmem:[#allocation8 + $0xfa0] sm:$0xff]
    %v1179 = vld [vmem:[#allocation8 + $0xfa8] sm:$0xff]
    %v1180 = vld [vmem:[#allocation8 + $0xfb0] sm:$0xff]
    %v1181 = vld [vmem:[#allocation8 + $0xfb8] sm:$0xff]
    %v1182 = vld [vmem:[#allocation8 + $0xfc0] sm:$0xff]
    %v1183 = vld [vmem:[#allocation8 + $0xfc8] sm:$0xff]
    %v1184 = vld [vmem:[#allocation8 + $0xfd0] sm:$0xff]
    %v1185 = vld [vmem:[#allocation8 + $0xfd8] sm:$0xff]
    %v1186 = vld [vmem:[#allocation8 + $0xfe0] sm:$0xff]
    %v1187 = vld [vmem:[#allocation8 + $0xfe8] sm:$0xff]
    %v1188 = vld [vmem:[#allocation8 + $0xff0] sm:$0xff]
    %v1189 = vld [vmem:[#allocation8 + $0xff8] sm:$0xff]
    %v1198 = vunpack.c.l.b16 %v158
    %v1199 = vunpack.c.h.b16 %v158
    %v1200 = vunpack.c.l.b16 %v159
    %v1201 = vunpack.c.h.b16 %v159
    %v1202 = vunpack.c.l.b16 %v160
    %v1203 = vunpack.c.h.b16 %v160
    %v1204 = vunpack.c.l.b16 %v161
    %v1205 = vunpack.c.h.b16 %v161
    %v1206 = vunpack.c.l.b16 %v162
    %v1207 = vunpack.c.h.b16 %v162
    %v1208 = vunpack.c.l.b16 %v163
    %v1209 = vunpack.c.h.b16 %v163
    %v1210 = vunpack.c.l.b16 %v164
    %v1211 = vunpack.c.h.b16 %v164
    %v1212 = vunpack.c.l.b16 %v165
    %v1213 = vunpack.c.h.b16 %v165
    %v1214 = vpack.c.b16 %v1206, %v1198
    %v1215 = vpack.c.b16 %v1207, %v1199
    %v1216 = vpack.c.b16 %v1208, %v1200
    %v1217 = vpack.c.b16 %v1209, %v1201
    %v1218 = vpack.c.b16 %v1210, %v1202
    %v1219 = vpack.c.b16 %v1211, %v1203
    %v1220 = vpack.c.b16 %v1212, %v1204
    %v1221 = vpack.c.b16 %v1213, %v1205
    %v1742 = vunpack.c.l.b16 %v678
    %v1743 = vunpack.c.h.b16 %v678
    %v1744 = vunpack.c.l.b16 %v679
    %v1745 = vunpack.c.h.b16 %v679
    %v1746 = vunpack.c.l.b16 %v680
    %v1747 = vunpack.c.h.b16 %v680
    %v1748 = vunpack.c.l.b16 %v681
    %v1749 = vunpack.c.h.b16 %v681
    %v1750 = vunpack.c.l.b16 %v682
    %v1751 = vunpack.c.h.b16 %v682
    %v1752 = vunpack.c.l.b16 %v683
    %v1753 = vunpack.c.h.b16 %v683
    %v1754 = vunpack.c.l.b16 %v684
    %v1755 = vunpack.c.h.b16 %v684
    %v1756 = vunpack.c.l.b16 %v685
    %v1757 = vunpack.c.h.b16 %v685
    %v1758 = vunpack.c.l.b16 %v686
    %v1759 = vunpack.c.h.b16 %v686
    %v1760 = vunpack.c.l.b16 %v687
    %v1761 = vunpack.c.h.b16 %v687
    %v1762 = vunpack.c.l.b16 %v688
    %v1763 = vunpack.c.h.b16 %v688
    %v1764 = vunpack.c.l.b16 %v689
    %v1765 = vunpack.c.h.b16 %v689
    %v1766 = vunpack.c.l.b16 %v690
    %v1767 = vunpack.c.h.b16 %v690
    %v1768 = vunpack.c.l.b16 %v691
    %v1769 = vunpack.c.h.b16 %v691
    %v1770 = vunpack.c.l.b16 %v692
    %v1771 = vunpack.c.h.b16 %v692
    %v1772 = vunpack.c.l.b16 %v693
    %v1773 = vunpack.c.h.b16 %v693
    %v1774 = vunpack.c.l.b16 %v694
    %v1775 = vunpack.c.h.b16 %v694
    %v1776 = vunpack.c.l.b16 %v695
    %v1777 = vunpack.c.h.b16 %v695
    %v1778 = vunpack.c.l.b16 %v696
    %v1779 = vunpack.c.h.b16 %v696
    %v1780 = vunpack.c.l.b16 %v697
    %v1781 = vunpack.c.h.b16 %v697
    %v1782 = vunpack.c.l.b16 %v698
    %v1783 = vunpack.c.h.b16 %v698
    %v1784 = vunpack.c.l.b16 %v699
    %v1785 = vunpack.c.h.b16 %v699
    %v1786 = vunpack.c.l.b16 %v700
    %v1787 = vunpack.c.h.b16 %v700
    %v1788 = vunpack.c.l.b16 %v701
    %v1789 = vunpack.c.h.b16 %v701
    %v1790 = vunpack.c.l.b16 %v702
    %v1791 = vunpack.c.h.b16 %v702
    %v1792 = vunpack.c.l.b16 %v703
    %v1793 = vunpack.c.h.b16 %v703
    %v1794 = vunpack.c.l.b16 %v704
    %v1795 = vunpack.c.h.b16 %v704
    %v1796 = vunpack.c.l.b16 %v705
    %v1797 = vunpack.c.h.b16 %v705
    %v1798 = vunpack.c.l.b16 %v706
    %v1799 = vunpack.c.h.b16 %v706
    %v1800 = vunpack.c.l.b16 %v707
    %v1801 = vunpack.c.h.b16 %v707
    %v1802 = vunpack.c.l.b16 %v708
    %v1803 = vunpack.c.h.b16 %v708
    %v1804 = vunpack.c.l.b16 %v709
    %v1805 = vunpack.c.h.b16 %v709
    %v1806 = vunpack.c.l.b16 %v710
    %v1807 = vunpack.c.h.b16 %v710
    %v1808 = vunpack.c.l.b16 %v711
    %v1809 = vunpack.c.h.b16 %v711
    %v1810 = vunpack.c.l.b16 %v712
    %v1811 = vunpack.c.h.b16 %v712
    %v1812 = vunpack.c.l.b16 %v713
    %v1813 = vunpack.c.h.b16 %v713
    %v1814 = vunpack.c.l.b16 %v714
    %v1815 = vunpack.c.h.b16 %v714
    %v1816 = vunpack.c.l.b16 %v715
    %v1817 = vunpack.c.h.b16 %v715
    %v1818 = vunpack.c.l.b16 %v716
    %v1819 = vunpack.c.h.b16 %v716
    %v1820 = vunpack.c.l.b16 %v717
    %v1821 = vunpack.c.h.b16 %v717
    %v1822 = vunpack.c.l.b16 %v718
    %v1823 = vunpack.c.h.b16 %v718
    %v1824 = vunpack.c.l.b16 %v719
    %v1825 = vunpack.c.h.b16 %v719
    %v1826 = vunpack.c.l.b16 %v720
    %v1827 = vunpack.c.h.b16 %v720
    %v1828 = vunpack.c.l.b16 %v721
    %v1829 = vunpack.c.h.b16 %v721
    %v1830 = vunpack.c.l.b16 %v722
    %v1831 = vunpack.c.h.b16 %v722
    %v1832 = vunpack.c.l.b16 %v723
    %v1833 = vunpack.c.h.b16 %v723
    %v1834 = vunpack.c.l.b16 %v724
    %v1835 = vunpack.c.h.b16 %v724
    %v1836 = vunpack.c.l.b16 %v725
    %v1837 = vunpack.c.h.b16 %v725
    %v1838 = vunpack.c.l.b16 %v726
    %v1839 = vunpack.c.h.b16 %v726
    %v1840 = vunpack.c.l.b16 %v727
    %v1841 = vunpack.c.h.b16 %v727
    %v1842 = vunpack.c.l.b16 %v728
    %v1843 = vunpack.c.h.b16 %v728
    %v1844 = vunpack.c.l.b16 %v729
    %v1845 = vunpack.c.h.b16 %v729
    %v1846 = vunpack.c.l.b16 %v730
    %v1847 = vunpack.c.h.b16 %v730
    %v1848 = vunpack.c.l.b16 %v731
    %v1849 = vunpack.c.h.b16 %v731
    %v1850 = vunpack.c.l.b16 %v732
    %v1851 = vunpack.c.h.b16 %v732
    %v1852 = vunpack.c.l.b16 %v733
    %v1853 = vunpack.c.h.b16 %v733
    %v1854 = vunpack.c.l.b16 %v734
    %v1855 = vunpack.c.h.b16 %v734
    %v1856 = vunpack.c.l.b16 %v735
    %v1857 = vunpack.c.h.b16 %v735
    %v1858 = vunpack.c.l.b16 %v736
    %v1859 = vunpack.c.h.b16 %v736
    %v1860 = vunpack.c.l.b16 %v737
    %v1861 = vunpack.c.h.b16 %v737
    %v1862 = vunpack.c.l.b16 %v738
    %v1863 = vunpack.c.h.b16 %v738
    %v1864 = vunpack.c.l.b16 %v739
    %v1865 = vunpack.c.h.b16 %v739
    %v1866 = vunpack.c.l.b16 %v740
    %v1867 = vunpack.c.h.b16 %v740
    %v1868 = vunpack.c.l.b16 %v741
    %v1869 = vunpack.c.h.b16 %v741
    %v1870 = vunpack.c.l.b16 %v742
    %v1871 = vunpack.c.h.b16 %v742
    %v1872 = vunpack.c.l.b16 %v743
    %v1873 = vunpack.c.h.b16 %v743
    %v1874 = vunpack.c.l.b16 %v744
    %v1875 = vunpack.c.h.b16 %v744
    %v1876 = vunpack.c.l.b16 %v745
    %v1877 = vunpack.c.h.b16 %v745
    %v1878 = vunpack.c.l.b16 %v746
    %v1879 = vunpack.c.h.b16 %v746
    %v1880 = vunpack.c.l.b16 %v747
    %v1881 = vunpack.c.h.b16 %v747
    %v1882 = vunpack.c.l.b16 %v748
    %v1883 = vunpack.c.h.b16 %v748
    %v1884 = vunpack.c.l.b16 %v749
    %v1885 = vunpack.c.h.b16 %v749
    %v1886 = vunpack.c.l.b16 %v750
    %v1887 = vunpack.c.h.b16 %v750
    %v1888 = vunpack.c.l.b16 %v751
    %v1889 = vunpack.c.h.b16 %v751
    %v1890 = vunpack.c.l.b16 %v752
    %v1891 = vunpack.c.h.b16 %v752
    %v1892 = vunpack.c.l.b16 %v753
    %v1893 = vunpack.c.h.b16 %v753
    %v1894 = vunpack.c.l.b16 %v754
    %v1895 = vunpack.c.h.b16 %v754
    %v1896 = vunpack.c.l.b16 %v755
    %v1897 = vunpack.c.h.b16 %v755
    %v1898 = vunpack.c.l.b16 %v756
    %v1899 = vunpack.c.h.b16 %v756
    %v1900 = vunpack.c.l.b16 %v757
    %v1901 = vunpack.c.h.b16 %v757
    %v1902 = vunpack.c.l.b16 %v758
    %v1903 = vunpack.c.h.b16 %v758
    %v1904 = vunpack.c.l.b16 %v759
    %v1905 = vunpack.c.h.b16 %v759
    %v1906 = vunpack.c.l.b16 %v760
    %v1907 = vunpack.c.h.b16 %v760
    %v1908 = vunpack.c.l.b16 %v761
    %v1909 = vunpack.c.h.b16 %v761
    %v1910 = vunpack.c.l.b16 %v762
    %v1911 = vunpack.c.h.b16 %v762
    %v1912 = vunpack.c.l.b16 %v763
    %v1913 = vunpack.c.h.b16 %v763
    %v1914 = vunpack.c.l.b16 %v764
    %v1915 = vunpack.c.h.b16 %v764
    %v1916 = vunpack.c.l.b16 %v765
    %v1917 = vunpack.c.h.b16 %v765
    %v1918 = vunpack.c.l.b16 %v766
    %v1919 = vunpack.c.h.b16 %v766
    %v1920 = vunpack.c.l.b16 %v767
    %v1921 = vunpack.c.h.b16 %v767
    %v1922 = vunpack.c.l.b16 %v768
    %v1923 = vunpack.c.h.b16 %v768
    %v1924 = vunpack.c.l.b16 %v769
    %v1925 = vunpack.c.h.b16 %v769
    %v1926 = vunpack.c.l.b16 %v770
    %v1927 = vunpack.c.h.b16 %v770
    %v1928 = vunpack.c.l.b16 %v771
    %v1929 = vunpack.c.h.b16 %v771
    %v1930 = vunpack.c.l.b16 %v772
    %v1931 = vunpack.c.h.b16 %v772
    %v1932 = vunpack.c.l.b16 %v773
    %v1933 = vunpack.c.h.b16 %v773
    %v1934 = vunpack.c.l.b16 %v774
    %v1935 = vunpack.c.h.b16 %v774
    %v1936 = vunpack.c.l.b16 %v775
    %v1937 = vunpack.c.h.b16 %v775
    %v1938 = vunpack.c.l.b16 %v776
    %v1939 = vunpack.c.h.b16 %v776
    %v1940 = vunpack.c.l.b16 %v777
    %v1941 = vunpack.c.h.b16 %v777
    %v1942 = vunpack.c.l.b16 %v778
    %v1943 = vunpack.c.h.b16 %v778
    %v1944 = vunpack.c.l.b16 %v779
    %v1945 = vunpack.c.h.b16 %v779
    %v1946 = vunpack.c.l.b16 %v780
    %v1947 = vunpack.c.h.b16 %v780
    %v1948 = vunpack.c.l.b16 %v781
    %v1949 = vunpack.c.h.b16 %v781
    %v1950 = vunpack.c.l.b16 %v782
    %v1951 = vunpack.c.h.b16 %v782
    %v1952 = vunpack.c.l.b16 %v783
    %v1953 = vunpack.c.h.b16 %v783
    %v1954 = vunpack.c.l.b16 %v784
    %v1955 = vunpack.c.h.b16 %v784
    %v1956 = vunpack.c.l.b16 %v785
    %v1957 = vunpack.c.h.b16 %v785
    %v1958 = vunpack.c.l.b16 %v786
    %v1959 = vunpack.c.h.b16 %v786
    %v1960 = vunpack.c.l.b16 %v787
    %v1961 = vunpack.c.h.b16 %v787
    %v1962 = vunpack.c.l.b16 %v788
    %v1963 = vunpack.c.h.b16 %v788
    %v1964 = vunpack.c.l.b16 %v789
    %v1965 = vunpack.c.h.b16 %v789
    %v1966 = vunpack.c.l.b16 %v790
    %v1967 = vunpack.c.h.b16 %v790
    %v1968 = vunpack.c.l.b16 %v791
    %v1969 = vunpack.c.h.b16 %v791
    %v1970 = vunpack.c.l.b16 %v792
    %v1971 = vunpack.c.h.b16 %v792
    %v1972 = vunpack.c.l.b16 %v793
    %v1973 = vunpack.c.h.b16 %v793
    %v1974 = vunpack.c.l.b16 %v794
    %v1975 = vunpack.c.h.b16 %v794
    %v1976 = vunpack.c.l.b16 %v795
    %v1977 = vunpack.c.h.b16 %v795
    %v1978 = vunpack.c.l.b16 %v796
    %v1979 = vunpack.c.h.b16 %v796
    %v1980 = vunpack.c.l.b16 %v797
    %v1981 = vunpack.c.h.b16 %v797
    %v1982 = vunpack.c.l.b16 %v798
    %v1983 = vunpack.c.h.b16 %v798
    %v1984 = vunpack.c.l.b16 %v799
    %v1985 = vunpack.c.h.b16 %v799
    %v1986 = vunpack.c.l.b16 %v800
    %v1987 = vunpack.c.h.b16 %v800
    %v1988 = vunpack.c.l.b16 %v801
    %v1989 = vunpack.c.h.b16 %v801
    %v1990 = vunpack.c.l.b16 %v802
    %v1991 = vunpack.c.h.b16 %v802
    %v1992 = vunpack.c.l.b16 %v803
    %v1993 = vunpack.c.h.b16 %v803
    %v1994 = vunpack.c.l.b16 %v804
    %v1995 = vunpack.c.h.b16 %v804
    %v1996 = vunpack.c.l.b16 %v805
    %v1997 = vunpack.c.h.b16 %v805
    %v1998 = vunpack.c.l.b16 %v806
    %v1999 = vunpack.c.h.b16 %v806
    %v2000 = vunpack.c.l.b16 %v807
    %v2001 = vunpack.c.h.b16 %v807
    %v2002 = vunpack.c.l.b16 %v808
    %v2003 = vunpack.c.h.b16 %v808
    %v2004 = vunpack.c.l.b16 %v809
    %v2005 = vunpack.c.h.b16 %v809
    %v2006 = vunpack.c.l.b16 %v810
    %v2007 = vunpack.c.h.b16 %v810
    %v2008 = vunpack.c.l.b16 %v811
    %v2009 = vunpack.c.h.b16 %v811
    %v2010 = vunpack.c.l.b16 %v812
    %v2011 = vunpack.c.h.b16 %v812
    %v2012 = vunpack.c.l.b16 %v813
    %v2013 = vunpack.c.h.b16 %v813
    %v2014 = vunpack.c.l.b16 %v814
    %v2015 = vunpack.c.h.b16 %v814
    %v2016 = vunpack.c.l.b16 %v815
    %v2017 = vunpack.c.h.b16 %v815
    %v2018 = vunpack.c.l.b16 %v816
    %v2019 = vunpack.c.h.b16 %v816
    %v2020 = vunpack.c.l.b16 %v817
    %v2021 = vunpack.c.h.b16 %v817
    %v2022 = vunpack.c.l.b16 %v818
    %v2023 = vunpack.c.h.b16 %v818
    %v2024 = vunpack.c.l.b16 %v819
    %v2025 = vunpack.c.h.b16 %v819
    %v2026 = vunpack.c.l.b16 %v820
    %v2027 = vunpack.c.h.b16 %v820
    %v2028 = vunpack.c.l.b16 %v821
    %v2029 = vunpack.c.h.b16 %v821
    %v2030 = vunpack.c.l.b16 %v822
    %v2031 = vunpack.c.h.b16 %v822
    %v2032 = vunpack.c.l.b16 %v823
    %v2033 = vunpack.c.h.b16 %v823
    %v2034 = vunpack.c.l.b16 %v824
    %v2035 = vunpack.c.h.b16 %v824
    %v2036 = vunpack.c.l.b16 %v825
    %v2037 = vunpack.c.h.b16 %v825
    %v2038 = vunpack.c.l.b16 %v826
    %v2039 = vunpack.c.h.b16 %v826
    %v2040 = vunpack.c.l.b16 %v827
    %v2041 = vunpack.c.h.b16 %v827
    %v2042 = vunpack.c.l.b16 %v828
    %v2043 = vunpack.c.h.b16 %v828
    %v2044 = vunpack.c.l.b16 %v829
    %v2045 = vunpack.c.h.b16 %v829
    %v2046 = vunpack.c.l.b16 %v830
    %v2047 = vunpack.c.h.b16 %v830
    %v2048 = vunpack.c.l.b16 %v831
    %v2049 = vunpack.c.h.b16 %v831
    %v2050 = vunpack.c.l.b16 %v832
    %v2051 = vunpack.c.h.b16 %v832
    %v2052 = vunpack.c.l.b16 %v833
    %v2053 = vunpack.c.h.b16 %v833
    %v2054 = vunpack.c.l.b16 %v834
    %v2055 = vunpack.c.h.b16 %v834
    %v2056 = vunpack.c.l.b16 %v835
    %v2057 = vunpack.c.h.b16 %v835
    %v2058 = vunpack.c.l.b16 %v836
    %v2059 = vunpack.c.h.b16 %v836
    %v2060 = vunpack.c.l.b16 %v837
    %v2061 = vunpack.c.h.b16 %v837
    %v2062 = vunpack.c.l.b16 %v838
    %v2063 = vunpack.c.h.b16 %v838
    %v2064 = vunpack.c.l.b16 %v839
    %v2065 = vunpack.c.h.b16 %v839
    %v2066 = vunpack.c.l.b16 %v840
    %v2067 = vunpack.c.h.b16 %v840
    %v2068 = vunpack.c.l.b16 %v841
    %v2069 = vunpack.c.h.b16 %v841
    %v2070 = vunpack.c.l.b16 %v842
    %v2071 = vunpack.c.h.b16 %v842
    %v2072 = vunpack.c.l.b16 %v843
    %v2073 = vunpack.c.h.b16 %v843
    %v2074 = vunpack.c.l.b16 %v844
    %v2075 = vunpack.c.h.b16 %v844
    %v2076 = vunpack.c.l.b16 %v845
    %v2077 = vunpack.c.h.b16 %v845
    %v2078 = vunpack.c.l.b16 %v846
    %v2079 = vunpack.c.h.b16 %v846
    %v2080 = vunpack.c.l.b16 %v847
    %v2081 = vunpack.c.h.b16 %v847
    %v2082 = vunpack.c.l.b16 %v848
    %v2083 = vunpack.c.h.b16 %v848
    %v2084 = vunpack.c.l.b16 %v849
    %v2085 = vunpack.c.h.b16 %v849
    %v2086 = vunpack.c.l.b16 %v850
    %v2087 = vunpack.c.h.b16 %v850
    %v2088 = vunpack.c.l.b16 %v851
    %v2089 = vunpack.c.h.b16 %v851
    %v2090 = vunpack.c.l.b16 %v852
    %v2091 = vunpack.c.h.b16 %v852
    %v2092 = vunpack.c.l.b16 %v853
    %v2093 = vunpack.c.h.b16 %v853
    %v2094 = vunpack.c.l.b16 %v854
    %v2095 = vunpack.c.h.b16 %v854
    %v2096 = vunpack.c.l.b16 %v855
    %v2097 = vunpack.c.h.b16 %v855
    %v2098 = vunpack.c.l.b16 %v856
    %v2099 = vunpack.c.h.b16 %v856
    %v2100 = vunpack.c.l.b16 %v857
    %v2101 = vunpack.c.h.b16 %v857
    %v2102 = vunpack.c.l.b16 %v858
    %v2103 = vunpack.c.h.b16 %v858
    %v2104 = vunpack.c.l.b16 %v859
    %v2105 = vunpack.c.h.b16 %v859
    %v2106 = vunpack.c.l.b16 %v860
    %v2107 = vunpack.c.h.b16 %v860
    %v2108 = vunpack.c.l.b16 %v861
    %v2109 = vunpack.c.h.b16 %v861
    %v2110 = vunpack.c.l.b16 %v862
    %v2111 = vunpack.c.h.b16 %v862
    %v2112 = vunpack.c.l.b16 %v863
    %v2113 = vunpack.c.h.b16 %v863
    %v2114 = vunpack.c.l.b16 %v864
    %v2115 = vunpack.c.h.b16 %v864
    %v2116 = vunpack.c.l.b16 %v865
    %v2117 = vunpack.c.h.b16 %v865
    %v2118 = vunpack.c.l.b16 %v866
    %v2119 = vunpack.c.h.b16 %v866
    %v2120 = vunpack.c.l.b16 %v867
    %v2121 = vunpack.c.h.b16 %v867
    %v2122 = vunpack.c.l.b16 %v868
    %v2123 = vunpack.c.h.b16 %v868
    %v2124 = vunpack.c.l.b16 %v869
    %v2125 = vunpack.c.h.b16 %v869
    %v2126 = vunpack.c.l.b16 %v870
    %v2127 = vunpack.c.h.b16 %v870
    %v2128 = vunpack.c.l.b16 %v871
    %v2129 = vunpack.c.h.b16 %v871
    %v2130 = vunpack.c.l.b16 %v872
    %v2131 = vunpack.c.h.b16 %v872
    %v2132 = vunpack.c.l.b16 %v873
    %v2133 = vunpack.c.h.b16 %v873
    %v2134 = vunpack.c.l.b16 %v874
    %v2135 = vunpack.c.h.b16 %v874
    %v2136 = vunpack.c.l.b16 %v875
    %v2137 = vunpack.c.h.b16 %v875
    %v2138 = vunpack.c.l.b16 %v876
    %v2139 = vunpack.c.h.b16 %v876
    %v2140 = vunpack.c.l.b16 %v877
    %v2141 = vunpack.c.h.b16 %v877
    %v2142 = vunpack.c.l.b16 %v878
    %v2143 = vunpack.c.h.b16 %v878
    %v2144 = vunpack.c.l.b16 %v879
    %v2145 = vunpack.c.h.b16 %v879
    %v2146 = vunpack.c.l.b16 %v880
    %v2147 = vunpack.c.h.b16 %v880
    %v2148 = vunpack.c.l.b16 %v881
    %v2149 = vunpack.c.h.b16 %v881
    %v2150 = vunpack.c.l.b16 %v882
    %v2151 = vunpack.c.h.b16 %v882
    %v2152 = vunpack.c.l.b16 %v883
    %v2153 = vunpack.c.h.b16 %v883
    %v2154 = vunpack.c.l.b16 %v884
    %v2155 = vunpack.c.h.b16 %v884
    %v2156 = vunpack.c.l.b16 %v885
    %v2157 = vunpack.c.h.b16 %v885
    %v2158 = vunpack.c.l.b16 %v886
    %v2159 = vunpack.c.h.b16 %v886
    %v2160 = vunpack.c.l.b16 %v887
    %v2161 = vunpack.c.h.b16 %v887
    %v2162 = vunpack.c.l.b16 %v888
    %v2163 = vunpack.c.h.b16 %v888
    %v2164 = vunpack.c.l.b16 %v889
    %v2165 = vunpack.c.h.b16 %v889
    %v2166 = vunpack.c.l.b16 %v890
    %v2167 = vunpack.c.h.b16 %v890
    %v2168 = vunpack.c.l.b16 %v891
    %v2169 = vunpack.c.h.b16 %v891
    %v2170 = vunpack.c.l.b16 %v892
    %v2171 = vunpack.c.h.b16 %v892
    %v2172 = vunpack.c.l.b16 %v893
    %v2173 = vunpack.c.h.b16 %v893
    %v2174 = vunpack.c.l.b16 %v894
    %v2175 = vunpack.c.h.b16 %v894
    %v2176 = vunpack.c.l.b16 %v895
    %v2177 = vunpack.c.h.b16 %v895
    %v2178 = vunpack.c.l.b16 %v896
    %v2179 = vunpack.c.h.b16 %v896
    %v2180 = vunpack.c.l.b16 %v897
    %v2181 = vunpack.c.h.b16 %v897
    %v2182 = vunpack.c.l.b16 %v898
    %v2183 = vunpack.c.h.b16 %v898
    %v2184 = vunpack.c.l.b16 %v899
    %v2185 = vunpack.c.h.b16 %v899
    %v2186 = vunpack.c.l.b16 %v900
    %v2187 = vunpack.c.h.b16 %v900
    %v2188 = vunpack.c.l.b16 %v901
    %v2189 = vunpack.c.h.b16 %v901
    %v2190 = vunpack.c.l.b16 %v902
    %v2191 = vunpack.c.h.b16 %v902
    %v2192 = vunpack.c.l.b16 %v903
    %v2193 = vunpack.c.h.b16 %v903
    %v2194 = vunpack.c.l.b16 %v904
    %v2195 = vunpack.c.h.b16 %v904
    %v2196 = vunpack.c.l.b16 %v905
    %v2197 = vunpack.c.h.b16 %v905
    %v2198 = vunpack.c.l.b16 %v906
    %v2199 = vunpack.c.h.b16 %v906
    %v2200 = vunpack.c.l.b16 %v907
    %v2201 = vunpack.c.h.b16 %v907
    %v2202 = vunpack.c.l.b16 %v908
    %v2203 = vunpack.c.h.b16 %v908
    %v2204 = vunpack.c.l.b16 %v909
    %v2205 = vunpack.c.h.b16 %v909
    %v2206 = vunpack.c.l.b16 %v910
    %v2207 = vunpack.c.h.b16 %v910
    %v2208 = vunpack.c.l.b16 %v911
    %v2209 = vunpack.c.h.b16 %v911
    %v2210 = vunpack.c.l.b16 %v912
    %v2211 = vunpack.c.h.b16 %v912
    %v2212 = vunpack.c.l.b16 %v913
    %v2213 = vunpack.c.h.b16 %v913
    %v2214 = vunpack.c.l.b16 %v914
    %v2215 = vunpack.c.h.b16 %v914
    %v2216 = vunpack.c.l.b16 %v915
    %v2217 = vunpack.c.h.b16 %v915
    %v2218 = vunpack.c.l.b16 %v916
    %v2219 = vunpack.c.h.b16 %v916
    %v2220 = vunpack.c.l.b16 %v917
    %v2221 = vunpack.c.h.b16 %v917
    %v2222 = vunpack.c.l.b16 %v918
    %v2223 = vunpack.c.h.b16 %v918
    %v2224 = vunpack.c.l.b16 %v919
    %v2225 = vunpack.c.h.b16 %v919
    %v2226 = vunpack.c.l.b16 %v920
    %v2227 = vunpack.c.h.b16 %v920
    %v2228 = vunpack.c.l.b16 %v921
    %v2229 = vunpack.c.h.b16 %v921
    %v2230 = vunpack.c.l.b16 %v922
    %v2231 = vunpack.c.h.b16 %v922
    %v2232 = vunpack.c.l.b16 %v923
    %v2233 = vunpack.c.h.b16 %v923
    %v2234 = vunpack.c.l.b16 %v924
    %v2235 = vunpack.c.h.b16 %v924
    %v2236 = vunpack.c.l.b16 %v925
    %v2237 = vunpack.c.h.b16 %v925
    %v2238 = vunpack.c.l.b16 %v926
    %v2239 = vunpack.c.h.b16 %v926
    %v2240 = vunpack.c.l.b16 %v927
    %v2241 = vunpack.c.h.b16 %v927
    %v2242 = vunpack.c.l.b16 %v928
    %v2243 = vunpack.c.h.b16 %v928
    %v2244 = vunpack.c.l.b16 %v929
    %v2245 = vunpack.c.h.b16 %v929
    %v2246 = vunpack.c.l.b16 %v930
    %v2247 = vunpack.c.h.b16 %v930
    %v2248 = vunpack.c.l.b16 %v931
    %v2249 = vunpack.c.h.b16 %v931
    %v2250 = vunpack.c.l.b16 %v932
    %v2251 = vunpack.c.h.b16 %v932
    %v2252 = vunpack.c.l.b16 %v933
    %v2253 = vunpack.c.h.b16 %v933
    %v2254 = vunpack.c.l.b16 %v934
    %v2255 = vunpack.c.h.b16 %v934
    %v2256 = vunpack.c.l.b16 %v935
    %v2257 = vunpack.c.h.b16 %v935
    %v2258 = vunpack.c.l.b16 %v936
    %v2259 = vunpack.c.h.b16 %v936
    %v2260 = vunpack.c.l.b16 %v937
    %v2261 = vunpack.c.h.b16 %v937
    %v2262 = vunpack.c.l.b16 %v938
    %v2263 = vunpack.c.h.b16 %v938
    %v2264 = vunpack.c.l.b16 %v939
    %v2265 = vunpack.c.h.b16 %v939
    %v2266 = vunpack.c.l.b16 %v940
    %v2267 = vunpack.c.h.b16 %v940
    %v2268 = vunpack.c.l.b16 %v941
    %v2269 = vunpack.c.h.b16 %v941
    %v2270 = vunpack.c.l.b16 %v942
    %v2271 = vunpack.c.h.b16 %v942
    %v2272 = vunpack.c.l.b16 %v943
    %v2273 = vunpack.c.h.b16 %v943
    %v2274 = vunpack.c.l.b16 %v944
    %v2275 = vunpack.c.h.b16 %v944
    %v2276 = vunpack.c.l.b16 %v945
    %v2277 = vunpack.c.h.b16 %v945
    %v2278 = vunpack.c.l.b16 %v946
    %v2279 = vunpack.c.h.b16 %v946
    %v2280 = vunpack.c.l.b16 %v947
    %v2281 = vunpack.c.h.b16 %v947
    %v2282 = vunpack.c.l.b16 %v948
    %v2283 = vunpack.c.h.b16 %v948
    %v2284 = vunpack.c.l.b16 %v949
    %v2285 = vunpack.c.h.b16 %v949
    %v2286 = vunpack.c.l.b16 %v950
    %v2287 = vunpack.c.h.b16 %v950
    %v2288 = vunpack.c.l.b16 %v951
    %v2289 = vunpack.c.h.b16 %v951
    %v2290 = vunpack.c.l.b16 %v952
    %v2291 = vunpack.c.h.b16 %v952
    %v2292 = vunpack.c.l.b16 %v953
    %v2293 = vunpack.c.h.b16 %v953
    %v2294 = vunpack.c.l.b16 %v954
    %v2295 = vunpack.c.h.b16 %v954
    %v2296 = vunpack.c.l.b16 %v955
    %v2297 = vunpack.c.h.b16 %v955
    %v2298 = vunpack.c.l.b16 %v956
    %v2299 = vunpack.c.h.b16 %v956
    %v2300 = vunpack.c.l.b16 %v957
    %v2301 = vunpack.c.h.b16 %v957
    %v2302 = vunpack.c.l.b16 %v958
    %v2303 = vunpack.c.h.b16 %v958
    %v2304 = vunpack.c.l.b16 %v959
    %v2305 = vunpack.c.h.b16 %v959
    %v2306 = vunpack.c.l.b16 %v960
    %v2307 = vunpack.c.h.b16 %v960
    %v2308 = vunpack.c.l.b16 %v961
    %v2309 = vunpack.c.h.b16 %v961
    %v2310 = vunpack.c.l.b16 %v962
    %v2311 = vunpack.c.h.b16 %v962
    %v2312 = vunpack.c.l.b16 %v963
    %v2313 = vunpack.c.h.b16 %v963
    %v2314 = vunpack.c.l.b16 %v964
    %v2315 = vunpack.c.h.b16 %v964
    %v2316 = vunpack.c.l.b16 %v965
    %v2317 = vunpack.c.h.b16 %v965
    %v2318 = vunpack.c.l.b16 %v966
    %v2319 = vunpack.c.h.b16 %v966
    %v2320 = vunpack.c.l.b16 %v967
    %v2321 = vunpack.c.h.b16 %v967
    %v2322 = vunpack.c.l.b16 %v968
    %v2323 = vunpack.c.h.b16 %v968
    %v2324 = vunpack.c.l.b16 %v969
    %v2325 = vunpack.c.h.b16 %v969
    %v2326 = vunpack.c.l.b16 %v970
    %v2327 = vunpack.c.h.b16 %v970
    %v2328 = vunpack.c.l.b16 %v971
    %v2329 = vunpack.c.h.b16 %v971
    %v2330 = vunpack.c.l.b16 %v972
    %v2331 = vunpack.c.h.b16 %v972
    %v2332 = vunpack.c.l.b16 %v973
    %v2333 = vunpack.c.h.b16 %v973
    %v2334 = vunpack.c.l.b16 %v974
    %v2335 = vunpack.c.h.b16 %v974
    %v2336 = vunpack.c.l.b16 %v975
    %v2337 = vunpack.c.h.b16 %v975
    %v2338 = vunpack.c.l.b16 %v976
    %v2339 = vunpack.c.h.b16 %v976
    %v2340 = vunpack.c.l.b16 %v977
    %v2341 = vunpack.c.h.b16 %v977
    %v2342 = vunpack.c.l.b16 %v978
    %v2343 = vunpack.c.h.b16 %v978
    %v2344 = vunpack.c.l.b16 %v979
    %v2345 = vunpack.c.h.b16 %v979
    %v2346 = vunpack.c.l.b16 %v980
    %v2347 = vunpack.c.h.b16 %v980
    %v2348 = vunpack.c.l.b16 %v981
    %v2349 = vunpack.c.h.b16 %v981
    %v2350 = vunpack.c.l.b16 %v982
    %v2351 = vunpack.c.h.b16 %v982
    %v2352 = vunpack.c.l.b16 %v983
    %v2353 = vunpack.c.h.b16 %v983
    %v2354 = vunpack.c.l.b16 %v984
    %v2355 = vunpack.c.h.b16 %v984
    %v2356 = vunpack.c.l.b16 %v985
    %v2357 = vunpack.c.h.b16 %v985
    %v2358 = vunpack.c.l.b16 %v986
    %v2359 = vunpack.c.h.b16 %v986
    %v2360 = vunpack.c.l.b16 %v987
    %v2361 = vunpack.c.h.b16 %v987
    %v2362 = vunpack.c.l.b16 %v988
    %v2363 = vunpack.c.h.b16 %v988
    %v2364 = vunpack.c.l.b16 %v989
    %v2365 = vunpack.c.h.b16 %v989
    %v2366 = vunpack.c.l.b16 %v990
    %v2367 = vunpack.c.h.b16 %v990
    %v2368 = vunpack.c.l.b16 %v991
    %v2369 = vunpack.c.h.b16 %v991
    %v2370 = vunpack.c.l.b16 %v992
    %v2371 = vunpack.c.h.b16 %v992
    %v2372 = vunpack.c.l.b16 %v993
    %v2373 = vunpack.c.h.b16 %v993
    %v2374 = vunpack.c.l.b16 %v994
    %v2375 = vunpack.c.h.b16 %v994
    %v2376 = vunpack.c.l.b16 %v995
    %v2377 = vunpack.c.h.b16 %v995
    %v2378 = vunpack.c.l.b16 %v996
    %v2379 = vunpack.c.h.b16 %v996
    %v2380 = vunpack.c.l.b16 %v997
    %v2381 = vunpack.c.h.b16 %v997
    %v2382 = vunpack.c.l.b16 %v998
    %v2383 = vunpack.c.h.b16 %v998
    %v2384 = vunpack.c.l.b16 %v999
    %v2385 = vunpack.c.h.b16 %v999
    %v2386 = vunpack.c.l.b16 %v1000
    %v2387 = vunpack.c.h.b16 %v1000
    %v2388 = vunpack.c.l.b16 %v1001
    %v2389 = vunpack.c.h.b16 %v1001
    %v2390 = vunpack.c.l.b16 %v1002
    %v2391 = vunpack.c.h.b16 %v1002
    %v2392 = vunpack.c.l.b16 %v1003
    %v2393 = vunpack.c.h.b16 %v1003
    %v2394 = vunpack.c.l.b16 %v1004
    %v2395 = vunpack.c.h.b16 %v1004
    %v2396 = vunpack.c.l.b16 %v1005
    %v2397 = vunpack.c.h.b16 %v1005
    %v2398 = vunpack.c.l.b16 %v1006
    %v2399 = vunpack.c.h.b16 %v1006
    %v2400 = vunpack.c.l.b16 %v1007
    %v2401 = vunpack.c.h.b16 %v1007
    %v2402 = vunpack.c.l.b16 %v1008
    %v2403 = vunpack.c.h.b16 %v1008
    %v2404 = vunpack.c.l.b16 %v1009
    %v2405 = vunpack.c.h.b16 %v1009
    %v2406 = vunpack.c.l.b16 %v1010
    %v2407 = vunpack.c.h.b16 %v1010
    %v2408 = vunpack.c.l.b16 %v1011
    %v2409 = vunpack.c.h.b16 %v1011
    %v2410 = vunpack.c.l.b16 %v1012
    %v2411 = vunpack.c.h.b16 %v1012
    %v2412 = vunpack.c.l.b16 %v1013
    %v2413 = vunpack.c.h.b16 %v1013
    %v2414 = vunpack.c.l.b16 %v1014
    %v2415 = vunpack.c.h.b16 %v1014
    %v2416 = vunpack.c.l.b16 %v1015
    %v2417 = vunpack.c.h.b16 %v1015
    %v2418 = vunpack.c.l.b16 %v1016
    %v2419 = vunpack.c.h.b16 %v1016
    %v2420 = vunpack.c.l.b16 %v1017
    %v2421 = vunpack.c.h.b16 %v1017
    %v2422 = vunpack.c.l.b16 %v1018
    %v2423 = vunpack.c.h.b16 %v1018
    %v2424 = vunpack.c.l.b16 %v1019
    %v2425 = vunpack.c.h.b16 %v1019
    %v2426 = vunpack.c.l.b16 %v1020
    %v2427 = vunpack.c.h.b16 %v1020
    %v2428 = vunpack.c.l.b16 %v1021
    %v2429 = vunpack.c.h.b16 %v1021
    %v2430 = vunpack.c.l.b16 %v1022
    %v2431 = vunpack.c.h.b16 %v1022
    %v2432 = vunpack.c.l.b16 %v1023
    %v2433 = vunpack.c.h.b16 %v1023
    %v2434 = vunpack.c.l.b16 %v1024
    %v2435 = vunpack.c.h.b16 %v1024
    %v2436 = vunpack.c.l.b16 %v1025
    %v2437 = vunpack.c.h.b16 %v1025
    %v2438 = vunpack.c.l.b16 %v1026
    %v2439 = vunpack.c.h.b16 %v1026
    %v2440 = vunpack.c.l.b16 %v1027
    %v2441 = vunpack.c.h.b16 %v1027
    %v2442 = vunpack.c.l.b16 %v1028
    %v2443 = vunpack.c.h.b16 %v1028
    %v2444 = vunpack.c.l.b16 %v1029
    %v2445 = vunpack.c.h.b16 %v1029
    %v2446 = vunpack.c.l.b16 %v1030
    %v2447 = vunpack.c.h.b16 %v1030
    %v2448 = vunpack.c.l.b16 %v1031
    %v2449 = vunpack.c.h.b16 %v1031
    %v2450 = vunpack.c.l.b16 %v1032
    %v2451 = vunpack.c.h.b16 %v1032
    %v2452 = vunpack.c.l.b16 %v1033
    %v2453 = vunpack.c.h.b16 %v1033
    %v2454 = vunpack.c.l.b16 %v1034
    %v2455 = vunpack.c.h.b16 %v1034
    %v2456 = vunpack.c.l.b16 %v1035
    %v2457 = vunpack.c.h.b16 %v1035
    %v2458 = vunpack.c.l.b16 %v1036
    %v2459 = vunpack.c.h.b16 %v1036
    %v2460 = vunpack.c.l.b16 %v1037
    %v2461 = vunpack.c.h.b16 %v1037
    %v2462 = vunpack.c.l.b16 %v1038
    %v2463 = vunpack.c.h.b16 %v1038
    %v2464 = vunpack.c.l.b16 %v1039
    %v2465 = vunpack.c.h.b16 %v1039
    %v2466 = vunpack.c.l.b16 %v1040
    %v2467 = vunpack.c.h.b16 %v1040
    %v2468 = vunpack.c.l.b16 %v1041
    %v2469 = vunpack.c.h.b16 %v1041
    %v2470 = vunpack.c.l.b16 %v1042
    %v2471 = vunpack.c.h.b16 %v1042
    %v2472 = vunpack.c.l.b16 %v1043
    %v2473 = vunpack.c.h.b16 %v1043
    %v2474 = vunpack.c.l.b16 %v1044
    %v2475 = vunpack.c.h.b16 %v1044
    %v2476 = vunpack.c.l.b16 %v1045
    %v2477 = vunpack.c.h.b16 %v1045
    %v2478 = vunpack.c.l.b16 %v1046
    %v2479 = vunpack.c.h.b16 %v1046
    %v2480 = vunpack.c.l.b16 %v1047
    %v2481 = vunpack.c.h.b16 %v1047
    %v2482 = vunpack.c.l.b16 %v1048
    %v2483 = vunpack.c.h.b16 %v1048
    %v2484 = vunpack.c.l.b16 %v1049
    %v2485 = vunpack.c.h.b16 %v1049
    %v2486 = vunpack.c.l.b16 %v1050
    %v2487 = vunpack.c.h.b16 %v1050
    %v2488 = vunpack.c.l.b16 %v1051
    %v2489 = vunpack.c.h.b16 %v1051
    %v2490 = vunpack.c.l.b16 %v1052
    %v2491 = vunpack.c.h.b16 %v1052
    %v2492 = vunpack.c.l.b16 %v1053
    %v2493 = vunpack.c.h.b16 %v1053
    %v2494 = vunpack.c.l.b16 %v1054
    %v2495 = vunpack.c.h.b16 %v1054
    %v2496 = vunpack.c.l.b16 %v1055
    %v2497 = vunpack.c.h.b16 %v1055
    %v2498 = vunpack.c.l.b16 %v1056
    %v2499 = vunpack.c.h.b16 %v1056
    %v2500 = vunpack.c.l.b16 %v1057
    %v2501 = vunpack.c.h.b16 %v1057
    %v2502 = vunpack.c.l.b16 %v1058
    %v2503 = vunpack.c.h.b16 %v1058
    %v2504 = vunpack.c.l.b16 %v1059
    %v2505 = vunpack.c.h.b16 %v1059
    %v2506 = vunpack.c.l.b16 %v1060
    %v2507 = vunpack.c.h.b16 %v1060
    %v2508 = vunpack.c.l.b16 %v1061
    %v2509 = vunpack.c.h.b16 %v1061
    %v2510 = vunpack.c.l.b16 %v1062
    %v2511 = vunpack.c.h.b16 %v1062
    %v2512 = vunpack.c.l.b16 %v1063
    %v2513 = vunpack.c.h.b16 %v1063
    %v2514 = vunpack.c.l.b16 %v1064
    %v2515 = vunpack.c.h.b16 %v1064
    %v2516 = vunpack.c.l.b16 %v1065
    %v2517 = vunpack.c.h.b16 %v1065
    %v2518 = vunpack.c.l.b16 %v1066
    %v2519 = vunpack.c.h.b16 %v1066
    %v2520 = vunpack.c.l.b16 %v1067
    %v2521 = vunpack.c.h.b16 %v1067
    %v2522 = vunpack.c.l.b16 %v1068
    %v2523 = vunpack.c.h.b16 %v1068
    %v2524 = vunpack.c.l.b16 %v1069
    %v2525 = vunpack.c.h.b16 %v1069
    %v2526 = vunpack.c.l.b16 %v1070
    %v2527 = vunpack.c.h.b16 %v1070
    %v2528 = vunpack.c.l.b16 %v1071
    %v2529 = vunpack.c.h.b16 %v1071
    %v2530 = vunpack.c.l.b16 %v1072
    %v2531 = vunpack.c.h.b16 %v1072
    %v2532 = vunpack.c.l.b16 %v1073
    %v2533 = vunpack.c.h.b16 %v1073
    %v2534 = vunpack.c.l.b16 %v1074
    %v2535 = vunpack.c.h.b16 %v1074
    %v2536 = vunpack.c.l.b16 %v1075
    %v2537 = vunpack.c.h.b16 %v1075
    %v2538 = vunpack.c.l.b16 %v1076
    %v2539 = vunpack.c.h.b16 %v1076
    %v2540 = vunpack.c.l.b16 %v1077
    %v2541 = vunpack.c.h.b16 %v1077
    %v2542 = vunpack.c.l.b16 %v1078
    %v2543 = vunpack.c.h.b16 %v1078
    %v2544 = vunpack.c.l.b16 %v1079
    %v2545 = vunpack.c.h.b16 %v1079
    %v2546 = vunpack.c.l.b16 %v1080
    %v2547 = vunpack.c.h.b16 %v1080
    %v2548 = vunpack.c.l.b16 %v1081
    %v2549 = vunpack.c.h.b16 %v1081
    %v2550 = vunpack.c.l.b16 %v1082
    %v2551 = vunpack.c.h.b16 %v1082
    %v2552 = vunpack.c.l.b16 %v1083
    %v2553 = vunpack.c.h.b16 %v1083
    %v2554 = vunpack.c.l.b16 %v1084
    %v2555 = vunpack.c.h.b16 %v1084
    %v2556 = vunpack.c.l.b16 %v1085
    %v2557 = vunpack.c.h.b16 %v1085
    %v2558 = vunpack.c.l.b16 %v1086
    %v2559 = vunpack.c.h.b16 %v1086
    %v2560 = vunpack.c.l.b16 %v1087
    %v2561 = vunpack.c.h.b16 %v1087
    %v2562 = vunpack.c.l.b16 %v1088
    %v2563 = vunpack.c.h.b16 %v1088
    %v2564 = vunpack.c.l.b16 %v1089
    %v2565 = vunpack.c.h.b16 %v1089
    %v2566 = vunpack.c.l.b16 %v1090
    %v2567 = vunpack.c.h.b16 %v1090
    %v2568 = vunpack.c.l.b16 %v1091
    %v2569 = vunpack.c.h.b16 %v1091
    %v2570 = vunpack.c.l.b16 %v1092
    %v2571 = vunpack.c.h.b16 %v1092
    %v2572 = vunpack.c.l.b16 %v1093
    %v2573 = vunpack.c.h.b16 %v1093
    %v2574 = vunpack.c.l.b16 %v1094
    %v2575 = vunpack.c.h.b16 %v1094
    %v2576 = vunpack.c.l.b16 %v1095
    %v2577 = vunpack.c.h.b16 %v1095
    %v2578 = vunpack.c.l.b16 %v1096
    %v2579 = vunpack.c.h.b16 %v1096
    %v2580 = vunpack.c.l.b16 %v1097
    %v2581 = vunpack.c.h.b16 %v1097
    %v2582 = vunpack.c.l.b16 %v1098
    %v2583 = vunpack.c.h.b16 %v1098
    %v2584 = vunpack.c.l.b16 %v1099
    %v2585 = vunpack.c.h.b16 %v1099
    %v2586 = vunpack.c.l.b16 %v1100
    %v2587 = vunpack.c.h.b16 %v1100
    %v2588 = vunpack.c.l.b16 %v1101
    %v2589 = vunpack.c.h.b16 %v1101
    %v2590 = vunpack.c.l.b16 %v1102
    %v2591 = vunpack.c.h.b16 %v1102
    %v2592 = vunpack.c.l.b16 %v1103
    %v2593 = vunpack.c.h.b16 %v1103
    %v2594 = vunpack.c.l.b16 %v1104
    %v2595 = vunpack.c.h.b16 %v1104
    %v2596 = vunpack.c.l.b16 %v1105
    %v2597 = vunpack.c.h.b16 %v1105
    %v2598 = vunpack.c.l.b16 %v1106
    %v2599 = vunpack.c.h.b16 %v1106
    %v2600 = vunpack.c.l.b16 %v1107
    %v2601 = vunpack.c.h.b16 %v1107
    %v2602 = vunpack.c.l.b16 %v1108
    %v2603 = vunpack.c.h.b16 %v1108
    %v2604 = vunpack.c.l.b16 %v1109
    %v2605 = vunpack.c.h.b16 %v1109
    %v2606 = vunpack.c.l.b16 %v1110
    %v2607 = vunpack.c.h.b16 %v1110
    %v2608 = vunpack.c.l.b16 %v1111
    %v2609 = vunpack.c.h.b16 %v1111
    %v2610 = vunpack.c.l.b16 %v1112
    %v2611 = vunpack.c.h.b16 %v1112
    %v2612 = vunpack.c.l.b16 %v1113
    %v2613 = vunpack.c.h.b16 %v1113
    %v2614 = vunpack.c.l.b16 %v1114
    %v2615 = vunpack.c.h.b16 %v1114
    %v2616 = vunpack.c.l.b16 %v1115
    %v2617 = vunpack.c.h.b16 %v1115
    %v2618 = vunpack.c.l.b16 %v1116
    %v2619 = vunpack.c.h.b16 %v1116
    %v2620 = vunpack.c.l.b16 %v1117
    %v2621 = vunpack.c.h.b16 %v1117
    %v2622 = vunpack.c.l.b16 %v1118
    %v2623 = vunpack.c.h.b16 %v1118
    %v2624 = vunpack.c.l.b16 %v1119
    %v2625 = vunpack.c.h.b16 %v1119
    %v2626 = vunpack.c.l.b16 %v1120
    %v2627 = vunpack.c.h.b16 %v1120
    %v2628 = vunpack.c.l.b16 %v1121
    %v2629 = vunpack.c.h.b16 %v1121
    %v2630 = vunpack.c.l.b16 %v1122
    %v2631 = vunpack.c.h.b16 %v1122
    %v2632 = vunpack.c.l.b16 %v1123
    %v2633 = vunpack.c.h.b16 %v1123
    %v2634 = vunpack.c.l.b16 %v1124
    %v2635 = vunpack.c.h.b16 %v1124
    %v2636 = vunpack.c.l.b16 %v1125
    %v2637 = vunpack.c.h.b16 %v1125
    %v2638 = vunpack.c.l.b16 %v1126
    %v2639 = vunpack.c.h.b16 %v1126
    %v2640 = vunpack.c.l.b16 %v1127
    %v2641 = vunpack.c.h.b16 %v1127
    %v2642 = vunpack.c.l.b16 %v1128
    %v2643 = vunpack.c.h.b16 %v1128
    %v2644 = vunpack.c.l.b16 %v1129
    %v2645 = vunpack.c.h.b16 %v1129
    %v2646 = vunpack.c.l.b16 %v1130
    %v2647 = vunpack.c.h.b16 %v1130
    %v2648 = vunpack.c.l.b16 %v1131
    %v2649 = vunpack.c.h.b16 %v1131
    %v2650 = vunpack.c.l.b16 %v1132
    %v2651 = vunpack.c.h.b16 %v1132
    %v2652 = vunpack.c.l.b16 %v1133
    %v2653 = vunpack.c.h.b16 %v1133
    %v2654 = vunpack.c.l.b16 %v1134
    %v2655 = vunpack.c.h.b16 %v1134
    %v2656 = vunpack.c.l.b16 %v1135
    %v2657 = vunpack.c.h.b16 %v1135
    %v2658 = vunpack.c.l.b16 %v1136
    %v2659 = vunpack.c.h.b16 %v1136
    %v2660 = vunpack.c.l.b16 %v1137
    %v2661 = vunpack.c.h.b16 %v1137
    %v2662 = vunpack.c.l.b16 %v1138
    %v2663 = vunpack.c.h.b16 %v1138
    %v2664 = vunpack.c.l.b16 %v1139
    %v2665 = vunpack.c.h.b16 %v1139
    %v2666 = vunpack.c.l.b16 %v1140
    %v2667 = vunpack.c.h.b16 %v1140
    %v2668 = vunpack.c.l.b16 %v1141
    %v2669 = vunpack.c.h.b16 %v1141
    %v2670 = vunpack.c.l.b16 %v1142
    %v2671 = vunpack.c.h.b16 %v1142
    %v2672 = vunpack.c.l.b16 %v1143
    %v2673 = vunpack.c.h.b16 %v1143
    %v2674 = vunpack.c.l.b16 %v1144
    %v2675 = vunpack.c.h.b16 %v1144
    %v2676 = vunpack.c.l.b16 %v1145
    %v2677 = vunpack.c.h.b16 %v1145
    %v2678 = vunpack.c.l.b16 %v1146
    %v2679 = vunpack.c.h.b16 %v1146
    %v2680 = vunpack.c.l.b16 %v1147
    %v2681 = vunpack.c.h.b16 %v1147
    %v2682 = vunpack.c.l.b16 %v1148
    %v2683 = vunpack.c.h.b16 %v1148
    %v2684 = vunpack.c.l.b16 %v1149
    %v2685 = vunpack.c.h.b16 %v1149
    %v2686 = vunpack.c.l.b16 %v1150
    %v2687 = vunpack.c.h.b16 %v1150
    %v2688 = vunpack.c.l.b16 %v1151
    %v2689 = vunpack.c.h.b16 %v1151
    %v2690 = vunpack.c.l.b16 %v1152
    %v2691 = vunpack.c.h.b16 %v1152
    %v2692 = vunpack.c.l.b16 %v1153
    %v2693 = vunpack.c.h.b16 %v1153
    %v2694 = vunpack.c.l.b16 %v1154
    %v2695 = vunpack.c.h.b16 %v1154
    %v2696 = vunpack.c.l.b16 %v1155
    %v2697 = vunpack.c.h.b16 %v1155
    %v2698 = vunpack.c.l.b16 %v1156
    %v2699 = vunpack.c.h.b16 %v1156
    %v2700 = vunpack.c.l.b16 %v1157
    %v2701 = vunpack.c.h.b16 %v1157
    %v2702 = vunpack.c.l.b16 %v1158
    %v2703 = vunpack.c.h.b16 %v1158
    %v2704 = vunpack.c.l.b16 %v1159
    %v2705 = vunpack.c.h.b16 %v1159
    %v2706 = vunpack.c.l.b16 %v1160
    %v2707 = vunpack.c.h.b16 %v1160
    %v2708 = vunpack.c.l.b16 %v1161
    %v2709 = vunpack.c.h.b16 %v1161
    %v2710 = vunpack.c.l.b16 %v1162
    %v2711 = vunpack.c.h.b16 %v1162
    %v2712 = vunpack.c.l.b16 %v1163
    %v2713 = vunpack.c.h.b16 %v1163
    %v2714 = vunpack.c.l.b16 %v1164
    %v2715 = vunpack.c.h.b16 %v1164
    %v2716 = vunpack.c.l.b16 %v1165
    %v2717 = vunpack.c.h.b16 %v1165
    %v2718 = vunpack.c.l.b16 %v1166
    %v2719 = vunpack.c.h.b16 %v1166
    %v2720 = vunpack.c.l.b16 %v1167
    %v2721 = vunpack.c.h.b16 %v1167
    %v2722 = vunpack.c.l.b16 %v1168
    %v2723 = vunpack.c.h.b16 %v1168
    %v2724 = vunpack.c.l.b16 %v1169
    %v2725 = vunpack.c.h.b16 %v1169
    %v2726 = vunpack.c.l.b16 %v1170
    %v2727 = vunpack.c.h.b16 %v1170
    %v2728 = vunpack.c.l.b16 %v1171
    %v2729 = vunpack.c.h.b16 %v1171
    %v2730 = vunpack.c.l.b16 %v1172
    %v2731 = vunpack.c.h.b16 %v1172
    %v2732 = vunpack.c.l.b16 %v1173
    %v2733 = vunpack.c.h.b16 %v1173
    %v2734 = vunpack.c.l.b16 %v1174
    %v2735 = vunpack.c.h.b16 %v1174
    %v2736 = vunpack.c.l.b16 %v1175
    %v2737 = vunpack.c.h.b16 %v1175
    %v2738 = vunpack.c.l.b16 %v1176
    %v2739 = vunpack.c.h.b16 %v1176
    %v2740 = vunpack.c.l.b16 %v1177
    %v2741 = vunpack.c.h.b16 %v1177
    %v2742 = vunpack.c.l.b16 %v1178
    %v2743 = vunpack.c.h.b16 %v1178
    %v2744 = vunpack.c.l.b16 %v1179
    %v2745 = vunpack.c.h.b16 %v1179
    %v2746 = vunpack.c.l.b16 %v1180
    %v2747 = vunpack.c.h.b16 %v1180
    %v2748 = vunpack.c.l.b16 %v1181
    %v2749 = vunpack.c.h.b16 %v1181
    %v2750 = vunpack.c.l.b16 %v1182
    %v2751 = vunpack.c.h.b16 %v1182
    %v2752 = vunpack.c.l.b16 %v1183
    %v2753 = vunpack.c.h.b16 %v1183
    %v2754 = vunpack.c.l.b16 %v1184
    %v2755 = vunpack.c.h.b16 %v1184
    %v2756 = vunpack.c.l.b16 %v1185
    %v2757 = vunpack.c.h.b16 %v1185
    %v2758 = vunpack.c.l.b16 %v1186
    %v2759 = vunpack.c.h.b16 %v1186
    %v2760 = vunpack.c.l.b16 %v1187
    %v2761 = vunpack.c.h.b16 %v1187
    %v2762 = vunpack.c.l.b16 %v1188
    %v2763 = vunpack.c.h.b16 %v1188
    %v2764 = vunpack.c.l.b16 %v1189
    %v2765 = vunpack.c.h.b16 %v1189
    %v2766 = vpack.c.b16 %v1750, %v1742
    %v2767 = vpack.c.b16 %v1751, %v1743
    %v2768 = vpack.c.b16 %v1752, %v1744
    %v2769 = vpack.c.b16 %v1753, %v1745
    %v2770 = vpack.c.b16 %v1754, %v1746
    %v2771 = vpack.c.b16 %v1755, %v1747
    %v2772 = vpack.c.b16 %v1756, %v1748
    %v2773 = vpack.c.b16 %v1757, %v1749
    %v2774 = vpack.c.b16 %v1766, %v1758
    %v2775 = vpack.c.b16 %v1767, %v1759
    %v2776 = vpack.c.b16 %v1768, %v1760
    %v2777 = vpack.c.b16 %v1769, %v1761
    %v2778 = vpack.c.b16 %v1770, %v1762
    %v2779 = vpack.c.b16 %v1771, %v1763
    %v2780 = vpack.c.b16 %v1772, %v1764
    %v2781 = vpack.c.b16 %v1773, %v1765
    %v2782 = vpack.c.b16 %v1782, %v1774
    %v2783 = vpack.c.b16 %v1783, %v1775
    %v2784 = vpack.c.b16 %v1784, %v1776
    %v2785 = vpack.c.b16 %v1785, %v1777
    %v2786 = vpack.c.b16 %v1786, %v1778
    %v2787 = vpack.c.b16 %v1787, %v1779
    %v2788 = vpack.c.b16 %v1788, %v1780
    %v2789 = vpack.c.b16 %v1789, %v1781
    %v2790 = vpack.c.b16 %v1798, %v1790
    %v2791 = vpack.c.b16 %v1799, %v1791
    %v2792 = vpack.c.b16 %v1800, %v1792
    %v2793 = vpack.c.b16 %v1801, %v1793
    %v2794 = vpack.c.b16 %v1802, %v1794
    %v2795 = vpack.c.b16 %v1803, %v1795
    %v2796 = vpack.c.b16 %v1804, %v1796
    %v2797 = vpack.c.b16 %v1805, %v1797
    %v2798 = vpack.c.b16 %v1814, %v1806
    %v2799 = vpack.c.b16 %v1815, %v1807
    %v2800 = vpack.c.b16 %v1816, %v1808
    %v2801 = vpack.c.b16 %v1817, %v1809
    %v2802 = vpack.c.b16 %v1818, %v1810
    %v2803 = vpack.c.b16 %v1819, %v1811
    %v2804 = vpack.c.b16 %v1820, %v1812
    %v2805 = vpack.c.b16 %v1821, %v1813
    %v2806 = vpack.c.b16 %v1830, %v1822
    %v2807 = vpack.c.b16 %v1831, %v1823
    %v2808 = vpack.c.b16 %v1832, %v1824
    %v2809 = vpack.c.b16 %v1833, %v1825
    %v2810 = vpack.c.b16 %v1834, %v1826
    %v2811 = vpack.c.b16 %v1835, %v1827
    %v2812 = vpack.c.b16 %v1836, %v1828
    %v2813 = vpack.c.b16 %v1837, %v1829
    %v2814 = vpack.c.b16 %v1846, %v1838
    %v2815 = vpack.c.b16 %v1847, %v1839
    %v2816 = vpack.c.b16 %v1848, %v1840
    %v2817 = vpack.c.b16 %v1849, %v1841
    %v2818 = vpack.c.b16 %v1850, %v1842
    %v2819 = vpack.c.b16 %v1851, %v1843
    %v2820 = vpack.c.b16 %v1852, %v1844
    %v2821 = vpack.c.b16 %v1853, %v1845
    %v2822 = vpack.c.b16 %v1862, %v1854
    %v2823 = vpack.c.b16 %v1863, %v1855
    %v2824 = vpack.c.b16 %v1864, %v1856
    %v2825 = vpack.c.b16 %v1865, %v1857
    %v2826 = vpack.c.b16 %v1866, %v1858
    %v2827 = vpack.c.b16 %v1867, %v1859
    %v2828 = vpack.c.b16 %v1868, %v1860
    %v2829 = vpack.c.b16 %v1869, %v1861
    %v2830 = vpack.c.b16 %v1878, %v1870
    %v2831 = vpack.c.b16 %v1879, %v1871
    %v2832 = vpack.c.b16 %v1880, %v1872
    %v2833 = vpack.c.b16 %v1881, %v1873
    %v2834 = vpack.c.b16 %v1882, %v1874
    %v2835 = vpack.c.b16 %v1883, %v1875
    %v2836 = vpack.c.b16 %v1884, %v1876
    %v2837 = vpack.c.b16 %v1885, %v1877
    %v2838 = vpack.c.b16 %v1894, %v1886
    %v2839 = vpack.c.b16 %v1895, %v1887
    %v2840 = vpack.c.b16 %v1896, %v1888
    %v2841 = vpack.c.b16 %v1897, %v1889
    %v2842 = vpack.c.b16 %v1898, %v1890
    %v2843 = vpack.c.b16 %v1899, %v1891
    %v2844 = vpack.c.b16 %v1900, %v1892
    %v2845 = vpack.c.b16 %v1901, %v1893
    %v2846 = vpack.c.b16 %v1910, %v1902
    %v2847 = vpack.c.b16 %v1911, %v1903
    %v2848 = vpack.c.b16 %v1912, %v1904
    %v2849 = vpack.c.b16 %v1913, %v1905
    %v2850 = vpack.c.b16 %v1914, %v1906
    %v2851 = vpack.c.b16 %v1915, %v1907
    %v2852 = vpack.c.b16 %v1916, %v1908
    %v2853 = vpack.c.b16 %v1917, %v1909
    %v2854 = vpack.c.b16 %v1926, %v1918
    %v2855 = vpack.c.b16 %v1927, %v1919
    %v2856 = vpack.c.b16 %v1928, %v1920
    %v2857 = vpack.c.b16 %v1929, %v1921
    %v2858 = vpack.c.b16 %v1930, %v1922
    %v2859 = vpack.c.b16 %v1931, %v1923
    %v2860 = vpack.c.b16 %v1932, %v1924
    %v2861 = vpack.c.b16 %v1933, %v1925
    %v2862 = vpack.c.b16 %v1942, %v1934
    %v2863 = vpack.c.b16 %v1943, %v1935
    %v2864 = vpack.c.b16 %v1944, %v1936
    %v2865 = vpack.c.b16 %v1945, %v1937
    %v2866 = vpack.c.b16 %v1946, %v1938
    %v2867 = vpack.c.b16 %v1947, %v1939
    %v2868 = vpack.c.b16 %v1948, %v1940
    %v2869 = vpack.c.b16 %v1949, %v1941
    %v2870 = vpack.c.b16 %v1958, %v1950
    %v2871 = vpack.c.b16 %v1959, %v1951
    %v2872 = vpack.c.b16 %v1960, %v1952
    %v2873 = vpack.c.b16 %v1961, %v1953
    %v2874 = vpack.c.b16 %v1962, %v1954
    %v2875 = vpack.c.b16 %v1963, %v1955
    %v2876 = vpack.c.b16 %v1964, %v1956
    %v2877 = vpack.c.b16 %v1965, %v1957
    %v2878 = vpack.c.b16 %v1974, %v1966
    %v2879 = vpack.c.b16 %v1975, %v1967
    %v2880 = vpack.c.b16 %v1976, %v1968
    %v2881 = vpack.c.b16 %v1977, %v1969
    %v2882 = vpack.c.b16 %v1978, %v1970
    %v2883 = vpack.c.b16 %v1979, %v1971
    %v2884 = vpack.c.b16 %v1980, %v1972
    %v2885 = vpack.c.b16 %v1981, %v1973
    %v2886 = vpack.c.b16 %v1990, %v1982
    %v2887 = vpack.c.b16 %v1991, %v1983
    %v2888 = vpack.c.b16 %v1992, %v1984
    %v2889 = vpack.c.b16 %v1993, %v1985
    %v2890 = vpack.c.b16 %v1994, %v1986
    %v2891 = vpack.c.b16 %v1995, %v1987
    %v2892 = vpack.c.b16 %v1996, %v1988
    %v2893 = vpack.c.b16 %v1997, %v1989
    %v2894 = vpack.c.b16 %v2006, %v1998
    %v2895 = vpack.c.b16 %v2007, %v1999
    %v2896 = vpack.c.b16 %v2008, %v2000
    %v2897 = vpack.c.b16 %v2009, %v2001
    %v2898 = vpack.c.b16 %v2010, %v2002
    %v2899 = vpack.c.b16 %v2011, %v2003
    %v2900 = vpack.c.b16 %v2012, %v2004
    %v2901 = vpack.c.b16 %v2013, %v2005
    %v2902 = vpack.c.b16 %v2022, %v2014
    %v2903 = vpack.c.b16 %v2023, %v2015
    %v2904 = vpack.c.b16 %v2024, %v2016
    %v2905 = vpack.c.b16 %v2025, %v2017
    %v2906 = vpack.c.b16 %v2026, %v2018
    %v2907 = vpack.c.b16 %v2027, %v2019
    %v2908 = vpack.c.b16 %v2028, %v2020
    %v2909 = vpack.c.b16 %v2029, %v2021
    %v2910 = vpack.c.b16 %v2038, %v2030
    %v2911 = vpack.c.b16 %v2039, %v2031
    %v2912 = vpack.c.b16 %v2040, %v2032
    %v2913 = vpack.c.b16 %v2041, %v2033
    %v2914 = vpack.c.b16 %v2042, %v2034
    %v2915 = vpack.c.b16 %v2043, %v2035
    %v2916 = vpack.c.b16 %v2044, %v2036
    %v2917 = vpack.c.b16 %v2045, %v2037
    %v2918 = vpack.c.b16 %v2054, %v2046
    %v2919 = vpack.c.b16 %v2055, %v2047
    %v2920 = vpack.c.b16 %v2056, %v2048
    %v2921 = vpack.c.b16 %v2057, %v2049
    %v2922 = vpack.c.b16 %v2058, %v2050
    %v2923 = vpack.c.b16 %v2059, %v2051
    %v2924 = vpack.c.b16 %v2060, %v2052
    %v2925 = vpack.c.b16 %v2061, %v2053
    %v2926 = vpack.c.b16 %v2070, %v2062
    %v2927 = vpack.c.b16 %v2071, %v2063
    %v2928 = vpack.c.b16 %v2072, %v2064
    %v2929 = vpack.c.b16 %v2073, %v2065
    %v2930 = vpack.c.b16 %v2074, %v2066
    %v2931 = vpack.c.b16 %v2075, %v2067
    %v2932 = vpack.c.b16 %v2076, %v2068
    %v2933 = vpack.c.b16 %v2077, %v2069
    %v2934 = vpack.c.b16 %v2086, %v2078
    %v2935 = vpack.c.b16 %v2087, %v2079
    %v2936 = vpack.c.b16 %v2088, %v2080
    %v2937 = vpack.c.b16 %v2089, %v2081
    %v2938 = vpack.c.b16 %v2090, %v2082
    %v2939 = vpack.c.b16 %v2091, %v2083
    %v2940 = vpack.c.b16 %v2092, %v2084
    %v2941 = vpack.c.b16 %v2093, %v2085
    %v2942 = vpack.c.b16 %v2102, %v2094
    %v2943 = vpack.c.b16 %v2103, %v2095
    %v2944 = vpack.c.b16 %v2104, %v2096
    %v2945 = vpack.c.b16 %v2105, %v2097
    %v2946 = vpack.c.b16 %v2106, %v2098
    %v2947 = vpack.c.b16 %v2107, %v2099
    %v2948 = vpack.c.b16 %v2108, %v2100
    %v2949 = vpack.c.b16 %v2109, %v2101
    %v2950 = vpack.c.b16 %v2118, %v2110
    %v2951 = vpack.c.b16 %v2119, %v2111
    %v2952 = vpack.c.b16 %v2120, %v2112
    %v2953 = vpack.c.b16 %v2121, %v2113
    %v2954 = vpack.c.b16 %v2122, %v2114
    %v2955 = vpack.c.b16 %v2123, %v2115
    %v2956 = vpack.c.b16 %v2124, %v2116
    %v2957 = vpack.c.b16 %v2125, %v2117
    %v2958 = vpack.c.b16 %v2134, %v2126
    %v2959 = vpack.c.b16 %v2135, %v2127
    %v2960 = vpack.c.b16 %v2136, %v2128
    %v2961 = vpack.c.b16 %v2137, %v2129
    %v2962 = vpack.c.b16 %v2138, %v2130
    %v2963 = vpack.c.b16 %v2139, %v2131
    %v2964 = vpack.c.b16 %v2140, %v2132
    %v2965 = vpack.c.b16 %v2141, %v2133
    %v2966 = vpack.c.b16 %v2150, %v2142
    %v2967 = vpack.c.b16 %v2151, %v2143
    %v2968 = vpack.c.b16 %v2152, %v2144
    %v2969 = vpack.c.b16 %v2153, %v2145
    %v2970 = vpack.c.b16 %v2154, %v2146
    %v2971 = vpack.c.b16 %v2155, %v2147
    %v2972 = vpack.c.b16 %v2156, %v2148
    %v2973 = vpack.c.b16 %v2157, %v2149
    %v2974 = vpack.c.b16 %v2166, %v2158
    %v2975 = vpack.c.b16 %v2167, %v2159
    %v2976 = vpack.c.b16 %v2168, %v2160
    %v2977 = vpack.c.b16 %v2169, %v2161
    %v2978 = vpack.c.b16 %v2170, %v2162
    %v2979 = vpack.c.b16 %v2171, %v2163
    %v2980 = vpack.c.b16 %v2172, %v2164
    %v2981 = vpack.c.b16 %v2173, %v2165
    %v2982 = vpack.c.b16 %v2182, %v2174
    %v2983 = vpack.c.b16 %v2183, %v2175
    %v2984 = vpack.c.b16 %v2184, %v2176
    %v2985 = vpack.c.b16 %v2185, %v2177
    %v2986 = vpack.c.b16 %v2186, %v2178
    %v2987 = vpack.c.b16 %v2187, %v2179
    %v2988 = vpack.c.b16 %v2188, %v2180
    %v2989 = vpack.c.b16 %v2189, %v2181
    %v2990 = vpack.c.b16 %v2198, %v2190
    %v2991 = vpack.c.b16 %v2199, %v2191
    %v2992 = vpack.c.b16 %v2200, %v2192
    %v2993 = vpack.c.b16 %v2201, %v2193
    %v2994 = vpack.c.b16 %v2202, %v2194
    %v2995 = vpack.c.b16 %v2203, %v2195
    %v2996 = vpack.c.b16 %v2204, %v2196
    %v2997 = vpack.c.b16 %v2205, %v2197
    %v2998 = vpack.c.b16 %v2214, %v2206
    %v2999 = vpack.c.b16 %v2215, %v2207
    %v3000 = vpack.c.b16 %v2216, %v2208
    %v3001 = vpack.c.b16 %v2217, %v2209
    %v3002 = vpack.c.b16 %v2218, %v2210
    %v3003 = vpack.c.b16 %v2219, %v2211
    %v3004 = vpack.c.b16 %v2220, %v2212
    %v3005 = vpack.c.b16 %v2221, %v2213
    %v3006 = vpack.c.b16 %v2230, %v2222
    %v3007 = vpack.c.b16 %v2231, %v2223
    %v3008 = vpack.c.b16 %v2232, %v2224
    %v3009 = vpack.c.b16 %v2233, %v2225
    %v3010 = vpack.c.b16 %v2234, %v2226
    %v3011 = vpack.c.b16 %v2235, %v2227
    %v3012 = vpack.c.b16 %v2236, %v2228
    %v3013 = vpack.c.b16 %v2237, %v2229
    %v3014 = vpack.c.b16 %v2246, %v2238
    %v3015 = vpack.c.b16 %v2247, %v2239
    %v3016 = vpack.c.b16 %v2248, %v2240
    %v3017 = vpack.c.b16 %v2249, %v2241
    %v3018 = vpack.c.b16 %v2250, %v2242
    %v3019 = vpack.c.b16 %v2251, %v2243
    %v3020 = vpack.c.b16 %v2252, %v2244
    %v3021 = vpack.c.b16 %v2253, %v2245
    %v3022 = vpack.c.b16 %v2262, %v2254
    %v3023 = vpack.c.b16 %v2263, %v2255
    %v3024 = vpack.c.b16 %v2264, %v2256
    %v3025 = vpack.c.b16 %v2265, %v2257
    %v3026 = vpack.c.b16 %v2266, %v2258
    %v3027 = vpack.c.b16 %v2267, %v2259
    %v3028 = vpack.c.b16 %v2268, %v2260
    %v3029 = vpack.c.b16 %v2269, %v2261
    %v3030 = vpack.c.b16 %v2278, %v2270
    %v3031 = vpack.c.b16 %v2279, %v2271
    %v3032 = vpack.c.b16 %v2280, %v2272
    %v3033 = vpack.c.b16 %v2281, %v2273
    %v3034 = vpack.c.b16 %v2282, %v2274
    %v3035 = vpack.c.b16 %v2283, %v2275
    %v3036 = vpack.c.b16 %v2284, %v2276
    %v3037 = vpack.c.b16 %v2285, %v2277
    %v3038 = vpack.c.b16 %v2294, %v2286
    %v3039 = vpack.c.b16 %v2295, %v2287
    %v3040 = vpack.c.b16 %v2296, %v2288
    %v3041 = vpack.c.b16 %v2297, %v2289
    %v3042 = vpack.c.b16 %v2298, %v2290
    %v3043 = vpack.c.b16 %v2299, %v2291
    %v3044 = vpack.c.b16 %v2300, %v2292
    %v3045 = vpack.c.b16 %v2301, %v2293
    %v3046 = vpack.c.b16 %v2310, %v2302
    %v3047 = vpack.c.b16 %v2311, %v2303
    %v3048 = vpack.c.b16 %v2312, %v2304
    %v3049 = vpack.c.b16 %v2313, %v2305
    %v3050 = vpack.c.b16 %v2314, %v2306
    %v3051 = vpack.c.b16 %v2315, %v2307
    %v3052 = vpack.c.b16 %v2316, %v2308
    %v3053 = vpack.c.b16 %v2317, %v2309
    %v3054 = vpack.c.b16 %v2326, %v2318
    %v3055 = vpack.c.b16 %v2327, %v2319
    %v3056 = vpack.c.b16 %v2328, %v2320
    %v3057 = vpack.c.b16 %v2329, %v2321
    %v3058 = vpack.c.b16 %v2330, %v2322
    %v3059 = vpack.c.b16 %v2331, %v2323
    %v3060 = vpack.c.b16 %v2332, %v2324
    %v3061 = vpack.c.b16 %v2333, %v2325
    %v3062 = vpack.c.b16 %v2342, %v2334
    %v3063 = vpack.c.b16 %v2343, %v2335
    %v3064 = vpack.c.b16 %v2344, %v2336
    %v3065 = vpack.c.b16 %v2345, %v2337
    %v3066 = vpack.c.b16 %v2346, %v2338
    %v3067 = vpack.c.b16 %v2347, %v2339
    %v3068 = vpack.c.b16 %v2348, %v2340
    %v3069 = vpack.c.b16 %v2349, %v2341
    %v3070 = vpack.c.b16 %v2358, %v2350
    %v3071 = vpack.c.b16 %v2359, %v2351
    %v3072 = vpack.c.b16 %v2360, %v2352
    %v3073 = vpack.c.b16 %v2361, %v2353
    %v3074 = vpack.c.b16 %v2362, %v2354
    %v3075 = vpack.c.b16 %v2363, %v2355
    %v3076 = vpack.c.b16 %v2364, %v2356
    %v3077 = vpack.c.b16 %v2365, %v2357
    %v3078 = vpack.c.b16 %v2374, %v2366
    %v3079 = vpack.c.b16 %v2375, %v2367
    %v3080 = vpack.c.b16 %v2376, %v2368
    %v3081 = vpack.c.b16 %v2377, %v2369
    %v3082 = vpack.c.b16 %v2378, %v2370
    %v3083 = vpack.c.b16 %v2379, %v2371
    %v3084 = vpack.c.b16 %v2380, %v2372
    %v3085 = vpack.c.b16 %v2381, %v2373
    %v3086 = vpack.c.b16 %v2390, %v2382
    %v3087 = vpack.c.b16 %v2391, %v2383
    %v3088 = vpack.c.b16 %v2392, %v2384
    %v3089 = vpack.c.b16 %v2393, %v2385
    %v3090 = vpack.c.b16 %v2394, %v2386
    %v3091 = vpack.c.b16 %v2395, %v2387
    %v3092 = vpack.c.b16 %v2396, %v2388
    %v3093 = vpack.c.b16 %v2397, %v2389
    %v3094 = vpack.c.b16 %v2406, %v2398
    %v3095 = vpack.c.b16 %v2407, %v2399
    %v3096 = vpack.c.b16 %v2408, %v2400
    %v3097 = vpack.c.b16 %v2409, %v2401
    %v3098 = vpack.c.b16 %v2410, %v2402
    %v3099 = vpack.c.b16 %v2411, %v2403
    %v3100 = vpack.c.b16 %v2412, %v2404
    %v3101 = vpack.c.b16 %v2413, %v2405
    %v3102 = vpack.c.b16 %v2422, %v2414
    %v3103 = vpack.c.b16 %v2423, %v2415
    %v3104 = vpack.c.b16 %v2424, %v2416
    %v3105 = vpack.c.b16 %v2425, %v2417
    %v3106 = vpack.c.b16 %v2426, %v2418
    %v3107 = vpack.c.b16 %v2427, %v2419
    %v3108 = vpack.c.b16 %v2428, %v2420
    %v3109 = vpack.c.b16 %v2429, %v2421
    %v3110 = vpack.c.b16 %v2438, %v2430
    %v3111 = vpack.c.b16 %v2439, %v2431
    %v3112 = vpack.c.b16 %v2440, %v2432
    %v3113 = vpack.c.b16 %v2441, %v2433
    %v3114 = vpack.c.b16 %v2442, %v2434
    %v3115 = vpack.c.b16 %v2443, %v2435
    %v3116 = vpack.c.b16 %v2444, %v2436
    %v3117 = vpack.c.b16 %v2445, %v2437
    %v3118 = vpack.c.b16 %v2454, %v2446
    %v3119 = vpack.c.b16 %v2455, %v2447
    %v3120 = vpack.c.b16 %v2456, %v2448
    %v3121 = vpack.c.b16 %v2457, %v2449
    %v3122 = vpack.c.b16 %v2458, %v2450
    %v3123 = vpack.c.b16 %v2459, %v2451
    %v3124 = vpack.c.b16 %v2460, %v2452
    %v3125 = vpack.c.b16 %v2461, %v2453
    %v3126 = vpack.c.b16 %v2470, %v2462
    %v3127 = vpack.c.b16 %v2471, %v2463
    %v3128 = vpack.c.b16 %v2472, %v2464
    %v3129 = vpack.c.b16 %v2473, %v2465
    %v3130 = vpack.c.b16 %v2474, %v2466
    %v3131 = vpack.c.b16 %v2475, %v2467
    %v3132 = vpack.c.b16 %v2476, %v2468
    %v3133 = vpack.c.b16 %v2477, %v2469
    %v3134 = vpack.c.b16 %v2486, %v2478
    %v3135 = vpack.c.b16 %v2487, %v2479
    %v3136 = vpack.c.b16 %v2488, %v2480
    %v3137 = vpack.c.b16 %v2489, %v2481
    %v3138 = vpack.c.b16 %v2490, %v2482
    %v3139 = vpack.c.b16 %v2491, %v2483
    %v3140 = vpack.c.b16 %v2492, %v2484
    %v3141 = vpack.c.b16 %v2493, %v2485
    %v3142 = vpack.c.b16 %v2502, %v2494
    %v3143 = vpack.c.b16 %v2503, %v2495
    %v3144 = vpack.c.b16 %v2504, %v2496
    %v3145 = vpack.c.b16 %v2505, %v2497
    %v3146 = vpack.c.b16 %v2506, %v2498
    %v3147 = vpack.c.b16 %v2507, %v2499
    %v3148 = vpack.c.b16 %v2508, %v2500
    %v3149 = vpack.c.b16 %v2509, %v2501
    %v3150 = vpack.c.b16 %v2518, %v2510
    %v3151 = vpack.c.b16 %v2519, %v2511
    %v3152 = vpack.c.b16 %v2520, %v2512
    %v3153 = vpack.c.b16 %v2521, %v2513
    %v3154 = vpack.c.b16 %v2522, %v2514
    %v3155 = vpack.c.b16 %v2523, %v2515
    %v3156 = vpack.c.b16 %v2524, %v2516
    %v3157 = vpack.c.b16 %v2525, %v2517
    %v3158 = vpack.c.b16 %v2534, %v2526
    %v3159 = vpack.c.b16 %v2535, %v2527
    %v3160 = vpack.c.b16 %v2536, %v2528
    %v3161 = vpack.c.b16 %v2537, %v2529
    %v3162 = vpack.c.b16 %v2538, %v2530
    %v3163 = vpack.c.b16 %v2539, %v2531
    %v3164 = vpack.c.b16 %v2540, %v2532
    %v3165 = vpack.c.b16 %v2541, %v2533
    %v3166 = vpack.c.b16 %v2550, %v2542
    %v3167 = vpack.c.b16 %v2551, %v2543
    %v3168 = vpack.c.b16 %v2552, %v2544
    %v3169 = vpack.c.b16 %v2553, %v2545
    %v3170 = vpack.c.b16 %v2554, %v2546
    %v3171 = vpack.c.b16 %v2555, %v2547
    %v3172 = vpack.c.b16 %v2556, %v2548
    %v3173 = vpack.c.b16 %v2557, %v2549
    %v3174 = vpack.c.b16 %v2566, %v2558
    %v3175 = vpack.c.b16 %v2567, %v2559
    %v3176 = vpack.c.b16 %v2568, %v2560
    %v3177 = vpack.c.b16 %v2569, %v2561
    %v3178 = vpack.c.b16 %v2570, %v2562
    %v3179 = vpack.c.b16 %v2571, %v2563
    %v3180 = vpack.c.b16 %v2572, %v2564
    %v3181 = vpack.c.b16 %v2573, %v2565
    %v3182 = vpack.c.b16 %v2582, %v2574
    %v3183 = vpack.c.b16 %v2583, %v2575
    %v3184 = vpack.c.b16 %v2584, %v2576
    %v3185 = vpack.c.b16 %v2585, %v2577
    %v3186 = vpack.c.b16 %v2586, %v2578
    %v3187 = vpack.c.b16 %v2587, %v2579
    %v3188 = vpack.c.b16 %v2588, %v2580
    %v3189 = vpack.c.b16 %v2589, %v2581
    %v3190 = vpack.c.b16 %v2598, %v2590
    %v3191 = vpack.c.b16 %v2599, %v2591
    %v3192 = vpack.c.b16 %v2600, %v2592
    %v3193 = vpack.c.b16 %v2601, %v2593
    %v3194 = vpack.c.b16 %v2602, %v2594
    %v3195 = vpack.c.b16 %v2603, %v2595
    %v3196 = vpack.c.b16 %v2604, %v2596
    %v3197 = vpack.c.b16 %v2605, %v2597
    %v3198 = vpack.c.b16 %v2614, %v2606
    %v3199 = vpack.c.b16 %v2615, %v2607
    %v3200 = vpack.c.b16 %v2616, %v2608
    %v3201 = vpack.c.b16 %v2617, %v2609
    %v3202 = vpack.c.b16 %v2618, %v2610
    %v3203 = vpack.c.b16 %v2619, %v2611
    %v3204 = vpack.c.b16 %v2620, %v2612
    %v3205 = vpack.c.b16 %v2621, %v2613
    %v3206 = vpack.c.b16 %v2630, %v2622
    %v3207 = vpack.c.b16 %v2631, %v2623
    %v3208 = vpack.c.b16 %v2632, %v2624
    %v3209 = vpack.c.b16 %v2633, %v2625
    %v3210 = vpack.c.b16 %v2634, %v2626
    %v3211 = vpack.c.b16 %v2635, %v2627
    %v3212 = vpack.c.b16 %v2636, %v2628
    %v3213 = vpack.c.b16 %v2637, %v2629
    %v3214 = vpack.c.b16 %v2646, %v2638
    %v3215 = vpack.c.b16 %v2647, %v2639
    %v3216 = vpack.c.b16 %v2648, %v2640
    %v3217 = vpack.c.b16 %v2649, %v2641
    %v3218 = vpack.c.b16 %v2650, %v2642
    %v3219 = vpack.c.b16 %v2651, %v2643
    %v3220 = vpack.c.b16 %v2652, %v2644
    %v3221 = vpack.c.b16 %v2653, %v2645
    %v3222 = vpack.c.b16 %v2662, %v2654
    %v3223 = vpack.c.b16 %v2663, %v2655
    %v3224 = vpack.c.b16 %v2664, %v2656
    %v3225 = vpack.c.b16 %v2665, %v2657
    %v3226 = vpack.c.b16 %v2666, %v2658
    %v3227 = vpack.c.b16 %v2667, %v2659
    %v3228 = vpack.c.b16 %v2668, %v2660
    %v3229 = vpack.c.b16 %v2669, %v2661
    %v3230 = vpack.c.b16 %v2678, %v2670
    %v3231 = vpack.c.b16 %v2679, %v2671
    %v3232 = vpack.c.b16 %v2680, %v2672
    %v3233 = vpack.c.b16 %v2681, %v2673
    %v3234 = vpack.c.b16 %v2682, %v2674
    %v3235 = vpack.c.b16 %v2683, %v2675
    %v3236 = vpack.c.b16 %v2684, %v2676
    %v3237 = vpack.c.b16 %v2685, %v2677
    %v3238 = vpack.c.b16 %v2694, %v2686
    %v3239 = vpack.c.b16 %v2695, %v2687
    %v3240 = vpack.c.b16 %v2696, %v2688
    %v3241 = vpack.c.b16 %v2697, %v2689
    %v3242 = vpack.c.b16 %v2698, %v2690
    %v3243 = vpack.c.b16 %v2699, %v2691
    %v3244 = vpack.c.b16 %v2700, %v2692
    %v3245 = vpack.c.b16 %v2701, %v2693
    %v3246 = vpack.c.b16 %v2710, %v2702
    %v3247 = vpack.c.b16 %v2711, %v2703
    %v3248 = vpack.c.b16 %v2712, %v2704
    %v3249 = vpack.c.b16 %v2713, %v2705
    %v3250 = vpack.c.b16 %v2714, %v2706
    %v3251 = vpack.c.b16 %v2715, %v2707
    %v3252 = vpack.c.b16 %v2716, %v2708
    %v3253 = vpack.c.b16 %v2717, %v2709
    %v3254 = vpack.c.b16 %v2726, %v2718
    %v3255 = vpack.c.b16 %v2727, %v2719
    %v3256 = vpack.c.b16 %v2728, %v2720
    %v3257 = vpack.c.b16 %v2729, %v2721
    %v3258 = vpack.c.b16 %v2730, %v2722
    %v3259 = vpack.c.b16 %v2731, %v2723
    %v3260 = vpack.c.b16 %v2732, %v2724
    %v3261 = vpack.c.b16 %v2733, %v2725
    %v3262 = vpack.c.b16 %v2742, %v2734
    %v3263 = vpack.c.b16 %v2743, %v2735
    %v3264 = vpack.c.b16 %v2744, %v2736
    %v3265 = vpack.c.b16 %v2745, %v2737
    %v3266 = vpack.c.b16 %v2746, %v2738
    %v3267 = vpack.c.b16 %v2747, %v2739
    %v3268 = vpack.c.b16 %v2748, %v2740
    %v3269 = vpack.c.b16 %v2749, %v2741
    %v3270 = vpack.c.b16 %v2758, %v2750
    %v3271 = vpack.c.b16 %v2759, %v2751
    %v3272 = vpack.c.b16 %v2760, %v2752
    %v3273 = vpack.c.b16 %v2761, %v2753
    %v3274 = vpack.c.b16 %v2762, %v2754
    %v3275 = vpack.c.b16 %v2763, %v2755
    %v3276 = vpack.c.b16 %v2764, %v2756
    %v3277 = vpack.c.b16 %v2765, %v2757
    %3790 = vmatprep.subr.bf16.mxu0 %v2767
    %3791 = vmatpush1.bf16.msra.mxu0 %v2766
    %3792 = vmatprep.subr.bf16.mxu0 %v2775
    %3793 = vmatpush1.bf16.msra.mxu0 %v2774
    %3794 = vmatprep.subr.bf16.mxu0 %v2783
    %3795 = vmatpush1.bf16.msra.mxu0 %v2782
    %3796 = vmatprep.subr.bf16.mxu0 %v2791
    %3797 = vmatpush1.bf16.msra.mxu0 %v2790
    %3798 = vmatprep.subr.bf16.mxu0 %v2799
    %3799 = vmatpush1.bf16.msra.mxu0 %v2798
    %3800 = vmatprep.subr.bf16.mxu0 %v2807
    %3801 = vmatpush1.bf16.msra.mxu0 %v2806
    %3802 = vmatprep.subr.bf16.mxu0 %v2815
    %3803 = vmatpush1.bf16.msra.mxu0 %v2814
    %3804 = vmatprep.subr.bf16.mxu0 %v2823
    %3805 = vmatpush1.bf16.msra.mxu0 %v2822
    %3806 = vmatprep.subr.bf16.mxu0 %v2831
    %3807 = vmatpush1.bf16.msra.mxu0 %v2830
    %3808 = vmatprep.subr.bf16.mxu0 %v2839
    %3809 = vmatpush1.bf16.msra.mxu0 %v2838
    %3810 = vmatprep.subr.bf16.mxu0 %v2847
    %3811 = vmatpush1.bf16.msra.mxu0 %v2846
    %3812 = vmatprep.subr.bf16.mxu0 %v2855
    %3813 = vmatpush1.bf16.msra.mxu0 %v2854
    %3814 = vmatprep.subr.bf16.mxu0 %v2863
    %3815 = vmatpush1.bf16.msra.mxu0 %v2862
    %3816 = vmatprep.subr.bf16.mxu0 %v2871
    %3817 = vmatpush1.bf16.msra.mxu0 %v2870
    %3818 = vmatprep.subr.bf16.mxu0 %v2879
    %3819 = vmatpush1.bf16.msra.mxu0 %v2878
    %3820 = vmatprep.subr.bf16.mxu0 %v2887
    %3821 = vmatpush1.bf16.msra.mxu0 %v2886
    %3822 = vmatprep.mubr.bf16.mxu0 %v1215
    %3823 = vmatmul.mubr.bf16.gmra.mrb[0].mxu0 %v1214
    %v3824 = vpop.f32.mrb[0].mxu0
    %v3825 = vadd.f32 0.0, %v3824
    %v3826 = vpop.f32.mrb[0].mxu0
    %v3827 = vadd.f32 0.0, %v3826
    %v3828 = vpop.f32.mrb[0].mxu0
    %v3829 = vadd.f32 0.0, %v3828
    %v3830 = vpop.f32.mrb[0].mxu0
    %v3831 = vadd.f32 0.0, %v3830
    %3832 = vdwg.mxu0
    %3833 = vmatprep.subr.bf16.mxu0 %v2895
    %3834 = vmatpush1.bf16.msra.mxu0 %v2894
    %3835 = vmatprep.subr.bf16.mxu0 %v2903
    %3836 = vmatpush1.bf16.msra.mxu0 %v2902
    %3837 = vmatprep.subr.bf16.mxu0 %v2911
    %3838 = vmatpush1.bf16.msra.mxu0 %v2910
    %3839 = vmatprep.subr.bf16.mxu0 %v2919
    %3840 = vmatpush1.bf16.msra.mxu0 %v2918
    %3841 = vmatprep.subr.bf16.mxu0 %v2927
    %3842 = vmatpush1.bf16.msra.mxu0 %v2926
    %3843 = vmatprep.subr.bf16.mxu0 %v2935
    %3844 = vmatpush1.bf16.msra.mxu0 %v2934
    %3845 = vmatprep.subr.bf16.mxu0 %v2943
    %3846 = vmatpush1.bf16.msra.mxu0 %v2942
    %3847 = vmatprep.subr.bf16.mxu0 %v2951
    %3848 = vmatpush1.bf16.msra.mxu0 %v2950
    %3849 = vmatprep.subr.bf16.mxu0 %v2959
    %3850 = vmatpush1.bf16.msra.mxu0 %v2958
    %3851 = vmatprep.subr.bf16.mxu0 %v2967
    %3852 = vmatpush1.bf16.msra.mxu0 %v2966
    %3853 = vmatprep.subr.bf16.mxu0 %v2975
    %3854 = vmatpush1.bf16.msra.mxu0 %v2974
    %3855 = vmatprep.subr.bf16.mxu0 %v2983
    %3856 = vmatpush1.bf16.msra.mxu0 %v2982
    %3857 = vmatprep.subr.bf16.mxu0 %v2991
    %3858 = vmatpush1.bf16.msra.mxu0 %v2990
    %3859 = vmatprep.subr.bf16.mxu0 %v2999
    %3860 = vmatpush1.bf16.msra.mxu0 %v2998
    %3861 = vmatprep.subr.bf16.mxu0 %v3007
    %3862 = vmatpush1.bf16.msra.mxu0 %v3006
    %3863 = vmatprep.subr.bf16.mxu0 %v3015
    %3864 = vmatpush1.bf16.msra.mxu0 %v3014
    %3865 = vmatprep.mubr.bf16.mxu0 %v1217
    %3866 = vmatmul.mubr.bf16.gmra.mrb[0].mxu0 %v1216
    %v3867 = vpop.f32.mrb[0].mxu0
    %v3868 = vadd.f32 %v3825, %v3867
    %v3869 = vpop.f32.mrb[0].mxu0
    %v3870 = vadd.f32 %v3827, %v3869
    %v3871 = vpop.f32.mrb[0].mxu0
    %v3872 = vadd.f32 %v3829, %v3871
    %v3873 = vpop.f32.mrb[0].mxu0
    %v3874 = vadd.f32 %v3831, %v3873
    %3875 = vdwg.mxu0
    %3876 = vmatprep.subr.bf16.mxu0 %v3023
    %3877 = vmatpush1.bf16.msra.mxu0 %v3022
    %3878 = vmatprep.subr.bf16.mxu0 %v3031
    %3879 = vmatpush1.bf16.msra.mxu0 %v3030
    %3880 = vmatprep.subr.bf16.mxu0 %v3039
    %3881 = vmatpush1.bf16.msra.mxu0 %v3038
    %3882 = vmatprep.subr.bf16.mxu0 %v3047
    %3883 = vmatpush1.bf16.msra.mxu0 %v3046
    %3884 = vmatprep.subr.bf16.mxu0 %v3055
    %3885 = vmatpush1.bf16.msra.mxu0 %v3054
    %3886 = vmatprep.subr.bf16.mxu0 %v3063
    %3887 = vmatpush1.bf16.msra.mxu0 %v3062
    %3888 = vmatprep.subr.bf16.mxu0 %v3071
    %3889 = vmatpush1.bf16.msra.mxu0 %v3070
    %3890 = vmatprep.subr.bf16.mxu0 %v3079
    %3891 = vmatpush1.bf16.msra.mxu0 %v3078
    %3892 = vmatprep.subr.bf16.mxu0 %v3087
    %3893 = vmatpush1.bf16.msra.mxu0 %v3086
    %3894 = vmatprep.subr.bf16.mxu0 %v3095
    %3895 = vmatpush1.bf16.msra.mxu0 %v3094
    %3896 = vmatprep.subr.bf16.mxu0 %v3103
    %3897 = vmatpush1.bf16.msra.mxu0 %v3102
    %3898 = vmatprep.subr.bf16.mxu0 %v3111
    %3899 = vmatpush1.bf16.msra.mxu0 %v3110
    %3900 = vmatprep.subr.bf16.mxu0 %v3119
    %3901 = vmatpush1.bf16.msra.mxu0 %v3118
    %3902 = vmatprep.subr.bf16.mxu0 %v3127
    %3903 = vmatpush1.bf16.msra.mxu0 %v3126
    %3904 = vmatprep.subr.bf16.mxu0 %v3135
    %3905 = vmatpush1.bf16.msra.mxu0 %v3134
    %3906 = vmatprep.subr.bf16.mxu0 %v3143
    %3907 = vmatpush1.bf16.msra.mxu0 %v3142
    %3908 = vmatprep.mubr.bf16.mxu0 %v1219
    %3909 = vmatmul.mubr.bf16.gmra.mrb[0].mxu0 %v1218
    %v3910 = vpop.f32.mrb[0].mxu0
    %v3911 = vadd.f32 %v3868, %v3910
    %v3912 = vpop.f32.mrb[0].mxu0
    %v3913 = vadd.f32 %v3870, %v3912
    %v3914 = vpop.f32.mrb[0].mxu0
    %v3915 = vadd.f32 %v3872, %v3914
    %v3916 = vpop.f32.mrb[0].mxu0
    %v3917 = vadd.f32 %v3874, %v3916
    %3918 = vdwg.mxu0
    %3919 = vmatprep.subr.bf16.mxu0 %v3151
    %3920 = vmatpush1.bf16.msra.mxu0 %v3150
    %3921 = vmatprep.subr.bf16.mxu0 %v3159
    %3922 = vmatpush1.bf16.msra.mxu0 %v3158
    %3923 = vmatprep.subr.bf16.mxu0 %v3167
    %3924 = vmatpush1.bf16.msra.mxu0 %v3166
    %3925 = vmatprep.subr.bf16.mxu0 %v3175
    %3926 = vmatpush1.bf16.msra.mxu0 %v3174
    %3927 = vmatprep.subr.bf16.mxu0 %v3183
    %3928 = vmatpush1.bf16.msra.mxu0 %v3182
    %3929 = vmatprep.subr.bf16.mxu0 %v3191
    %3930 = vmatpush1.bf16.msra.mxu0 %v3190
    %3931 = vmatprep.subr.bf16.mxu0 %v3199
    %3932 = vmatpush1.bf16.msra.mxu0 %v3198
    %3933 = vmatprep.subr.bf16.mxu0 %v3207
    %3934 = vmatpush1.bf16.msra.mxu0 %v3206
    %3935 = vmatprep.subr.bf16.mxu0 %v3215
    %3936 = vmatpush1.bf16.msra.mxu0 %v3214
    %3937 = vmatprep.subr.bf16.mxu0 %v3223
    %3938 = vmatpush1.bf16.msra.mxu0 %v3222
    %3939 = vmatprep.subr.bf16.mxu0 %v3231
    %3940 = vmatpush1.bf16.msra.mxu0 %v3230
    %3941 = vmatprep.subr.bf16.mxu0 %v3239
    %3942 = vmatpush1.bf16.msra.mxu0 %v3238
    %3943 = vmatprep.subr.bf16.mxu0 %v3247
    %3944 = vmatpush1.bf16.msra.mxu0 %v3246
    %3945 = vmatprep.subr.bf16.mxu0 %v3255
    %3946 = vmatpush1.bf16.msra.mxu0 %v3254
    %3947 = vmatprep.subr.bf16.mxu0 %v3263
    %3948 = vmatpush1.bf16.msra.mxu0 %v3262
    %3949 = vmatprep.subr.bf16.mxu0 %v3271
    %3950 = vmatpush1.bf16.msra.mxu0 %v3270
    %3951 = vmatprep.mubr.bf16.mxu0 %v1221
    %3952 = vmatmul.mubr.bf16.gmra.mrb[0].mxu0 %v1220
    %v3953 = vpop.f32.mrb[0].mxu0
    %v3954 = vadd.f32 %v3911, %v3953
    %v3955 = vpop.f32.mrb[0].mxu0
    %v3956 = vadd.f32 %v3913, %v3955
    %v3957 = vpop.f32.mrb[0].mxu0
    %v3958 = vadd.f32 %v3915, %v3957
    %v3959 = vpop.f32.mrb[0].mxu0
    %v3960 = vadd.f32 %v3917, %v3959
    %3961 = vdwg.mxu0
    %3962 = vmatprep.subr.bf16.mxu0 %v2769
    %3963 = vmatpush1.bf16.msra.mxu0 %v2768
    %3964 = vmatprep.subr.bf16.mxu0 %v2777
    %3965 = vmatpush1.bf16.msra.mxu0 %v2776
    %3966 = vmatprep.subr.bf16.mxu0 %v2785
    %3967 = vmatpush1.bf16.msra.mxu0 %v2784
    %3968 = vmatprep.subr.bf16.mxu0 %v2793
    %3969 = vmatpush1.bf16.msra.mxu0 %v2792
    %3970 = vmatprep.subr.bf16.mxu0 %v2801
    %3971 = vmatpush1.bf16.msra.mxu0 %v2800
    %3972 = vmatprep.subr.bf16.mxu0 %v2809
    %3973 = vmatpush1.bf16.msra.mxu0 %v2808
    %3974 = vmatprep.subr.bf16.mxu0 %v2817
    %3975 = vmatpush1.bf16.msra.mxu0 %v2816
    %3976 = vmatprep.subr.bf16.mxu0 %v2825
    %3977 = vmatpush1.bf16.msra.mxu0 %v2824
    %3978 = vmatprep.subr.bf16.mxu0 %v2833
    %3979 = vmatpush1.bf16.msra.mxu0 %v2832
    %3980 = vmatprep.subr.bf16.mxu0 %v2841
    %3981 = vmatpush1.bf16.msra.mxu0 %v2840
    %3982 = vmatprep.subr.bf16.mxu0 %v2849
    %3983 = vmatpush1.bf16.msra.mxu0 %v2848
    %3984 = vmatprep.subr.bf16.mxu0 %v2857
    %3985 = vmatpush1.bf16.msra.mxu0 %v2856
    %3986 = vmatprep.subr.bf16.mxu0 %v2865
    %3987 = vmatpush1.bf16.msra.mxu0 %v2864
    %3988 = vmatprep.subr.bf16.mxu0 %v2873
    %3989 = vmatpush1.bf16.msra.mxu0 %v2872
    %3990 = vmatprep.subr.bf16.mxu0 %v2881
    %3991 = vmatpush1.bf16.msra.mxu0 %v2880
    %3992 = vmatprep.subr.bf16.mxu0 %v2889
    %3993 = vmatpush1.bf16.msra.mxu0 %v2888
    %3994 = vmatprep.mubr.bf16.mxu0 %v1215
    %3995 = vmatmul.mubr.bf16.gmra.mrb[0].mxu0 %v1214
    %v3996 = vpop.f32.mrb[0].mxu0
    %v3997 = vadd.f32 0.0, %v3996
    %v3998 = vpop.f32.mrb[0].mxu0
    %v3999 = vadd.f32 0.0, %v3998
    %v4000 = vpop.f32.mrb[0].mxu0
    %v4001 = vadd.f32 0.0, %v4000
    %v4002 = vpop.f32.mrb[0].mxu0
    %v4003 = vadd.f32 0.0, %v4002
    %4004 = vdwg.mxu0
    %4005 = vmatprep.subr.bf16.mxu0 %v2897
    %4006 = vmatpush1.bf16.msra.mxu0 %v2896
    %4007 = vmatprep.subr.bf16.mxu0 %v2905
    %4008 = vmatpush1.bf16.msra.mxu0 %v2904
    %4009 = vmatprep.subr.bf16.mxu0 %v2913
    %4010 = vmatpush1.bf16.msra.mxu0 %v2912
    %4011 = vmatprep.subr.bf16.mxu0 %v2921
    %4012 = vmatpush1.bf16.msra.mxu0 %v2920
    %4013 = vmatprep.subr.bf16.mxu0 %v2929
    %4014 = vmatpush1.bf16.msra.mxu0 %v2928
    %4015 = vmatprep.subr.bf16.mxu0 %v2937
    %4016 = vmatpush1.bf16.msra.mxu0 %v2936
    %4017 = vmatprep.subr.bf16.mxu0 %v2945
    %4018 = vmatpush1.bf16.msra.mxu0 %v2944
    %4019 = vmatprep.subr.bf16.mxu0 %v2953
    %4020 = vmatpush1.bf16.msra.mxu0 %v2952
    %4021 = vmatprep.subr.bf16.mxu0 %v2961
    %4022 = vmatpush1.bf16.msra.mxu0 %v2960
    %4023 = vmatprep.subr.bf16.mxu0 %v2969
    %4024 = vmatpush1.bf16.msra.mxu0 %v2968
    %4025 = vmatprep.subr.bf16.mxu0 %v2977
    %4026 = vmatpush1.bf16.msra.mxu0 %v2976
    %4027 = vmatprep.subr.bf16.mxu0 %v2985
    %4028 = vmatpush1.bf16.msra.mxu0 %v2984
    %4029 = vmatprep.subr.bf16.mxu0 %v2993
    %4030 = vmatpush1.bf16.msra.mxu0 %v2992
    %4031 = vmatprep.subr.bf16.mxu0 %v3001
    %4032 = vmatpush1.bf16.msra.mxu0 %v3000
    %4033 = vmatprep.subr.bf16.mxu0 %v3009
    %4034 = vmatpush1.bf16.msra.mxu0 %v3008
    %4035 = vmatprep.subr.bf16.mxu0 %v3017
    %4036 = vmatpush1.bf16.msra.mxu0 %v3016
    %4037 = vmatprep.mubr.bf16.mxu0 %v1217
    %4038 = vmatmul.mubr.bf16.gmra.mrb[0].mxu0 %v1216
    %v4039 = vpop.f32.mrb[0].mxu0
    %v4040 = vadd.f32 %v3997, %v4039
    %v4041 = vpop.f32.mrb[0].mxu0
    %v4042 = vadd.f32 %v3999, %v4041
    %v4043 = vpop.f32.mrb[0].mxu0
    %v4044 = vadd.f32 %v4001, %v4043
    %v4045 = vpop.f32.mrb[0].mxu0
    %v4046 = vadd.f32 %v4003, %v4045
    %4047 = vdwg.mxu0
    %4048 = vmatprep.subr.bf16.mxu0 %v3025
    %4049 = vmatpush1.bf16.msra.mxu0 %v3024
    %4050 = vmatprep.subr.bf16.mxu0 %v3033
    %4051 = vmatpush1.bf16.msra.mxu0 %v3032
    %4052 = vmatprep.subr.bf16.mxu0 %v3041
    %4053 = vmatpush1.bf16.msra.mxu0 %v3040
    %4054 = vmatprep.subr.bf16.mxu0 %v3049
    %4055 = vmatpush1.bf16.msra.mxu0 %v3048
    %4056 = vmatprep.subr.bf16.mxu0 %v3057
    %4057 = vmatpush1.bf16.msra.mxu0 %v3056
    %4058 = vmatprep.subr.bf16.mxu0 %v3065
    %4059 = vmatpush1.bf16.msra.mxu0 %v3064
    %4060 = vmatprep.subr.bf16.mxu0 %v3073
    %4061 = vmatpush1.bf16.msra.mxu0 %v3072
    %4062 = vmatprep.subr.bf16.mxu0 %v3081
    %4063 = vmatpush1.bf16.msra.mxu0 %v3080
    %4064 = vmatprep.subr.bf16.mxu0 %v3089
    %4065 = vmatpush1.bf16.msra.mxu0 %v3088
    %4066 = vmatprep.subr.bf16.mxu0 %v3097
    %4067 = vmatpush1.bf16.msra.mxu0 %v3096
    %4068 = vmatprep.subr.bf16.mxu0 %v3105
    %4069 = vmatpush1.bf16.msra.mxu0 %v3104
    %4070 = vmatprep.subr.bf16.mxu0 %v3113
    %4071 = vmatpush1.bf16.msra.mxu0 %v3112
    %4072 = vmatprep.subr.bf16.mxu0 %v3121
    %4073 = vmatpush1.bf16.msra.mxu0 %v3120
    %4074 = vmatprep.subr.bf16.mxu0 %v3129
    %4075 = vmatpush1.bf16.msra.mxu0 %v3128
    %4076 = vmatprep.subr.bf16.mxu0 %v3137
    %4077 = vmatpush1.bf16.msra.mxu0 %v3136
    %4078 = vmatprep.subr.bf16.mxu0 %v3145
    %4079 = vmatpush1.bf16.msra.mxu0 %v3144
    %4080 = vmatprep.mubr.bf16.mxu0 %v1219
    %4081 = vmatmul.mubr.bf16.gmra.mrb[0].mxu0 %v1218
    %v4082 = vpop.f32.mrb[0].mxu0
    %v4083 = vadd.f32 %v4040, %v4082
    %v4084 = vpop.f32.mrb[0].mxu0
    %v4085 = vadd.f32 %v4042, %v4084
    %v4086 = vpop.f32.mrb[0].mxu0
    %v4087 = vadd.f32 %v4044, %v4086
    %v4088 = vpop.f32.mrb[0].mxu0
    %v4089 = vadd.f32 %v4046, %v4088
    %4090 = vdwg.mxu0
    %4091 = vmatprep.subr.bf16.mxu0 %v3153
    %4092 = vmatpush1.bf16.msra.mxu0 %v3152
    %4093 = vmatprep.subr.bf16.mxu0 %v3161
    %4094 = vmatpush1.bf16.msra.mxu0 %v3160
    %4095 = vmatprep.subr.bf16.mxu0 %v3169
    %4096 = vmatpush1.bf16.msra.mxu0 %v3168
    %4097 = vmatprep.subr.bf16.mxu0 %v3177
    %4098 = vmatpush1.bf16.msra.mxu0 %v3176
    %4099 = vmatprep.subr.bf16.mxu0 %v3185
    %4100 = vmatpush1.bf16.msra.mxu0 %v3184
    %4101 = vmatprep.subr.bf16.mxu0 %v3193
    %4102 = vmatpush1.bf16.msra.mxu0 %v3192
    %4103 = vmatprep.subr.bf16.mxu0 %v3201
    %4104 = vmatpush1.bf16.msra.mxu0 %v3200
    %4105 = vmatprep.subr.bf16.mxu0 %v3209
    %4106 = vmatpush1.bf16.msra.mxu0 %v3208
    %4107 = vmatprep.subr.bf16.mxu0 %v3217
    %4108 = vmatpush1.bf16.msra.mxu0 %v3216
    %4109 = vmatprep.subr.bf16.mxu0 %v3225
    %4110 = vmatpush1.bf16.msra.mxu0 %v3224
    %4111 = vmatprep.subr.bf16.mxu0 %v3233
    %4112 = vmatpush1.bf16.msra.mxu0 %v3232
    %4113 = vmatprep.subr.bf16.mxu0 %v3241
    %4114 = vmatpush1.bf16.msra.mxu0 %v3240
    %4115 = vmatprep.subr.bf16.mxu0 %v3249
    %4116 = vmatpush1.bf16.msra.mxu0 %v3248
    %4117 = vmatprep.subr.bf16.mxu0 %v3257
    %4118 = vmatpush1.bf16.msra.mxu0 %v3256
    %4119 = vmatprep.subr.bf16.mxu0 %v3265
    %4120 = vmatpush1.bf16.msra.mxu0 %v3264
    %4121 = vmatprep.subr.bf16.mxu0 %v3273
    %4122 = vmatpush1.bf16.msra.mxu0 %v3272
    %4123 = vmatprep.mubr.bf16.mxu0 %v1221
    %4124 = vmatmul.mubr.bf16.gmra.mrb[0].mxu0 %v1220
    %v4125 = vpop.f32.mrb[0].mxu0
    %v4126 = vadd.f32 %v4083, %v4125
    %v4127 = vpop.f32.mrb[0].mxu0
    %v4128 = vadd.f32 %v4085, %v4127
    %v4129 = vpop.f32.mrb[0].mxu0
    %v4130 = vadd.f32 %v4087, %v4129
    %v4131 = vpop.f32.mrb[0].mxu0
    %v4132 = vadd.f32 %v4089, %v4131
    %4133 = vdwg.mxu0
    %4134 = vmatprep.subr.bf16.mxu0 %v2771
    %4135 = vmatpush1.bf16.msra.mxu0 %v2770
    %4136 = vmatprep.subr.bf16.mxu0 %v2779
    %4137 = vmatpush1.bf16.msra.mxu0 %v2778
    %4138 = vmatprep.subr.bf16.mxu0 %v2787
    %4139 = vmatpush1.bf16.msra.mxu0 %v2786
    %4140 = vmatprep.subr.bf16.mxu0 %v2795
    %4141 = vmatpush1.bf16.msra.mxu0 %v2794
    %4142 = vmatprep.subr.bf16.mxu0 %v2803
    %4143 = vmatpush1.bf16.msra.mxu0 %v2802
    %4144 = vmatprep.subr.bf16.mxu0 %v2811
    %4145 = vmatpush1.bf16.msra.mxu0 %v2810
    %4146 = vmatprep.subr.bf16.mxu0 %v2819
    %4147 = vmatpush1.bf16.msra.mxu0 %v2818
    %4148 = vmatprep.subr.bf16.mxu0 %v2827
    %4149 = vmatpush1.bf16.msra.mxu0 %v2826
    %4150 = vmatprep.subr.bf16.mxu0 %v2835
    %4151 = vmatpush1.bf16.msra.mxu0 %v2834
    %4152 = vmatprep.subr.bf16.mxu0 %v2843
    %4153 = vmatpush1.bf16.msra.mxu0 %v2842
    %4154 = vmatprep.subr.bf16.mxu0 %v2851
    %4155 = vmatpush1.bf16.msra.mxu0 %v2850
    %4156 = vmatprep.subr.bf16.mxu0 %v2859
    %4157 = vmatpush1.bf16.msra.mxu0 %v2858
    %4158 = vmatprep.subr.bf16.mxu0 %v2867
    %4159 = vmatpush1.bf16.msra.mxu0 %v2866
    %4160 = vmatprep.subr.bf16.mxu0 %v2875
    %4161 = vmatpush1.bf16.msra.mxu0 %v2874
    %4162 = vmatprep.subr.bf16.mxu0 %v2883
    %4163 = vmatpush1.bf16.msra.mxu0 %v2882
    %4164 = vmatprep.subr.bf16.mxu0 %v2891
    %4165 = vmatpush1.bf16.msra.mxu0 %v2890
    %4166 = vmatprep.mubr.bf16.mxu0 %v1215
    %4167 = vmatmul.mubr.bf16.gmra.mrb[0].mxu0 %v1214
    %v4168 = vpop.f32.mrb[0].mxu0
    %v4169 = vadd.f32 0.0, %v4168
    %v4170 = vpop.f32.mrb[0].mxu0
    %v4171 = vadd.f32 0.0, %v4170
    %v4172 = vpop.f32.mrb[0].mxu0
    %v4173 = vadd.f32 0.0, %v4172
    %v4174 = vpop.f32.mrb[0].mxu0
    %v4175 = vadd.f32 0.0, %v4174
    %4176 = vdwg.mxu0
    %4177 = vmatprep.subr.bf16.mxu0 %v2899
    %4178 = vmatpush1.bf16.msra.mxu0 %v2898
    %4179 = vmatprep.subr.bf16.mxu0 %v2907
    %4180 = vmatpush1.bf16.msra.mxu0 %v2906
    %4181 = vmatprep.subr.bf16.mxu0 %v2915
    %4182 = vmatpush1.bf16.msra.mxu0 %v2914
    %4183 = vmatprep.subr.bf16.mxu0 %v2923
    %4184 = vmatpush1.bf16.msra.mxu0 %v2922
    %4185 = vmatprep.subr.bf16.mxu0 %v2931
    %4186 = vmatpush1.bf16.msra.mxu0 %v2930
    %4187 = vmatprep.subr.bf16.mxu0 %v2939
    %4188 = vmatpush1.bf16.msra.mxu0 %v2938
    %4189 = vmatprep.subr.bf16.mxu0 %v2947
    %4190 = vmatpush1.bf16.msra.mxu0 %v2946
    %4191 = vmatprep.subr.bf16.mxu0 %v2955
    %4192 = vmatpush1.bf16.msra.mxu0 %v2954
    %4193 = vmatprep.subr.bf16.mxu0 %v2963
    %4194 = vmatpush1.bf16.msra.mxu0 %v2962
    %4195 = vmatprep.subr.bf16.mxu0 %v2971
    %4196 = vmatpush1.bf16.msra.mxu0 %v2970
    %4197 = vmatprep.subr.bf16.mxu0 %v2979
    %4198 = vmatpush1.bf16.msra.mxu0 %v2978
    %4199 = vmatprep.subr.bf16.mxu0 %v2987
    %4200 = vmatpush1.bf16.msra.mxu0 %v2986
    %4201 = vmatprep.subr.bf16.mxu0 %v2995
    %4202 = vmatpush1.bf16.msra.mxu0 %v2994
    %4203 = vmatprep.subr.bf16.mxu0 %v3003
    %4204 = vmatpush1.bf16.msra.mxu0 %v3002
    %4205 = vmatprep.subr.bf16.mxu0 %v3011
    %4206 = vmatpush1.bf16.msra.mxu0 %v3010
    %4207 = vmatprep.subr.bf16.mxu0 %v3019
    %4208 = vmatpush1.bf16.msra.mxu0 %v3018
    %4209 = vmatprep.mubr.bf16.mxu0 %v1217
    %4210 = vmatmul.mubr.bf16.gmra.mrb[0].mxu0 %v1216
    %v4211 = vpop.f32.mrb[0].mxu0
    %v4212 = vadd.f32 %v4169, %v4211
    %v4213 = vpop.f32.mrb[0].mxu0
    %v4214 = vadd.f32 %v4171, %v4213
    %v4215 = vpop.f32.mrb[0].mxu0
    %v4216 = vadd.f32 %v4173, %v4215
    %v4217 = vpop.f32.mrb[0].mxu0
    %v4218 = vadd.f32 %v4175, %v4217
    %4219 = vdwg.mxu0
    %4220 = vmatprep.subr.bf16.mxu0 %v3027
    %4221 = vmatpush1.bf16.msra.mxu0 %v3026
    %4222 = vmatprep.subr.bf16.mxu0 %v3035
    %4223 = vmatpush1.bf16.msra.mxu0 %v3034
    %4224 = vmatprep.subr.bf16.mxu0 %v3043
    %4225 = vmatpush1.bf16.msra.mxu0 %v3042
    %4226 = vmatprep.subr.bf16.mxu0 %v3051
    %4227 = vmatpush1.bf16.msra.mxu0 %v3050
    %4228 = vmatprep.subr.bf16.mxu0 %v3059
    %4229 = vmatpush1.bf16.msra.mxu0 %v3058
    %4230 = vmatprep.subr.bf16.mxu0 %v3067
    %4231 = vmatpush1.bf16.msra.mxu0 %v3066
    %4232 = vmatprep.subr.bf16.mxu0 %v3075
    %4233 = vmatpush1.bf16.msra.mxu0 %v3074
    %4234 = vmatprep.subr.bf16.mxu0 %v3083
    %4235 = vmatpush1.bf16.msra.mxu0 %v3082
    %4236 = vmatprep.subr.bf16.mxu0 %v3091
    %4237 = vmatpush1.bf16.msra.mxu0 %v3090
    %4238 = vmatprep.subr.bf16.mxu0 %v3099
    %4239 = vmatpush1.bf16.msra.mxu0 %v3098
    %4240 = vmatprep.subr.bf16.mxu0 %v3107
    %4241 = vmatpush1.bf16.msra.mxu0 %v3106
    %4242 = vmatprep.subr.bf16.mxu0 %v3115
    %4243 = vmatpush1.bf16.msra.mxu0 %v3114
    %4244 = vmatprep.subr.bf16.mxu0 %v3123
    %4245 = vmatpush1.bf16.msra.mxu0 %v3122
    %4246 = vmatprep.subr.bf16.mxu0 %v3131
    %4247 = vmatpush1.bf16.msra.mxu0 %v3130
    %4248 = vmatprep.subr.bf16.mxu0 %v3139
    %4249 = vmatpush1.bf16.msra.mxu0 %v3138
    %4250 = vmatprep.subr.bf16.mxu0 %v3147
    %4251 = vmatpush1.bf16.msra.mxu0 %v3146
    %4252 = vmatprep.mubr.bf16.mxu0 %v1219
    %4253 = vmatmul.mubr.bf16.gmra.mrb[0].mxu0 %v1218
    %v4254 = vpop.f32.mrb[0].mxu0
    %v4255 = vadd.f32 %v4212, %v4254
    %v4256 = vpop.f32.mrb[0].mxu0
    %v4257 = vadd.f32 %v4214, %v4256
    %v4258 = vpop.f32.mrb[0].mxu0
    %v4259 = vadd.f32 %v4216, %v4258
    %v4260 = vpop.f32.mrb[0].mxu0
    %v4261 = vadd.f32 %v4218, %v4260
    %4262 = vdwg.mxu0
    %4263 = vmatprep.subr.bf16.mxu0 %v3155
    %4264 = vmatpush1.bf16.msra.mxu0 %v3154
    %4265 = vmatprep.subr.bf16.mxu0 %v3163
    %4266 = vmatpush1.bf16.msra.mxu0 %v3162
    %4267 = vmatprep.subr.bf16.mxu0 %v3171
    %4268 = vmatpush1.bf16.msra.mxu0 %v3170
    %4269 = vmatprep.subr.bf16.mxu0 %v3179
    %4270 = vmatpush1.bf16.msra.mxu0 %v3178
    %4271 = vmatprep.subr.bf16.mxu0 %v3187
    %4272 = vmatpush1.bf16.msra.mxu0 %v3186
    %4273 = vmatprep.subr.bf16.mxu0 %v3195
    %4274 = vmatpush1.bf16.msra.mxu0 %v3194
    %4275 = vmatprep.subr.bf16.mxu0 %v3203
    %4276 = vmatpush1.bf16.msra.mxu0 %v3202
    %4277 = vmatprep.subr.bf16.mxu0 %v3211
    %4278 = vmatpush1.bf16.msra.mxu0 %v3210
    %4279 = vmatprep.subr.bf16.mxu0 %v3219
    %4280 = vmatpush1.bf16.msra.mxu0 %v3218
    %4281 = vmatprep.subr.bf16.mxu0 %v3227
    %4282 = vmatpush1.bf16.msra.mxu0 %v3226
    %4283 = vmatprep.subr.bf16.mxu0 %v3235
    %4284 = vmatpush1.bf16.msra.mxu0 %v3234
    %4285 = vmatprep.subr.bf16.mxu0 %v3243
    %4286 = vmatpush1.bf16.msra.mxu0 %v3242
    %4287 = vmatprep.subr.bf16.mxu0 %v3251
    %4288 = vmatpush1.bf16.msra.mxu0 %v3250
    %4289 = vmatprep.subr.bf16.mxu0 %v3259
    %4290 = vmatpush1.bf16.msra.mxu0 %v3258
    %4291 = vmatprep.subr.bf16.mxu0 %v3267
    %4292 = vmatpush1.bf16.msra.mxu0 %v3266
    %4293 = vmatprep.subr.bf16.mxu0 %v3275
    %4294 = vmatpush1.bf16.msra.mxu0 %v3274
    %4295 = vmatprep.mubr.bf16.mxu0 %v1221
    %4296 = vmatmul.mubr.bf16.gmra.mrb[0].mxu0 %v1220
    %v4297 = vpop.f32.mrb[0].mxu0
    %v4298 = vadd.f32 %v4255, %v4297
    %v4299 = vpop.f32.mrb[0].mxu0
    %v4300 = vadd.f32 %v4257, %v4299
    %v4301 = vpop.f32.mrb[0].mxu0
    %v4302 = vadd.f32 %v4259, %v4301
    %v4303 = vpop.f32.mrb[0].mxu0
    %v4304 = vadd.f32 %v4261, %v4303
    %4305 = vdwg.mxu0
    %4306 = vmatprep.subr.bf16.mxu0 %v2773
    %4307 = vmatpush1.bf16.msra.mxu0 %v2772
    %4308 = vmatprep.subr.bf16.mxu0 %v2781
    %4309 = vmatpush1.bf16.msra.mxu0 %v2780
    %4310 = vmatprep.subr.bf16.mxu0 %v2789
    %4311 = vmatpush1.bf16.msra.mxu0 %v2788
    %4312 = vmatprep.subr.bf16.mxu0 %v2797
    %4313 = vmatpush1.bf16.msra.mxu0 %v2796
    %4314 = vmatprep.subr.bf16.mxu0 %v2805
    %4315 = vmatpush1.bf16.msra.mxu0 %v2804
    %4316 = vmatprep.subr.bf16.mxu0 %v2813
    %4317 = vmatpush1.bf16.msra.mxu0 %v2812
    %4318 = vmatprep.subr.bf16.mxu0 %v2821
    %4319 = vmatpush1.bf16.msra.mxu0 %v2820
    %4320 = vmatprep.subr.bf16.mxu0 %v2829
    %4321 = vmatpush1.bf16.msra.mxu0 %v2828
    %4322 = vmatprep.subr.bf16.mxu0 %v2837
    %4323 = vmatpush1.bf16.msra.mxu0 %v2836
    %4324 = vmatprep.subr.bf16.mxu0 %v2845
    %4325 = vmatpush1.bf16.msra.mxu0 %v2844
    %4326 = vmatprep.subr.bf16.mxu0 %v2853
    %4327 = vmatpush1.bf16.msra.mxu0 %v2852
    %4328 = vmatprep.subr.bf16.mxu0 %v2861
    %4329 = vmatpush1.bf16.msra.mxu0 %v2860
    %4330 = vmatprep.subr.bf16.mxu0 %v2869
    %4331 = vmatpush1.bf16.msra.mxu0 %v2868
    %4332 = vmatprep.subr.bf16.mxu0 %v2877
    %4333 = vmatpush1.bf16.msra.mxu0 %v2876
    %4334 = vmatprep.subr.bf16.mxu0 %v2885
    %4335 = vmatpush1.bf16.msra.mxu0 %v2884
    %4336 = vmatprep.subr.bf16.mxu0 %v2893
    %4337 = vmatpush1.bf16.msra.mxu0 %v2892
    %4338 = vmatprep.mubr.bf16.mxu0 %v1215
    %4339 = vmatmul.mubr.bf16.gmra.mrb[0].mxu0 %v1214
    %v4340 = vpop.f32.mrb[0].mxu0
    %v4341 = vadd.f32 0.0, %v4340
    %v4342 = vpop.f32.mrb[0].mxu0
    %v4343 = vadd.f32 0.0, %v4342
    %v4344 = vpop.f32.mrb[0].mxu0
    %v4345 = vadd.f32 0.0, %v4344
    %v4346 = vpop.f32.mrb[0].mxu0
    %v4347 = vadd.f32 0.0, %v4346
    %4348 = vdwg.mxu0
    %4349 = vmatprep.subr.bf16.mxu0 %v2901
    %4350 = vmatpush1.bf16.msra.mxu0 %v2900
    %4351 = vmatprep.subr.bf16.mxu0 %v2909
    %4352 = vmatpush1.bf16.msra.mxu0 %v2908
    %4353 = vmatprep.subr.bf16.mxu0 %v2917
    %4354 = vmatpush1.bf16.msra.mxu0 %v2916
    %4355 = vmatprep.subr.bf16.mxu0 %v2925
    %4356 = vmatpush1.bf16.msra.mxu0 %v2924
    %4357 = vmatprep.subr.bf16.mxu0 %v2933
    %4358 = vmatpush1.bf16.msra.mxu0 %v2932
    %4359 = vmatprep.subr.bf16.mxu0 %v2941
    %4360 = vmatpush1.bf16.msra.mxu0 %v2940
    %4361 = vmatprep.subr.bf16.mxu0 %v2949
    %4362 = vmatpush1.bf16.msra.mxu0 %v2948
    %4363 = vmatprep.subr.bf16.mxu0 %v2957
    %4364 = vmatpush1.bf16.msra.mxu0 %v2956
    %4365 = vmatprep.subr.bf16.mxu0 %v2965
    %4366 = vmatpush1.bf16.msra.mxu0 %v2964
    %4367 = vmatprep.subr.bf16.mxu0 %v2973
    %4368 = vmatpush1.bf16.msra.mxu0 %v2972
    %4369 = vmatprep.subr.bf16.mxu0 %v2981
    %4370 = vmatpush1.bf16.msra.mxu0 %v2980
    %4371 = vmatprep.subr.bf16.mxu0 %v2989
    %4372 = vmatpush1.bf16.msra.mxu0 %v2988
    %4373 = vmatprep.subr.bf16.mxu0 %v2997
    %4374 = vmatpush1.bf16.msra.mxu0 %v2996
    %4375 = vmatprep.subr.bf16.mxu0 %v3005
    %4376 = vmatpush1.bf16.msra.mxu0 %v3004
    %4377 = vmatprep.subr.bf16.mxu0 %v3013
    %4378 = vmatpush1.bf16.msra.mxu0 %v3012
    %4379 = vmatprep.subr.bf16.mxu0 %v3021
    %4380 = vmatpush1.bf16.msra.mxu0 %v3020
    %4381 = vmatprep.mubr.bf16.mxu0 %v1217
    %4382 = vmatmul.mubr.bf16.gmra.mrb[0].mxu0 %v1216
    %v4383 = vpop.f32.mrb[0].mxu0
    %v4384 = vadd.f32 %v4341, %v4383
    %v4385 = vpop.f32.mrb[0].mxu0
    %v4386 = vadd.f32 %v4343, %v4385
    %v4387 = vpop.f32.mrb[0].mxu0
    %v4388 = vadd.f32 %v4345, %v4387
    %v4389 = vpop.f32.mrb[0].mxu0
    %v4390 = vadd.f32 %v4347, %v4389
    %4391 = vdwg.mxu0
    %4392 = vmatprep.subr.bf16.mxu0 %v3029
    %4393 = vmatpush1.bf16.msra.mxu0 %v3028
    %4394 = vmatprep.subr.bf16.mxu0 %v3037
    %4395 = vmatpush1.bf16.msra.mxu0 %v3036
    %4396 = vmatprep.subr.bf16.mxu0 %v3045
    %4397 = vmatpush1.bf16.msra.mxu0 %v3044
    %4398 = vmatprep.subr.bf16.mxu0 %v3053
    %4399 = vmatpush1.bf16.msra.mxu0 %v3052
    %4400 = vmatprep.subr.bf16.mxu0 %v3061
    %4401 = vmatpush1.bf16.msra.mxu0 %v3060
    %4402 = vmatprep.subr.bf16.mxu0 %v3069
    %4403 = vmatpush1.bf16.msra.mxu0 %v3068
    %4404 = vmatprep.subr.bf16.mxu0 %v3077
    %4405 = vmatpush1.bf16.msra.mxu0 %v3076
    %4406 = vmatprep.subr.bf16.mxu0 %v3085
    %4407 = vmatpush1.bf16.msra.mxu0 %v3084
    %4408 = vmatprep.subr.bf16.mxu0 %v3093
    %4409 = vmatpush1.bf16.msra.mxu0 %v3092
    %4410 = vmatprep.subr.bf16.mxu0 %v3101
    %4411 = vmatpush1.bf16.msra.mxu0 %v3100
    %4412 = vmatprep.subr.bf16.mxu0 %v3109
    %4413 = vmatpush1.bf16.msra.mxu0 %v3108
    %4414 = vmatprep.subr.bf16.mxu0 %v3117
    %4415 = vmatpush1.bf16.msra.mxu0 %v3116
    %4416 = vmatprep.subr.bf16.mxu0 %v3125
    %4417 = vmatpush1.bf16.msra.mxu0 %v3124
    %4418 = vmatprep.subr.bf16.mxu0 %v3133
    %4419 = vmatpush1.bf16.msra.mxu0 %v3132
    %4420 = vmatprep.subr.bf16.mxu0 %v3141
    %4421 = vmatpush1.bf16.msra.mxu0 %v3140
    %4422 = vmatprep.subr.bf16.mxu0 %v3149
    %4423 = vmatpush1.bf16.msra.mxu0 %v3148
    %4424 = vmatprep.mubr.bf16.mxu0 %v1219
    %4425 = vmatmul.mubr.bf16.gmra.mrb[0].mxu0 %v1218
    %v4426 = vpop.f32.mrb[0].mxu0
    %v4427 = vadd.f32 %v4384, %v4426
    %v4428 = vpop.f32.mrb[0].mxu0
    %v4429 = vadd.f32 %v4386, %v4428
    %v4430 = vpop.f32.mrb[0].mxu0
    %v4431 = vadd.f32 %v4388, %v4430
    %v4432 = vpop.f32.mrb[0].mxu0
    %v4433 = vadd.f32 %v4390, %v4432
    %4434 = vdwg.mxu0
    %4435 = vmatprep.subr.bf16.mxu0 %v3157
    %4436 = vmatpush1.bf16.msra.mxu0 %v3156
    %4437 = vmatprep.subr.bf16.mxu0 %v3165
    %4438 = vmatpush1.bf16.msra.mxu0 %v3164
    %4439 = vmatprep.subr.bf16.mxu0 %v3173
    %4440 = vmatpush1.bf16.msra.mxu0 %v3172
    %4441 = vmatprep.subr.bf16.mxu0 %v3181
    %4442 = vmatpush1.bf16.msra.mxu0 %v3180
    %4443 = vmatprep.subr.bf16.mxu0 %v3189
    %4444 = vmatpush1.bf16.msra.mxu0 %v3188
    %4445 = vmatprep.subr.bf16.mxu0 %v3197
    %4446 = vmatpush1.bf16.msra.mxu0 %v3196
    %4447 = vmatprep.subr.bf16.mxu0 %v3205
    %4448 = vmatpush1.bf16.msra.mxu0 %v3204
    %4449 = vmatprep.subr.bf16.mxu0 %v3213
    %4450 = vmatpush1.bf16.msra.mxu0 %v3212
    %4451 = vmatprep.subr.bf16.mxu0 %v3221
    %4452 = vmatpush1.bf16.msra.mxu0 %v3220
    %4453 = vmatprep.subr.bf16.mxu0 %v3229
    %4454 = vmatpush1.bf16.msra.mxu0 %v3228
    %4455 = vmatprep.subr.bf16.mxu0 %v3237
    %4456 = vmatpush1.bf16.msra.mxu0 %v3236
    %4457 = vmatprep.subr.bf16.mxu0 %v3245
    %4458 = vmatpush1.bf16.msra.mxu0 %v3244
    %4459 = vmatprep.subr.bf16.mxu0 %v3253
    %4460 = vmatpush1.bf16.msra.mxu0 %v3252
    %4461 = vmatprep.subr.bf16.mxu0 %v3261
    %4462 = vmatpush1.bf16.msra.mxu0 %v3260
    %4463 = vmatprep.subr.bf16.mxu0 %v3269
    %4464 = vmatpush1.bf16.msra.mxu0 %v3268
    %4465 = vmatprep.subr.bf16.mxu0 %v3277
    %4466 = vmatpush1.bf16.msra.mxu0 %v3276
    %4467 = vmatprep.mubr.bf16.mxu0 %v1221
    %4468 = vmatmul.mubr.bf16.gmra.mrb[0].mxu0 %v1220
    %v4469 = vpop.f32.mrb[0].mxu0
    %v4470 = vadd.f32 %v4427, %v4469
    %v4471 = vpop.f32.mrb[0].mxu0
    %v4472 = vadd.f32 %v4429, %v4471
    %v4473 = vpop.f32.mrb[0].mxu0
    %v4474 = vadd.f32 %v4431, %v4473
    %v4475 = vpop.f32.mrb[0].mxu0
    %v4476 = vadd.f32 %v4433, %v4475
    %4477 = vdwg.mxu0
    %v4486 = vunpack.c.l.b16 %v150
    %v4487 = vunpack.c.h.b16 %v150
    %v4488 = vunpack.c.l.b16 %v151
    %v4489 = vunpack.c.h.b16 %v151
    %v4490 = vunpack.c.l.b16 %v152
    %v4491 = vunpack.c.h.b16 %v152
    %v4492 = vunpack.c.l.b16 %v153
    %v4493 = vunpack.c.h.b16 %v153
    %v4494 = vunpack.c.l.b16 %v154
    %v4495 = vunpack.c.h.b16 %v154
    %v4496 = vunpack.c.l.b16 %v155
    %v4497 = vunpack.c.h.b16 %v155
    %v4498 = vunpack.c.l.b16 %v156
    %v4499 = vunpack.c.h.b16 %v156
    %v4500 = vunpack.c.l.b16 %v157
    %v4501 = vunpack.c.h.b16 %v157
    %v4502 = vpack.c.b16 %v4494, %v4486
    %v4503 = vpack.c.b16 %v4495, %v4487
    %v4504 = vpack.c.b16 %v4496, %v4488
    %v4505 = vpack.c.b16 %v4497, %v4489
    %v4506 = vpack.c.b16 %v4498, %v4490
    %v4507 = vpack.c.b16 %v4499, %v4491
    %v4508 = vpack.c.b16 %v4500, %v4492
    %v4509 = vpack.c.b16 %v4501, %v4493
    %v5030 = vunpack.c.l.b16 %v166
    %v5031 = vunpack.c.h.b16 %v166
    %v5032 = vunpack.c.l.b16 %v167
    %v5033 = vunpack.c.h.b16 %v167
    %v5034 = vunpack.c.l.b16 %v168
    %v5035 = vunpack.c.h.b16 %v168
    %v5036 = vunpack.c.l.b16 %v169
    %v5037 = vunpack.c.h.b16 %v169
    %v5038 = vunpack.c.l.b16 %v170
    %v5039 = vunpack.c.h.b16 %v170
    %v5040 = vunpack.c.l.b16 %v171
    %v5041 = vunpack.c.h.b16 %v171
    %v5042 = vunpack.c.l.b16 %v172
    %v5043 = vunpack.c.h.b16 %v172
    %v5044 = vunpack.c.l.b16 %v173
    %v5045 = vunpack.c.h.b16 %v173
    %v5046 = vunpack.c.l.b16 %v174
    %v5047 = vunpack.c.h.b16 %v174
    %v5048 = vunpack.c.l.b16 %v175
    %v5049 = vunpack.c.h.b16 %v175
    %v5050 = vunpack.c.l.b16 %v176
    %v5051 = vunpack.c.h.b16 %v176
    %v5052 = vunpack.c.l.b16 %v177
    %v5053 = vunpack.c.h.b16 %v177
    %v5054 = vunpack.c.l.b16 %v178
    %v5055 = vunpack.c.h.b16 %v178
    %v5056 = vunpack.c.l.b16 %v179
    %v5057 = vunpack.c.h.b16 %v179
    %v5058 = vunpack.c.l.b16 %v180
    %v5059 = vunpack.c.h.b16 %v180
    %v5060 = vunpack.c.l.b16 %v181
    %v5061 = vunpack.c.h.b16 %v181
    %v5062 = vunpack.c.l.b16 %v182
    %v5063 = vunpack.c.h.b16 %v182
    %v5064 = vunpack.c.l.b16 %v183
    %v5065 = vunpack.c.h.b16 %v183
    %v5066 = vunpack.c.l.b16 %v184
    %v5067 = vunpack.c.h.b16 %v184
    %v5068 = vunpack.c.l.b16 %v185
    %v5069 = vunpack.c.h.b16 %v185
    %v5070 = vunpack.c.l.b16 %v186
    %v5071 = vunpack.c.h.b16 %v186
    %v5072 = vunpack.c.l.b16 %v187
    %v5073 = vunpack.c.h.b16 %v187
    %v5074 = vunpack.c.l.b16 %v188
    %v5075 = vunpack.c.h.b16 %v188
    %v5076 = vunpack.c.l.b16 %v189
    %v5077 = vunpack.c.h.b16 %v189
    %v5078 = vunpack.c.l.b16 %v190
    %v5079 = vunpack.c.h.b16 %v190
    %v5080 = vunpack.c.l.b16 %v191
    %v5081 = vunpack.c.h.b16 %v191
    %v5082 = vunpack.c.l.b16 %v192
    %v5083 = vunpack.c.h.b16 %v192
    %v5084 = vunpack.c.l.b16 %v193
    %v5085 = vunpack.c.h.b16 %v193
    %v5086 = vunpack.c.l.b16 %v194
    %v5087 = vunpack.c.h.b16 %v194
    %v5088 = vunpack.c.l.b16 %v195
    %v5089 = vunpack.c.h.b16 %v195
    %v5090 = vunpack.c.l.b16 %v196
    %v5091 = vunpack.c.h.b16 %v196
    %v5092 = vunpack.c.l.b16 %v197
    %v5093 = vunpack.c.h.b16 %v197
    %v5094 = vunpack.c.l.b16 %v198
    %v5095 = vunpack.c.h.b16 %v198
    %v5096 = vunpack.c.l.b16 %v199
    %v5097 = vunpack.c.h.b16 %v199
    %v5098 = vunpack.c.l.b16 %v200
    %v5099 = vunpack.c.h.b16 %v200
    %v5100 = vunpack.c.l.b16 %v201
    %v5101 = vunpack.c.h.b16 %v201
    %v5102 = vunpack.c.l.b16 %v202
    %v5103 = vunpack.c.h.b16 %v202
    %v5104 = vunpack.c.l.b16 %v203
    %v5105 = vunpack.c.h.b16 %v203
    %v5106 = vunpack.c.l.b16 %v204
    %v5107 = vunpack.c.h.b16 %v204
    %v5108 = vunpack.c.l.b16 %v205
    %v5109 = vunpack.c.h.b16 %v205
    %v5110 = vunpack.c.l.b16 %v206
    %v5111 = vunpack.c.h.b16 %v206
    %v5112 = vunpack.c.l.b16 %v207
    %v5113 = vunpack.c.h.b16 %v207
    %v5114 = vunpack.c.l.b16 %v208
    %v5115 = vunpack.c.h.b16 %v208
    %v5116 = vunpack.c.l.b16 %v209
    %v5117 = vunpack.c.h.b16 %v209
    %v5118 = vunpack.c.l.b16 %v210
    %v5119 = vunpack.c.h.b16 %v210
    %v5120 = vunpack.c.l.b16 %v211
    %v5121 = vunpack.c.h.b16 %v211
    %v5122 = vunpack.c.l.b16 %v212
    %v5123 = vunpack.c.h.b16 %v212
    %v5124 = vunpack.c.l.b16 %v213
    %v5125 = vunpack.c.h.b16 %v213
    %v5126 = vunpack.c.l.b16 %v214
    %v5127 = vunpack.c.h.b16 %v214
    %v5128 = vunpack.c.l.b16 %v215
    %v5129 = vunpack.c.h.b16 %v215
    %v5130 = vunpack.c.l.b16 %v216
    %v5131 = vunpack.c.h.b16 %v216
    %v5132 = vunpack.c.l.b16 %v217
    %v5133 = vunpack.c.h.b16 %v217
    %v5134 = vunpack.c.l.b16 %v218
    %v5135 = vunpack.c.h.b16 %v218
    %v5136 = vunpack.c.l.b16 %v219
    %v5137 = vunpack.c.h.b16 %v219
    %v5138 = vunpack.c.l.b16 %v220
    %v5139 = vunpack.c.h.b16 %v220
    %v5140 = vunpack.c.l.b16 %v221
    %v5141 = vunpack.c.h.b16 %v221
    %v5142 = vunpack.c.l.b16 %v222
    %v5143 = vunpack.c.h.b16 %v222
    %v5144 = vunpack.c.l.b16 %v223
    %v5145 = vunpack.c.h.b16 %v223
    %v5146 = vunpack.c.l.b16 %v224
    %v5147 = vunpack.c.h.b16 %v224
    %v5148 = vunpack.c.l.b16 %v225
    %v5149 = vunpack.c.h.b16 %v225
    %v5150 = vunpack.c.l.b16 %v226
    %v5151 = vunpack.c.h.b16 %v226
    %v5152 = vunpack.c.l.b16 %v227
    %v5153 = vunpack.c.h.b16 %v227
    %v5154 = vunpack.c.l.b16 %v228
    %v5155 = vunpack.c.h.b16 %v228
    %v5156 = vunpack.c.l.b16 %v229
    %v5157 = vunpack.c.h.b16 %v229
    %v5158 = vunpack.c.l.b16 %v230
    %v5159 = vunpack.c.h.b16 %v230
    %v5160 = vunpack.c.l.b16 %v231
    %v5161 = vunpack.c.h.b16 %v231
    %v5162 = vunpack.c.l.b16 %v232
    %v5163 = vunpack.c.h.b16 %v232
    %v5164 = vunpack.c.l.b16 %v233
    %v5165 = vunpack.c.h.b16 %v233
    %v5166 = vunpack.c.l.b16 %v234
    %v5167 = vunpack.c.h.b16 %v234
    %v5168 = vunpack.c.l.b16 %v235
    %v5169 = vunpack.c.h.b16 %v235
    %v5170 = vunpack.c.l.b16 %v236
    %v5171 = vunpack.c.h.b16 %v236
    %v5172 = vunpack.c.l.b16 %v237
    %v5173 = vunpack.c.h.b16 %v237
    %v5174 = vunpack.c.l.b16 %v238
    %v5175 = vunpack.c.h.b16 %v238
    %v5176 = vunpack.c.l.b16 %v239
    %v5177 = vunpack.c.h.b16 %v239
    %v5178 = vunpack.c.l.b16 %v240
    %v5179 = vunpack.c.h.b16 %v240
    %v5180 = vunpack.c.l.b16 %v241
    %v5181 = vunpack.c.h.b16 %v241
    %v5182 = vunpack.c.l.b16 %v242
    %v5183 = vunpack.c.h.b16 %v242
    %v5184 = vunpack.c.l.b16 %v243
    %v5185 = vunpack.c.h.b16 %v243
    %v5186 = vunpack.c.l.b16 %v244
    %v5187 = vunpack.c.h.b16 %v244
    %v5188 = vunpack.c.l.b16 %v245
    %v5189 = vunpack.c.h.b16 %v245
    %v5190 = vunpack.c.l.b16 %v246
    %v5191 = vunpack.c.h.b16 %v246
    %v5192 = vunpack.c.l.b16 %v247
    %v5193 = vunpack.c.h.b16 %v247
    %v5194 = vunpack.c.l.b16 %v248
    %v5195 = vunpack.c.h.b16 %v248
    %v5196 = vunpack.c.l.b16 %v249
    %v5197 = vunpack.c.h.b16 %v249
    %v5198 = vunpack.c.l.b16 %v250
    %v5199 = vunpack.c.h.b16 %v250
    %v5200 = vunpack.c.l.b16 %v251
    %v5201 = vunpack.c.h.b16 %v251
    %v5202 = vunpack.c.l.b16 %v252
    %v5203 = vunpack.c.h.b16 %v252
    %v5204 = vunpack.c.l.b16 %v253
    %v5205 = vunpack.c.h.b16 %v253
    %v5206 = vunpack.c.l.b16 %v254
    %v5207 = vunpack.c.h.b16 %v254
    %v5208 = vunpack.c.l.b16 %v255
    %v5209 = vunpack.c.h.b16 %v255
    %v5210 = vunpack.c.l.b16 %v256
    %v5211 = vunpack.c.h.b16 %v256
    %v5212 = vunpack.c.l.b16 %v257
    %v5213 = vunpack.c.h.b16 %v257
    %v5214 = vunpack.c.l.b16 %v258
    %v5215 = vunpack.c.h.b16 %v258
    %v5216 = vunpack.c.l.b16 %v259
    %v5217 = vunpack.c.h.b16 %v259
    %v5218 = vunpack.c.l.b16 %v260
    %v5219 = vunpack.c.h.b16 %v260
    %v5220 = vunpack.c.l.b16 %v261
    %v5221 = vunpack.c.h.b16 %v261
    %v5222 = vunpack.c.l.b16 %v262
    %v5223 = vunpack.c.h.b16 %v262
    %v5224 = vunpack.c.l.b16 %v263
    %v5225 = vunpack.c.h.b16 %v263
    %v5226 = vunpack.c.l.b16 %v264
    %v5227 = vunpack.c.h.b16 %v264
    %v5228 = vunpack.c.l.b16 %v265
    %v5229 = vunpack.c.h.b16 %v265
    %v5230 = vunpack.c.l.b16 %v266
    %v5231 = vunpack.c.h.b16 %v266
    %v5232 = vunpack.c.l.b16 %v267
    %v5233 = vunpack.c.h.b16 %v267
    %v5234 = vunpack.c.l.b16 %v268
    %v5235 = vunpack.c.h.b16 %v268
    %v5236 = vunpack.c.l.b16 %v269
    %v5237 = vunpack.c.h.b16 %v269
    %v5238 = vunpack.c.l.b16 %v270
    %v5239 = vunpack.c.h.b16 %v270
    %v5240 = vunpack.c.l.b16 %v271
    %v5241 = vunpack.c.h.b16 %v271
    %v5242 = vunpack.c.l.b16 %v272
    %v5243 = vunpack.c.h.b16 %v272
    %v5244 = vunpack.c.l.b16 %v273
    %v5245 = vunpack.c.h.b16 %v273
    %v5246 = vunpack.c.l.b16 %v274
    %v5247 = vunpack.c.h.b16 %v274
    %v5248 = vunpack.c.l.b16 %v275
    %v5249 = vunpack.c.h.b16 %v275
    %v5250 = vunpack.c.l.b16 %v276
    %v5251 = vunpack.c.h.b16 %v276
    %v5252 = vunpack.c.l.b16 %v277
    %v5253 = vunpack.c.h.b16 %v277
    %v5254 = vunpack.c.l.b16 %v278
    %v5255 = vunpack.c.h.b16 %v278
    %v5256 = vunpack.c.l.b16 %v279
    %v5257 = vunpack.c.h.b16 %v279
    %v5258 = vunpack.c.l.b16 %v280
    %v5259 = vunpack.c.h.b16 %v280
    %v5260 = vunpack.c.l.b16 %v281
    %v5261 = vunpack.c.h.b16 %v281
    %v5262 = vunpack.c.l.b16 %v282
    %v5263 = vunpack.c.h.b16 %v282
    %v5264 = vunpack.c.l.b16 %v283
    %v5265 = vunpack.c.h.b16 %v283
    %v5266 = vunpack.c.l.b16 %v284
    %v5267 = vunpack.c.h.b16 %v284
    %v5268 = vunpack.c.l.b16 %v285
    %v5269 = vunpack.c.h.b16 %v285
    %v5270 = vunpack.c.l.b16 %v286
    %v5271 = vunpack.c.h.b16 %v286
    %v5272 = vunpack.c.l.b16 %v287
    %v5273 = vunpack.c.h.b16 %v287
    %v5274 = vunpack.c.l.b16 %v288
    %v5275 = vunpack.c.h.b16 %v288
    %v5276 = vunpack.c.l.b16 %v289
    %v5277 = vunpack.c.h.b16 %v289
    %v5278 = vunpack.c.l.b16 %v290
    %v5279 = vunpack.c.h.b16 %v290
    %v5280 = vunpack.c.l.b16 %v291
    %v5281 = vunpack.c.h.b16 %v291
    %v5282 = vunpack.c.l.b16 %v292
    %v5283 = vunpack.c.h.b16 %v292
    %v5284 = vunpack.c.l.b16 %v293
    %v5285 = vunpack.c.h.b16 %v293
    %v5286 = vunpack.c.l.b16 %v294
    %v5287 = vunpack.c.h.b16 %v294
    %v5288 = vunpack.c.l.b16 %v295
    %v5289 = vunpack.c.h.b16 %v295
    %v5290 = vunpack.c.l.b16 %v296
    %v5291 = vunpack.c.h.b16 %v296
    %v5292 = vunpack.c.l.b16 %v297
    %v5293 = vunpack.c.h.b16 %v297
    %v5294 = vunpack.c.l.b16 %v298
    %v5295 = vunpack.c.h.b16 %v298
    %v5296 = vunpack.c.l.b16 %v299
    %v5297 = vunpack.c.h.b16 %v299
    %v5298 = vunpack.c.l.b16 %v300
    %v5299 = vunpack.c.h.b16 %v300
    %v5300 = vunpack.c.l.b16 %v301
    %v5301 = vunpack.c.h.b16 %v301
    %v5302 = vunpack.c.l.b16 %v302
    %v5303 = vunpack.c.h.b16 %v302
    %v5304 = vunpack.c.l.b16 %v303
    %v5305 = vunpack.c.h.b16 %v303
    %v5306 = vunpack.c.l.b16 %v304
    %v5307 = vunpack.c.h.b16 %v304
    %v5308 = vunpack.c.l.b16 %v305
    %v5309 = vunpack.c.h.b16 %v305
    %v5310 = vunpack.c.l.b16 %v306
    %v5311 = vunpack.c.h.b16 %v306
    %v5312 = vunpack.c.l.b16 %v307
    %v5313 = vunpack.c.h.b16 %v307
    %v5314 = vunpack.c.l.b16 %v308
    %v5315 = vunpack.c.h.b16 %v308
    %v5316 = vunpack.c.l.b16 %v309
    %v5317 = vunpack.c.h.b16 %v309
    %v5318 = vunpack.c.l.b16 %v310
    %v5319 = vunpack.c.h.b16 %v310
    %v5320 = vunpack.c.l.b16 %v311
    %v5321 = vunpack.c.h.b16 %v311
    %v5322 = vunpack.c.l.b16 %v312
    %v5323 = vunpack.c.h.b16 %v312
    %v5324 = vunpack.c.l.b16 %v313
    %v5325 = vunpack.c.h.b16 %v313
    %v5326 = vunpack.c.l.b16 %v314
    %v5327 = vunpack.c.h.b16 %v314
    %v5328 = vunpack.c.l.b16 %v315
    %v5329 = vunpack.c.h.b16 %v315
    %v5330 = vunpack.c.l.b16 %v316
    %v5331 = vunpack.c.h.b16 %v316
    %v5332 = vunpack.c.l.b16 %v317
    %v5333 = vunpack.c.h.b16 %v317
    %v5334 = vunpack.c.l.b16 %v318
    %v5335 = vunpack.c.h.b16 %v318
    %v5336 = vunpack.c.l.b16 %v319
    %v5337 = vunpack.c.h.b16 %v319
    %v5338 = vunpack.c.l.b16 %v320
    %v5339 = vunpack.c.h.b16 %v320
    %v5340 = vunpack.c.l.b16 %v321
    %v5341 = vunpack.c.h.b16 %v321
    %v5342 = vunpack.c.l.b16 %v322
    %v5343 = vunpack.c.h.b16 %v322
    %v5344 = vunpack.c.l.b16 %v323
    %v5345 = vunpack.c.h.b16 %v323
    %v5346 = vunpack.c.l.b16 %v324
    %v5347 = vunpack.c.h.b16 %v324
    %v5348 = vunpack.c.l.b16 %v325
    %v5349 = vunpack.c.h.b16 %v325
    %v5350 = vunpack.c.l.b16 %v326
    %v5351 = vunpack.c.h.b16 %v326
    %v5352 = vunpack.c.l.b16 %v327
    %v5353 = vunpack.c.h.b16 %v327
    %v5354 = vunpack.c.l.b16 %v328
    %v5355 = vunpack.c.h.b16 %v328
    %v5356 = vunpack.c.l.b16 %v329
    %v5357 = vunpack.c.h.b16 %v329
    %v5358 = vunpack.c.l.b16 %v330
    %v5359 = vunpack.c.h.b16 %v330
    %v5360 = vunpack.c.l.b16 %v331
    %v5361 = vunpack.c.h.b16 %v331
    %v5362 = vunpack.c.l.b16 %v332
    %v5363 = vunpack.c.h.b16 %v332
    %v5364 = vunpack.c.l.b16 %v333
    %v5365 = vunpack.c.h.b16 %v333
    %v5366 = vunpack.c.l.b16 %v334
    %v5367 = vunpack.c.h.b16 %v334
    %v5368 = vunpack.c.l.b16 %v335
    %v5369 = vunpack.c.h.b16 %v335
    %v5370 = vunpack.c.l.b16 %v336
    %v5371 = vunpack.c.h.b16 %v336
    %v5372 = vunpack.c.l.b16 %v337
    %v5373 = vunpack.c.h.b16 %v337
    %v5374 = vunpack.c.l.b16 %v338
    %v5375 = vunpack.c.h.b16 %v338
    %v5376 = vunpack.c.l.b16 %v339
    %v5377 = vunpack.c.h.b16 %v339
    %v5378 = vunpack.c.l.b16 %v340
    %v5379 = vunpack.c.h.b16 %v340
    %v5380 = vunpack.c.l.b16 %v341
    %v5381 = vunpack.c.h.b16 %v341
    %v5382 = vunpack.c.l.b16 %v342
    %v5383 = vunpack.c.h.b16 %v342
    %v5384 = vunpack.c.l.b16 %v343
    %v5385 = vunpack.c.h.b16 %v343
    %v5386 = vunpack.c.l.b16 %v344
    %v5387 = vunpack.c.h.b16 %v344
    %v5388 = vunpack.c.l.b16 %v345
    %v5389 = vunpack.c.h.b16 %v345
    %v5390 = vunpack.c.l.b16 %v346
    %v5391 = vunpack.c.h.b16 %v346
    %v5392 = vunpack.c.l.b16 %v347
    %v5393 = vunpack.c.h.b16 %v347
    %v5394 = vunpack.c.l.b16 %v348
    %v5395 = vunpack.c.h.b16 %v348
    %v5396 = vunpack.c.l.b16 %v349
    %v5397 = vunpack.c.h.b16 %v349
    %v5398 = vunpack.c.l.b16 %v350
    %v5399 = vunpack.c.h.b16 %v350
    %v5400 = vunpack.c.l.b16 %v351
    %v5401 = vunpack.c.h.b16 %v351
    %v5402 = vunpack.c.l.b16 %v352
    %v5403 = vunpack.c.h.b16 %v352
    %v5404 = vunpack.c.l.b16 %v353
    %v5405 = vunpack.c.h.b16 %v353
    %v5406 = vunpack.c.l.b16 %v354
    %v5407 = vunpack.c.h.b16 %v354
    %v5408 = vunpack.c.l.b16 %v355
    %v5409 = vunpack.c.h.b16 %v355
    %v5410 = vunpack.c.l.b16 %v356
    %v5411 = vunpack.c.h.b16 %v356
    %v5412 = vunpack.c.l.b16 %v357
    %v5413 = vunpack.c.h.b16 %v357
    %v5414 = vunpack.c.l.b16 %v358
    %v5415 = vunpack.c.h.b16 %v358
    %v5416 = vunpack.c.l.b16 %v359
    %v5417 = vunpack.c.h.b16 %v359
    %v5418 = vunpack.c.l.b16 %v360
    %v5419 = vunpack.c.h.b16 %v360
    %v5420 = vunpack.c.l.b16 %v361
    %v5421 = vunpack.c.h.b16 %v361
    %v5422 = vunpack.c.l.b16 %v362
    %v5423 = vunpack.c.h.b16 %v362
    %v5424 = vunpack.c.l.b16 %v363
    %v5425 = vunpack.c.h.b16 %v363
    %v5426 = vunpack.c.l.b16 %v364
    %v5427 = vunpack.c.h.b16 %v364
    %v5428 = vunpack.c.l.b16 %v365
    %v5429 = vunpack.c.h.b16 %v365
    %v5430 = vunpack.c.l.b16 %v366
    %v5431 = vunpack.c.h.b16 %v366
    %v5432 = vunpack.c.l.b16 %v367
    %v5433 = vunpack.c.h.b16 %v367
    %v5434 = vunpack.c.l.b16 %v368
    %v5435 = vunpack.c.h.b16 %v368
    %v5436 = vunpack.c.l.b16 %v369
    %v5437 = vunpack.c.h.b16 %v369
    %v5438 = vunpack.c.l.b16 %v370
    %v5439 = vunpack.c.h.b16 %v370
    %v5440 = vunpack.c.l.b16 %v371
    %v5441 = vunpack.c.h.b16 %v371
    %v5442 = vunpack.c.l.b16 %v372
    %v5443 = vunpack.c.h.b16 %v372
    %v5444 = vunpack.c.l.b16 %v373
    %v5445 = vunpack.c.h.b16 %v373
    %v5446 = vunpack.c.l.b16 %v374
    %v5447 = vunpack.c.h.b16 %v374
    %v5448 = vunpack.c.l.b16 %v375
    %v5449 = vunpack.c.h.b16 %v375
    %v5450 = vunpack.c.l.b16 %v376
    %v5451 = vunpack.c.h.b16 %v376
    %v5452 = vunpack.c.l.b16 %v377
    %v5453 = vunpack.c.h.b16 %v377
    %v5454 = vunpack.c.l.b16 %v378
    %v5455 = vunpack.c.h.b16 %v378
    %v5456 = vunpack.c.l.b16 %v379
    %v5457 = vunpack.c.h.b16 %v379
    %v5458 = vunpack.c.l.b16 %v380
    %v5459 = vunpack.c.h.b16 %v380
    %v5460 = vunpack.c.l.b16 %v381
    %v5461 = vunpack.c.h.b16 %v381
    %v5462 = vunpack.c.l.b16 %v382
    %v5463 = vunpack.c.h.b16 %v382
    %v5464 = vunpack.c.l.b16 %v383
    %v5465 = vunpack.c.h.b16 %v383
    %v5466 = vunpack.c.l.b16 %v384
    %v5467 = vunpack.c.h.b16 %v384
    %v5468 = vunpack.c.l.b16 %v385
    %v5469 = vunpack.c.h.b16 %v385
    %v5470 = vunpack.c.l.b16 %v386
    %v5471 = vunpack.c.h.b16 %v386
    %v5472 = vunpack.c.l.b16 %v387
    %v5473 = vunpack.c.h.b16 %v387
    %v5474 = vunpack.c.l.b16 %v388
    %v5475 = vunpack.c.h.b16 %v388
    %v5476 = vunpack.c.l.b16 %v389
    %v5477 = vunpack.c.h.b16 %v389
    %v5478 = vunpack.c.l.b16 %v390
    %v5479 = vunpack.c.h.b16 %v390
    %v5480 = vunpack.c.l.b16 %v391
    %v5481 = vunpack.c.h.b16 %v391
    %v5482 = vunpack.c.l.b16 %v392
    %v5483 = vunpack.c.h.b16 %v392
    %v5484 = vunpack.c.l.b16 %v393
    %v5485 = vunpack.c.h.b16 %v393
    %v5486 = vunpack.c.l.b16 %v394
    %v5487 = vunpack.c.h.b16 %v394
    %v5488 = vunpack.c.l.b16 %v395
    %v5489 = vunpack.c.h.b16 %v395
    %v5490 = vunpack.c.l.b16 %v396
    %v5491 = vunpack.c.h.b16 %v396
    %v5492 = vunpack.c.l.b16 %v397
    %v5493 = vunpack.c.h.b16 %v397
    %v5494 = vunpack.c.l.b16 %v398
    %v5495 = vunpack.c.h.b16 %v398
    %v5496 = vunpack.c.l.b16 %v399
    %v5497 = vunpack.c.h.b16 %v399
    %v5498 = vunpack.c.l.b16 %v400
    %v5499 = vunpack.c.h.b16 %v400
    %v5500 = vunpack.c.l.b16 %v401
    %v5501 = vunpack.c.h.b16 %v401
    %v5502 = vunpack.c.l.b16 %v402
    %v5503 = vunpack.c.h.b16 %v402
    %v5504 = vunpack.c.l.b16 %v403
    %v5505 = vunpack.c.h.b16 %v403
    %v5506 = vunpack.c.l.b16 %v404
    %v5507 = vunpack.c.h.b16 %v404
    %v5508 = vunpack.c.l.b16 %v405
    %v5509 = vunpack.c.h.b16 %v405
    %v5510 = vunpack.c.l.b16 %v406
    %v5511 = vunpack.c.h.b16 %v406
    %v5512 = vunpack.c.l.b16 %v407
    %v5513 = vunpack.c.h.b16 %v407
    %v5514 = vunpack.c.l.b16 %v408
    %v5515 = vunpack.c.h.b16 %v408
    %v5516 = vunpack.c.l.b16 %v409
    %v5517 = vunpack.c.h.b16 %v409
    %v5518 = vunpack.c.l.b16 %v410
    %v5519 = vunpack.c.h.b16 %v410
    %v5520 = vunpack.c.l.b16 %v411
    %v5521 = vunpack.c.h.b16 %v411
    %v5522 = vunpack.c.l.b16 %v412
    %v5523 = vunpack.c.h.b16 %v412
    %v5524 = vunpack.c.l.b16 %v413
    %v5525 = vunpack.c.h.b16 %v413
    %v5526 = vunpack.c.l.b16 %v414
    %v5527 = vunpack.c.h.b16 %v414
    %v5528 = vunpack.c.l.b16 %v415
    %v5529 = vunpack.c.h.b16 %v415
    %v5530 = vunpack.c.l.b16 %v416
    %v5531 = vunpack.c.h.b16 %v416
    %v5532 = vunpack.c.l.b16 %v417
    %v5533 = vunpack.c.h.b16 %v417
    %v5534 = vunpack.c.l.b16 %v418
    %v5535 = vunpack.c.h.b16 %v418
    %v5536 = vunpack.c.l.b16 %v419
    %v5537 = vunpack.c.h.b16 %v419
    %v5538 = vunpack.c.l.b16 %v420
    %v5539 = vunpack.c.h.b16 %v420
    %v5540 = vunpack.c.l.b16 %v421
    %v5541 = vunpack.c.h.b16 %v421
    %v5542 = vunpack.c.l.b16 %v422
    %v5543 = vunpack.c.h.b16 %v422
    %v5544 = vunpack.c.l.b16 %v423
    %v5545 = vunpack.c.h.b16 %v423
    %v5546 = vunpack.c.l.b16 %v424
    %v5547 = vunpack.c.h.b16 %v424
    %v5548 = vunpack.c.l.b16 %v425
    %v5549 = vunpack.c.h.b16 %v425
    %v5550 = vunpack.c.l.b16 %v426
    %v5551 = vunpack.c.h.b16 %v426
    %v5552 = vunpack.c.l.b16 %v427
    %v5553 = vunpack.c.h.b16 %v427
    %v5554 = vunpack.c.l.b16 %v428
    %v5555 = vunpack.c.h.b16 %v428
    %v5556 = vunpack.c.l.b16 %v429
    %v5557 = vunpack.c.h.b16 %v429
    %v5558 = vunpack.c.l.b16 %v430
    %v5559 = vunpack.c.h.b16 %v430
    %v5560 = vunpack.c.l.b16 %v431
    %v5561 = vunpack.c.h.b16 %v431
    %v5562 = vunpack.c.l.b16 %v432
    %v5563 = vunpack.c.h.b16 %v432
    %v5564 = vunpack.c.l.b16 %v433
    %v5565 = vunpack.c.h.b16 %v433
    %v5566 = vunpack.c.l.b16 %v434
    %v5567 = vunpack.c.h.b16 %v434
    %v5568 = vunpack.c.l.b16 %v435
    %v5569 = vunpack.c.h.b16 %v435
    %v5570 = vunpack.c.l.b16 %v436
    %v5571 = vunpack.c.h.b16 %v436
    %v5572 = vunpack.c.l.b16 %v437
    %v5573 = vunpack.c.h.b16 %v437
    %v5574 = vunpack.c.l.b16 %v438
    %v5575 = vunpack.c.h.b16 %v438
    %v5576 = vunpack.c.l.b16 %v439
    %v5577 = vunpack.c.h.b16 %v439
    %v5578 = vunpack.c.l.b16 %v440
    %v5579 = vunpack.c.h.b16 %v440
    %v5580 = vunpack.c.l.b16 %v441
    %v5581 = vunpack.c.h.b16 %v441
    %v5582 = vunpack.c.l.b16 %v442
    %v5583 = vunpack.c.h.b16 %v442
    %v5584 = vunpack.c.l.b16 %v443
    %v5585 = vunpack.c.h.b16 %v443
    %v5586 = vunpack.c.l.b16 %v444
    %v5587 = vunpack.c.h.b16 %v444
    %v5588 = vunpack.c.l.b16 %v445
    %v5589 = vunpack.c.h.b16 %v445
    %v5590 = vunpack.c.l.b16 %v446
    %v5591 = vunpack.c.h.b16 %v446
    %v5592 = vunpack.c.l.b16 %v447
    %v5593 = vunpack.c.h.b16 %v447
    %v5594 = vunpack.c.l.b16 %v448
    %v5595 = vunpack.c.h.b16 %v448
    %v5596 = vunpack.c.l.b16 %v449
    %v5597 = vunpack.c.h.b16 %v449
    %v5598 = vunpack.c.l.b16 %v450
    %v5599 = vunpack.c.h.b16 %v450
    %v5600 = vunpack.c.l.b16 %v451
    %v5601 = vunpack.c.h.b16 %v451
    %v5602 = vunpack.c.l.b16 %v452
    %v5603 = vunpack.c.h.b16 %v452
    %v5604 = vunpack.c.l.b16 %v453
    %v5605 = vunpack.c.h.b16 %v453
    %v5606 = vunpack.c.l.b16 %v454
    %v5607 = vunpack.c.h.b16 %v454
    %v5608 = vunpack.c.l.b16 %v455
    %v5609 = vunpack.c.h.b16 %v455
    %v5610 = vunpack.c.l.b16 %v456
    %v5611 = vunpack.c.h.b16 %v456
    %v5612 = vunpack.c.l.b16 %v457
    %v5613 = vunpack.c.h.b16 %v457
    %v5614 = vunpack.c.l.b16 %v458
    %v5615 = vunpack.c.h.b16 %v458
    %v5616 = vunpack.c.l.b16 %v459
    %v5617 = vunpack.c.h.b16 %v459
    %v5618 = vunpack.c.l.b16 %v460
    %v5619 = vunpack.c.h.b16 %v460
    %v5620 = vunpack.c.l.b16 %v461
    %v5621 = vunpack.c.h.b16 %v461
    %v5622 = vunpack.c.l.b16 %v462
    %v5623 = vunpack.c.h.b16 %v462
    %v5624 = vunpack.c.l.b16 %v463
    %v5625 = vunpack.c.h.b16 %v463
    %v5626 = vunpack.c.l.b16 %v464
    %v5627 = vunpack.c.h.b16 %v464
    %v5628 = vunpack.c.l.b16 %v465
    %v5629 = vunpack.c.h.b16 %v465
    %v5630 = vunpack.c.l.b16 %v466
    %v5631 = vunpack.c.h.b16 %v466
    %v5632 = vunpack.c.l.b16 %v467
    %v5633 = vunpack.c.h.b16 %v467
    %v5634 = vunpack.c.l.b16 %v468
    %v5635 = vunpack.c.h.b16 %v468
    %v5636 = vunpack.c.l.b16 %v469
    %v5637 = vunpack.c.h.b16 %v469
    %v5638 = vunpack.c.l.b16 %v470
    %v5639 = vunpack.c.h.b16 %v470
    %v5640 = vunpack.c.l.b16 %v471
    %v5641 = vunpack.c.h.b16 %v471
    %v5642 = vunpack.c.l.b16 %v472
    %v5643 = vunpack.c.h.b16 %v472
    %v5644 = vunpack.c.l.b16 %v473
    %v5645 = vunpack.c.h.b16 %v473
    %v5646 = vunpack.c.l.b16 %v474
    %v5647 = vunpack.c.h.b16 %v474
    %v5648 = vunpack.c.l.b16 %v475
    %v5649 = vunpack.c.h.b16 %v475
    %v5650 = vunpack.c.l.b16 %v476
    %v5651 = vunpack.c.h.b16 %v476
    %v5652 = vunpack.c.l.b16 %v477
    %v5653 = vunpack.c.h.b16 %v477
    %v5654 = vunpack.c.l.b16 %v478
    %v5655 = vunpack.c.h.b16 %v478
    %v5656 = vunpack.c.l.b16 %v479
    %v5657 = vunpack.c.h.b16 %v479
    %v5658 = vunpack.c.l.b16 %v480
    %v5659 = vunpack.c.h.b16 %v480
    %v5660 = vunpack.c.l.b16 %v481
    %v5661 = vunpack.c.h.b16 %v481
    %v5662 = vunpack.c.l.b16 %v482
    %v5663 = vunpack.c.h.b16 %v482
    %v5664 = vunpack.c.l.b16 %v483
    %v5665 = vunpack.c.h.b16 %v483
    %v5666 = vunpack.c.l.b16 %v484
    %v5667 = vunpack.c.h.b16 %v484
    %v5668 = vunpack.c.l.b16 %v485
    %v5669 = vunpack.c.h.b16 %v485
    %v5670 = vunpack.c.l.b16 %v486
    %v5671 = vunpack.c.h.b16 %v486
    %v5672 = vunpack.c.l.b16 %v487
    %v5673 = vunpack.c.h.b16 %v487
    %v5674 = vunpack.c.l.b16 %v488
    %v5675 = vunpack.c.h.b16 %v488
    %v5676 = vunpack.c.l.b16 %v489
    %v5677 = vunpack.c.h.b16 %v489
    %v5678 = vunpack.c.l.b16 %v490
    %v5679 = vunpack.c.h.b16 %v490
    %v5680 = vunpack.c.l.b16 %v491
    %v5681 = vunpack.c.h.b16 %v491
    %v5682 = vunpack.c.l.b16 %v492
    %v5683 = vunpack.c.h.b16 %v492
    %v5684 = vunpack.c.l.b16 %v493
    %v5685 = vunpack.c.h.b16 %v493
    %v5686 = vunpack.c.l.b16 %v494
    %v5687 = vunpack.c.h.b16 %v494
    %v5688 = vunpack.c.l.b16 %v495
    %v5689 = vunpack.c.h.b16 %v495
    %v5690 = vunpack.c.l.b16 %v496
    %v5691 = vunpack.c.h.b16 %v496
    %v5692 = vunpack.c.l.b16 %v497
    %v5693 = vunpack.c.h.b16 %v497
    %v5694 = vunpack.c.l.b16 %v498
    %v5695 = vunpack.c.h.b16 %v498
    %v5696 = vunpack.c.l.b16 %v499
    %v5697 = vunpack.c.h.b16 %v499
    %v5698 = vunpack.c.l.b16 %v500
    %v5699 = vunpack.c.h.b16 %v500
    %v5700 = vunpack.c.l.b16 %v501
    %v5701 = vunpack.c.h.b16 %v501
    %v5702 = vunpack.c.l.b16 %v502
    %v5703 = vunpack.c.h.b16 %v502
    %v5704 = vunpack.c.l.b16 %v503
    %v5705 = vunpack.c.h.b16 %v503
    %v5706 = vunpack.c.l.b16 %v504
    %v5707 = vunpack.c.h.b16 %v504
    %v5708 = vunpack.c.l.b16 %v505
    %v5709 = vunpack.c.h.b16 %v505
    %v5710 = vunpack.c.l.b16 %v506
    %v5711 = vunpack.c.h.b16 %v506
    %v5712 = vunpack.c.l.b16 %v507
    %v5713 = vunpack.c.h.b16 %v507
    %v5714 = vunpack.c.l.b16 %v508
    %v5715 = vunpack.c.h.b16 %v508
    %v5716 = vunpack.c.l.b16 %v509
    %v5717 = vunpack.c.h.b16 %v509
    %v5718 = vunpack.c.l.b16 %v510
    %v5719 = vunpack.c.h.b16 %v510
    %v5720 = vunpack.c.l.b16 %v511
    %v5721 = vunpack.c.h.b16 %v511
    %v5722 = vunpack.c.l.b16 %v512
    %v5723 = vunpack.c.h.b16 %v512
    %v5724 = vunpack.c.l.b16 %v513
    %v5725 = vunpack.c.h.b16 %v513
    %v5726 = vunpack.c.l.b16 %v514
    %v5727 = vunpack.c.h.b16 %v514
    %v5728 = vunpack.c.l.b16 %v515
    %v5729 = vunpack.c.h.b16 %v515
    %v5730 = vunpack.c.l.b16 %v516
    %v5731 = vunpack.c.h.b16 %v516
    %v5732 = vunpack.c.l.b16 %v517
    %v5733 = vunpack.c.h.b16 %v517
    %v5734 = vunpack.c.l.b16 %v518
    %v5735 = vunpack.c.h.b16 %v518
    %v5736 = vunpack.c.l.b16 %v519
    %v5737 = vunpack.c.h.b16 %v519
    %v5738 = vunpack.c.l.b16 %v520
    %v5739 = vunpack.c.h.b16 %v520
    %v5740 = vunpack.c.l.b16 %v521
    %v5741 = vunpack.c.h.b16 %v521
    %v5742 = vunpack.c.l.b16 %v522
    %v5743 = vunpack.c.h.b16 %v522
    %v5744 = vunpack.c.l.b16 %v523
    %v5745 = vunpack.c.h.b16 %v523
    %v5746 = vunpack.c.l.b16 %v524
    %v5747 = vunpack.c.h.b16 %v524
    %v5748 = vunpack.c.l.b16 %v525
    %v5749 = vunpack.c.h.b16 %v525
    %v5750 = vunpack.c.l.b16 %v526
    %v5751 = vunpack.c.h.b16 %v526
    %v5752 = vunpack.c.l.b16 %v527
    %v5753 = vunpack.c.h.b16 %v527
    %v5754 = vunpack.c.l.b16 %v528
    %v5755 = vunpack.c.h.b16 %v528
    %v5756 = vunpack.c.l.b16 %v529
    %v5757 = vunpack.c.h.b16 %v529
    %v5758 = vunpack.c.l.b16 %v530
    %v5759 = vunpack.c.h.b16 %v530
    %v5760 = vunpack.c.l.b16 %v531
    %v5761 = vunpack.c.h.b16 %v531
    %v5762 = vunpack.c.l.b16 %v532
    %v5763 = vunpack.c.h.b16 %v532
    %v5764 = vunpack.c.l.b16 %v533
    %v5765 = vunpack.c.h.b16 %v533
    %v5766 = vunpack.c.l.b16 %v534
    %v5767 = vunpack.c.h.b16 %v534
    %v5768 = vunpack.c.l.b16 %v535
    %v5769 = vunpack.c.h.b16 %v535
    %v5770 = vunpack.c.l.b16 %v536
    %v5771 = vunpack.c.h.b16 %v536
    %v5772 = vunpack.c.l.b16 %v537
    %v5773 = vunpack.c.h.b16 %v537
    %v5774 = vunpack.c.l.b16 %v538
    %v5775 = vunpack.c.h.b16 %v538
    %v5776 = vunpack.c.l.b16 %v539
    %v5777 = vunpack.c.h.b16 %v539
    %v5778 = vunpack.c.l.b16 %v540
    %v5779 = vunpack.c.h.b16 %v540
    %v5780 = vunpack.c.l.b16 %v541
    %v5781 = vunpack.c.h.b16 %v541
    %v5782 = vunpack.c.l.b16 %v542
    %v5783 = vunpack.c.h.b16 %v542
    %v5784 = vunpack.c.l.b16 %v543
    %v5785 = vunpack.c.h.b16 %v543
    %v5786 = vunpack.c.l.b16 %v544
    %v5787 = vunpack.c.h.b16 %v544
    %v5788 = vunpack.c.l.b16 %v545
    %v5789 = vunpack.c.h.b16 %v545
    %v5790 = vunpack.c.l.b16 %v546
    %v5791 = vunpack.c.h.b16 %v546
    %v5792 = vunpack.c.l.b16 %v547
    %v5793 = vunpack.c.h.b16 %v547
    %v5794 = vunpack.c.l.b16 %v548
    %v5795 = vunpack.c.h.b16 %v548
    %v5796 = vunpack.c.l.b16 %v549
    %v5797 = vunpack.c.h.b16 %v549
    %v5798 = vunpack.c.l.b16 %v550
    %v5799 = vunpack.c.h.b16 %v550
    %v5800 = vunpack.c.l.b16 %v551
    %v5801 = vunpack.c.h.b16 %v551
    %v5802 = vunpack.c.l.b16 %v552
    %v5803 = vunpack.c.h.b16 %v552
    %v5804 = vunpack.c.l.b16 %v553
    %v5805 = vunpack.c.h.b16 %v553
    %v5806 = vunpack.c.l.b16 %v554
    %v5807 = vunpack.c.h.b16 %v554
    %v5808 = vunpack.c.l.b16 %v555
    %v5809 = vunpack.c.h.b16 %v555
    %v5810 = vunpack.c.l.b16 %v556
    %v5811 = vunpack.c.h.b16 %v556
    %v5812 = vunpack.c.l.b16 %v557
    %v5813 = vunpack.c.h.b16 %v557
    %v5814 = vunpack.c.l.b16 %v558
    %v5815 = vunpack.c.h.b16 %v558
    %v5816 = vunpack.c.l.b16 %v559
    %v5817 = vunpack.c.h.b16 %v559
    %v5818 = vunpack.c.l.b16 %v560
    %v5819 = vunpack.c.h.b16 %v560
    %v5820 = vunpack.c.l.b16 %v561
    %v5821 = vunpack.c.h.b16 %v561
    %v5822 = vunpack.c.l.b16 %v562
    %v5823 = vunpack.c.h.b16 %v562
    %v5824 = vunpack.c.l.b16 %v563
    %v5825 = vunpack.c.h.b16 %v563
    %v5826 = vunpack.c.l.b16 %v564
    %v5827 = vunpack.c.h.b16 %v564
    %v5828 = vunpack.c.l.b16 %v565
    %v5829 = vunpack.c.h.b16 %v565
    %v5830 = vunpack.c.l.b16 %v566
    %v5831 = vunpack.c.h.b16 %v566
    %v5832 = vunpack.c.l.b16 %v567
    %v5833 = vunpack.c.h.b16 %v567
    %v5834 = vunpack.c.l.b16 %v568
    %v5835 = vunpack.c.h.b16 %v568
    %v5836 = vunpack.c.l.b16 %v569
    %v5837 = vunpack.c.h.b16 %v569
    %v5838 = vunpack.c.l.b16 %v570
    %v5839 = vunpack.c.h.b16 %v570
    %v5840 = vunpack.c.l.b16 %v571
    %v5841 = vunpack.c.h.b16 %v571
    %v5842 = vunpack.c.l.b16 %v572
    %v5843 = vunpack.c.h.b16 %v572
    %v5844 = vunpack.c.l.b16 %v573
    %v5845 = vunpack.c.h.b16 %v573
    %v5846 = vunpack.c.l.b16 %v574
    %v5847 = vunpack.c.h.b16 %v574
    %v5848 = vunpack.c.l.b16 %v575
    %v5849 = vunpack.c.h.b16 %v575
    %v5850 = vunpack.c.l.b16 %v576
    %v5851 = vunpack.c.h.b16 %v576
    %v5852 = vunpack.c.l.b16 %v577
    %v5853 = vunpack.c.h.b16 %v577
    %v5854 = vunpack.c.l.b16 %v578
    %v5855 = vunpack.c.h.b16 %v578
    %v5856 = vunpack.c.l.b16 %v579
    %v5857 = vunpack.c.h.b16 %v579
    %v5858 = vunpack.c.l.b16 %v580
    %v5859 = vunpack.c.h.b16 %v580
    %v5860 = vunpack.c.l.b16 %v581
    %v5861 = vunpack.c.h.b16 %v581
    %v5862 = vunpack.c.l.b16 %v582
    %v5863 = vunpack.c.h.b16 %v582
    %v5864 = vunpack.c.l.b16 %v583
    %v5865 = vunpack.c.h.b16 %v583
    %v5866 = vunpack.c.l.b16 %v584
    %v5867 = vunpack.c.h.b16 %v584
    %v5868 = vunpack.c.l.b16 %v585
    %v5869 = vunpack.c.h.b16 %v585
    %v5870 = vunpack.c.l.b16 %v586
    %v5871 = vunpack.c.h.b16 %v586
    %v5872 = vunpack.c.l.b16 %v587
    %v5873 = vunpack.c.h.b16 %v587
    %v5874 = vunpack.c.l.b16 %v588
    %v5875 = vunpack.c.h.b16 %v588
    %v5876 = vunpack.c.l.b16 %v589
    %v5877 = vunpack.c.h.b16 %v589
    %v5878 = vunpack.c.l.b16 %v590
    %v5879 = vunpack.c.h.b16 %v590
    %v5880 = vunpack.c.l.b16 %v591
    %v5881 = vunpack.c.h.b16 %v591
    %v5882 = vunpack.c.l.b16 %v592
    %v5883 = vunpack.c.h.b16 %v592
    %v5884 = vunpack.c.l.b16 %v593
    %v5885 = vunpack.c.h.b16 %v593
    %v5886 = vunpack.c.l.b16 %v594
    %v5887 = vunpack.c.h.b16 %v594
    %v5888 = vunpack.c.l.b16 %v595
    %v5889 = vunpack.c.h.b16 %v595
    %v5890 = vunpack.c.l.b16 %v596
    %v5891 = vunpack.c.h.b16 %v596
    %v5892 = vunpack.c.l.b16 %v597
    %v5893 = vunpack.c.h.b16 %v597
    %v5894 = vunpack.c.l.b16 %v598
    %v5895 = vunpack.c.h.b16 %v598
    %v5896 = vunpack.c.l.b16 %v599
    %v5897 = vunpack.c.h.b16 %v599
    %v5898 = vunpack.c.l.b16 %v600
    %v5899 = vunpack.c.h.b16 %v600
    %v5900 = vunpack.c.l.b16 %v601
    %v5901 = vunpack.c.h.b16 %v601
    %v5902 = vunpack.c.l.b16 %v602
    %v5903 = vunpack.c.h.b16 %v602
    %v5904 = vunpack.c.l.b16 %v603
    %v5905 = vunpack.c.h.b16 %v603
    %v5906 = vunpack.c.l.b16 %v604
    %v5907 = vunpack.c.h.b16 %v604
    %v5908 = vunpack.c.l.b16 %v605
    %v5909 = vunpack.c.h.b16 %v605
    %v5910 = vunpack.c.l.b16 %v606
    %v5911 = vunpack.c.h.b16 %v606
    %v5912 = vunpack.c.l.b16 %v607
    %v5913 = vunpack.c.h.b16 %v607
    %v5914 = vunpack.c.l.b16 %v608
    %v5915 = vunpack.c.h.b16 %v608
    %v5916 = vunpack.c.l.b16 %v609
    %v5917 = vunpack.c.h.b16 %v609
    %v5918 = vunpack.c.l.b16 %v610
    %v5919 = vunpack.c.h.b16 %v610
    %v5920 = vunpack.c.l.b16 %v611
    %v5921 = vunpack.c.h.b16 %v611
    %v5922 = vunpack.c.l.b16 %v612
    %v5923 = vunpack.c.h.b16 %v612
    %v5924 = vunpack.c.l.b16 %v613
    %v5925 = vunpack.c.h.b16 %v613
    %v5926 = vunpack.c.l.b16 %v614
    %v5927 = vunpack.c.h.b16 %v614
    %v5928 = vunpack.c.l.b16 %v615
    %v5929 = vunpack.c.h.b16 %v615
    %v5930 = vunpack.c.l.b16 %v616
    %v5931 = vunpack.c.h.b16 %v616
    %v5932 = vunpack.c.l.b16 %v617
    %v5933 = vunpack.c.h.b16 %v617
    %v5934 = vunpack.c.l.b16 %v618
    %v5935 = vunpack.c.h.b16 %v618
    %v5936 = vunpack.c.l.b16 %v619
    %v5937 = vunpack.c.h.b16 %v619
    %v5938 = vunpack.c.l.b16 %v620
    %v5939 = vunpack.c.h.b16 %v620
    %v5940 = vunpack.c.l.b16 %v621
    %v5941 = vunpack.c.h.b16 %v621
    %v5942 = vunpack.c.l.b16 %v622
    %v5943 = vunpack.c.h.b16 %v622
    %v5944 = vunpack.c.l.b16 %v623
    %v5945 = vunpack.c.h.b16 %v623
    %v5946 = vunpack.c.l.b16 %v624
    %v5947 = vunpack.c.h.b16 %v624
    %v5948 = vunpack.c.l.b16 %v625
    %v5949 = vunpack.c.h.b16 %v625
    %v5950 = vunpack.c.l.b16 %v626
    %v5951 = vunpack.c.h.b16 %v626
    %v5952 = vunpack.c.l.b16 %v627
    %v5953 = vunpack.c.h.b16 %v627
    %v5954 = vunpack.c.l.b16 %v628
    %v5955 = vunpack.c.h.b16 %v628
    %v5956 = vunpack.c.l.b16 %v629
    %v5957 = vunpack.c.h.b16 %v629
    %v5958 = vunpack.c.l.b16 %v630
    %v5959 = vunpack.c.h.b16 %v630
    %v5960 = vunpack.c.l.b16 %v631
    %v5961 = vunpack.c.h.b16 %v631
    %v5962 = vunpack.c.l.b16 %v632
    %v5963 = vunpack.c.h.b16 %v632
    %v5964 = vunpack.c.l.b16 %v633
    %v5965 = vunpack.c.h.b16 %v633
    %v5966 = vunpack.c.l.b16 %v634
    %v5967 = vunpack.c.h.b16 %v634
    %v5968 = vunpack.c.l.b16 %v635
    %v5969 = vunpack.c.h.b16 %v635
    %v5970 = vunpack.c.l.b16 %v636
    %v5971 = vunpack.c.h.b16 %v636
    %v5972 = vunpack.c.l.b16 %v637
    %v5973 = vunpack.c.h.b16 %v637
    %v5974 = vunpack.c.l.b16 %v638
    %v5975 = vunpack.c.h.b16 %v638
    %v5976 = vunpack.c.l.b16 %v639
    %v5977 = vunpack.c.h.b16 %v639
    %v5978 = vunpack.c.l.b16 %v640
    %v5979 = vunpack.c.h.b16 %v640
    %v5980 = vunpack.c.l.b16 %v641
    %v5981 = vunpack.c.h.b16 %v641
    %v5982 = vunpack.c.l.b16 %v642
    %v5983 = vunpack.c.h.b16 %v642
    %v5984 = vunpack.c.l.b16 %v643
    %v5985 = vunpack.c.h.b16 %v643
    %v5986 = vunpack.c.l.b16 %v644
    %v5987 = vunpack.c.h.b16 %v644
    %v5988 = vunpack.c.l.b16 %v645
    %v5989 = vunpack.c.h.b16 %v645
    %v5990 = vunpack.c.l.b16 %v646
    %v5991 = vunpack.c.h.b16 %v646
    %v5992 = vunpack.c.l.b16 %v647
    %v5993 = vunpack.c.h.b16 %v647
    %v5994 = vunpack.c.l.b16 %v648
    %v5995 = vunpack.c.h.b16 %v648
    %v5996 = vunpack.c.l.b16 %v649
    %v5997 = vunpack.c.h.b16 %v649
    %v5998 = vunpack.c.l.b16 %v650
    %v5999 = vunpack.c.h.b16 %v650
    %v6000 = vunpack.c.l.b16 %v651
    %v6001 = vunpack.c.h.b16 %v651
    %v6002 = vunpack.c.l.b16 %v652
    %v6003 = vunpack.c.h.b16 %v652
    %v6004 = vunpack.c.l.b16 %v653
    %v6005 = vunpack.c.h.b16 %v653
    %v6006 = vunpack.c.l.b16 %v654
    %v6007 = vunpack.c.h.b16 %v654
    %v6008 = vunpack.c.l.b16 %v655
    %v6009 = vunpack.c.h.b16 %v655
    %v6010 = vunpack.c.l.b16 %v656
    %v6011 = vunpack.c.h.b16 %v656
    %v6012 = vunpack.c.l.b16 %v657
    %v6013 = vunpack.c.h.b16 %v657
    %v6014 = vunpack.c.l.b16 %v658
    %v6015 = vunpack.c.h.b16 %v658
    %v6016 = vunpack.c.l.b16 %v659
    %v6017 = vunpack.c.h.b16 %v659
    %v6018 = vunpack.c.l.b16 %v660
    %v6019 = vunpack.c.h.b16 %v660
    %v6020 = vunpack.c.l.b16 %v661
    %v6021 = vunpack.c.h.b16 %v661
    %v6022 = vunpack.c.l.b16 %v662
    %v6023 = vunpack.c.h.b16 %v662
    %v6024 = vunpack.c.l.b16 %v663
    %v6025 = vunpack.c.h.b16 %v663
    %v6026 = vunpack.c.l.b16 %v664
    %v6027 = vunpack.c.h.b16 %v664
    %v6028 = vunpack.c.l.b16 %v665
    %v6029 = vunpack.c.h.b16 %v665
    %v6030 = vunpack.c.l.b16 %v666
    %v6031 = vunpack.c.h.b16 %v666
    %v6032 = vunpack.c.l.b16 %v667
    %v6033 = vunpack.c.h.b16 %v667
    %v6034 = vunpack.c.l.b16 %v668
    %v6035 = vunpack.c.h.b16 %v668
    %v6036 = vunpack.c.l.b16 %v669
    %v6037 = vunpack.c.h.b16 %v669
    %v6038 = vunpack.c.l.b16 %v670
    %v6039 = vunpack.c.h.b16 %v670
    %v6040 = vunpack.c.l.b16 %v671
    %v6041 = vunpack.c.h.b16 %v671
    %v6042 = vunpack.c.l.b16 %v672
    %v6043 = vunpack.c.h.b16 %v672
    %v6044 = vunpack.c.l.b16 %v673
    %v6045 = vunpack.c.h.b16 %v673
    %v6046 = vunpack.c.l.b16 %v674
    %v6047 = vunpack.c.h.b16 %v674
    %v6048 = vunpack.c.l.b16 %v675
    %v6049 = vunpack.c.h.b16 %v675
    %v6050 = vunpack.c.l.b16 %v676
    %v6051 = vunpack.c.h.b16 %v676
    %v6052 = vunpack.c.l.b16 %v677
    %v6053 = vunpack.c.h.b16 %v677
    %v6054 = vpack.c.b16 %v5038, %v5030
    %v6055 = vpack.c.b16 %v5039, %v5031
    %v6056 = vpack.c.b16 %v5040, %v5032
    %v6057 = vpack.c.b16 %v5041, %v5033
    %v6058 = vpack.c.b16 %v5042, %v5034
    %v6059 = vpack.c.b16 %v5043, %v5035
    %v6060 = vpack.c.b16 %v5044, %v5036
    %v6061 = vpack.c.b16 %v5045, %v5037
    %v6062 = vpack.c.b16 %v5054, %v5046
    %v6063 = vpack.c.b16 %v5055, %v5047
    %v6064 = vpack.c.b16 %v5056, %v5048
    %v6065 = vpack.c.b16 %v5057, %v5049
    %v6066 = vpack.c.b16 %v5058, %v5050
    %v6067 = vpack.c.b16 %v5059, %v5051
    %v6068 = vpack.c.b16 %v5060, %v5052
    %v6069 = vpack.c.b16 %v5061, %v5053
    %v6070 = vpack.c.b16 %v5070, %v5062
    %v6071 = vpack.c.b16 %v5071, %v5063
    %v6072 = vpack.c.b16 %v5072, %v5064
    %v6073 = vpack.c.b16 %v5073, %v5065
    %v6074 = vpack.c.b16 %v5074, %v5066
    %v6075 = vpack.c.b16 %v5075, %v5067
    %v6076 = vpack.c.b16 %v5076, %v5068
    %v6077 = vpack.c.b16 %v5077, %v5069
    %v6078 = vpack.c.b16 %v5086, %v5078
    %v6079 = vpack.c.b16 %v5087, %v5079
    %v6080 = vpack.c.b16 %v5088, %v5080
    %v6081 = vpack.c.b16 %v5089, %v5081
    %v6082 = vpack.c.b16 %v5090, %v5082
    %v6083 = vpack.c.b16 %v5091, %v5083
    %v6084 = vpack.c.b16 %v5092, %v5084
    %v6085 = vpack.c.b16 %v5093, %v5085
    %v6086 = vpack.c.b16 %v5102, %v5094
    %v6087 = vpack.c.b16 %v5103, %v5095
    %v6088 = vpack.c.b16 %v5104, %v5096
    %v6089 = vpack.c.b16 %v5105, %v5097
    %v6090 = vpack.c.b16 %v5106, %v5098
    %v6091 = vpack.c.b16 %v5107, %v5099
    %v6092 = vpack.c.b16 %v5108, %v5100
    %v6093 = vpack.c.b16 %v5109, %v5101
    %v6094 = vpack.c.b16 %v5118, %v5110
    %v6095 = vpack.c.b16 %v5119, %v5111
    %v6096 = vpack.c.b16 %v5120, %v5112
    %v6097 = vpack.c.b16 %v5121, %v5113
    %v6098 = vpack.c.b16 %v5122, %v5114
    %v6099 = vpack.c.b16 %v5123, %v5115
    %v6100 = vpack.c.b16 %v5124, %v5116
    %v6101 = vpack.c.b16 %v5125, %v5117
    %v6102 = vpack.c.b16 %v5134, %v5126
    %v6103 = vpack.c.b16 %v5135, %v5127
    %v6104 = vpack.c.b16 %v5136, %v5128
    %v6105 = vpack.c.b16 %v5137, %v5129
    %v6106 = vpack.c.b16 %v5138, %v5130
    %v6107 = vpack.c.b16 %v5139, %v5131
    %v6108 = vpack.c.b16 %v5140, %v5132
    %v6109 = vpack.c.b16 %v5141, %v5133
    %v6110 = vpack.c.b16 %v5150, %v5142
    %v6111 = vpack.c.b16 %v5151, %v5143
    %v6112 = vpack.c.b16 %v5152, %v5144
    %v6113 = vpack.c.b16 %v5153, %v5145
    %v6114 = vpack.c.b16 %v5154, %v5146
    %v6115 = vpack.c.b16 %v5155, %v5147
    %v6116 = vpack.c.b16 %v5156, %v5148
    %v6117 = vpack.c.b16 %v5157, %v5149
    %v6118 = vpack.c.b16 %v5166, %v5158
    %v6119 = vpack.c.b16 %v5167, %v5159
    %v6120 = vpack.c.b16 %v5168, %v5160
    %v6121 = vpack.c.b16 %v5169, %v5161
    %v6122 = vpack.c.b16 %v5170, %v5162
    %v6123 = vpack.c.b16 %v5171, %v5163
    %v6124 = vpack.c.b16 %v5172, %v5164
    %v6125 = vpack.c.b16 %v5173, %v5165
    %v6126 = vpack.c.b16 %v5182, %v5174
    %v6127 = vpack.c.b16 %v5183, %v5175
    %v6128 = vpack.c.b16 %v5184, %v5176
    %v6129 = vpack.c.b16 %v5185, %v5177
    %v6130 = vpack.c.b16 %v5186, %v5178
    %v6131 = vpack.c.b16 %v5187, %v5179
    %v6132 = vpack.c.b16 %v5188, %v5180
    %v6133 = vpack.c.b16 %v5189, %v5181
    %v6134 = vpack.c.b16 %v5198, %v5190
    %v6135 = vpack.c.b16 %v5199, %v5191
    %v6136 = vpack.c.b16 %v5200, %v5192
    %v6137 = vpack.c.b16 %v5201, %v5193
    %v6138 = vpack.c.b16 %v5202, %v5194
    %v6139 = vpack.c.b16 %v5203, %v5195
    %v6140 = vpack.c.b16 %v5204, %v5196
    %v6141 = vpack.c.b16 %v5205, %v5197
    %v6142 = vpack.c.b16 %v5214, %v5206
    %v6143 = vpack.c.b16 %v5215, %v5207
    %v6144 = vpack.c.b16 %v5216, %v5208
    %v6145 = vpack.c.b16 %v5217, %v5209
    %v6146 = vpack.c.b16 %v5218, %v5210
    %v6147 = vpack.c.b16 %v5219, %v5211
    %v6148 = vpack.c.b16 %v5220, %v5212
    %v6149 = vpack.c.b16 %v5221, %v5213
    %v6150 = vpack.c.b16 %v5230, %v5222
    %v6151 = vpack.c.b16 %v5231, %v5223
    %v6152 = vpack.c.b16 %v5232, %v5224
    %v6153 = vpack.c.b16 %v5233, %v5225
    %v6154 = vpack.c.b16 %v5234, %v5226
    %v6155 = vpack.c.b16 %v5235, %v5227
    %v6156 = vpack.c.b16 %v5236, %v5228
    %v6157 = vpack.c.b16 %v5237, %v5229
    %v6158 = vpack.c.b16 %v5246, %v5238
    %v6159 = vpack.c.b16 %v5247, %v5239
    %v6160 = vpack.c.b16 %v5248, %v5240
    %v6161 = vpack.c.b16 %v5249, %v5241
    %v6162 = vpack.c.b16 %v5250, %v5242
    %v6163 = vpack.c.b16 %v5251, %v5243
    %v6164 = vpack.c.b16 %v5252, %v5244
    %v6165 = vpack.c.b16 %v5253, %v5245
    %v6166 = vpack.c.b16 %v5262, %v5254
    %v6167 = vpack.c.b16 %v5263, %v5255
    %v6168 = vpack.c.b16 %v5264, %v5256
    %v6169 = vpack.c.b16 %v5265, %v5257
    %v6170 = vpack.c.b16 %v5266, %v5258
    %v6171 = vpack.c.b16 %v5267, %v5259
    %v6172 = vpack.c.b16 %v5268, %v5260
    %v6173 = vpack.c.b16 %v5269, %v5261
    %v6174 = vpack.c.b16 %v5278, %v5270
    %v6175 = vpack.c.b16 %v5279, %v5271
    %v6176 = vpack.c.b16 %v5280, %v5272
    %v6177 = vpack.c.b16 %v5281, %v5273
    %v6178 = vpack.c.b16 %v5282, %v5274
    %v6179 = vpack.c.b16 %v5283, %v5275
    %v6180 = vpack.c.b16 %v5284, %v5276
    %v6181 = vpack.c.b16 %v5285, %v5277
    %v6182 = vpack.c.b16 %v5294, %v5286
    %v6183 = vpack.c.b16 %v5295, %v5287
    %v6184 = vpack.c.b16 %v5296, %v5288
    %v6185 = vpack.c.b16 %v5297, %v5289
    %v6186 = vpack.c.b16 %v5298, %v5290
    %v6187 = vpack.c.b16 %v5299, %v5291
    %v6188 = vpack.c.b16 %v5300, %v5292
    %v6189 = vpack.c.b16 %v5301, %v5293
    %v6190 = vpack.c.b16 %v5310, %v5302
    %v6191 = vpack.c.b16 %v5311, %v5303
    %v6192 = vpack.c.b16 %v5312, %v5304
    %v6193 = vpack.c.b16 %v5313, %v5305
    %v6194 = vpack.c.b16 %v5314, %v5306
    %v6195 = vpack.c.b16 %v5315, %v5307
    %v6196 = vpack.c.b16 %v5316, %v5308
    %v6197 = vpack.c.b16 %v5317, %v5309
    %v6198 = vpack.c.b16 %v5326, %v5318
    %v6199 = vpack.c.b16 %v5327, %v5319
    %v6200 = vpack.c.b16 %v5328, %v5320
    %v6201 = vpack.c.b16 %v5329, %v5321
    %v6202 = vpack.c.b16 %v5330, %v5322
    %v6203 = vpack.c.b16 %v5331, %v5323
    %v6204 = vpack.c.b16 %v5332, %v5324
    %v6205 = vpack.c.b16 %v5333, %v5325
    %v6206 = vpack.c.b16 %v5342, %v5334
    %v6207 = vpack.c.b16 %v5343, %v5335
    %v6208 = vpack.c.b16 %v5344, %v5336
    %v6209 = vpack.c.b16 %v5345, %v5337
    %v6210 = vpack.c.b16 %v5346, %v5338
    %v6211 = vpack.c.b16 %v5347, %v5339
    %v6212 = vpack.c.b16 %v5348, %v5340
    %v6213 = vpack.c.b16 %v5349, %v5341
    %v6214 = vpack.c.b16 %v5358, %v5350
    %v6215 = vpack.c.b16 %v5359, %v5351
    %v6216 = vpack.c.b16 %v5360, %v5352
    %v6217 = vpack.c.b16 %v5361, %v5353
    %v6218 = vpack.c.b16 %v5362, %v5354
    %v6219 = vpack.c.b16 %v5363, %v5355
    %v6220 = vpack.c.b16 %v5364, %v5356
    %v6221 = vpack.c.b16 %v5365, %v5357
    %v6222 = vpack.c.b16 %v5374, %v5366
    %v6223 = vpack.c.b16 %v5375, %v5367
    %v6224 = vpack.c.b16 %v5376, %v5368
    %v6225 = vpack.c.b16 %v5377, %v5369
    %v6226 = vpack.c.b16 %v5378, %v5370
    %v6227 = vpack.c.b16 %v5379, %v5371
    %v6228 = vpack.c.b16 %v5380, %v5372
    %v6229 = vpack.c.b16 %v5381, %v5373
    %v6230 = vpack.c.b16 %v5390, %v5382
    %v6231 = vpack.c.b16 %v5391, %v5383
    %v6232 = vpack.c.b16 %v5392, %v5384
    %v6233 = vpack.c.b16 %v5393, %v5385
    %v6234 = vpack.c.b16 %v5394, %v5386
    %v6235 = vpack.c.b16 %v5395, %v5387
    %v6236 = vpack.c.b16 %v5396, %v5388
    %v6237 = vpack.c.b16 %v5397, %v5389
    %v6238 = vpack.c.b16 %v5406, %v5398
    %v6239 = vpack.c.b16 %v5407, %v5399
    %v6240 = vpack.c.b16 %v5408, %v5400
    %v6241 = vpack.c.b16 %v5409, %v5401
    %v6242 = vpack.c.b16 %v5410, %v5402
    %v6243 = vpack.c.b16 %v5411, %v5403
    %v6244 = vpack.c.b16 %v5412, %v5404
    %v6245 = vpack.c.b16 %v5413, %v5405
    %v6246 = vpack.c.b16 %v5422, %v5414
    %v6247 = vpack.c.b16 %v5423, %v5415
    %v6248 = vpack.c.b16 %v5424, %v5416
    %v6249 = vpack.c.b16 %v5425, %v5417
    %v6250 = vpack.c.b16 %v5426, %v5418
    %v6251 = vpack.c.b16 %v5427, %v5419
    %v6252 = vpack.c.b16 %v5428, %v5420
    %v6253 = vpack.c.b16 %v5429, %v5421
    %v6254 = vpack.c.b16 %v5438, %v5430
    %v6255 = vpack.c.b16 %v5439, %v5431
    %v6256 = vpack.c.b16 %v5440, %v5432
    %v6257 = vpack.c.b16 %v5441, %v5433
    %v6258 = vpack.c.b16 %v5442, %v5434
    %v6259 = vpack.c.b16 %v5443, %v5435
    %v6260 = vpack.c.b16 %v5444, %v5436
    %v6261 = vpack.c.b16 %v5445, %v5437
    %v6262 = vpack.c.b16 %v5454, %v5446
    %v6263 = vpack.c.b16 %v5455, %v5447
    %v6264 = vpack.c.b16 %v5456, %v5448
    %v6265 = vpack.c.b16 %v5457, %v5449
    %v6266 = vpack.c.b16 %v5458, %v5450
    %v6267 = vpack.c.b16 %v5459, %v5451
    %v6268 = vpack.c.b16 %v5460, %v5452
    %v6269 = vpack.c.b16 %v5461, %v5453
    %v6270 = vpack.c.b16 %v5470, %v5462
    %v6271 = vpack.c.b16 %v5471, %v5463
    %v6272 = vpack.c.b16 %v5472, %v5464
    %v6273 = vpack.c.b16 %v5473, %v5465
    %v6274 = vpack.c.b16 %v5474, %v5466
    %v6275 = vpack.c.b16 %v5475, %v5467
    %v6276 = vpack.c.b16 %v5476, %v5468
    %v6277 = vpack.c.b16 %v5477, %v5469
    %v6278 = vpack.c.b16 %v5486, %v5478
    %v6279 = vpack.c.b16 %v5487, %v5479
    %v6280 = vpack.c.b16 %v5488, %v5480
    %v6281 = vpack.c.b16 %v5489, %v5481
    %v6282 = vpack.c.b16 %v5490, %v5482
    %v6283 = vpack.c.b16 %v5491, %v5483
    %v6284 = vpack.c.b16 %v5492, %v5484
    %v6285 = vpack.c.b16 %v5493, %v5485
    %v6286 = vpack.c.b16 %v5502, %v5494
    %v6287 = vpack.c.b16 %v5503, %v5495
    %v6288 = vpack.c.b16 %v5504, %v5496
    %v6289 = vpack.c.b16 %v5505, %v5497
    %v6290 = vpack.c.b16 %v5506, %v5498
    %v6291 = vpack.c.b16 %v5507, %v5499
    %v6292 = vpack.c.b16 %v5508, %v5500
    %v6293 = vpack.c.b16 %v5509, %v5501
    %v6294 = vpack.c.b16 %v5518, %v5510
    %v6295 = vpack.c.b16 %v5519, %v5511
    %v6296 = vpack.c.b16 %v5520, %v5512
    %v6297 = vpack.c.b16 %v5521, %v5513
    %v6298 = vpack.c.b16 %v5522, %v5514
    %v6299 = vpack.c.b16 %v5523, %v5515
    %v6300 = vpack.c.b16 %v5524, %v5516
    %v6301 = vpack.c.b16 %v5525, %v5517
    %v6302 = vpack.c.b16 %v5534, %v5526
    %v6303 = vpack.c.b16 %v5535, %v5527
    %v6304 = vpack.c.b16 %v5536, %v5528
    %v6305 = vpack.c.b16 %v5537, %v5529
    %v6306 = vpack.c.b16 %v5538, %v5530
    %v6307 = vpack.c.b16 %v5539, %v5531
    %v6308 = vpack.c.b16 %v5540, %v5532
    %v6309 = vpack.c.b16 %v5541, %v5533
    %v6310 = vpack.c.b16 %v5550, %v5542
    %v6311 = vpack.c.b16 %v5551, %v5543
    %v6312 = vpack.c.b16 %v5552, %v5544
    %v6313 = vpack.c.b16 %v5553, %v5545
    %v6314 = vpack.c.b16 %v5554, %v5546
    %v6315 = vpack.c.b16 %v5555, %v5547
    %v6316 = vpack.c.b16 %v5556, %v5548
    %v6317 = vpack.c.b16 %v5557, %v5549
    %v6318 = vpack.c.b16 %v5566, %v5558
    %v6319 = vpack.c.b16 %v5567, %v5559
    %v6320 = vpack.c.b16 %v5568, %v5560
    %v6321 = vpack.c.b16 %v5569, %v5561
    %v6322 = vpack.c.b16 %v5570, %v5562
    %v6323 = vpack.c.b16 %v5571, %v5563
    %v6324 = vpack.c.b16 %v5572, %v5564
    %v6325 = vpack.c.b16 %v5573, %v5565
    %v6326 = vpack.c.b16 %v5582, %v5574
    %v6327 = vpack.c.b16 %v5583, %v5575
    %v6328 = vpack.c.b16 %v5584, %v5576
    %v6329 = vpack.c.b16 %v5585, %v5577
    %v6330 = vpack.c.b16 %v5586, %v5578
    %v6331 = vpack.c.b16 %v5587, %v5579
    %v6332 = vpack.c.b16 %v5588, %v5580
    %v6333 = vpack.c.b16 %v5589, %v5581
    %v6334 = vpack.c.b16 %v5598, %v5590
    %v6335 = vpack.c.b16 %v5599, %v5591
    %v6336 = vpack.c.b16 %v5600, %v5592
    %v6337 = vpack.c.b16 %v5601, %v5593
    %v6338 = vpack.c.b16 %v5602, %v5594
    %v6339 = vpack.c.b16 %v5603, %v5595
    %v6340 = vpack.c.b16 %v5604, %v5596
    %v6341 = vpack.c.b16 %v5605, %v5597
    %v6342 = vpack.c.b16 %v5614, %v5606
    %v6343 = vpack.c.b16 %v5615, %v5607
    %v6344 = vpack.c.b16 %v5616, %v5608
    %v6345 = vpack.c.b16 %v5617, %v5609
    %v6346 = vpack.c.b16 %v5618, %v5610
    %v6347 = vpack.c.b16 %v5619, %v5611
    %v6348 = vpack.c.b16 %v5620, %v5612
    %v6349 = vpack.c.b16 %v5621, %v5613
    %v6350 = vpack.c.b16 %v5630, %v5622
    %v6351 = vpack.c.b16 %v5631, %v5623
    %v6352 = vpack.c.b16 %v5632, %v5624
    %v6353 = vpack.c.b16 %v5633, %v5625
    %v6354 = vpack.c.b16 %v5634, %v5626
    %v6355 = vpack.c.b16 %v5635, %v5627
    %v6356 = vpack.c.b16 %v5636, %v5628
    %v6357 = vpack.c.b16 %v5637, %v5629
    %v6358 = vpack.c.b16 %v5646, %v5638
    %v6359 = vpack.c.b16 %v5647, %v5639
    %v6360 = vpack.c.b16 %v5648, %v5640
    %v6361 = vpack.c.b16 %v5649, %v5641
    %v6362 = vpack.c.b16 %v5650, %v5642
    %v6363 = vpack.c.b16 %v5651, %v5643
    %v6364 = vpack.c.b16 %v5652, %v5644
    %v6365 = vpack.c.b16 %v5653, %v5645
    %v6366 = vpack.c.b16 %v5662, %v5654
    %v6367 = vpack.c.b16 %v5663, %v5655
    %v6368 = vpack.c.b16 %v5664, %v5656
    %v6369 = vpack.c.b16 %v5665, %v5657
    %v6370 = vpack.c.b16 %v5666, %v5658
    %v6371 = vpack.c.b16 %v5667, %v5659
    %v6372 = vpack.c.b16 %v5668, %v5660
    %v6373 = vpack.c.b16 %v5669, %v5661
    %v6374 = vpack.c.b16 %v5678, %v5670
    %v6375 = vpack.c.b16 %v5679, %v5671
    %v6376 = vpack.c.b16 %v5680, %v5672
    %v6377 = vpack.c.b16 %v5681, %v5673
    %v6378 = vpack.c.b16 %v5682, %v5674
    %v6379 = vpack.c.b16 %v5683, %v5675
    %v6380 = vpack.c.b16 %v5684, %v5676
    %v6381 = vpack.c.b16 %v5685, %v5677
    %v6382 = vpack.c.b16 %v5694, %v5686
    %v6383 = vpack.c.b16 %v5695, %v5687
    %v6384 = vpack.c.b16 %v5696, %v5688
    %v6385 = vpack.c.b16 %v5697, %v5689
    %v6386 = vpack.c.b16 %v5698, %v5690
    %v6387 = vpack.c.b16 %v5699, %v5691
    %v6388 = vpack.c.b16 %v5700, %v5692
    %v6389 = vpack.c.b16 %v5701, %v5693
    %v6390 = vpack.c.b16 %v5710, %v5702
    %v6391 = vpack.c.b16 %v5711, %v5703
    %v6392 = vpack.c.b16 %v5712, %v5704
    %v6393 = vpack.c.b16 %v5713, %v5705
    %v6394 = vpack.c.b16 %v5714, %v5706
    %v6395 = vpack.c.b16 %v5715, %v5707
    %v6396 = vpack.c.b16 %v5716, %v5708
    %v6397 = vpack.c.b16 %v5717, %v5709
    %v6398 = vpack.c.b16 %v5726, %v5718
    %v6399 = vpack.c.b16 %v5727, %v5719
    %v6400 = vpack.c.b16 %v5728, %v5720
    %v6401 = vpack.c.b16 %v5729, %v5721
    %v6402 = vpack.c.b16 %v5730, %v5722
    %v6403 = vpack.c.b16 %v5731, %v5723
    %v6404 = vpack.c.b16 %v5732, %v5724
    %v6405 = vpack.c.b16 %v5733, %v5725
    %v6406 = vpack.c.b16 %v5742, %v5734
    %v6407 = vpack.c.b16 %v5743, %v5735
    %v6408 = vpack.c.b16 %v5744, %v5736
    %v6409 = vpack.c.b16 %v5745, %v5737
    %v6410 = vpack.c.b16 %v5746, %v5738
    %v6411 = vpack.c.b16 %v5747, %v5739
    %v6412 = vpack.c.b16 %v5748, %v5740
    %v6413 = vpack.c.b16 %v5749, %v5741
    %v6414 = vpack.c.b16 %v5758, %v5750
    %v6415 = vpack.c.b16 %v5759, %v5751
    %v6416 = vpack.c.b16 %v5760, %v5752
    %v6417 = vpack.c.b16 %v5761, %v5753
    %v6418 = vpack.c.b16 %v5762, %v5754
    %v6419 = vpack.c.b16 %v5763, %v5755
    %v6420 = vpack.c.b16 %v5764, %v5756
    %v6421 = vpack.c.b16 %v5765, %v5757
    %v6422 = vpack.c.b16 %v5774, %v5766
    %v6423 = vpack.c.b16 %v5775, %v5767
    %v6424 = vpack.c.b16 %v5776, %v5768
    %v6425 = vpack.c.b16 %v5777, %v5769
    %v6426 = vpack.c.b16 %v5778, %v5770
    %v6427 = vpack.c.b16 %v5779, %v5771
    %v6428 = vpack.c.b16 %v5780, %v5772
    %v6429 = vpack.c.b16 %v5781, %v5773
    %v6430 = vpack.c.b16 %v5790, %v5782
    %v6431 = vpack.c.b16 %v5791, %v5783
    %v6432 = vpack.c.b16 %v5792, %v5784
    %v6433 = vpack.c.b16 %v5793, %v5785
    %v6434 = vpack.c.b16 %v5794, %v5786
    %v6435 = vpack.c.b16 %v5795, %v5787
    %v6436 = vpack.c.b16 %v5796, %v5788
    %v6437 = vpack.c.b16 %v5797, %v5789
    %v6438 = vpack.c.b16 %v5806, %v5798
    %v6439 = vpack.c.b16 %v5807, %v5799
    %v6440 = vpack.c.b16 %v5808, %v5800
    %v6441 = vpack.c.b16 %v5809, %v5801
    %v6442 = vpack.c.b16 %v5810, %v5802
    %v6443 = vpack.c.b16 %v5811, %v5803
    %v6444 = vpack.c.b16 %v5812, %v5804
    %v6445 = vpack.c.b16 %v5813, %v5805
    %v6446 = vpack.c.b16 %v5822, %v5814
    %v6447 = vpack.c.b16 %v5823, %v5815
    %v6448 = vpack.c.b16 %v5824, %v5816
    %v6449 = vpack.c.b16 %v5825, %v5817
    %v6450 = vpack.c.b16 %v5826, %v5818
    %v6451 = vpack.c.b16 %v5827, %v5819
    %v6452 = vpack.c.b16 %v5828, %v5820
    %v6453 = vpack.c.b16 %v5829, %v5821
    %v6454 = vpack.c.b16 %v5838, %v5830
    %v6455 = vpack.c.b16 %v5839, %v5831
    %v6456 = vpack.c.b16 %v5840, %v5832
    %v6457 = vpack.c.b16 %v5841, %v5833
    %v6458 = vpack.c.b16 %v5842, %v5834
    %v6459 = vpack.c.b16 %v5843, %v5835
    %v6460 = vpack.c.b16 %v5844, %v5836
    %v6461 = vpack.c.b16 %v5845, %v5837
    %v6462 = vpack.c.b16 %v5854, %v5846
    %v6463 = vpack.c.b16 %v5855, %v5847
    %v6464 = vpack.c.b16 %v5856, %v5848
    %v6465 = vpack.c.b16 %v5857, %v5849
    %v6466 = vpack.c.b16 %v5858, %v5850
    %v6467 = vpack.c.b16 %v5859, %v5851
    %v6468 = vpack.c.b16 %v5860, %v5852
    %v6469 = vpack.c.b16 %v5861, %v5853
    %v6470 = vpack.c.b16 %v5870, %v5862
    %v6471 = vpack.c.b16 %v5871, %v5863
    %v6472 = vpack.c.b16 %v5872, %v5864
    %v6473 = vpack.c.b16 %v5873, %v5865
    %v6474 = vpack.c.b16 %v5874, %v5866
    %v6475 = vpack.c.b16 %v5875, %v5867
    %v6476 = vpack.c.b16 %v5876, %v5868
    %v6477 = vpack.c.b16 %v5877, %v5869
    %v6478 = vpack.c.b16 %v5886, %v5878
    %v6479 = vpack.c.b16 %v5887, %v5879
    %v6480 = vpack.c.b16 %v5888, %v5880
    %v6481 = vpack.c.b16 %v5889, %v5881
    %v6482 = vpack.c.b16 %v5890, %v5882
    %v6483 = vpack.c.b16 %v5891, %v5883
    %v6484 = vpack.c.b16 %v5892, %v5884
    %v6485 = vpack.c.b16 %v5893, %v5885
    %v6486 = vpack.c.b16 %v5902, %v5894
    %v6487 = vpack.c.b16 %v5903, %v5895
    %v6488 = vpack.c.b16 %v5904, %v5896
    %v6489 = vpack.c.b16 %v5905, %v5897
    %v6490 = vpack.c.b16 %v5906, %v5898
    %v6491 = vpack.c.b16 %v5907, %v5899
    %v6492 = vpack.c.b16 %v5908, %v5900
    %v6493 = vpack.c.b16 %v5909, %v5901
    %v6494 = vpack.c.b16 %v5918, %v5910
    %v6495 = vpack.c.b16 %v5919, %v5911
    %v6496 = vpack.c.b16 %v5920, %v5912
    %v6497 = vpack.c.b16 %v5921, %v5913
    %v6498 = vpack.c.b16 %v5922, %v5914
    %v6499 = vpack.c.b16 %v5923, %v5915
    %v6500 = vpack.c.b16 %v5924, %v5916
    %v6501 = vpack.c.b16 %v5925, %v5917
    %v6502 = vpack.c.b16 %v5934, %v5926
    %v6503 = vpack.c.b16 %v5935, %v5927
    %v6504 = vpack.c.b16 %v5936, %v5928
    %v6505 = vpack.c.b16 %v5937, %v5929
    %v6506 = vpack.c.b16 %v5938, %v5930
    %v6507 = vpack.c.b16 %v5939, %v5931
    %v6508 = vpack.c.b16 %v5940, %v5932
    %v6509 = vpack.c.b16 %v5941, %v5933
    %v6510 = vpack.c.b16 %v5950, %v5942
    %v6511 = vpack.c.b16 %v5951, %v5943
    %v6512 = vpack.c.b16 %v5952, %v5944
    %v6513 = vpack.c.b16 %v5953, %v5945
    %v6514 = vpack.c.b16 %v5954, %v5946
    %v6515 = vpack.c.b16 %v5955, %v5947
    %v6516 = vpack.c.b16 %v5956, %v5948
    %v6517 = vpack.c.b16 %v5957, %v5949
    %v6518 = vpack.c.b16 %v5966, %v5958
    %v6519 = vpack.c.b16 %v5967, %v5959
    %v6520 = vpack.c.b16 %v5968, %v5960
    %v6521 = vpack.c.b16 %v5969, %v5961
    %v6522 = vpack.c.b16 %v5970, %v5962
    %v6523 = vpack.c.b16 %v5971, %v5963
    %v6524 = vpack.c.b16 %v5972, %v5964
    %v6525 = vpack.c.b16 %v5973, %v5965
    %v6526 = vpack.c.b16 %v5982, %v5974
    %v6527 = vpack.c.b16 %v5983, %v5975
    %v6528 = vpack.c.b16 %v5984, %v5976
    %v6529 = vpack.c.b16 %v5985, %v5977
    %v6530 = vpack.c.b16 %v5986, %v5978
    %v6531 = vpack.c.b16 %v5987, %v5979
    %v6532 = vpack.c.b16 %v5988, %v5980
    %v6533 = vpack.c.b16 %v5989, %v5981
    %v6534 = vpack.c.b16 %v5998, %v5990
    %v6535 = vpack.c.b16 %v5999, %v5991
    %v6536 = vpack.c.b16 %v6000, %v5992
    %v6537 = vpack.c.b16 %v6001, %v5993
    %v6538 = vpack.c.b16 %v6002, %v5994
    %v6539 = vpack.c.b16 %v6003, %v5995
    %v6540 = vpack.c.b16 %v6004, %v5996
    %v6541 = vpack.c.b16 %v6005, %v5997
    %v6542 = vpack.c.b16 %v6014, %v6006
    %v6543 = vpack.c.b16 %v6015, %v6007
    %v6544 = vpack.c.b16 %v6016, %v6008
    %v6545 = vpack.c.b16 %v6017, %v6009
    %v6546 = vpack.c.b16 %v6018, %v6010
    %v6547 = vpack.c.b16 %v6019, %v6011
    %v6548 = vpack.c.b16 %v6020, %v6012
    %v6549 = vpack.c.b16 %v6021, %v6013
    %v6550 = vpack.c.b16 %v6030, %v6022
    %v6551 = vpack.c.b16 %v6031, %v6023
    %v6552 = vpack.c.b16 %v6032, %v6024
    %v6553 = vpack.c.b16 %v6033, %v6025
    %v6554 = vpack.c.b16 %v6034, %v6026
    %v6555 = vpack.c.b16 %v6035, %v6027
    %v6556 = vpack.c.b16 %v6036, %v6028
    %v6557 = vpack.c.b16 %v6037, %v6029
    %v6558 = vpack.c.b16 %v6046, %v6038
    %v6559 = vpack.c.b16 %v6047, %v6039
    %v6560 = vpack.c.b16 %v6048, %v6040
    %v6561 = vpack.c.b16 %v6049, %v6041
    %v6562 = vpack.c.b16 %v6050, %v6042
    %v6563 = vpack.c.b16 %v6051, %v6043
    %v6564 = vpack.c.b16 %v6052, %v6044
    %v6565 = vpack.c.b16 %v6053, %v6045
    %7078 = vmatprep.subr.bf16.mxu0 %v6055
    %7079 = vmatpush1.bf16.msra.mxu0 %v6054
    %7080 = vmatprep.subr.bf16.mxu0 %v6063
    %7081 = vmatpush1.bf16.msra.mxu0 %v6062
    %7082 = vmatprep.subr.bf16.mxu0 %v6071
    %7083 = vmatpush1.bf16.msra.mxu0 %v6070
    %7084 = vmatprep.subr.bf16.mxu0 %v6079
    %7085 = vmatpush1.bf16.msra.mxu0 %v6078
    %7086 = vmatprep.subr.bf16.mxu0 %v6087
    %7087 = vmatpush1.bf16.msra.mxu0 %v6086
    %7088 = vmatprep.subr.bf16.mxu0 %v6095
    %7089 = vmatpush1.bf16.msra.mxu0 %v6094
    %7090 = vmatprep.subr.bf16.mxu0 %v6103
    %7091 = vmatpush1.bf16.msra.mxu0 %v6102
    %7092 = vmatprep.subr.bf16.mxu0 %v6111
    %7093 = vmatpush1.bf16.msra.mxu0 %v6110
    %7094 = vmatprep.subr.bf16.mxu0 %v6119
    %7095 = vmatpush1.bf16.msra.mxu0 %v6118
    %7096 = vmatprep.subr.bf16.mxu0 %v6127
    %7097 = vmatpush1.bf16.msra.mxu0 %v6126
    %7098 = vmatprep.subr.bf16.mxu0 %v6135
    %7099 = vmatpush1.bf16.msra.mxu0 %v6134
    %7100 = vmatprep.subr.bf16.mxu0 %v6143
    %7101 = vmatpush1.bf16.msra.mxu0 %v6142
    %7102 = vmatprep.subr.bf16.mxu0 %v6151
    %7103 = vmatpush1.bf16.msra.mxu0 %v6150
    %7104 = vmatprep.subr.bf16.mxu0 %v6159
    %7105 = vmatpush1.bf16.msra.mxu0 %v6158
    %7106 = vmatprep.subr.bf16.mxu0 %v6167
    %7107 = vmatpush1.bf16.msra.mxu0 %v6166
    %7108 = vmatprep.subr.bf16.mxu0 %v6175
    %7109 = vmatpush1.bf16.msra.mxu0 %v6174
    %7110 = vmatprep.mubr.bf16.mxu0 %v4503
    %7111 = vmatmul.mubr.bf16.gmra.mrb[0].mxu0 %v4502
    %v7112 = vpop.f32.mrb[0].mxu0
    %v7113 = vadd.f32 %v3954, %v7112
    %v7114 = vpop.f32.mrb[0].mxu0
    %v7115 = vadd.f32 %v3956, %v7114
    %v7116 = vpop.f32.mrb[0].mxu0
    %v7117 = vadd.f32 %v3958, %v7116
    %v7118 = vpop.f32.mrb[0].mxu0
    %v7119 = vadd.f32 %v3960, %v7118
    %7120 = vdwg.mxu0
    %7121 = vmatprep.subr.bf16.mxu0 %v6183
    %7122 = vmatpush1.bf16.msra.mxu0 %v6182
    %7123 = vmatprep.subr.bf16.mxu0 %v6191
    %7124 = vmatpush1.bf16.msra.mxu0 %v6190
    %7125 = vmatprep.subr.bf16.mxu0 %v6199
    %7126 = vmatpush1.bf16.msra.mxu0 %v6198
    %7127 = vmatprep.subr.bf16.mxu0 %v6207
    %7128 = vmatpush1.bf16.msra.mxu0 %v6206
    %7129 = vmatprep.subr.bf16.mxu0 %v6215
    %7130 = vmatpush1.bf16.msra.mxu0 %v6214
    %7131 = vmatprep.subr.bf16.mxu0 %v6223
    %7132 = vmatpush1.bf16.msra.mxu0 %v6222
    %7133 = vmatprep.subr.bf16.mxu0 %v6231
    %7134 = vmatpush1.bf16.msra.mxu0 %v6230
    %7135 = vmatprep.subr.bf16.mxu0 %v6239
    %7136 = vmatpush1.bf16.msra.mxu0 %v6238
    %7137 = vmatprep.subr.bf16.mxu0 %v6247
    %7138 = vmatpush1.bf16.msra.mxu0 %v6246
    %7139 = vmatprep.subr.bf16.mxu0 %v6255
    %7140 = vmatpush1.bf16.msra.mxu0 %v6254
    %7141 = vmatprep.subr.bf16.mxu0 %v6263
    %7142 = vmatpush1.bf16.msra.mxu0 %v6262
    %7143 = vmatprep.subr.bf16.mxu0 %v6271
    %7144 = vmatpush1.bf16.msra.mxu0 %v6270
    %7145 = vmatprep.subr.bf16.mxu0 %v6279
    %7146 = vmatpush1.bf16.msra.mxu0 %v6278
    %7147 = vmatprep.subr.bf16.mxu0 %v6287
    %7148 = vmatpush1.bf16.msra.mxu0 %v6286
    %7149 = vmatprep.subr.bf16.mxu0 %v6295
    %7150 = vmatpush1.bf16.msra.mxu0 %v6294
    %7151 = vmatprep.subr.bf16.mxu0 %v6303
    %7152 = vmatpush1.bf16.msra.mxu0 %v6302
    %7153 = vmatprep.mubr.bf16.mxu0 %v4505
    %7154 = vmatmul.mubr.bf16.gmra.mrb[0].mxu0 %v4504
    %v7155 = vpop.f32.mrb[0].mxu0
    %v7156 = vadd.f32 %v7113, %v7155
    %v7157 = vpop.f32.mrb[0].mxu0
    %v7158 = vadd.f32 %v7115, %v7157
    %v7159 = vpop.f32.mrb[0].mxu0
    %v7160 = vadd.f32 %v7117, %v7159
    %v7161 = vpop.f32.mrb[0].mxu0
    %v7162 = vadd.f32 %v7119, %v7161
    %7163 = vdwg.mxu0
    %7164 = vmatprep.subr.bf16.mxu0 %v6311
    %7165 = vmatpush1.bf16.msra.mxu0 %v6310
    %7166 = vmatprep.subr.bf16.mxu0 %v6319
    %7167 = vmatpush1.bf16.msra.mxu0 %v6318
    %7168 = vmatprep.subr.bf16.mxu0 %v6327
    %7169 = vmatpush1.bf16.msra.mxu0 %v6326
    %7170 = vmatprep.subr.bf16.mxu0 %v6335
    %7171 = vmatpush1.bf16.msra.mxu0 %v6334
    %7172 = vmatprep.subr.bf16.mxu0 %v6343
    %7173 = vmatpush1.bf16.msra.mxu0 %v6342
    %7174 = vmatprep.subr.bf16.mxu0 %v6351
    %7175 = vmatpush1.bf16.msra.mxu0 %v6350
    %7176 = vmatprep.subr.bf16.mxu0 %v6359
    %7177 = vmatpush1.bf16.msra.mxu0 %v6358
    %7178 = vmatprep.subr.bf16.mxu0 %v6367
    %7179 = vmatpush1.bf16.msra.mxu0 %v6366
    %7180 = vmatprep.subr.bf16.mxu0 %v6375
    %7181 = vmatpush1.bf16.msra.mxu0 %v6374
    %7182 = vmatprep.subr.bf16.mxu0 %v6383
    %7183 = vmatpush1.bf16.msra.mxu0 %v6382
    %7184 = vmatprep.subr.bf16.mxu0 %v6391
    %7185 = vmatpush1.bf16.msra.mxu0 %v6390
    %7186 = vmatprep.subr.bf16.mxu0 %v6399
    %7187 = vmatpush1.bf16.msra.mxu0 %v6398
    %7188 = vmatprep.subr.bf16.mxu0 %v6407
    %7189 = vmatpush1.bf16.msra.mxu0 %v6406
    %7190 = vmatprep.subr.bf16.mxu0 %v6415
    %7191 = vmatpush1.bf16.msra.mxu0 %v6414
    %7192 = vmatprep.subr.bf16.mxu0 %v6423
    %7193 = vmatpush1.bf16.msra.mxu0 %v6422
    %7194 = vmatprep.subr.bf16.mxu0 %v6431
    %7195 = vmatpush1.bf16.msra.mxu0 %v6430
    %7196 = vmatprep.mubr.bf16.mxu0 %v4507
    %7197 = vmatmul.mubr.bf16.gmra.mrb[0].mxu0 %v4506
    %v7198 = vpop.f32.mrb[0].mxu0
    %v7199 = vadd.f32 %v7156, %v7198
    %v7200 = vpop.f32.mrb[0].mxu0
    %v7201 = vadd.f32 %v7158, %v7200
    %v7202 = vpop.f32.mrb[0].mxu0
    %v7203 = vadd.f32 %v7160, %v7202
    %v7204 = vpop.f32.mrb[0].mxu0
    %v7205 = vadd.f32 %v7162, %v7204
    %7206 = vdwg.mxu0
    %7207 = vmatprep.subr.bf16.mxu0 %v6439
    %7208 = vmatpush1.bf16.msra.mxu0 %v6438
    %7209 = vmatprep.subr.bf16.mxu0 %v6447
    %7210 = vmatpush1.bf16.msra.mxu0 %v6446
    %7211 = vmatprep.subr.bf16.mxu0 %v6455
    %7212 = vmatpush1.bf16.msra.mxu0 %v6454
    %7213 = vmatprep.subr.bf16.mxu0 %v6463
    %7214 = vmatpush1.bf16.msra.mxu0 %v6462
    %7215 = vmatprep.subr.bf16.mxu0 %v6471
    %7216 = vmatpush1.bf16.msra.mxu0 %v6470
    %7217 = vmatprep.subr.bf16.mxu0 %v6479
    %7218 = vmatpush1.bf16.msra.mxu0 %v6478
    %7219 = vmatprep.subr.bf16.mxu0 %v6487
    %7220 = vmatpush1.bf16.msra.mxu0 %v6486
    %7221 = vmatprep.subr.bf16.mxu0 %v6495
    %7222 = vmatpush1.bf16.msra.mxu0 %v6494
    %7223 = vmatprep.subr.bf16.mxu0 %v6503
    %7224 = vmatpush1.bf16.msra.mxu0 %v6502
    %7225 = vmatprep.subr.bf16.mxu0 %v6511
    %7226 = vmatpush1.bf16.msra.mxu0 %v6510
    %7227 = vmatprep.subr.bf16.mxu0 %v6519
    %7228 = vmatpush1.bf16.msra.mxu0 %v6518
    %7229 = vmatprep.subr.bf16.mxu0 %v6527
    %7230 = vmatpush1.bf16.msra.mxu0 %v6526
    %7231 = vmatprep.subr.bf16.mxu0 %v6535
    %7232 = vmatpush1.bf16.msra.mxu0 %v6534
    %7233 = vmatprep.subr.bf16.mxu0 %v6543
    %7234 = vmatpush1.bf16.msra.mxu0 %v6542
    %7235 = vmatprep.subr.bf16.mxu0 %v6551
    %7236 = vmatpush1.bf16.msra.mxu0 %v6550
    %7237 = vmatprep.subr.bf16.mxu0 %v6559
    %7238 = vmatpush1.bf16.msra.mxu0 %v6558
    %7239 = vmatprep.mubr.bf16.mxu0 %v4509
    %7240 = vmatmul.mubr.bf16.gmra.mrb[0].mxu0 %v4508
    %v7241 = vpop.f32.mrb[0].mxu0
    %v7242 = vadd.f32 %v7199, %v7241
    %v7243 = vpop.f32.mrb[0].mxu0
    %v7244 = vadd.f32 %v7201, %v7243
    %v7245 = vpop.f32.mrb[0].mxu0
    %v7246 = vadd.f32 %v7203, %v7245
    %v7247 = vpop.f32.mrb[0].mxu0
    %v7248 = vadd.f32 %v7205, %v7247
    %7249 = vdwg.mxu0
    %7250 = vmatprep.subr.bf16.mxu0 %v6057
    %7251 = vmatpush1.bf16.msra.mxu0 %v6056
    %7252 = vmatprep.subr.bf16.mxu0 %v6065
    %7253 = vmatpush1.bf16.msra.mxu0 %v6064
    %7254 = vmatprep.subr.bf16.mxu0 %v6073
    %7255 = vmatpush1.bf16.msra.mxu0 %v6072
    %7256 = vmatprep.subr.bf16.mxu0 %v6081
    %7257 = vmatpush1.bf16.msra.mxu0 %v6080
    %7258 = vmatprep.subr.bf16.mxu0 %v6089
    %7259 = vmatpush1.bf16.msra.mxu0 %v6088
    %7260 = vmatprep.subr.bf16.mxu0 %v6097
    %7261 = vmatpush1.bf16.msra.mxu0 %v6096
    %7262 = vmatprep.subr.bf16.mxu0 %v6105
    %7263 = vmatpush1.bf16.msra.mxu0 %v6104
    %7264 = vmatprep.subr.bf16.mxu0 %v6113
    %7265 = vmatpush1.bf16.msra.mxu0 %v6112
    %7266 = vmatprep.subr.bf16.mxu0 %v6121
    %7267 = vmatpush1.bf16.msra.mxu0 %v6120
    %7268 = vmatprep.subr.bf16.mxu0 %v6129
    %7269 = vmatpush1.bf16.msra.mxu0 %v6128
    %7270 = vmatprep.subr.bf16.mxu0 %v6137
    %7271 = vmatpush1.bf16.msra.mxu0 %v6136
    %7272 = vmatprep.subr.bf16.mxu0 %v6145
    %7273 = vmatpush1.bf16.msra.mxu0 %v6144
    %7274 = vmatprep.subr.bf16.mxu0 %v6153
    %7275 = vmatpush1.bf16.msra.mxu0 %v6152
    %7276 = vmatprep.subr.bf16.mxu0 %v6161
    %7277 = vmatpush1.bf16.msra.mxu0 %v6160
    %7278 = vmatprep.subr.bf16.mxu0 %v6169
    %7279 = vmatpush1.bf16.msra.mxu0 %v6168
    %7280 = vmatprep.subr.bf16.mxu0 %v6177
    %7281 = vmatpush1.bf16.msra.mxu0 %v6176
    %7282 = vmatprep.mubr.bf16.mxu0 %v4503
    %7283 = vmatmul.mubr.bf16.gmra.mrb[0].mxu0 %v4502
    %v7284 = vpop.f32.mrb[0].mxu0
    %v7285 = vadd.f32 %v4126, %v7284
    %v7286 = vpop.f32.mrb[0].mxu0
    %v7287 = vadd.f32 %v4128, %v7286
    %v7288 = vpop.f32.mrb[0].mxu0
    %v7289 = vadd.f32 %v4130, %v7288
    %v7290 = vpop.f32.mrb[0].mxu0
    %v7291 = vadd.f32 %v4132, %v7290
    %7292 = vdwg.mxu0
    %7293 = vmatprep.subr.bf16.mxu0 %v6185
    %7294 = vmatpush1.bf16.msra.mxu0 %v6184
    %7295 = vmatprep.subr.bf16.mxu0 %v6193
    %7296 = vmatpush1.bf16.msra.mxu0 %v6192
    %7297 = vmatprep.subr.bf16.mxu0 %v6201
    %7298 = vmatpush1.bf16.msra.mxu0 %v6200
    %7299 = vmatprep.subr.bf16.mxu0 %v6209
    %7300 = vmatpush1.bf16.msra.mxu0 %v6208
    %7301 = vmatprep.subr.bf16.mxu0 %v6217
    %7302 = vmatpush1.bf16.msra.mxu0 %v6216
    %7303 = vmatprep.subr.bf16.mxu0 %v6225
    %7304 = vmatpush1.bf16.msra.mxu0 %v6224
    %7305 = vmatprep.subr.bf16.mxu0 %v6233
    %7306 = vmatpush1.bf16.msra.mxu0 %v6232
    %7307 = vmatprep.subr.bf16.mxu0 %v6241
    %7308 = vmatpush1.bf16.msra.mxu0 %v6240
    %7309 = vmatprep.subr.bf16.mxu0 %v6249
    %7310 = vmatpush1.bf16.msra.mxu0 %v6248
    %7311 = vmatprep.subr.bf16.mxu0 %v6257
    %7312 = vmatpush1.bf16.msra.mxu0 %v6256
    %7313 = vmatprep.subr.bf16.mxu0 %v6265
    %7314 = vmatpush1.bf16.msra.mxu0 %v6264
    %7315 = vmatprep.subr.bf16.mxu0 %v6273
    %7316 = vmatpush1.bf16.msra.mxu0 %v6272
    %7317 = vmatprep.subr.bf16.mxu0 %v6281
    %7318 = vmatpush1.bf16.msra.mxu0 %v6280
    %7319 = vmatprep.subr.bf16.mxu0 %v6289
    %7320 = vmatpush1.bf16.msra.mxu0 %v6288
    %7321 = vmatprep.subr.bf16.mxu0 %v6297
    %7322 = vmatpush1.bf16.msra.mxu0 %v6296
    %7323 = vmatprep.subr.bf16.mxu0 %v6305
    %7324 = vmatpush1.bf16.msra.mxu0 %v6304
    %7325 = vmatprep.mubr.bf16.mxu0 %v4505
    %7326 = vmatmul.mubr.bf16.gmra.mrb[0].mxu0 %v4504
    %v7327 = vpop.f32.mrb[0].mxu0
    %v7328 = vadd.f32 %v7285, %v7327
    %v7329 = vpop.f32.mrb[0].mxu0
    %v7330 = vadd.f32 %v7287, %v7329
    %v7331 = vpop.f32.mrb[0].mxu0
    %v7332 = vadd.f32 %v7289, %v7331
    %v7333 = vpop.f32.mrb[0].mxu0
    %v7334 = vadd.f32 %v7291, %v7333
    %7335 = vdwg.mxu0
    %7336 = vmatprep.subr.bf16.mxu0 %v6313
    %7337 = vmatpush1.bf16.msra.mxu0 %v6312
    %7338 = vmatprep.subr.bf16.mxu0 %v6321
    %7339 = vmatpush1.bf16.msra.mxu0 %v6320
    %7340 = vmatprep.subr.bf16.mxu0 %v6329
    %7341 = vmatpush1.bf16.msra.mxu0 %v6328
    %7342 = vmatprep.subr.bf16.mxu0 %v6337
    %7343 = vmatpush1.bf16.msra.mxu0 %v6336
    %7344 = vmatprep.subr.bf16.mxu0 %v6345
    %7345 = vmatpush1.bf16.msra.mxu0 %v6344
    %7346 = vmatprep.subr.bf16.mxu0 %v6353
    %7347 = vmatpush1.bf16.msra.mxu0 %v6352
    %7348 = vmatprep.subr.bf16.mxu0 %v6361
    %7349 = vmatpush1.bf16.msra.mxu0 %v6360
    %7350 = vmatprep.subr.bf16.mxu0 %v6369
    %7351 = vmatpush1.bf16.msra.mxu0 %v6368
    %7352 = vmatprep.subr.bf16.mxu0 %v6377
    %7353 = vmatpush1.bf16.msra.mxu0 %v6376
    %7354 = vmatprep.subr.bf16.mxu0 %v6385
    %7355 = vmatpush1.bf16.msra.mxu0 %v6384
    %7356 = vmatprep.subr.bf16.mxu0 %v6393
    %7357 = vmatpush1.bf16.msra.mxu0 %v6392
    %7358 = vmatprep.subr.bf16.mxu0 %v6401
    %7359 = vmatpush1.bf16.msra.mxu0 %v6400
    %7360 = vmatprep.subr.bf16.mxu0 %v6409
    %7361 = vmatpush1.bf16.msra.mxu0 %v6408
    %7362 = vmatprep.subr.bf16.mxu0 %v6417
    %7363 = vmatpush1.bf16.msra.mxu0 %v6416
    %7364 = vmatprep.subr.bf16.mxu0 %v6425
    %7365 = vmatpush1.bf16.msra.mxu0 %v6424
    %7366 = vmatprep.subr.bf16.mxu0 %v6433
    %7367 = vmatpush1.bf16.msra.mxu0 %v6432
    %7368 = vmatprep.mubr.bf16.mxu0 %v4507
    %7369 = vmatmul.mubr.bf16.gmra.mrb[0].mxu0 %v4506
    %v7370 = vpop.f32.mrb[0].mxu0
    %v7371 = vadd.f32 %v7328, %v7370
    %v7372 = vpop.f32.mrb[0].mxu0
    %v7373 = vadd.f32 %v7330, %v7372
    %v7374 = vpop.f32.mrb[0].mxu0
    %v7375 = vadd.f32 %v7332, %v7374
    %v7376 = vpop.f32.mrb[0].mxu0
    %v7377 = vadd.f32 %v7334, %v7376
    %7378 = vdwg.mxu0
    %7379 = vmatprep.subr.bf16.mxu0 %v6441
    %7380 = vmatpush1.bf16.msra.mxu0 %v6440
    %7381 = vmatprep.subr.bf16.mxu0 %v6449
    %7382 = vmatpush1.bf16.msra.mxu0 %v6448
    %7383 = vmatprep.subr.bf16.mxu0 %v6457
    %7384 = vmatpush1.bf16.msra.mxu0 %v6456
    %7385 = vmatprep.subr.bf16.mxu0 %v6465
    %7386 = vmatpush1.bf16.msra.mxu0 %v6464
    %7387 = vmatprep.subr.bf16.mxu0 %v6473
    %7388 = vmatpush1.bf16.msra.mxu0 %v6472
    %7389 = vmatprep.subr.bf16.mxu0 %v6481
    %7390 = vmatpush1.bf16.msra.mxu0 %v6480
    %7391 = vmatprep.subr.bf16.mxu0 %v6489
    %7392 = vmatpush1.bf16.msra.mxu0 %v6488
    %7393 = vmatprep.subr.bf16.mxu0 %v6497
    %7394 = vmatpush1.bf16.msra.mxu0 %v6496
    %7395 = vmatprep.subr.bf16.mxu0 %v6505
    %7396 = vmatpush1.bf16.msra.mxu0 %v6504
    %7397 = vmatprep.subr.bf16.mxu0 %v6513
    %7398 = vmatpush1.bf16.msra.mxu0 %v6512
    %7399 = vmatprep.subr.bf16.mxu0 %v6521
    %7400 = vmatpush1.bf16.msra.mxu0 %v6520
    %7401 = vmatprep.subr.bf16.mxu0 %v6529
    %7402 = vmatpush1.bf16.msra.mxu0 %v6528
    %7403 = vmatprep.subr.bf16.mxu0 %v6537
    %7404 = vmatpush1.bf16.msra.mxu0 %v6536
    %7405 = vmatprep.subr.bf16.mxu0 %v6545
    %7406 = vmatpush1.bf16.msra.mxu0 %v6544
    %7407 = vmatprep.subr.bf16.mxu0 %v6553
    %7408 = vmatpush1.bf16.msra.mxu0 %v6552
    %7409 = vmatprep.subr.bf16.mxu0 %v6561
    %7410 = vmatpush1.bf16.msra.mxu0 %v6560
    %7411 = vmatprep.mubr.bf16.mxu0 %v4509
    %7412 = vmatmul.mubr.bf16.gmra.mrb[0].mxu0 %v4508
    %v7413 = vpop.f32.mrb[0].mxu0
    %v7414 = vadd.f32 %v7371, %v7413
    %v7415 = vpop.f32.mrb[0].mxu0
    %v7416 = vadd.f32 %v7373, %v7415
    %v7417 = vpop.f32.mrb[0].mxu0
    %v7418 = vadd.f32 %v7375, %v7417
    %v7419 = vpop.f32.mrb[0].mxu0
    %v7420 = vadd.f32 %v7377, %v7419
    %7421 = vdwg.mxu0
    %7422 = vmatprep.subr.bf16.mxu0 %v6059
    %7423 = vmatpush1.bf16.msra.mxu0 %v6058
    %7424 = vmatprep.subr.bf16.mxu0 %v6067
    %7425 = vmatpush1.bf16.msra.mxu0 %v6066
    %7426 = vmatprep.subr.bf16.mxu0 %v6075
    %7427 = vmatpush1.bf16.msra.mxu0 %v6074
    %7428 = vmatprep.subr.bf16.mxu0 %v6083
    %7429 = vmatpush1.bf16.msra.mxu0 %v6082
    %7430 = vmatprep.subr.bf16.mxu0 %v6091
    %7431 = vmatpush1.bf16.msra.mxu0 %v6090
    %7432 = vmatprep.subr.bf16.mxu0 %v6099
    %7433 = vmatpush1.bf16.msra.mxu0 %v6098
    %7434 = vmatprep.subr.bf16.mxu0 %v6107
    %7435 = vmatpush1.bf16.msra.mxu0 %v6106
    %7436 = vmatprep.subr.bf16.mxu0 %v6115
    %7437 = vmatpush1.bf16.msra.mxu0 %v6114
    %7438 = vmatprep.subr.bf16.mxu0 %v6123
    %7439 = vmatpush1.bf16.msra.mxu0 %v6122
    %7440 = vmatprep.subr.bf16.mxu0 %v6131
    %7441 = vmatpush1.bf16.msra.mxu0 %v6130
    %7442 = vmatprep.subr.bf16.mxu0 %v6139
    %7443 = vmatpush1.bf16.msra.mxu0 %v6138
    %7444 = vmatprep.subr.bf16.mxu0 %v6147
    %7445 = vmatpush1.bf16.msra.mxu0 %v6146
    %7446 = vmatprep.subr.bf16.mxu0 %v6155
    %7447 = vmatpush1.bf16.msra.mxu0 %v6154
    %7448 = vmatprep.subr.bf16.mxu0 %v6163
    %7449 = vmatpush1.bf16.msra.mxu0 %v6162
    %7450 = vmatprep.subr.bf16.mxu0 %v6171
    %7451 = vmatpush1.bf16.msra.mxu0 %v6170
    %7452 = vmatprep.subr.bf16.mxu0 %v6179
    %7453 = vmatpush1.bf16.msra.mxu0 %v6178
    %7454 = vmatprep.mubr.bf16.mxu0 %v4503
    %7455 = vmatmul.mubr.bf16.gmra.mrb[0].mxu0 %v4502
    %v7456 = vpop.f32.mrb[0].mxu0
    %v7457 = vadd.f32 %v4298, %v7456
    %v7458 = vpop.f32.mrb[0].mxu0
    %v7459 = vadd.f32 %v4300, %v7458
    %v7460 = vpop.f32.mrb[0].mxu0
    %v7461 = vadd.f32 %v4302, %v7460
    %v7462 = vpop.f32.mrb[0].mxu0
    %v7463 = vadd.f32 %v4304, %v7462
    %7464 = vdwg.mxu0
    %7465 = vmatprep.subr.bf16.mxu0 %v6187
    %7466 = vmatpush1.bf16.msra.mxu0 %v6186
    %7467 = vmatprep.subr.bf16.mxu0 %v6195
    %7468 = vmatpush1.bf16.msra.mxu0 %v6194
    %7469 = vmatprep.subr.bf16.mxu0 %v6203
    %7470 = vmatpush1.bf16.msra.mxu0 %v6202
    %7471 = vmatprep.subr.bf16.mxu0 %v6211
    %7472 = vmatpush1.bf16.msra.mxu0 %v6210
    %7473 = vmatprep.subr.bf16.mxu0 %v6219
    %7474 = vmatpush1.bf16.msra.mxu0 %v6218
    %7475 = vmatprep.subr.bf16.mxu0 %v6227
    %7476 = vmatpush1.bf16.msra.mxu0 %v6226
    %7477 = vmatprep.subr.bf16.mxu0 %v6235
    %7478 = vmatpush1.bf16.msra.mxu0 %v6234
    %7479 = vmatprep.subr.bf16.mxu0 %v6243
    %7480 = vmatpush1.bf16.msra.mxu0 %v6242
    %7481 = vmatprep.subr.bf16.mxu0 %v6251
    %7482 = vmatpush1.bf16.msra.mxu0 %v6250
    %7483 = vmatprep.subr.bf16.mxu0 %v6259
    %7484 = vmatpush1.bf16.msra.mxu0 %v6258
    %7485 = vmatprep.subr.bf16.mxu0 %v6267
    %7486 = vmatpush1.bf16.msra.mxu0 %v6266
    %7487 = vmatprep.subr.bf16.mxu0 %v6275
    %7488 = vmatpush1.bf16.msra.mxu0 %v6274
    %7489 = vmatprep.subr.bf16.mxu0 %v6283
    %7490 = vmatpush1.bf16.msra.mxu0 %v6282
    %7491 = vmatprep.subr.bf16.mxu0 %v6291
    %7492 = vmatpush1.bf16.msra.mxu0 %v6290
    %7493 = vmatprep.subr.bf16.mxu0 %v6299
    %7494 = vmatpush1.bf16.msra.mxu0 %v6298
    %7495 = vmatprep.subr.bf16.mxu0 %v6307
    %7496 = vmatpush1.bf16.msra.mxu0 %v6306
    %7497 = vmatprep.mubr.bf16.mxu0 %v4505
    %7498 = vmatmul.mubr.bf16.gmra.mrb[0].mxu0 %v4504
    %v7499 = vpop.f32.mrb[0].mxu0
    %v7500 = vadd.f32 %v7457, %v7499
    %v7501 = vpop.f32.mrb[0].mxu0
    %v7502 = vadd.f32 %v7459, %v7501
    %v7503 = vpop.f32.mrb[0].mxu0
    %v7504 = vadd.f32 %v7461, %v7503
    %v7505 = vpop.f32.mrb[0].mxu0
    %v7506 = vadd.f32 %v7463, %v7505
    %7507 = vdwg.mxu0
    %7508 = vmatprep.subr.bf16.mxu0 %v6315
    %7509 = vmatpush1.bf16.msra.mxu0 %v6314
    %7510 = vmatprep.subr.bf16.mxu0 %v6323
    %7511 = vmatpush1.bf16.msra.mxu0 %v6322
    %7512 = vmatprep.subr.bf16.mxu0 %v6331
    %7513 = vmatpush1.bf16.msra.mxu0 %v6330
    %7514 = vmatprep.subr.bf16.mxu0 %v6339
    %7515 = vmatpush1.bf16.msra.mxu0 %v6338
    %7516 = vmatprep.subr.bf16.mxu0 %v6347
    %7517 = vmatpush1.bf16.msra.mxu0 %v6346
    %7518 = vmatprep.subr.bf16.mxu0 %v6355
    %7519 = vmatpush1.bf16.msra.mxu0 %v6354
    %7520 = vmatprep.subr.bf16.mxu0 %v6363
    %7521 = vmatpush1.bf16.msra.mxu0 %v6362
    %7522 = vmatprep.subr.bf16.mxu0 %v6371
    %7523 = vmatpush1.bf16.msra.mxu0 %v6370
    %7524 = vmatprep.subr.bf16.mxu0 %v6379
    %7525 = vmatpush1.bf16.msra.mxu0 %v6378
    %7526 = vmatprep.subr.bf16.mxu0 %v6387
    %7527 = vmatpush1.bf16.msra.mxu0 %v6386
    %7528 = vmatprep.subr.bf16.mxu0 %v6395
    %7529 = vmatpush1.bf16.msra.mxu0 %v6394
    %7530 = vmatprep.subr.bf16.mxu0 %v6403
    %7531 = vmatpush1.bf16.msra.mxu0 %v6402
    %7532 = vmatprep.subr.bf16.mxu0 %v6411
    %7533 = vmatpush1.bf16.msra.mxu0 %v6410
    %7534 = vmatprep.subr.bf16.mxu0 %v6419
    %7535 = vmatpush1.bf16.msra.mxu0 %v6418
    %7536 = vmatprep.subr.bf16.mxu0 %v6427
    %7537 = vmatpush1.bf16.msra.mxu0 %v6426
    %7538 = vmatprep.subr.bf16.mxu0 %v6435
    %7539 = vmatpush1.bf16.msra.mxu0 %v6434
    %7540 = vmatprep.mubr.bf16.mxu0 %v4507
    %7541 = vmatmul.mubr.bf16.gmra.mrb[0].mxu0 %v4506
    %v7542 = vpop.f32.mrb[0].mxu0
    %v7543 = vadd.f32 %v7500, %v7542
    %v7544 = vpop.f32.mrb[0].mxu0
    %v7545 = vadd.f32 %v7502, %v7544
    %v7546 = vpop.f32.mrb[0].mxu0
    %v7547 = vadd.f32 %v7504, %v7546
    %v7548 = vpop.f32.mrb[0].mxu0
    %v7549 = vadd.f32 %v7506, %v7548
    %7550 = vdwg.mxu0
    %7551 = vmatprep.subr.bf16.mxu0 %v6443
    %7552 = vmatpush1.bf16.msra.mxu0 %v6442
    %7553 = vmatprep.subr.bf16.mxu0 %v6451
    %7554 = vmatpush1.bf16.msra.mxu0 %v6450
    %7555 = vmatprep.subr.bf16.mxu0 %v6459
    %7556 = vmatpush1.bf16.msra.mxu0 %v6458
    %7557 = vmatprep.subr.bf16.mxu0 %v6467
    %7558 = vmatpush1.bf16.msra.mxu0 %v6466
    %7559 = vmatprep.subr.bf16.mxu0 %v6475
    %7560 = vmatpush1.bf16.msra.mxu0 %v6474
    %7561 = vmatprep.subr.bf16.mxu0 %v6483
    %7562 = vmatpush1.bf16.msra.mxu0 %v6482
    %7563 = vmatprep.subr.bf16.mxu0 %v6491
    %7564 = vmatpush1.bf16.msra.mxu0 %v6490
    %7565 = vmatprep.subr.bf16.mxu0 %v6499
    %7566 = vmatpush1.bf16.msra.mxu0 %v6498
    %7567 = vmatprep.subr.bf16.mxu0 %v6507
    %7568 = vmatpush1.bf16.msra.mxu0 %v6506
    %7569 = vmatprep.subr.bf16.mxu0 %v6515
    %7570 = vmatpush1.bf16.msra.mxu0 %v6514
    %7571 = vmatprep.subr.bf16.mxu0 %v6523
    %7572 = vmatpush1.bf16.msra.mxu0 %v6522
    %7573 = vmatprep.subr.bf16.mxu0 %v6531
    %7574 = vmatpush1.bf16.msra.mxu0 %v6530
    %7575 = vmatprep.subr.bf16.mxu0 %v6539
    %7576 = vmatpush1.bf16.msra.mxu0 %v6538
    %7577 = vmatprep.subr.bf16.mxu0 %v6547
    %7578 = vmatpush1.bf16.msra.mxu0 %v6546
    %7579 = vmatprep.subr.bf16.mxu0 %v6555
    %7580 = vmatpush1.bf16.msra.mxu0 %v6554
    %7581 = vmatprep.subr.bf16.mxu0 %v6563
    %7582 = vmatpush1.bf16.msra.mxu0 %v6562
    %7583 = vmatprep.mubr.bf16.mxu0 %v4509
    %7584 = vmatmul.mubr.bf16.gmra.mrb[0].mxu0 %v4508
    %v7585 = vpop.f32.mrb[0].mxu0
    %v7586 = vadd.f32 %v7543, %v7585
    %v7587 = vpop.f32.mrb[0].mxu0
    %v7588 = vadd.f32 %v7545, %v7587
    %v7589 = vpop.f32.mrb[0].mxu0
    %v7590 = vadd.f32 %v7547, %v7589
    %v7591 = vpop.f32.mrb[0].mxu0
    %v7592 = vadd.f32 %v7549, %v7591
    %7593 = vdwg.mxu0
    %7594 = vmatprep.subr.bf16.mxu0 %v6061
    %7595 = vmatpush1.bf16.msra.mxu0 %v6060
    %7596 = vmatprep.subr.bf16.mxu0 %v6069
    %7597 = vmatpush1.bf16.msra.mxu0 %v6068
    %7598 = vmatprep.subr.bf16.mxu0 %v6077
    %7599 = vmatpush1.bf16.msra.mxu0 %v6076
    %7600 = vmatprep.subr.bf16.mxu0 %v6085
    %7601 = vmatpush1.bf16.msra.mxu0 %v6084
    %7602 = vmatprep.subr.bf16.mxu0 %v6093
    %7603 = vmatpush1.bf16.msra.mxu0 %v6092
    %7604 = vmatprep.subr.bf16.mxu0 %v6101
    %7605 = vmatpush1.bf16.msra.mxu0 %v6100
    %7606 = vmatprep.subr.bf16.mxu0 %v6109
    %7607 = vmatpush1.bf16.msra.mxu0 %v6108
    %7608 = vmatprep.subr.bf16.mxu0 %v6117
    %7609 = vmatpush1.bf16.msra.mxu0 %v6116
    %7610 = vmatprep.subr.bf16.mxu0 %v6125
    %7611 = vmatpush1.bf16.msra.mxu0 %v6124
    %7612 = vmatprep.subr.bf16.mxu0 %v6133
    %7613 = vmatpush1.bf16.msra.mxu0 %v6132
    %7614 = vmatprep.subr.bf16.mxu0 %v6141
    %7615 = vmatpush1.bf16.msra.mxu0 %v6140
    %7616 = vmatprep.subr.bf16.mxu0 %v6149
    %7617 = vmatpush1.bf16.msra.mxu0 %v6148
    %7618 = vmatprep.subr.bf16.mxu0 %v6157
    %7619 = vmatpush1.bf16.msra.mxu0 %v6156
    %7620 = vmatprep.subr.bf16.mxu0 %v6165
    %7621 = vmatpush1.bf16.msra.mxu0 %v6164
    %7622 = vmatprep.subr.bf16.mxu0 %v6173
    %7623 = vmatpush1.bf16.msra.mxu0 %v6172
    %7624 = vmatprep.subr.bf16.mxu0 %v6181
    %7625 = vmatpush1.bf16.msra.mxu0 %v6180
    %7626 = vmatprep.mubr.bf16.mxu0 %v4503
    %7627 = vmatmul.mubr.bf16.gmra.mrb[0].mxu0 %v4502
    %v7628 = vpop.f32.mrb[0].mxu0
    %v7629 = vadd.f32 %v4470, %v7628
    %v7630 = vpop.f32.mrb[0].mxu0
    %v7631 = vadd.f32 %v4472, %v7630
    %v7632 = vpop.f32.mrb[0].mxu0
    %v7633 = vadd.f32 %v4474, %v7632
    %v7634 = vpop.f32.mrb[0].mxu0
    %v7635 = vadd.f32 %v4476, %v7634
    %7636 = vdwg.mxu0
    %7637 = vmatprep.subr.bf16.mxu0 %v6189
    %7638 = vmatpush1.bf16.msra.mxu0 %v6188
    %7639 = vmatprep.subr.bf16.mxu0 %v6197
    %7640 = vmatpush1.bf16.msra.mxu0 %v6196
    %7641 = vmatprep.subr.bf16.mxu0 %v6205
    %7642 = vmatpush1.bf16.msra.mxu0 %v6204
    %7643 = vmatprep.subr.bf16.mxu0 %v6213
    %7644 = vmatpush1.bf16.msra.mxu0 %v6212
    %7645 = vmatprep.subr.bf16.mxu0 %v6221
    %7646 = vmatpush1.bf16.msra.mxu0 %v6220
    %7647 = vmatprep.subr.bf16.mxu0 %v6229
    %7648 = vmatpush1.bf16.msra.mxu0 %v6228
    %7649 = vmatprep.subr.bf16.mxu0 %v6237
    %7650 = vmatpush1.bf16.msra.mxu0 %v6236
    %7651 = vmatprep.subr.bf16.mxu0 %v6245
    %7652 = vmatpush1.bf16.msra.mxu0 %v6244
    %7653 = vmatprep.subr.bf16.mxu0 %v6253
    %7654 = vmatpush1.bf16.msra.mxu0 %v6252
    %7655 = vmatprep.subr.bf16.mxu0 %v6261
    %7656 = vmatpush1.bf16.msra.mxu0 %v6260
    %7657 = vmatprep.subr.bf16.mxu0 %v6269
    %7658 = vmatpush1.bf16.msra.mxu0 %v6268
    %7659 = vmatprep.subr.bf16.mxu0 %v6277
    %7660 = vmatpush1.bf16.msra.mxu0 %v6276
    %7661 = vmatprep.subr.bf16.mxu0 %v6285
    %7662 = vmatpush1.bf16.msra.mxu0 %v6284
    %7663 = vmatprep.subr.bf16.mxu0 %v6293
    %7664 = vmatpush1.bf16.msra.mxu0 %v6292
    %7665 = vmatprep.subr.bf16.mxu0 %v6301
    %7666 = vmatpush1.bf16.msra.mxu0 %v6300
    %7667 = vmatprep.subr.bf16.mxu0 %v6309
    %7668 = vmatpush1.bf16.msra.mxu0 %v6308
    %7669 = vmatprep.mubr.bf16.mxu0 %v4505
    %7670 = vmatmul.mubr.bf16.gmra.mrb[0].mxu0 %v4504
    %v7671 = vpop.f32.mrb[0].mxu0
    %v7672 = vadd.f32 %v7629, %v7671
    %v7673 = vpop.f32.mrb[0].mxu0
    %v7674 = vadd.f32 %v7631, %v7673
    %v7675 = vpop.f32.mrb[0].mxu0
    %v7676 = vadd.f32 %v7633, %v7675
    %v7677 = vpop.f32.mrb[0].mxu0
    %v7678 = vadd.f32 %v7635, %v7677
    %7679 = vdwg.mxu0
    %7680 = vmatprep.subr.bf16.mxu0 %v6317
    %7681 = vmatpush1.bf16.msra.mxu0 %v6316
    %7682 = vmatprep.subr.bf16.mxu0 %v6325
    %7683 = vmatpush1.bf16.msra.mxu0 %v6324
    %7684 = vmatprep.subr.bf16.mxu0 %v6333
    %7685 = vmatpush1.bf16.msra.mxu0 %v6332
    %7686 = vmatprep.subr.bf16.mxu0 %v6341
    %7687 = vmatpush1.bf16.msra.mxu0 %v6340
    %7688 = vmatprep.subr.bf16.mxu0 %v6349
    %7689 = vmatpush1.bf16.msra.mxu0 %v6348
    %7690 = vmatprep.subr.bf16.mxu0 %v6357
    %7691 = vmatpush1.bf16.msra.mxu0 %v6356
    %7692 = vmatprep.subr.bf16.mxu0 %v6365
    %7693 = vmatpush1.bf16.msra.mxu0 %v6364
    %7694 = vmatprep.subr.bf16.mxu0 %v6373
    %7695 = vmatpush1.bf16.msra.mxu0 %v6372
    %7696 = vmatprep.subr.bf16.mxu0 %v6381
    %7697 = vmatpush1.bf16.msra.mxu0 %v6380
    %7698 = vmatprep.subr.bf16.mxu0 %v6389
    %7699 = vmatpush1.bf16.msra.mxu0 %v6388
    %7700 = vmatprep.subr.bf16.mxu0 %v6397
    %7701 = vmatpush1.bf16.msra.mxu0 %v6396
    %7702 = vmatprep.subr.bf16.mxu0 %v6405
    %7703 = vmatpush1.bf16.msra.mxu0 %v6404
    %7704 = vmatprep.subr.bf16.mxu0 %v6413
    %7705 = vmatpush1.bf16.msra.mxu0 %v6412
    %7706 = vmatprep.subr.bf16.mxu0 %v6421
    %7707 = vmatpush1.bf16.msra.mxu0 %v6420
    %7708 = vmatprep.subr.bf16.mxu0 %v6429
    %7709 = vmatpush1.bf16.msra.mxu0 %v6428
    %7710 = vmatprep.subr.bf16.mxu0 %v6437
    %7711 = vmatpush1.bf16.msra.mxu0 %v6436
    %7712 = vmatprep.mubr.bf16.mxu0 %v4507
    %7713 = vmatmul.mubr.bf16.gmra.mrb[0].mxu0 %v4506
    %v7714 = vpop.f32.mrb[0].mxu0
    %v7715 = vadd.f32 %v7672, %v7714
    %v7716 = vpop.f32.mrb[0].mxu0
    %v7717 = vadd.f32 %v7674, %v7716
    %v7718 = vpop.f32.mrb[0].mxu0
    %v7719 = vadd.f32 %v7676, %v7718
    %v7720 = vpop.f32.mrb[0].mxu0
    %v7721 = vadd.f32 %v7678, %v7720
    %7722 = vdwg.mxu0
    %7723 = vmatprep.subr.bf16.mxu0 %v6445
    %7724 = vmatpush1.bf16.msra.mxu0 %v6444
    %7725 = vmatprep.subr.bf16.mxu0 %v6453
    %7726 = vmatpush1.bf16.msra.mxu0 %v6452
    %7727 = vmatprep.subr.bf16.mxu0 %v6461
    %7728 = vmatpush1.bf16.msra.mxu0 %v6460
    %7729 = vmatprep.subr.bf16.mxu0 %v6469
    %7730 = vmatpush1.bf16.msra.mxu0 %v6468
    %7731 = vmatprep.subr.bf16.mxu0 %v6477
    %7732 = vmatpush1.bf16.msra.mxu0 %v6476
    %7733 = vmatprep.subr.bf16.mxu0 %v6485
    %7734 = vmatpush1.bf16.msra.mxu0 %v6484
    %7735 = vmatprep.subr.bf16.mxu0 %v6493
    %7736 = vmatpush1.bf16.msra.mxu0 %v6492
    %7737 = vmatprep.subr.bf16.mxu0 %v6501
    %7738 = vmatpush1.bf16.msra.mxu0 %v6500
    %7739 = vmatprep.subr.bf16.mxu0 %v6509
    %7740 = vmatpush1.bf16.msra.mxu0 %v6508
    %7741 = vmatprep.subr.bf16.mxu0 %v6517
    %7742 = vmatpush1.bf16.msra.mxu0 %v6516
    %7743 = vmatprep.subr.bf16.mxu0 %v6525
    %7744 = vmatpush1.bf16.msra.mxu0 %v6524
    %7745 = vmatprep.subr.bf16.mxu0 %v6533
    %7746 = vmatpush1.bf16.msra.mxu0 %v6532
    %7747 = vmatprep.subr.bf16.mxu0 %v6541
    %7748 = vmatpush1.bf16.msra.mxu0 %v6540
    %7749 = vmatprep.subr.bf16.mxu0 %v6549
    %7750 = vmatpush1.bf16.msra.mxu0 %v6548
    %7751 = vmatprep.subr.bf16.mxu0 %v6557
    %7752 = vmatpush1.bf16.msra.mxu0 %v6556
    %7753 = vmatprep.subr.bf16.mxu0 %v6565
    %7754 = vmatpush1.bf16.msra.mxu0 %v6564
    %7755 = vmatprep.mubr.bf16.mxu0 %v4509
    %7756 = vmatmul.mubr.bf16.gmra.mrb[0].mxu0 %v4508
    %v7757 = vpop.f32.mrb[0].mxu0
    %v7758 = vadd.f32 %v7715, %v7757
    %v7759 = vpop.f32.mrb[0].mxu0
    %v7760 = vadd.f32 %v7717, %v7759
    %v7761 = vpop.f32.mrb[0].mxu0
    %v7762 = vadd.f32 %v7719, %v7761
    %v7763 = vpop.f32.mrb[0].mxu0
    %v7764 = vadd.f32 %v7721, %v7763
    %7765 = vdwg.mxu0
    %v7766 = vld [vmem:[#allocation10] sm:$0xff]
    %v7768 = vlaneseq
    %v7769 = vshrl.u32 %v7768, 7
    %v7770 = vsub.s32 0, %v7769
    %v7771 = vrot.slane %v7766, %v7770
    %v7772 = vlaneseq
    %v7773 = vshrl.u32 %v7772, 7
    %v7774 = vsub.s32 1, %v7773
    %v7775 = vrot.slane %v7766, %v7774
    %v7776 = vlaneseq
    %v7777 = vshrl.u32 %v7776, 7
    %v7778 = vsub.s32 2, %v7777
    %v7779 = vrot.slane %v7766, %v7778
    %v7780 = vlaneseq
    %v7781 = vshrl.u32 %v7780, 7
    %v7782 = vsub.s32 3, %v7781
    %v7783 = vrot.slane %v7766, %v7782
    %v7784 = vlaneseq
    %v7785 = vshrl.u32 %v7784, 7
    %v7786 = vsub.s32 4, %v7785
    %v7787 = vrot.slane %v7766, %v7786
    %v7788 = vlaneseq
    %v7789 = vshrl.u32 %v7788, 7
    %v7790 = vsub.s32 5, %v7789
    %v7791 = vrot.slane %v7766, %v7790
    %v7792 = vlaneseq
    %v7793 = vshrl.u32 %v7792, 7
    %v7794 = vsub.s32 6, %v7793
    %v7795 = vrot.slane %v7766, %v7794
    %v7796 = vlaneseq
    %v7797 = vshrl.u32 %v7796, 7
    %v7798 = vsub.s32 7, %v7797
    %v7799 = vrot.slane %v7766, %v7798
    %v7808 = vadd.f32 %v7242, %v7771
    %v7809 = vadd.f32 %v7244, %v7775
    %v7810 = vadd.f32 %v7414, %v7779
    %v7811 = vadd.f32 %v7416, %v7783
    %v7812 = vadd.f32 %v7586, %v7787
    %v7813 = vadd.f32 %v7588, %v7791
    %v7814 = vadd.f32 %v7758, %v7795
    %v7815 = vadd.f32 %v7760, %v7799
    %v7816 = vadd.f32 %v7246, %v7771
    %v7817 = vadd.f32 %v7248, %v7775
    %v7818 = vadd.f32 %v7418, %v7779
    %v7819 = vadd.f32 %v7420, %v7783
    %v7820 = vadd.f32 %v7590, %v7787
    %v7821 = vadd.f32 %v7592, %v7791
    %v7822 = vadd.f32 %v7762, %v7795
    %v7823 = vadd.f32 %v7764, %v7799
    %v7824 = vmax.f32 %v7808, 0.0
    %v7825 = vmax.f32 %v7809, 0.0
    %v7826 = vmax.f32 %v7810, 0.0
    %v7827 = vmax.f32 %v7811, 0.0
    %v7828 = vmax.f32 %v7812, 0.0
    %v7829 = vmax.f32 %v7813, 0.0
    %v7830 = vmax.f32 %v7814, 0.0
    %v7831 = vmax.f32 %v7815, 0.0
    %v7832 = vmax.f32 %v7816, 0.0
    %v7833 = vmax.f32 %v7817, 0.0
    %v7834 = vmax.f32 %v7818, 0.0
    %v7835 = vmax.f32 %v7819, 0.0
    %v7836 = vmax.f32 %v7820, 0.0
    %v7837 = vmax.f32 %v7821, 0.0
    %v7838 = vmax.f32 %v7822, 0.0
    %v7839 = vmax.f32 %v7823, 0.0
    %v7840 = vpack.c.bf16 %v7832, %v7824
    %v7841 = vpack.c.bf16 %v7833, %v7825
    %v7842 = vpack.c.bf16 %v7834, %v7826
    %v7843 = vpack.c.bf16 %v7835, %v7827
    %v7844 = vpack.c.bf16 %v7836, %v7828
    %v7845 = vpack.c.bf16 %v7837, %v7829
    %v7846 = vpack.c.bf16 %v7838, %v7830
    %v7847 = vpack.c.bf16 %v7839, %v7831
    %v7848 = vld [vmem:[#allocation11] sm:$0xff]
    %v7849 = vld [vmem:[#allocation11 + $0x8] sm:$0xff]
    %v7850 = vld [vmem:[#allocation11 + $0x10] sm:$0xff]
    %v7851 = vld [vmem:[#allocation11 + $0x18] sm:$0xff]
    %v7852 = vld [vmem:[#allocation11 + $0x20] sm:$0xff]
    %v7853 = vld [vmem:[#allocation11 + $0x28] sm:$0xff]
    %v7854 = vld [vmem:[#allocation11 + $0x30] sm:$0xff]
    %v7855 = vld [vmem:[#allocation11 + $0x38] sm:$0xff]
    %v7856 = vld [vmem:[#allocation11 + $0x40] sm:$0xff]
    %v7857 = vld [vmem:[#allocation11 + $0x48] sm:$0xff]
    %v7858 = vld [vmem:[#allocation11 + $0x50] sm:$0xff]
    %v7859 = vld [vmem:[#allocation11 + $0x58] sm:$0xff]
    %v7860 = vld [vmem:[#allocation11 + $0x60] sm:$0xff]
    %v7861 = vld [vmem:[#allocation11 + $0x68] sm:$0xff]
    %v7862 = vld [vmem:[#allocation11 + $0x70] sm:$0xff]
    %v7863 = vld [vmem:[#allocation11 + $0x78] sm:$0xff]
    %v7864 = vld [vmem:[#allocation11 + $0x80] sm:$0xff]
    %v7865 = vld [vmem:[#allocation11 + $0x88] sm:$0xff]
    %v7866 = vld [vmem:[#allocation11 + $0x90] sm:$0xff]
    %v7867 = vld [vmem:[#allocation11 + $0x98] sm:$0xff]
    %v7868 = vld [vmem:[#allocation11 + $0xa0] sm:$0xff]
    %v7869 = vld [vmem:[#allocation11 + $0xa8] sm:$0xff]
    %v7870 = vld [vmem:[#allocation11 + $0xb0] sm:$0xff]
    %v7871 = vld [vmem:[#allocation11 + $0xb8] sm:$0xff]
    %v7872 = vld [vmem:[#allocation11 + $0xc0] sm:$0xff]
    %v7873 = vld [vmem:[#allocation11 + $0xc8] sm:$0xff]
    %v7874 = vld [vmem:[#allocation11 + $0xd0] sm:$0xff]
    %v7875 = vld [vmem:[#allocation11 + $0xd8] sm:$0xff]
    %v7876 = vld [vmem:[#allocation11 + $0xe0] sm:$0xff]
    %v7877 = vld [vmem:[#allocation11 + $0xe8] sm:$0xff]
    %v7878 = vld [vmem:[#allocation11 + $0xf0] sm:$0xff]
    %v7879 = vld [vmem:[#allocation11 + $0xf8] sm:$0xff]
    %v7880 = vld [vmem:[#allocation11 + $0x100] sm:$0xff]
    %v7881 = vld [vmem:[#allocation11 + $0x108] sm:$0xff]
    %v7882 = vld [vmem:[#allocation11 + $0x110] sm:$0xff]
    %v7883 = vld [vmem:[#allocation11 + $0x118] sm:$0xff]
    %v7884 = vld [vmem:[#allocation11 + $0x120] sm:$0xff]
    %v7885 = vld [vmem:[#allocation11 + $0x128] sm:$0xff]
    %v7886 = vld [vmem:[#allocation11 + $0x130] sm:$0xff]
    %v7887 = vld [vmem:[#allocation11 + $0x138] sm:$0xff]
    %v7888 = vld [vmem:[#allocation11 + $0x140] sm:$0xff]
    %v7889 = vld [vmem:[#allocation11 + $0x148] sm:$0xff]
    %v7890 = vld [vmem:[#allocation11 + $0x150] sm:$0xff]
    %v7891 = vld [vmem:[#allocation11 + $0x158] sm:$0xff]
    %v7892 = vld [vmem:[#allocation11 + $0x160] sm:$0xff]
    %v7893 = vld [vmem:[#allocation11 + $0x168] sm:$0xff]
    %v7894 = vld [vmem:[#allocation11 + $0x170] sm:$0xff]
    %v7895 = vld [vmem:[#allocation11 + $0x178] sm:$0xff]
    %v7896 = vld [vmem:[#allocation11 + $0x180] sm:$0xff]
    %v7897 = vld [vmem:[#allocation11 + $0x188] sm:$0xff]
    %v7898 = vld [vmem:[#allocation11 + $0x190] sm:$0xff]
    %v7899 = vld [vmem:[#allocation11 + $0x198] sm:$0xff]
    %v7900 = vld [vmem:[#allocation11 + $0x1a0] sm:$0xff]
    %v7901 = vld [vmem:[#allocation11 + $0x1a8] sm:$0xff]
    %v7902 = vld [vmem:[#allocation11 + $0x1b0] sm:$0xff]
    %v7903 = vld [vmem:[#allocation11 + $0x1b8] sm:$0xff]
    %v7904 = vld [vmem:[#allocation11 + $0x1c0] sm:$0xff]
    %v7905 = vld [vmem:[#allocation11 + $0x1c8] sm:$0xff]
    %v7906 = vld [vmem:[#allocation11 + $0x1d0] sm:$0xff]
    %v7907 = vld [vmem:[#allocation11 + $0x1d8] sm:$0xff]
    %v7908 = vld [vmem:[#allocation11 + $0x1e0] sm:$0xff]
    %v7909 = vld [vmem:[#allocation11 + $0x1e8] sm:$0xff]
    %v7910 = vld [vmem:[#allocation11 + $0x1f0] sm:$0xff]
    %v7911 = vld [vmem:[#allocation11 + $0x1f8] sm:$0xff]
    %v7912 = vld [vmem:[#allocation11 + $0x200] sm:$0xff]
    %v7913 = vld [vmem:[#allocation11 + $0x208] sm:$0xff]
    %v7914 = vld [vmem:[#allocation11 + $0x210] sm:$0xff]
    %v7915 = vld [vmem:[#allocation11 + $0x218] sm:$0xff]
    %v7916 = vld [vmem:[#allocation11 + $0x220] sm:$0xff]
    %v7917 = vld [vmem:[#allocation11 + $0x228] sm:$0xff]
    %v7918 = vld [vmem:[#allocation11 + $0x230] sm:$0xff]
    %v7919 = vld [vmem:[#allocation11 + $0x238] sm:$0xff]
    %v7920 = vld [vmem:[#allocation11 + $0x240] sm:$0xff]
    %v7921 = vld [vmem:[#allocation11 + $0x248] sm:$0xff]
    %v7922 = vld [vmem:[#allocation11 + $0x250] sm:$0xff]
    %v7923 = vld [vmem:[#allocation11 + $0x258] sm:$0xff]
    %v7924 = vld [vmem:[#allocation11 + $0x260] sm:$0xff]
    %v7925 = vld [vmem:[#allocation11 + $0x268] sm:$0xff]
    %v7926 = vld [vmem:[#allocation11 + $0x270] sm:$0xff]
    %v7927 = vld [vmem:[#allocation11 + $0x278] sm:$0xff]
    %v7928 = vld [vmem:[#allocation11 + $0x280] sm:$0xff]
    %v7929 = vld [vmem:[#allocation11 + $0x288] sm:$0xff]
    %v7930 = vld [vmem:[#allocation11 + $0x290] sm:$0xff]
    %v7931 = vld [vmem:[#allocation11 + $0x298] sm:$0xff]
    %v7932 = vld [vmem:[#allocation11 + $0x2a0] sm:$0xff]
    %v7933 = vld [vmem:[#allocation11 + $0x2a8] sm:$0xff]
    %v7934 = vld [vmem:[#allocation11 + $0x2b0] sm:$0xff]
    %v7935 = vld [vmem:[#allocation11 + $0x2b8] sm:$0xff]
    %v7936 = vld [vmem:[#allocation11 + $0x2c0] sm:$0xff]
    %v7937 = vld [vmem:[#allocation11 + $0x2c8] sm:$0xff]
    %v7938 = vld [vmem:[#allocation11 + $0x2d0] sm:$0xff]
    %v7939 = vld [vmem:[#allocation11 + $0x2d8] sm:$0xff]
    %v7940 = vld [vmem:[#allocation11 + $0x2e0] sm:$0xff]
    %v7941 = vld [vmem:[#allocation11 + $0x2e8] sm:$0xff]
    %v7942 = vld [vmem:[#allocation11 + $0x2f0] sm:$0xff]
    %v7943 = vld [vmem:[#allocation11 + $0x2f8] sm:$0xff]
    %v7944 = vld [vmem:[#allocation11 + $0x300] sm:$0xff]
    %v7945 = vld [vmem:[#allocation11 + $0x308] sm:$0xff]
    %v7946 = vld [vmem:[#allocation11 + $0x310] sm:$0xff]
    %v7947 = vld [vmem:[#allocation11 + $0x318] sm:$0xff]
    %v7948 = vld [vmem:[#allocation11 + $0x320] sm:$0xff]
    %v7949 = vld [vmem:[#allocation11 + $0x328] sm:$0xff]
    %v7950 = vld [vmem:[#allocation11 + $0x330] sm:$0xff]
    %v7951 = vld [vmem:[#allocation11 + $0x338] sm:$0xff]
    %v7952 = vld [vmem:[#allocation11 + $0x340] sm:$0xff]
    %v7953 = vld [vmem:[#allocation11 + $0x348] sm:$0xff]
    %v7954 = vld [vmem:[#allocation11 + $0x350] sm:$0xff]
    %v7955 = vld [vmem:[#allocation11 + $0x358] sm:$0xff]
    %v7956 = vld [vmem:[#allocation11 + $0x360] sm:$0xff]
    %v7957 = vld [vmem:[#allocation11 + $0x368] sm:$0xff]
    %v7958 = vld [vmem:[#allocation11 + $0x370] sm:$0xff]
    %v7959 = vld [vmem:[#allocation11 + $0x378] sm:$0xff]
    %v7960 = vld [vmem:[#allocation11 + $0x380] sm:$0xff]
    %v7961 = vld [vmem:[#allocation11 + $0x388] sm:$0xff]
    %v7962 = vld [vmem:[#allocation11 + $0x390] sm:$0xff]
    %v7963 = vld [vmem:[#allocation11 + $0x398] sm:$0xff]
    %v7964 = vld [vmem:[#allocation11 + $0x3a0] sm:$0xff]
    %v7965 = vld [vmem:[#allocation11 + $0x3a8] sm:$0xff]
    %v7966 = vld [vmem:[#allocation11 + $0x3b0] sm:$0xff]
    %v7967 = vld [vmem:[#allocation11 + $0x3b8] sm:$0xff]
    %v7968 = vld [vmem:[#allocation11 + $0x3c0] sm:$0xff]
    %v7969 = vld [vmem:[#allocation11 + $0x3c8] sm:$0xff]
    %v7970 = vld [vmem:[#allocation11 + $0x3d0] sm:$0xff]
    %v7971 = vld [vmem:[#allocation11 + $0x3d8] sm:$0xff]
    %v7972 = vld [vmem:[#allocation11 + $0x3e0] sm:$0xff]
    %v7973 = vld [vmem:[#allocation11 + $0x3e8] sm:$0xff]
    %v7974 = vld [vmem:[#allocation11 + $0x3f0] sm:$0xff]
    %v7975 = vld [vmem:[#allocation11 + $0x3f8] sm:$0xff]
    %v7976 = vld [vmem:[#allocation11 + $0x400] sm:$0xff]
    %v7977 = vld [vmem:[#allocation11 + $0x408] sm:$0xff]
    %v7978 = vld [vmem:[#allocation11 + $0x410] sm:$0xff]
    %v7979 = vld [vmem:[#allocation11 + $0x418] sm:$0xff]
    %v7980 = vld [vmem:[#allocation11 + $0x420] sm:$0xff]
    %v7981 = vld [vmem:[#allocation11 + $0x428] sm:$0xff]
    %v7982 = vld [vmem:[#allocation11 + $0x430] sm:$0xff]
    %v7983 = vld [vmem:[#allocation11 + $0x438] sm:$0xff]
    %v7984 = vld [vmem:[#allocation11 + $0x440] sm:$0xff]
    %v7985 = vld [vmem:[#allocation11 + $0x448] sm:$0xff]
    %v7986 = vld [vmem:[#allocation11 + $0x450] sm:$0xff]
    %v7987 = vld [vmem:[#allocation11 + $0x458] sm:$0xff]
    %v7988 = vld [vmem:[#allocation11 + $0x460] sm:$0xff]
    %v7989 = vld [vmem:[#allocation11 + $0x468] sm:$0xff]
    %v7990 = vld [vmem:[#allocation11 + $0x470] sm:$0xff]
    %v7991 = vld [vmem:[#allocation11 + $0x478] sm:$0xff]
    %v7992 = vld [vmem:[#allocation11 + $0x480] sm:$0xff]
    %v7993 = vld [vmem:[#allocation11 + $0x488] sm:$0xff]
    %v7994 = vld [vmem:[#allocation11 + $0x490] sm:$0xff]
    %v7995 = vld [vmem:[#allocation11 + $0x498] sm:$0xff]
    %v7996 = vld [vmem:[#allocation11 + $0x4a0] sm:$0xff]
    %v7997 = vld [vmem:[#allocation11 + $0x4a8] sm:$0xff]
    %v7998 = vld [vmem:[#allocation11 + $0x4b0] sm:$0xff]
    %v7999 = vld [vmem:[#allocation11 + $0x4b8] sm:$0xff]
    %v8000 = vld [vmem:[#allocation11 + $0x4c0] sm:$0xff]
    %v8001 = vld [vmem:[#allocation11 + $0x4c8] sm:$0xff]
    %v8002 = vld [vmem:[#allocation11 + $0x4d0] sm:$0xff]
    %v8003 = vld [vmem:[#allocation11 + $0x4d8] sm:$0xff]
    %v8004 = vld [vmem:[#allocation11 + $0x4e0] sm:$0xff]
    %v8005 = vld [vmem:[#allocation11 + $0x4e8] sm:$0xff]
    %v8006 = vld [vmem:[#allocation11 + $0x4f0] sm:$0xff]
    %v8007 = vld [vmem:[#allocation11 + $0x4f8] sm:$0xff]
    %v8008 = vld [vmem:[#allocation11 + $0x500] sm:$0xff]
    %v8009 = vld [vmem:[#allocation11 + $0x508] sm:$0xff]
    %v8010 = vld [vmem:[#allocation11 + $0x510] sm:$0xff]
    %v8011 = vld [vmem:[#allocation11 + $0x518] sm:$0xff]
    %v8012 = vld [vmem:[#allocation11 + $0x520] sm:$0xff]
    %v8013 = vld [vmem:[#allocation11 + $0x528] sm:$0xff]
    %v8014 = vld [vmem:[#allocation11 + $0x530] sm:$0xff]
    %v8015 = vld [vmem:[#allocation11 + $0x538] sm:$0xff]
    %v8016 = vld [vmem:[#allocation11 + $0x540] sm:$0xff]
    %v8017 = vld [vmem:[#allocation11 + $0x548] sm:$0xff]
    %v8018 = vld [vmem:[#allocation11 + $0x550] sm:$0xff]
    %v8019 = vld [vmem:[#allocation11 + $0x558] sm:$0xff]
    %v8020 = vld [vmem:[#allocation11 + $0x560] sm:$0xff]
    %v8021 = vld [vmem:[#allocation11 + $0x568] sm:$0xff]
    %v8022 = vld [vmem:[#allocation11 + $0x570] sm:$0xff]
    %v8023 = vld [vmem:[#allocation11 + $0x578] sm:$0xff]
    %v8024 = vld [vmem:[#allocation11 + $0x580] sm:$0xff]
    %v8025 = vld [vmem:[#allocation11 + $0x588] sm:$0xff]
    %v8026 = vld [vmem:[#allocation11 + $0x590] sm:$0xff]
    %v8027 = vld [vmem:[#allocation11 + $0x598] sm:$0xff]
    %v8028 = vld [vmem:[#allocation11 + $0x5a0] sm:$0xff]
    %v8029 = vld [vmem:[#allocation11 + $0x5a8] sm:$0xff]
    %v8030 = vld [vmem:[#allocation11 + $0x5b0] sm:$0xff]
    %v8031 = vld [vmem:[#allocation11 + $0x5b8] sm:$0xff]
    %v8032 = vld [vmem:[#allocation11 + $0x5c0] sm:$0xff]
    %v8033 = vld [vmem:[#allocation11 + $0x5c8] sm:$0xff]
    %v8034 = vld [vmem:[#allocation11 + $0x5d0] sm:$0xff]
    %v8035 = vld [vmem:[#allocation11 + $0x5d8] sm:$0xff]
    %v8036 = vld [vmem:[#allocation11 + $0x5e0] sm:$0xff]
    %v8037 = vld [vmem:[#allocation11 + $0x5e8] sm:$0xff]
    %v8038 = vld [vmem:[#allocation11 + $0x5f0] sm:$0xff]
    %v8039 = vld [vmem:[#allocation11 + $0x5f8] sm:$0xff]
    %v8040 = vld [vmem:[#allocation11 + $0x600] sm:$0xff]
    %v8041 = vld [vmem:[#allocation11 + $0x608] sm:$0xff]
    %v8042 = vld [vmem:[#allocation11 + $0x610] sm:$0xff]
    %v8043 = vld [vmem:[#allocation11 + $0x618] sm:$0xff]
    %v8044 = vld [vmem:[#allocation11 + $0x620] sm:$0xff]
    %v8045 = vld [vmem:[#allocation11 + $0x628] sm:$0xff]
    %v8046 = vld [vmem:[#allocation11 + $0x630] sm:$0xff]
    %v8047 = vld [vmem:[#allocation11 + $0x638] sm:$0xff]
    %v8048 = vld [vmem:[#allocation11 + $0x640] sm:$0xff]
    %v8049 = vld [vmem:[#allocation11 + $0x648] sm:$0xff]
    %v8050 = vld [vmem:[#allocation11 + $0x650] sm:$0xff]
    %v8051 = vld [vmem:[#allocation11 + $0x658] sm:$0xff]
    %v8052 = vld [vmem:[#allocation11 + $0x660] sm:$0xff]
    %v8053 = vld [vmem:[#allocation11 + $0x668] sm:$0xff]
    %v8054 = vld [vmem:[#allocation11 + $0x670] sm:$0xff]
    %v8055 = vld [vmem:[#allocation11 + $0x678] sm:$0xff]
    %v8056 = vld [vmem:[#allocation11 + $0x680] sm:$0xff]
    %v8057 = vld [vmem:[#allocation11 + $0x688] sm:$0xff]
    %v8058 = vld [vmem:[#allocation11 + $0x690] sm:$0xff]
    %v8059 = vld [vmem:[#allocation11 + $0x698] sm:$0xff]
    %v8060 = vld [vmem:[#allocation11 + $0x6a0] sm:$0xff]
    %v8061 = vld [vmem:[#allocation11 + $0x6a8] sm:$0xff]
    %v8062 = vld [vmem:[#allocation11 + $0x6b0] sm:$0xff]
    %v8063 = vld [vmem:[#allocation11 + $0x6b8] sm:$0xff]
    %v8064 = vld [vmem:[#allocation11 + $0x6c0] sm:$0xff]
    %v8065 = vld [vmem:[#allocation11 + $0x6c8] sm:$0xff]
    %v8066 = vld [vmem:[#allocation11 + $0x6d0] sm:$0xff]
    %v8067 = vld [vmem:[#allocation11 + $0x6d8] sm:$0xff]
    %v8068 = vld [vmem:[#allocation11 + $0x6e0] sm:$0xff]
    %v8069 = vld [vmem:[#allocation11 + $0x6e8] sm:$0xff]
    %v8070 = vld [vmem:[#allocation11 + $0x6f0] sm:$0xff]
    %v8071 = vld [vmem:[#allocation11 + $0x6f8] sm:$0xff]
    %v8072 = vld [vmem:[#allocation11 + $0x700] sm:$0xff]
    %v8073 = vld [vmem:[#allocation11 + $0x708] sm:$0xff]
    %v8074 = vld [vmem:[#allocation11 + $0x710] sm:$0xff]
    %v8075 = vld [vmem:[#allocation11 + $0x718] sm:$0xff]
    %v8076 = vld [vmem:[#allocation11 + $0x720] sm:$0xff]
    %v8077 = vld [vmem:[#allocation11 + $0x728] sm:$0xff]
    %v8078 = vld [vmem:[#allocation11 + $0x730] sm:$0xff]
    %v8079 = vld [vmem:[#allocation11 + $0x738] sm:$0xff]
    %v8080 = vld [vmem:[#allocation11 + $0x740] sm:$0xff]
    %v8081 = vld [vmem:[#allocation11 + $0x748] sm:$0xff]
    %v8082 = vld [vmem:[#allocation11 + $0x750] sm:$0xff]
    %v8083 = vld [vmem:[#allocation11 + $0x758] sm:$0xff]
    %v8084 = vld [vmem:[#allocation11 + $0x760] sm:$0xff]
    %v8085 = vld [vmem:[#allocation11 + $0x768] sm:$0xff]
    %v8086 = vld [vmem:[#allocation11 + $0x770] sm:$0xff]
    %v8087 = vld [vmem:[#allocation11 + $0x778] sm:$0xff]
    %v8088 = vld [vmem:[#allocation11 + $0x780] sm:$0xff]
    %v8089 = vld [vmem:[#allocation11 + $0x788] sm:$0xff]
    %v8090 = vld [vmem:[#allocation11 + $0x790] sm:$0xff]
    %v8091 = vld [vmem:[#allocation11 + $0x798] sm:$0xff]
    %v8092 = vld [vmem:[#allocation11 + $0x7a0] sm:$0xff]
    %v8093 = vld [vmem:[#allocation11 + $0x7a8] sm:$0xff]
    %v8094 = vld [vmem:[#allocation11 + $0x7b0] sm:$0xff]
    %v8095 = vld [vmem:[#allocation11 + $0x7b8] sm:$0xff]
    %v8096 = vld [vmem:[#allocation11 + $0x7c0] sm:$0xff]
    %v8097 = vld [vmem:[#allocation11 + $0x7c8] sm:$0xff]
    %v8098 = vld [vmem:[#allocation11 + $0x7d0] sm:$0xff]
    %v8099 = vld [vmem:[#allocation11 + $0x7d8] sm:$0xff]
    %v8100 = vld [vmem:[#allocation11 + $0x7e0] sm:$0xff]
    %v8101 = vld [vmem:[#allocation11 + $0x7e8] sm:$0xff]
    %v8102 = vld [vmem:[#allocation11 + $0x7f0] sm:$0xff]
    %v8103 = vld [vmem:[#allocation11 + $0x7f8] sm:$0xff]
    %v8104 = vld [vmem:[#allocation11 + $0x800] sm:$0xff]
    %v8105 = vld [vmem:[#allocation11 + $0x808] sm:$0xff]
    %v8106 = vld [vmem:[#allocation11 + $0x810] sm:$0xff]
    %v8107 = vld [vmem:[#allocation11 + $0x818] sm:$0xff]
    %v8108 = vld [vmem:[#allocation11 + $0x820] sm:$0xff]
    %v8109 = vld [vmem:[#allocation11 + $0x828] sm:$0xff]
    %v8110 = vld [vmem:[#allocation11 + $0x830] sm:$0xff]
    %v8111 = vld [vmem:[#allocation11 + $0x838] sm:$0xff]
    %v8112 = vld [vmem:[#allocation11 + $0x840] sm:$0xff]
    %v8113 = vld [vmem:[#allocation11 + $0x848] sm:$0xff]
    %v8114 = vld [vmem:[#allocation11 + $0x850] sm:$0xff]
    %v8115 = vld [vmem:[#allocation11 + $0x858] sm:$0xff]
    %v8116 = vld [vmem:[#allocation11 + $0x860] sm:$0xff]
    %v8117 = vld [vmem:[#allocation11 + $0x868] sm:$0xff]
    %v8118 = vld [vmem:[#allocation11 + $0x870] sm:$0xff]
    %v8119 = vld [vmem:[#allocation11 + $0x878] sm:$0xff]
    %v8120 = vld [vmem:[#allocation11 + $0x880] sm:$0xff]
    %v8121 = vld [vmem:[#allocation11 + $0x888] sm:$0xff]
    %v8122 = vld [vmem:[#allocation11 + $0x890] sm:$0xff]
    %v8123 = vld [vmem:[#allocation11 + $0x898] sm:$0xff]
    %v8124 = vld [vmem:[#allocation11 + $0x8a0] sm:$0xff]
    %v8125 = vld [vmem:[#allocation11 + $0x8a8] sm:$0xff]
    %v8126 = vld [vmem:[#allocation11 + $0x8b0] sm:$0xff]
    %v8127 = vld [vmem:[#allocation11 + $0x8b8] sm:$0xff]
    %v8128 = vld [vmem:[#allocation11 + $0x8c0] sm:$0xff]
    %v8129 = vld [vmem:[#allocation11 + $0x8c8] sm:$0xff]
    %v8130 = vld [vmem:[#allocation11 + $0x8d0] sm:$0xff]
    %v8131 = vld [vmem:[#allocation11 + $0x8d8] sm:$0xff]
    %v8132 = vld [vmem:[#allocation11 + $0x8e0] sm:$0xff]
    %v8133 = vld [vmem:[#allocation11 + $0x8e8] sm:$0xff]
    %v8134 = vld [vmem:[#allocation11 + $0x8f0] sm:$0xff]
    %v8135 = vld [vmem:[#allocation11 + $0x8f8] sm:$0xff]
    %v8136 = vld [vmem:[#allocation11 + $0x900] sm:$0xff]
    %v8137 = vld [vmem:[#allocation11 + $0x908] sm:$0xff]
    %v8138 = vld [vmem:[#allocation11 + $0x910] sm:$0xff]
    %v8139 = vld [vmem:[#allocation11 + $0x918] sm:$0xff]
    %v8140 = vld [vmem:[#allocation11 + $0x920] sm:$0xff]
    %v8141 = vld [vmem:[#allocation11 + $0x928] sm:$0xff]
    %v8142 = vld [vmem:[#allocation11 + $0x930] sm:$0xff]
    %v8143 = vld [vmem:[#allocation11 + $0x938] sm:$0xff]
    %v8144 = vld [vmem:[#allocation11 + $0x940] sm:$0xff]
    %v8145 = vld [vmem:[#allocation11 + $0x948] sm:$0xff]
    %v8146 = vld [vmem:[#allocation11 + $0x950] sm:$0xff]
    %v8147 = vld [vmem:[#allocation11 + $0x958] sm:$0xff]
    %v8148 = vld [vmem:[#allocation11 + $0x960] sm:$0xff]
    %v8149 = vld [vmem:[#allocation11 + $0x968] sm:$0xff]
    %v8150 = vld [vmem:[#allocation11 + $0x970] sm:$0xff]
    %v8151 = vld [vmem:[#allocation11 + $0x978] sm:$0xff]
    %v8152 = vld [vmem:[#allocation11 + $0x980] sm:$0xff]
    %v8153 = vld [vmem:[#allocation11 + $0x988] sm:$0xff]
    %v8154 = vld [vmem:[#allocation11 + $0x990] sm:$0xff]
    %v8155 = vld [vmem:[#allocation11 + $0x998] sm:$0xff]
    %v8156 = vld [vmem:[#allocation11 + $0x9a0] sm:$0xff]
    %v8157 = vld [vmem:[#allocation11 + $0x9a8] sm:$0xff]
    %v8158 = vld [vmem:[#allocation11 + $0x9b0] sm:$0xff]
    %v8159 = vld [vmem:[#allocation11 + $0x9b8] sm:$0xff]
    %v8160 = vld [vmem:[#allocation11 + $0x9c0] sm:$0xff]
    %v8161 = vld [vmem:[#allocation11 + $0x9c8] sm:$0xff]
    %v8162 = vld [vmem:[#allocation11 + $0x9d0] sm:$0xff]
    %v8163 = vld [vmem:[#allocation11 + $0x9d8] sm:$0xff]
    %v8164 = vld [vmem:[#allocation11 + $0x9e0] sm:$0xff]
    %v8165 = vld [vmem:[#allocation11 + $0x9e8] sm:$0xff]
    %v8166 = vld [vmem:[#allocation11 + $0x9f0] sm:$0xff]
    %v8167 = vld [vmem:[#allocation11 + $0x9f8] sm:$0xff]
    %v8168 = vld [vmem:[#allocation11 + $0xa00] sm:$0xff]
    %v8169 = vld [vmem:[#allocation11 + $0xa08] sm:$0xff]
    %v8170 = vld [vmem:[#allocation11 + $0xa10] sm:$0xff]
    %v8171 = vld [vmem:[#allocation11 + $0xa18] sm:$0xff]
    %v8172 = vld [vmem:[#allocation11 + $0xa20] sm:$0xff]
    %v8173 = vld [vmem:[#allocation11 + $0xa28] sm:$0xff]
    %v8174 = vld [vmem:[#allocation11 + $0xa30] sm:$0xff]
    %v8175 = vld [vmem:[#allocation11 + $0xa38] sm:$0xff]
    %v8176 = vld [vmem:[#allocation11 + $0xa40] sm:$0xff]
    %v8177 = vld [vmem:[#allocation11 + $0xa48] sm:$0xff]
    %v8178 = vld [vmem:[#allocation11 + $0xa50] sm:$0xff]
    %v8179 = vld [vmem:[#allocation11 + $0xa58] sm:$0xff]
    %v8180 = vld [vmem:[#allocation11 + $0xa60] sm:$0xff]
    %v8181 = vld [vmem:[#allocation11 + $0xa68] sm:$0xff]
    %v8182 = vld [vmem:[#allocation11 + $0xa70] sm:$0xff]
    %v8183 = vld [vmem:[#allocation11 + $0xa78] sm:$0xff]
    %v8184 = vld [vmem:[#allocation11 + $0xa80] sm:$0xff]
    %v8185 = vld [vmem:[#allocation11 + $0xa88] sm:$0xff]
    %v8186 = vld [vmem:[#allocation11 + $0xa90] sm:$0xff]
    %v8187 = vld [vmem:[#allocation11 + $0xa98] sm:$0xff]
    %v8188 = vld [vmem:[#allocation11 + $0xaa0] sm:$0xff]
    %v8189 = vld [vmem:[#allocation11 + $0xaa8] sm:$0xff]
    %v8190 = vld [vmem:[#allocation11 + $0xab0] sm:$0xff]
    %v8191 = vld [vmem:[#allocation11 + $0xab8] sm:$0xff]
    %v8192 = vld [vmem:[#allocation11 + $0xac0] sm:$0xff]
    %v8193 = vld [vmem:[#allocation11 + $0xac8] sm:$0xff]
    %v8194 = vld [vmem:[#allocation11 + $0xad0] sm:$0xff]
    %v8195 = vld [vmem:[#allocation11 + $0xad8] sm:$0xff]
    %v8196 = vld [vmem:[#allocation11 + $0xae0] sm:$0xff]
    %v8197 = vld [vmem:[#allocation11 + $0xae8] sm:$0xff]
    %v8198 = vld [vmem:[#allocation11 + $0xaf0] sm:$0xff]
    %v8199 = vld [vmem:[#allocation11 + $0xaf8] sm:$0xff]
    %v8200 = vld [vmem:[#allocation11 + $0xb00] sm:$0xff]
    %v8201 = vld [vmem:[#allocation11 + $0xb08] sm:$0xff]
    %v8202 = vld [vmem:[#allocation11 + $0xb10] sm:$0xff]
    %v8203 = vld [vmem:[#allocation11 + $0xb18] sm:$0xff]
    %v8204 = vld [vmem:[#allocation11 + $0xb20] sm:$0xff]
    %v8205 = vld [vmem:[#allocation11 + $0xb28] sm:$0xff]
    %v8206 = vld [vmem:[#allocation11 + $0xb30] sm:$0xff]
    %v8207 = vld [vmem:[#allocation11 + $0xb38] sm:$0xff]
    %v8208 = vld [vmem:[#allocation11 + $0xb40] sm:$0xff]
    %v8209 = vld [vmem:[#allocation11 + $0xb48] sm:$0xff]
    %v8210 = vld [vmem:[#allocation11 + $0xb50] sm:$0xff]
    %v8211 = vld [vmem:[#allocation11 + $0xb58] sm:$0xff]
    %v8212 = vld [vmem:[#allocation11 + $0xb60] sm:$0xff]
    %v8213 = vld [vmem:[#allocation11 + $0xb68] sm:$0xff]
    %v8214 = vld [vmem:[#allocation11 + $0xb70] sm:$0xff]
    %v8215 = vld [vmem:[#allocation11 + $0xb78] sm:$0xff]
    %v8216 = vld [vmem:[#allocation11 + $0xb80] sm:$0xff]
    %v8217 = vld [vmem:[#allocation11 + $0xb88] sm:$0xff]
    %v8218 = vld [vmem:[#allocation11 + $0xb90] sm:$0xff]
    %v8219 = vld [vmem:[#allocation11 + $0xb98] sm:$0xff]
    %v8220 = vld [vmem:[#allocation11 + $0xba0] sm:$0xff]
    %v8221 = vld [vmem:[#allocation11 + $0xba8] sm:$0xff]
    %v8222 = vld [vmem:[#allocation11 + $0xbb0] sm:$0xff]
    %v8223 = vld [vmem:[#allocation11 + $0xbb8] sm:$0xff]
    %v8224 = vld [vmem:[#allocation11 + $0xbc0] sm:$0xff]
    %v8225 = vld [vmem:[#allocation11 + $0xbc8] sm:$0xff]
    %v8226 = vld [vmem:[#allocation11 + $0xbd0] sm:$0xff]
    %v8227 = vld [vmem:[#allocation11 + $0xbd8] sm:$0xff]
    %v8228 = vld [vmem:[#allocation11 + $0xbe0] sm:$0xff]
    %v8229 = vld [vmem:[#allocation11 + $0xbe8] sm:$0xff]
    %v8230 = vld [vmem:[#allocation11 + $0xbf0] sm:$0xff]
    %v8231 = vld [vmem:[#allocation11 + $0xbf8] sm:$0xff]
    %v8232 = vld [vmem:[#allocation11 + $0xc00] sm:$0xff]
    %v8233 = vld [vmem:[#allocation11 + $0xc08] sm:$0xff]
    %v8234 = vld [vmem:[#allocation11 + $0xc10] sm:$0xff]
    %v8235 = vld [vmem:[#allocation11 + $0xc18] sm:$0xff]
    %v8236 = vld [vmem:[#allocation11 + $0xc20] sm:$0xff]
    %v8237 = vld [vmem:[#allocation11 + $0xc28] sm:$0xff]
    %v8238 = vld [vmem:[#allocation11 + $0xc30] sm:$0xff]
    %v8239 = vld [vmem:[#allocation11 + $0xc38] sm:$0xff]
    %v8240 = vld [vmem:[#allocation11 + $0xc40] sm:$0xff]
    %v8241 = vld [vmem:[#allocation11 + $0xc48] sm:$0xff]
    %v8242 = vld [vmem:[#allocation11 + $0xc50] sm:$0xff]
    %v8243 = vld [vmem:[#allocation11 + $0xc58] sm:$0xff]
    %v8244 = vld [vmem:[#allocation11 + $0xc60] sm:$0xff]
    %v8245 = vld [vmem:[#allocation11 + $0xc68] sm:$0xff]
    %v8246 = vld [vmem:[#allocation11 + $0xc70] sm:$0xff]
    %v8247 = vld [vmem:[#allocation11 + $0xc78] sm:$0xff]
    %v8248 = vld [vmem:[#allocation11 + $0xc80] sm:$0xff]
    %v8249 = vld [vmem:[#allocation11 + $0xc88] sm:$0xff]
    %v8250 = vld [vmem:[#allocation11 + $0xc90] sm:$0xff]
    %v8251 = vld [vmem:[#allocation11 + $0xc98] sm:$0xff]
    %v8252 = vld [vmem:[#allocation11 + $0xca0] sm:$0xff]
    %v8253 = vld [vmem:[#allocation11 + $0xca8] sm:$0xff]
    %v8254 = vld [vmem:[#allocation11 + $0xcb0] sm:$0xff]
    %v8255 = vld [vmem:[#allocation11 + $0xcb8] sm:$0xff]
    %v8256 = vld [vmem:[#allocation11 + $0xcc0] sm:$0xff]
    %v8257 = vld [vmem:[#allocation11 + $0xcc8] sm:$0xff]
    %v8258 = vld [vmem:[#allocation11 + $0xcd0] sm:$0xff]
    %v8259 = vld [vmem:[#allocation11 + $0xcd8] sm:$0xff]
    %v8260 = vld [vmem:[#allocation11 + $0xce0] sm:$0xff]
    %v8261 = vld [vmem:[#allocation11 + $0xce8] sm:$0xff]
    %v8262 = vld [vmem:[#allocation11 + $0xcf0] sm:$0xff]
    %v8263 = vld [vmem:[#allocation11 + $0xcf8] sm:$0xff]
    %v8264 = vld [vmem:[#allocation11 + $0xd00] sm:$0xff]
    %v8265 = vld [vmem:[#allocation11 + $0xd08] sm:$0xff]
    %v8266 = vld [vmem:[#allocation11 + $0xd10] sm:$0xff]
    %v8267 = vld [vmem:[#allocation11 + $0xd18] sm:$0xff]
    %v8268 = vld [vmem:[#allocation11 + $0xd20] sm:$0xff]
    %v8269 = vld [vmem:[#allocation11 + $0xd28] sm:$0xff]
    %v8270 = vld [vmem:[#allocation11 + $0xd30] sm:$0xff]
    %v8271 = vld [vmem:[#allocation11 + $0xd38] sm:$0xff]
    %v8272 = vld [vmem:[#allocation11 + $0xd40] sm:$0xff]
    %v8273 = vld [vmem:[#allocation11 + $0xd48] sm:$0xff]
    %v8274 = vld [vmem:[#allocation11 + $0xd50] sm:$0xff]
    %v8275 = vld [vmem:[#allocation11 + $0xd58] sm:$0xff]
    %v8276 = vld [vmem:[#allocation11 + $0xd60] sm:$0xff]
    %v8277 = vld [vmem:[#allocation11 + $0xd68] sm:$0xff]
    %v8278 = vld [vmem:[#allocation11 + $0xd70] sm:$0xff]
    %v8279 = vld [vmem:[#allocation11 + $0xd78] sm:$0xff]
    %v8280 = vld [vmem:[#allocation11 + $0xd80] sm:$0xff]
    %v8281 = vld [vmem:[#allocation11 + $0xd88] sm:$0xff]
    %v8282 = vld [vmem:[#allocation11 + $0xd90] sm:$0xff]
    %v8283 = vld [vmem:[#allocation11 + $0xd98] sm:$0xff]
    %v8284 = vld [vmem:[#allocation11 + $0xda0] sm:$0xff]
    %v8285 = vld [vmem:[#allocation11 + $0xda8] sm:$0xff]
    %v8286 = vld [vmem:[#allocation11 + $0xdb0] sm:$0xff]
    %v8287 = vld [vmem:[#allocation11 + $0xdb8] sm:$0xff]
    %v8288 = vld [vmem:[#allocation11 + $0xdc0] sm:$0xff]
    %v8289 = vld [vmem:[#allocation11 + $0xdc8] sm:$0xff]
    %v8290 = vld [vmem:[#allocation11 + $0xdd0] sm:$0xff]
    %v8291 = vld [vmem:[#allocation11 + $0xdd8] sm:$0xff]
    %v8292 = vld [vmem:[#allocation11 + $0xde0] sm:$0xff]
    %v8293 = vld [vmem:[#allocation11 + $0xde8] sm:$0xff]
    %v8294 = vld [vmem:[#allocation11 + $0xdf0] sm:$0xff]
    %v8295 = vld [vmem:[#allocation11 + $0xdf8] sm:$0xff]
    %v8296 = vld [vmem:[#allocation11 + $0xe00] sm:$0xff]
    %v8297 = vld [vmem:[#allocation11 + $0xe08] sm:$0xff]
    %v8298 = vld [vmem:[#allocation11 + $0xe10] sm:$0xff]
    %v8299 = vld [vmem:[#allocation11 + $0xe18] sm:$0xff]
    %v8300 = vld [vmem:[#allocation11 + $0xe20] sm:$0xff]
    %v8301 = vld [vmem:[#allocation11 + $0xe28] sm:$0xff]
    %v8302 = vld [vmem:[#allocation11 + $0xe30] sm:$0xff]
    %v8303 = vld [vmem:[#allocation11 + $0xe38] sm:$0xff]
    %v8304 = vld [vmem:[#allocation11 + $0xe40] sm:$0xff]
    %v8305 = vld [vmem:[#allocation11 + $0xe48] sm:$0xff]
    %v8306 = vld [vmem:[#allocation11 + $0xe50] sm:$0xff]
    %v8307 = vld [vmem:[#allocation11 + $0xe58] sm:$0xff]
    %v8308 = vld [vmem:[#allocation11 + $0xe60] sm:$0xff]
    %v8309 = vld [vmem:[#allocation11 + $0xe68] sm:$0xff]
    %v8310 = vld [vmem:[#allocation11 + $0xe70] sm:$0xff]
    %v8311 = vld [vmem:[#allocation11 + $0xe78] sm:$0xff]
    %v8312 = vld [vmem:[#allocation11 + $0xe80] sm:$0xff]
    %v8313 = vld [vmem:[#allocation11 + $0xe88] sm:$0xff]
    %v8314 = vld [vmem:[#allocation11 + $0xe90] sm:$0xff]
    %v8315 = vld [vmem:[#allocation11 + $0xe98] sm:$0xff]
    %v8316 = vld [vmem:[#allocation11 + $0xea0] sm:$0xff]
    %v8317 = vld [vmem:[#allocation11 + $0xea8] sm:$0xff]
    %v8318 = vld [vmem:[#allocation11 + $0xeb0] sm:$0xff]
    %v8319 = vld [vmem:[#allocation11 + $0xeb8] sm:$0xff]
    %v8320 = vld [vmem:[#allocation11 + $0xec0] sm:$0xff]
    %v8321 = vld [vmem:[#allocation11 + $0xec8] sm:$0xff]
    %v8322 = vld [vmem:[#allocation11 + $0xed0] sm:$0xff]
    %v8323 = vld [vmem:[#allocation11 + $0xed8] sm:$0xff]
    %v8324 = vld [vmem:[#allocation11 + $0xee0] sm:$0xff]
    %v8325 = vld [vmem:[#allocation11 + $0xee8] sm:$0xff]
    %v8326 = vld [vmem:[#allocation11 + $0xef0] sm:$0xff]
    %v8327 = vld [vmem:[#allocation11 + $0xef8] sm:$0xff]
    %v8328 = vld [vmem:[#allocation11 + $0xf00] sm:$0xff]
    %v8329 = vld [vmem:[#allocation11 + $0xf08] sm:$0xff]
    %v8330 = vld [vmem:[#allocation11 + $0xf10] sm:$0xff]
    %v8331 = vld [vmem:[#allocation11 + $0xf18] sm:$0xff]
    %v8332 = vld [vmem:[#allocation11 + $0xf20] sm:$0xff]
    %v8333 = vld [vmem:[#allocation11 + $0xf28] sm:$0xff]
    %v8334 = vld [vmem:[#allocation11 + $0xf30] sm:$0xff]
    %v8335 = vld [vmem:[#allocation11 + $0xf38] sm:$0xff]
    %v8336 = vld [vmem:[#allocation11 + $0xf40] sm:$0xff]
    %v8337 = vld [vmem:[#allocation11 + $0xf48] sm:$0xff]
    %v8338 = vld [vmem:[#allocation11 + $0xf50] sm:$0xff]
    %v8339 = vld [vmem:[#allocation11 + $0xf58] sm:$0xff]
    %v8340 = vld [vmem:[#allocation11 + $0xf60] sm:$0xff]
    %v8341 = vld [vmem:[#allocation11 + $0xf68] sm:$0xff]
    %v8342 = vld [vmem:[#allocation11 + $0xf70] sm:$0xff]
    %v8343 = vld [vmem:[#allocation11 + $0xf78] sm:$0xff]
    %v8344 = vld [vmem:[#allocation11 + $0xf80] sm:$0xff]
    %v8345 = vld [vmem:[#allocation11 + $0xf88] sm:$0xff]
    %v8346 = vld [vmem:[#allocation11 + $0xf90] sm:$0xff]
    %v8347 = vld [vmem:[#allocation11 + $0xf98] sm:$0xff]
    %v8348 = vld [vmem:[#allocation11 + $0xfa0] sm:$0xff]
    %v8349 = vld [vmem:[#allocation11 + $0xfa8] sm:$0xff]
    %v8350 = vld [vmem:[#allocation11 + $0xfb0] sm:$0xff]
    %v8351 = vld [vmem:[#allocation11 + $0xfb8] sm:$0xff]
    %v8352 = vld [vmem:[#allocation11 + $0xfc0] sm:$0xff]
    %v8353 = vld [vmem:[#allocation11 + $0xfc8] sm:$0xff]
    %v8354 = vld [vmem:[#allocation11 + $0xfd0] sm:$0xff]
    %v8355 = vld [vmem:[#allocation11 + $0xfd8] sm:$0xff]
    %v8356 = vld [vmem:[#allocation11 + $0xfe0] sm:$0xff]
    %v8357 = vld [vmem:[#allocation11 + $0xfe8] sm:$0xff]
    %v8358 = vld [vmem:[#allocation11 + $0xff0] sm:$0xff]
    %v8359 = vld [vmem:[#allocation11 + $0xff8] sm:$0xff]
    %v8360 = vld [vmem:[#allocation13] sm:$0xff]
    %v8362 = vlaneseq
    %v8363 = vshrl.u32 %v8362, 7
    %v8364 = vsub.s32 0, %v8363
    %v8365 = vrot.slane %v8360, %v8364
    %v8366 = vlaneseq
    %v8367 = vshrl.u32 %v8366, 7
    %v8368 = vsub.s32 1, %v8367
    %v8369 = vrot.slane %v8360, %v8368
    %v8370 = vlaneseq
    %v8371 = vshrl.u32 %v8370, 7
    %v8372 = vsub.s32 2, %v8371
    %v8373 = vrot.slane %v8360, %v8372
    %v8374 = vlaneseq
    %v8375 = vshrl.u32 %v8374, 7
    %v8376 = vsub.s32 3, %v8375
    %v8377 = vrot.slane %v8360, %v8376
    %v8378 = vlaneseq
    %v8379 = vshrl.u32 %v8378, 7
    %v8380 = vsub.s32 4, %v8379
    %v8381 = vrot.slane %v8360, %v8380
    %v8382 = vlaneseq
    %v8383 = vshrl.u32 %v8382, 7
    %v8384 = vsub.s32 5, %v8383
    %v8385 = vrot.slane %v8360, %v8384
    %v8386 = vlaneseq
    %v8387 = vshrl.u32 %v8386, 7
    %v8388 = vsub.s32 6, %v8387
    %v8389 = vrot.slane %v8360, %v8388
    %v8390 = vlaneseq
    %v8391 = vshrl.u32 %v8390, 7
    %v8392 = vsub.s32 7, %v8391
    %v8393 = vrot.slane %v8360, %v8392
    %v8914 = vunpack.c.l.b16 %v7848
    %v8915 = vunpack.c.h.b16 %v7848
    %v8916 = vunpack.c.l.b16 %v7849
    %v8917 = vunpack.c.h.b16 %v7849
    %v8918 = vunpack.c.l.b16 %v7850
    %v8919 = vunpack.c.h.b16 %v7850
    %v8920 = vunpack.c.l.b16 %v7851
    %v8921 = vunpack.c.h.b16 %v7851
    %v8922 = vunpack.c.l.b16 %v7852
    %v8923 = vunpack.c.h.b16 %v7852
    %v8924 = vunpack.c.l.b16 %v7853
    %v8925 = vunpack.c.h.b16 %v7853
    %v8926 = vunpack.c.l.b16 %v7854
    %v8927 = vunpack.c.h.b16 %v7854
    %v8928 = vunpack.c.l.b16 %v7855
    %v8929 = vunpack.c.h.b16 %v7855
    %v8930 = vunpack.c.l.b16 %v7856
    %v8931 = vunpack.c.h.b16 %v7856
    %v8932 = vunpack.c.l.b16 %v7857
    %v8933 = vunpack.c.h.b16 %v7857
    %v8934 = vunpack.c.l.b16 %v7858
    %v8935 = vunpack.c.h.b16 %v7858
    %v8936 = vunpack.c.l.b16 %v7859
    %v8937 = vunpack.c.h.b16 %v7859
    %v8938 = vunpack.c.l.b16 %v7860
    %v8939 = vunpack.c.h.b16 %v7860
    %v8940 = vunpack.c.l.b16 %v7861
    %v8941 = vunpack.c.h.b16 %v7861
    %v8942 = vunpack.c.l.b16 %v7862
    %v8943 = vunpack.c.h.b16 %v7862
    %v8944 = vunpack.c.l.b16 %v7863
    %v8945 = vunpack.c.h.b16 %v7863
    %v8946 = vunpack.c.l.b16 %v7864
    %v8947 = vunpack.c.h.b16 %v7864
    %v8948 = vunpack.c.l.b16 %v7865
    %v8949 = vunpack.c.h.b16 %v7865
    %v8950 = vunpack.c.l.b16 %v7866
    %v8951 = vunpack.c.h.b16 %v7866
    %v8952 = vunpack.c.l.b16 %v7867
    %v8953 = vunpack.c.h.b16 %v7867
    %v8954 = vunpack.c.l.b16 %v7868
    %v8955 = vunpack.c.h.b16 %v7868
    %v8956 = vunpack.c.l.b16 %v7869
    %v8957 = vunpack.c.h.b16 %v7869
    %v8958 = vunpack.c.l.b16 %v7870
    %v8959 = vunpack.c.h.b16 %v7870
    %v8960 = vunpack.c.l.b16 %v7871
    %v8961 = vunpack.c.h.b16 %v7871
    %v8962 = vunpack.c.l.b16 %v7872
    %v8963 = vunpack.c.h.b16 %v7872
    %v8964 = vunpack.c.l.b16 %v7873
    %v8965 = vunpack.c.h.b16 %v7873
    %v8966 = vunpack.c.l.b16 %v7874
    %v8967 = vunpack.c.h.b16 %v7874
    %v8968 = vunpack.c.l.b16 %v7875
    %v8969 = vunpack.c.h.b16 %v7875
    %v8970 = vunpack.c.l.b16 %v7876
    %v8971 = vunpack.c.h.b16 %v7876
    %v8972 = vunpack.c.l.b16 %v7877
    %v8973 = vunpack.c.h.b16 %v7877
    %v8974 = vunpack.c.l.b16 %v7878
    %v8975 = vunpack.c.h.b16 %v7878
    %v8976 = vunpack.c.l.b16 %v7879
    %v8977 = vunpack.c.h.b16 %v7879
    %v8978 = vunpack.c.l.b16 %v7880
    %v8979 = vunpack.c.h.b16 %v7880
    %v8980 = vunpack.c.l.b16 %v7881
    %v8981 = vunpack.c.h.b16 %v7881
    %v8982 = vunpack.c.l.b16 %v7882
    %v8983 = vunpack.c.h.b16 %v7882
    %v8984 = vunpack.c.l.b16 %v7883
    %v8985 = vunpack.c.h.b16 %v7883
    %v8986 = vunpack.c.l.b16 %v7884
    %v8987 = vunpack.c.h.b16 %v7884
    %v8988 = vunpack.c.l.b16 %v7885
    %v8989 = vunpack.c.h.b16 %v7885
    %v8990 = vunpack.c.l.b16 %v7886
    %v8991 = vunpack.c.h.b16 %v7886
    %v8992 = vunpack.c.l.b16 %v7887
    %v8993 = vunpack.c.h.b16 %v7887
    %v8994 = vunpack.c.l.b16 %v7888
    %v8995 = vunpack.c.h.b16 %v7888
    %v8996 = vunpack.c.l.b16 %v7889
    %v8997 = vunpack.c.h.b16 %v7889
    %v8998 = vunpack.c.l.b16 %v7890
    %v8999 = vunpack.c.h.b16 %v7890
    %v9000 = vunpack.c.l.b16 %v7891
    %v9001 = vunpack.c.h.b16 %v7891
    %v9002 = vunpack.c.l.b16 %v7892
    %v9003 = vunpack.c.h.b16 %v7892
    %v9004 = vunpack.c.l.b16 %v7893
    %v9005 = vunpack.c.h.b16 %v7893
    %v9006 = vunpack.c.l.b16 %v7894
    %v9007 = vunpack.c.h.b16 %v7894
    %v9008 = vunpack.c.l.b16 %v7895
    %v9009 = vunpack.c.h.b16 %v7895
    %v9010 = vunpack.c.l.b16 %v7896
    %v9011 = vunpack.c.h.b16 %v7896
    %v9012 = vunpack.c.l.b16 %v7897
    %v9013 = vunpack.c.h.b16 %v7897
    %v9014 = vunpack.c.l.b16 %v7898
    %v9015 = vunpack.c.h.b16 %v7898
    %v9016 = vunpack.c.l.b16 %v7899
    %v9017 = vunpack.c.h.b16 %v7899
    %v9018 = vunpack.c.l.b16 %v7900
    %v9019 = vunpack.c.h.b16 %v7900
    %v9020 = vunpack.c.l.b16 %v7901
    %v9021 = vunpack.c.h.b16 %v7901
    %v9022 = vunpack.c.l.b16 %v7902
    %v9023 = vunpack.c.h.b16 %v7902
    %v9024 = vunpack.c.l.b16 %v7903
    %v9025 = vunpack.c.h.b16 %v7903
    %v9026 = vunpack.c.l.b16 %v7904
    %v9027 = vunpack.c.h.b16 %v7904
    %v9028 = vunpack.c.l.b16 %v7905
    %v9029 = vunpack.c.h.b16 %v7905
    %v9030 = vunpack.c.l.b16 %v7906
    %v9031 = vunpack.c.h.b16 %v7906
    %v9032 = vunpack.c.l.b16 %v7907
    %v9033 = vunpack.c.h.b16 %v7907
    %v9034 = vunpack.c.l.b16 %v7908
    %v9035 = vunpack.c.h.b16 %v7908
    %v9036 = vunpack.c.l.b16 %v7909
    %v9037 = vunpack.c.h.b16 %v7909
    %v9038 = vunpack.c.l.b16 %v7910
    %v9039 = vunpack.c.h.b16 %v7910
    %v9040 = vunpack.c.l.b16 %v7911
    %v9041 = vunpack.c.h.b16 %v7911
    %v9042 = vunpack.c.l.b16 %v7912
    %v9043 = vunpack.c.h.b16 %v7912
    %v9044 = vunpack.c.l.b16 %v7913
    %v9045 = vunpack.c.h.b16 %v7913
    %v9046 = vunpack.c.l.b16 %v7914
    %v9047 = vunpack.c.h.b16 %v7914
    %v9048 = vunpack.c.l.b16 %v7915
    %v9049 = vunpack.c.h.b16 %v7915
    %v9050 = vunpack.c.l.b16 %v7916
    %v9051 = vunpack.c.h.b16 %v7916
    %v9052 = vunpack.c.l.b16 %v7917
    %v9053 = vunpack.c.h.b16 %v7917
    %v9054 = vunpack.c.l.b16 %v7918
    %v9055 = vunpack.c.h.b16 %v7918
    %v9056 = vunpack.c.l.b16 %v7919
    %v9057 = vunpack.c.h.b16 %v7919
    %v9058 = vunpack.c.l.b16 %v7920
    %v9059 = vunpack.c.h.b16 %v7920
    %v9060 = vunpack.c.l.b16 %v7921
    %v9061 = vunpack.c.h.b16 %v7921
    %v9062 = vunpack.c.l.b16 %v7922
    %v9063 = vunpack.c.h.b16 %v7922
    %v9064 = vunpack.c.l.b16 %v7923
    %v9065 = vunpack.c.h.b16 %v7923
    %v9066 = vunpack.c.l.b16 %v7924
    %v9067 = vunpack.c.h.b16 %v7924
    %v9068 = vunpack.c.l.b16 %v7925
    %v9069 = vunpack.c.h.b16 %v7925
    %v9070 = vunpack.c.l.b16 %v7926
    %v9071 = vunpack.c.h.b16 %v7926
    %v9072 = vunpack.c.l.b16 %v7927
    %v9073 = vunpack.c.h.b16 %v7927
    %v9074 = vunpack.c.l.b16 %v7928
    %v9075 = vunpack.c.h.b16 %v7928
    %v9076 = vunpack.c.l.b16 %v7929
    %v9077 = vunpack.c.h.b16 %v7929
    %v9078 = vunpack.c.l.b16 %v7930
    %v9079 = vunpack.c.h.b16 %v7930
    %v9080 = vunpack.c.l.b16 %v7931
    %v9081 = vunpack.c.h.b16 %v7931
    %v9082 = vunpack.c.l.b16 %v7932
    %v9083 = vunpack.c.h.b16 %v7932
    %v9084 = vunpack.c.l.b16 %v7933
    %v9085 = vunpack.c.h.b16 %v7933
    %v9086 = vunpack.c.l.b16 %v7934
    %v9087 = vunpack.c.h.b16 %v7934
    %v9088 = vunpack.c.l.b16 %v7935
    %v9089 = vunpack.c.h.b16 %v7935
    %v9090 = vunpack.c.l.b16 %v7936
    %v9091 = vunpack.c.h.b16 %v7936
    %v9092 = vunpack.c.l.b16 %v7937
    %v9093 = vunpack.c.h.b16 %v7937
    %v9094 = vunpack.c.l.b16 %v7938
    %v9095 = vunpack.c.h.b16 %v7938
    %v9096 = vunpack.c.l.b16 %v7939
    %v9097 = vunpack.c.h.b16 %v7939
    %v9098 = vunpack.c.l.b16 %v7940
    %v9099 = vunpack.c.h.b16 %v7940
    %v9100 = vunpack.c.l.b16 %v7941
    %v9101 = vunpack.c.h.b16 %v7941
    %v9102 = vunpack.c.l.b16 %v7942
    %v9103 = vunpack.c.h.b16 %v7942
    %v9104 = vunpack.c.l.b16 %v7943
    %v9105 = vunpack.c.h.b16 %v7943
    %v9106 = vunpack.c.l.b16 %v7944
    %v9107 = vunpack.c.h.b16 %v7944
    %v9108 = vunpack.c.l.b16 %v7945
    %v9109 = vunpack.c.h.b16 %v7945
    %v9110 = vunpack.c.l.b16 %v7946
    %v9111 = vunpack.c.h.b16 %v7946
    %v9112 = vunpack.c.l.b16 %v7947
    %v9113 = vunpack.c.h.b16 %v7947
    %v9114 = vunpack.c.l.b16 %v7948
    %v9115 = vunpack.c.h.b16 %v7948
    %v9116 = vunpack.c.l.b16 %v7949
    %v9117 = vunpack.c.h.b16 %v7949
    %v9118 = vunpack.c.l.b16 %v7950
    %v9119 = vunpack.c.h.b16 %v7950
    %v9120 = vunpack.c.l.b16 %v7951
    %v9121 = vunpack.c.h.b16 %v7951
    %v9122 = vunpack.c.l.b16 %v7952
    %v9123 = vunpack.c.h.b16 %v7952
    %v9124 = vunpack.c.l.b16 %v7953
    %v9125 = vunpack.c.h.b16 %v7953
    %v9126 = vunpack.c.l.b16 %v7954
    %v9127 = vunpack.c.h.b16 %v7954
    %v9128 = vunpack.c.l.b16 %v7955
    %v9129 = vunpack.c.h.b16 %v7955
    %v9130 = vunpack.c.l.b16 %v7956
    %v9131 = vunpack.c.h.b16 %v7956
    %v9132 = vunpack.c.l.b16 %v7957
    %v9133 = vunpack.c.h.b16 %v7957
    %v9134 = vunpack.c.l.b16 %v7958
    %v9135 = vunpack.c.h.b16 %v7958
    %v9136 = vunpack.c.l.b16 %v7959
    %v9137 = vunpack.c.h.b16 %v7959
    %v9138 = vunpack.c.l.b16 %v7960
    %v9139 = vunpack.c.h.b16 %v7960
    %v9140 = vunpack.c.l.b16 %v7961
    %v9141 = vunpack.c.h.b16 %v7961
    %v9142 = vunpack.c.l.b16 %v7962
    %v9143 = vunpack.c.h.b16 %v7962
    %v9144 = vunpack.c.l.b16 %v7963
    %v9145 = vunpack.c.h.b16 %v7963
    %v9146 = vunpack.c.l.b16 %v7964
    %v9147 = vunpack.c.h.b16 %v7964
    %v9148 = vunpack.c.l.b16 %v7965
    %v9149 = vunpack.c.h.b16 %v7965
    %v9150 = vunpack.c.l.b16 %v7966
    %v9151 = vunpack.c.h.b16 %v7966
    %v9152 = vunpack.c.l.b16 %v7967
    %v9153 = vunpack.c.h.b16 %v7967
    %v9154 = vunpack.c.l.b16 %v7968
    %v9155 = vunpack.c.h.b16 %v7968
    %v9156 = vunpack.c.l.b16 %v7969
    %v9157 = vunpack.c.h.b16 %v7969
    %v9158 = vunpack.c.l.b16 %v7970
    %v9159 = vunpack.c.h.b16 %v7970
    %v9160 = vunpack.c.l.b16 %v7971
    %v9161 = vunpack.c.h.b16 %v7971
    %v9162 = vunpack.c.l.b16 %v7972
    %v9163 = vunpack.c.h.b16 %v7972
    %v9164 = vunpack.c.l.b16 %v7973
    %v9165 = vunpack.c.h.b16 %v7973
    %v9166 = vunpack.c.l.b16 %v7974
    %v9167 = vunpack.c.h.b16 %v7974
    %v9168 = vunpack.c.l.b16 %v7975
    %v9169 = vunpack.c.h.b16 %v7975
    %v9170 = vunpack.c.l.b16 %v7976
    %v9171 = vunpack.c.h.b16 %v7976
    %v9172 = vunpack.c.l.b16 %v7977
    %v9173 = vunpack.c.h.b16 %v7977
    %v9174 = vunpack.c.l.b16 %v7978
    %v9175 = vunpack.c.h.b16 %v7978
    %v9176 = vunpack.c.l.b16 %v7979
    %v9177 = vunpack.c.h.b16 %v7979
    %v9178 = vunpack.c.l.b16 %v7980
    %v9179 = vunpack.c.h.b16 %v7980
    %v9180 = vunpack.c.l.b16 %v7981
    %v9181 = vunpack.c.h.b16 %v7981
    %v9182 = vunpack.c.l.b16 %v7982
    %v9183 = vunpack.c.h.b16 %v7982
    %v9184 = vunpack.c.l.b16 %v7983
    %v9185 = vunpack.c.h.b16 %v7983
    %v9186 = vunpack.c.l.b16 %v7984
    %v9187 = vunpack.c.h.b16 %v7984
    %v9188 = vunpack.c.l.b16 %v7985
    %v9189 = vunpack.c.h.b16 %v7985
    %v9190 = vunpack.c.l.b16 %v7986
    %v9191 = vunpack.c.h.b16 %v7986
    %v9192 = vunpack.c.l.b16 %v7987
    %v9193 = vunpack.c.h.b16 %v7987
    %v9194 = vunpack.c.l.b16 %v7988
    %v9195 = vunpack.c.h.b16 %v7988
    %v9196 = vunpack.c.l.b16 %v7989
    %v9197 = vunpack.c.h.b16 %v7989
    %v9198 = vunpack.c.l.b16 %v7990
    %v9199 = vunpack.c.h.b16 %v7990
    %v9200 = vunpack.c.l.b16 %v7991
    %v9201 = vunpack.c.h.b16 %v7991
    %v9202 = vunpack.c.l.b16 %v7992
    %v9203 = vunpack.c.h.b16 %v7992
    %v9204 = vunpack.c.l.b16 %v7993
    %v9205 = vunpack.c.h.b16 %v7993
    %v9206 = vunpack.c.l.b16 %v7994
    %v9207 = vunpack.c.h.b16 %v7994
    %v9208 = vunpack.c.l.b16 %v7995
    %v9209 = vunpack.c.h.b16 %v7995
    %v9210 = vunpack.c.l.b16 %v7996
    %v9211 = vunpack.c.h.b16 %v7996
    %v9212 = vunpack.c.l.b16 %v7997
    %v9213 = vunpack.c.h.b16 %v7997
    %v9214 = vunpack.c.l.b16 %v7998
    %v9215 = vunpack.c.h.b16 %v7998
    %v9216 = vunpack.c.l.b16 %v7999
    %v9217 = vunpack.c.h.b16 %v7999
    %v9218 = vunpack.c.l.b16 %v8000
    %v9219 = vunpack.c.h.b16 %v8000
    %v9220 = vunpack.c.l.b16 %v8001
    %v9221 = vunpack.c.h.b16 %v8001
    %v9222 = vunpack.c.l.b16 %v8002
    %v9223 = vunpack.c.h.b16 %v8002
    %v9224 = vunpack.c.l.b16 %v8003
    %v9225 = vunpack.c.h.b16 %v8003
    %v9226 = vunpack.c.l.b16 %v8004
    %v9227 = vunpack.c.h.b16 %v8004
    %v9228 = vunpack.c.l.b16 %v8005
    %v9229 = vunpack.c.h.b16 %v8005
    %v9230 = vunpack.c.l.b16 %v8006
    %v9231 = vunpack.c.h.b16 %v8006
    %v9232 = vunpack.c.l.b16 %v8007
    %v9233 = vunpack.c.h.b16 %v8007
    %v9234 = vunpack.c.l.b16 %v8008
    %v9235 = vunpack.c.h.b16 %v8008
    %v9236 = vunpack.c.l.b16 %v8009
    %v9237 = vunpack.c.h.b16 %v8009
    %v9238 = vunpack.c.l.b16 %v8010
    %v9239 = vunpack.c.h.b16 %v8010
    %v9240 = vunpack.c.l.b16 %v8011
    %v9241 = vunpack.c.h.b16 %v8011
    %v9242 = vunpack.c.l.b16 %v8012
    %v9243 = vunpack.c.h.b16 %v8012
    %v9244 = vunpack.c.l.b16 %v8013
    %v9245 = vunpack.c.h.b16 %v8013
    %v9246 = vunpack.c.l.b16 %v8014
    %v9247 = vunpack.c.h.b16 %v8014
    %v9248 = vunpack.c.l.b16 %v8015
    %v9249 = vunpack.c.h.b16 %v8015
    %v9250 = vunpack.c.l.b16 %v8016
    %v9251 = vunpack.c.h.b16 %v8016
    %v9252 = vunpack.c.l.b16 %v8017
    %v9253 = vunpack.c.h.b16 %v8017
    %v9254 = vunpack.c.l.b16 %v8018
    %v9255 = vunpack.c.h.b16 %v8018
    %v9256 = vunpack.c.l.b16 %v8019
    %v9257 = vunpack.c.h.b16 %v8019
    %v9258 = vunpack.c.l.b16 %v8020
    %v9259 = vunpack.c.h.b16 %v8020
    %v9260 = vunpack.c.l.b16 %v8021
    %v9261 = vunpack.c.h.b16 %v8021
    %v9262 = vunpack.c.l.b16 %v8022
    %v9263 = vunpack.c.h.b16 %v8022
    %v9264 = vunpack.c.l.b16 %v8023
    %v9265 = vunpack.c.h.b16 %v8023
    %v9266 = vunpack.c.l.b16 %v8024
    %v9267 = vunpack.c.h.b16 %v8024
    %v9268 = vunpack.c.l.b16 %v8025
    %v9269 = vunpack.c.h.b16 %v8025
    %v9270 = vunpack.c.l.b16 %v8026
    %v9271 = vunpack.c.h.b16 %v8026
    %v9272 = vunpack.c.l.b16 %v8027
    %v9273 = vunpack.c.h.b16 %v8027
    %v9274 = vunpack.c.l.b16 %v8028
    %v9275 = vunpack.c.h.b16 %v8028
    %v9276 = vunpack.c.l.b16 %v8029
    %v9277 = vunpack.c.h.b16 %v8029
    %v9278 = vunpack.c.l.b16 %v8030
    %v9279 = vunpack.c.h.b16 %v8030
    %v9280 = vunpack.c.l.b16 %v8031
    %v9281 = vunpack.c.h.b16 %v8031
    %v9282 = vunpack.c.l.b16 %v8032
    %v9283 = vunpack.c.h.b16 %v8032
    %v9284 = vunpack.c.l.b16 %v8033
    %v9285 = vunpack.c.h.b16 %v8033
    %v9286 = vunpack.c.l.b16 %v8034
    %v9287 = vunpack.c.h.b16 %v8034
    %v9288 = vunpack.c.l.b16 %v8035
    %v9289 = vunpack.c.h.b16 %v8035
    %v9290 = vunpack.c.l.b16 %v8036
    %v9291 = vunpack.c.h.b16 %v8036
    %v9292 = vunpack.c.l.b16 %v8037
    %v9293 = vunpack.c.h.b16 %v8037
    %v9294 = vunpack.c.l.b16 %v8038
    %v9295 = vunpack.c.h.b16 %v8038
    %v9296 = vunpack.c.l.b16 %v8039
    %v9297 = vunpack.c.h.b16 %v8039
    %v9298 = vunpack.c.l.b16 %v8040
    %v9299 = vunpack.c.h.b16 %v8040
    %v9300 = vunpack.c.l.b16 %v8041
    %v9301 = vunpack.c.h.b16 %v8041
    %v9302 = vunpack.c.l.b16 %v8042
    %v9303 = vunpack.c.h.b16 %v8042
    %v9304 = vunpack.c.l.b16 %v8043
    %v9305 = vunpack.c.h.b16 %v8043
    %v9306 = vunpack.c.l.b16 %v8044
    %v9307 = vunpack.c.h.b16 %v8044
    %v9308 = vunpack.c.l.b16 %v8045
    %v9309 = vunpack.c.h.b16 %v8045
    %v9310 = vunpack.c.l.b16 %v8046
    %v9311 = vunpack.c.h.b16 %v8046
    %v9312 = vunpack.c.l.b16 %v8047
    %v9313 = vunpack.c.h.b16 %v8047
    %v9314 = vunpack.c.l.b16 %v8048
    %v9315 = vunpack.c.h.b16 %v8048
    %v9316 = vunpack.c.l.b16 %v8049
    %v9317 = vunpack.c.h.b16 %v8049
    %v9318 = vunpack.c.l.b16 %v8050
    %v9319 = vunpack.c.h.b16 %v8050
    %v9320 = vunpack.c.l.b16 %v8051
    %v9321 = vunpack.c.h.b16 %v8051
    %v9322 = vunpack.c.l.b16 %v8052
    %v9323 = vunpack.c.h.b16 %v8052
    %v9324 = vunpack.c.l.b16 %v8053
    %v9325 = vunpack.c.h.b16 %v8053
    %v9326 = vunpack.c.l.b16 %v8054
    %v9327 = vunpack.c.h.b16 %v8054
    %v9328 = vunpack.c.l.b16 %v8055
    %v9329 = vunpack.c.h.b16 %v8055
    %v9330 = vunpack.c.l.b16 %v8056
    %v9331 = vunpack.c.h.b16 %v8056
    %v9332 = vunpack.c.l.b16 %v8057
    %v9333 = vunpack.c.h.b16 %v8057
    %v9334 = vunpack.c.l.b16 %v8058
    %v9335 = vunpack.c.h.b16 %v8058
    %v9336 = vunpack.c.l.b16 %v8059
    %v9337 = vunpack.c.h.b16 %v8059
    %v9338 = vunpack.c.l.b16 %v8060
    %v9339 = vunpack.c.h.b16 %v8060
    %v9340 = vunpack.c.l.b16 %v8061
    %v9341 = vunpack.c.h.b16 %v8061
    %v9342 = vunpack.c.l.b16 %v8062
    %v9343 = vunpack.c.h.b16 %v8062
    %v9344 = vunpack.c.l.b16 %v8063
    %v9345 = vunpack.c.h.b16 %v8063
    %v9346 = vunpack.c.l.b16 %v8064
    %v9347 = vunpack.c.h.b16 %v8064
    %v9348 = vunpack.c.l.b16 %v8065
    %v9349 = vunpack.c.h.b16 %v8065
    %v9350 = vunpack.c.l.b16 %v8066
    %v9351 = vunpack.c.h.b16 %v8066
    %v9352 = vunpack.c.l.b16 %v8067
    %v9353 = vunpack.c.h.b16 %v8067
    %v9354 = vunpack.c.l.b16 %v8068
    %v9355 = vunpack.c.h.b16 %v8068
    %v9356 = vunpack.c.l.b16 %v8069
    %v9357 = vunpack.c.h.b16 %v8069
    %v9358 = vunpack.c.l.b16 %v8070
    %v9359 = vunpack.c.h.b16 %v8070
    %v9360 = vunpack.c.l.b16 %v8071
    %v9361 = vunpack.c.h.b16 %v8071
    %v9362 = vunpack.c.l.b16 %v8072
    %v9363 = vunpack.c.h.b16 %v8072
    %v9364 = vunpack.c.l.b16 %v8073
    %v9365 = vunpack.c.h.b16 %v8073
    %v9366 = vunpack.c.l.b16 %v8074
    %v9367 = vunpack.c.h.b16 %v8074
    %v9368 = vunpack.c.l.b16 %v8075
    %v9369 = vunpack.c.h.b16 %v8075
    %v9370 = vunpack.c.l.b16 %v8076
    %v9371 = vunpack.c.h.b16 %v8076
    %v9372 = vunpack.c.l.b16 %v8077
    %v9373 = vunpack.c.h.b16 %v8077
    %v9374 = vunpack.c.l.b16 %v8078
    %v9375 = vunpack.c.h.b16 %v8078
    %v9376 = vunpack.c.l.b16 %v8079
    %v9377 = vunpack.c.h.b16 %v8079
    %v9378 = vunpack.c.l.b16 %v8080
    %v9379 = vunpack.c.h.b16 %v8080
    %v9380 = vunpack.c.l.b16 %v8081
    %v9381 = vunpack.c.h.b16 %v8081
    %v9382 = vunpack.c.l.b16 %v8082
    %v9383 = vunpack.c.h.b16 %v8082
    %v9384 = vunpack.c.l.b16 %v8083
    %v9385 = vunpack.c.h.b16 %v8083
    %v9386 = vunpack.c.l.b16 %v8084
    %v9387 = vunpack.c.h.b16 %v8084
    %v9388 = vunpack.c.l.b16 %v8085
    %v9389 = vunpack.c.h.b16 %v8085
    %v9390 = vunpack.c.l.b16 %v8086
    %v9391 = vunpack.c.h.b16 %v8086
    %v9392 = vunpack.c.l.b16 %v8087
    %v9393 = vunpack.c.h.b16 %v8087
    %v9394 = vunpack.c.l.b16 %v8088
    %v9395 = vunpack.c.h.b16 %v8088
    %v9396 = vunpack.c.l.b16 %v8089
    %v9397 = vunpack.c.h.b16 %v8089
    %v9398 = vunpack.c.l.b16 %v8090
    %v9399 = vunpack.c.h.b16 %v8090
    %v9400 = vunpack.c.l.b16 %v8091
    %v9401 = vunpack.c.h.b16 %v8091
    %v9402 = vunpack.c.l.b16 %v8092
    %v9403 = vunpack.c.h.b16 %v8092
    %v9404 = vunpack.c.l.b16 %v8093
    %v9405 = vunpack.c.h.b16 %v8093
    %v9406 = vunpack.c.l.b16 %v8094
    %v9407 = vunpack.c.h.b16 %v8094
    %v9408 = vunpack.c.l.b16 %v8095
    %v9409 = vunpack.c.h.b16 %v8095
    %v9410 = vunpack.c.l.b16 %v8096
    %v9411 = vunpack.c.h.b16 %v8096
    %v9412 = vunpack.c.l.b16 %v8097
    %v9413 = vunpack.c.h.b16 %v8097
    %v9414 = vunpack.c.l.b16 %v8098
    %v9415 = vunpack.c.h.b16 %v8098
    %v9416 = vunpack.c.l.b16 %v8099
    %v9417 = vunpack.c.h.b16 %v8099
    %v9418 = vunpack.c.l.b16 %v8100
    %v9419 = vunpack.c.h.b16 %v8100
    %v9420 = vunpack.c.l.b16 %v8101
    %v9421 = vunpack.c.h.b16 %v8101
    %v9422 = vunpack.c.l.b16 %v8102
    %v9423 = vunpack.c.h.b16 %v8102
    %v9424 = vunpack.c.l.b16 %v8103
    %v9425 = vunpack.c.h.b16 %v8103
    %v9426 = vunpack.c.l.b16 %v8104
    %v9427 = vunpack.c.h.b16 %v8104
    %v9428 = vunpack.c.l.b16 %v8105
    %v9429 = vunpack.c.h.b16 %v8105
    %v9430 = vunpack.c.l.b16 %v8106
    %v9431 = vunpack.c.h.b16 %v8106
    %v9432 = vunpack.c.l.b16 %v8107
    %v9433 = vunpack.c.h.b16 %v8107
    %v9434 = vunpack.c.l.b16 %v8108
    %v9435 = vunpack.c.h.b16 %v8108
    %v9436 = vunpack.c.l.b16 %v8109
    %v9437 = vunpack.c.h.b16 %v8109
    %v9438 = vunpack.c.l.b16 %v8110
    %v9439 = vunpack.c.h.b16 %v8110
    %v9440 = vunpack.c.l.b16 %v8111
    %v9441 = vunpack.c.h.b16 %v8111
    %v9442 = vunpack.c.l.b16 %v8112
    %v9443 = vunpack.c.h.b16 %v8112
    %v9444 = vunpack.c.l.b16 %v8113
    %v9445 = vunpack.c.h.b16 %v8113
    %v9446 = vunpack.c.l.b16 %v8114
    %v9447 = vunpack.c.h.b16 %v8114
    %v9448 = vunpack.c.l.b16 %v8115
    %v9449 = vunpack.c.h.b16 %v8115
    %v9450 = vunpack.c.l.b16 %v8116
    %v9451 = vunpack.c.h.b16 %v8116
    %v9452 = vunpack.c.l.b16 %v8117
    %v9453 = vunpack.c.h.b16 %v8117
    %v9454 = vunpack.c.l.b16 %v8118
    %v9455 = vunpack.c.h.b16 %v8118
    %v9456 = vunpack.c.l.b16 %v8119
    %v9457 = vunpack.c.h.b16 %v8119
    %v9458 = vunpack.c.l.b16 %v8120
    %v9459 = vunpack.c.h.b16 %v8120
    %v9460 = vunpack.c.l.b16 %v8121
    %v9461 = vunpack.c.h.b16 %v8121
    %v9462 = vunpack.c.l.b16 %v8122
    %v9463 = vunpack.c.h.b16 %v8122
    %v9464 = vunpack.c.l.b16 %v8123
    %v9465 = vunpack.c.h.b16 %v8123
    %v9466 = vunpack.c.l.b16 %v8124
    %v9467 = vunpack.c.h.b16 %v8124
    %v9468 = vunpack.c.l.b16 %v8125
    %v9469 = vunpack.c.h.b16 %v8125
    %v9470 = vunpack.c.l.b16 %v8126
    %v9471 = vunpack.c.h.b16 %v8126
    %v9472 = vunpack.c.l.b16 %v8127
    %v9473 = vunpack.c.h.b16 %v8127
    %v9474 = vunpack.c.l.b16 %v8128
    %v9475 = vunpack.c.h.b16 %v8128
    %v9476 = vunpack.c.l.b16 %v8129
    %v9477 = vunpack.c.h.b16 %v8129
    %v9478 = vunpack.c.l.b16 %v8130
    %v9479 = vunpack.c.h.b16 %v8130
    %v9480 = vunpack.c.l.b16 %v8131
    %v9481 = vunpack.c.h.b16 %v8131
    %v9482 = vunpack.c.l.b16 %v8132
    %v9483 = vunpack.c.h.b16 %v8132
    %v9484 = vunpack.c.l.b16 %v8133
    %v9485 = vunpack.c.h.b16 %v8133
    %v9486 = vunpack.c.l.b16 %v8134
    %v9487 = vunpack.c.h.b16 %v8134
    %v9488 = vunpack.c.l.b16 %v8135
    %v9489 = vunpack.c.h.b16 %v8135
    %v9490 = vunpack.c.l.b16 %v8136
    %v9491 = vunpack.c.h.b16 %v8136
    %v9492 = vunpack.c.l.b16 %v8137
    %v9493 = vunpack.c.h.b16 %v8137
    %v9494 = vunpack.c.l.b16 %v8138
    %v9495 = vunpack.c.h.b16 %v8138
    %v9496 = vunpack.c.l.b16 %v8139
    %v9497 = vunpack.c.h.b16 %v8139
    %v9498 = vunpack.c.l.b16 %v8140
    %v9499 = vunpack.c.h.b16 %v8140
    %v9500 = vunpack.c.l.b16 %v8141
    %v9501 = vunpack.c.h.b16 %v8141
    %v9502 = vunpack.c.l.b16 %v8142
    %v9503 = vunpack.c.h.b16 %v8142
    %v9504 = vunpack.c.l.b16 %v8143
    %v9505 = vunpack.c.h.b16 %v8143
    %v9506 = vunpack.c.l.b16 %v8144
    %v9507 = vunpack.c.h.b16 %v8144
    %v9508 = vunpack.c.l.b16 %v8145
    %v9509 = vunpack.c.h.b16 %v8145
    %v9510 = vunpack.c.l.b16 %v8146
    %v9511 = vunpack.c.h.b16 %v8146
    %v9512 = vunpack.c.l.b16 %v8147
    %v9513 = vunpack.c.h.b16 %v8147
    %v9514 = vunpack.c.l.b16 %v8148
    %v9515 = vunpack.c.h.b16 %v8148
    %v9516 = vunpack.c.l.b16 %v8149
    %v9517 = vunpack.c.h.b16 %v8149
    %v9518 = vunpack.c.l.b16 %v8150
    %v9519 = vunpack.c.h.b16 %v8150
    %v9520 = vunpack.c.l.b16 %v8151
    %v9521 = vunpack.c.h.b16 %v8151
    %v9522 = vunpack.c.l.b16 %v8152
    %v9523 = vunpack.c.h.b16 %v8152
    %v9524 = vunpack.c.l.b16 %v8153
    %v9525 = vunpack.c.h.b16 %v8153
    %v9526 = vunpack.c.l.b16 %v8154
    %v9527 = vunpack.c.h.b16 %v8154
    %v9528 = vunpack.c.l.b16 %v8155
    %v9529 = vunpack.c.h.b16 %v8155
    %v9530 = vunpack.c.l.b16 %v8156
    %v9531 = vunpack.c.h.b16 %v8156
    %v9532 = vunpack.c.l.b16 %v8157
    %v9533 = vunpack.c.h.b16 %v8157
    %v9534 = vunpack.c.l.b16 %v8158
    %v9535 = vunpack.c.h.b16 %v8158
    %v9536 = vunpack.c.l.b16 %v8159
    %v9537 = vunpack.c.h.b16 %v8159
    %v9538 = vunpack.c.l.b16 %v8160
    %v9539 = vunpack.c.h.b16 %v8160
    %v9540 = vunpack.c.l.b16 %v8161
    %v9541 = vunpack.c.h.b16 %v8161
    %v9542 = vunpack.c.l.b16 %v8162
    %v9543 = vunpack.c.h.b16 %v8162
    %v9544 = vunpack.c.l.b16 %v8163
    %v9545 = vunpack.c.h.b16 %v8163
    %v9546 = vunpack.c.l.b16 %v8164
    %v9547 = vunpack.c.h.b16 %v8164
    %v9548 = vunpack.c.l.b16 %v8165
    %v9549 = vunpack.c.h.b16 %v8165
    %v9550 = vunpack.c.l.b16 %v8166
    %v9551 = vunpack.c.h.b16 %v8166
    %v9552 = vunpack.c.l.b16 %v8167
    %v9553 = vunpack.c.h.b16 %v8167
    %v9554 = vunpack.c.l.b16 %v8168
    %v9555 = vunpack.c.h.b16 %v8168
    %v9556 = vunpack.c.l.b16 %v8169
    %v9557 = vunpack.c.h.b16 %v8169
    %v9558 = vunpack.c.l.b16 %v8170
    %v9559 = vunpack.c.h.b16 %v8170
    %v9560 = vunpack.c.l.b16 %v8171
    %v9561 = vunpack.c.h.b16 %v8171
    %v9562 = vunpack.c.l.b16 %v8172
    %v9563 = vunpack.c.h.b16 %v8172
    %v9564 = vunpack.c.l.b16 %v8173
    %v9565 = vunpack.c.h.b16 %v8173
    %v9566 = vunpack.c.l.b16 %v8174
    %v9567 = vunpack.c.h.b16 %v8174
    %v9568 = vunpack.c.l.b16 %v8175
    %v9569 = vunpack.c.h.b16 %v8175
    %v9570 = vunpack.c.l.b16 %v8176
    %v9571 = vunpack.c.h.b16 %v8176
    %v9572 = vunpack.c.l.b16 %v8177
    %v9573 = vunpack.c.h.b16 %v8177
    %v9574 = vunpack.c.l.b16 %v8178
    %v9575 = vunpack.c.h.b16 %v8178
    %v9576 = vunpack.c.l.b16 %v8179
    %v9577 = vunpack.c.h.b16 %v8179
    %v9578 = vunpack.c.l.b16 %v8180
    %v9579 = vunpack.c.h.b16 %v8180
    %v9580 = vunpack.c.l.b16 %v8181
    %v9581 = vunpack.c.h.b16 %v8181
    %v9582 = vunpack.c.l.b16 %v8182
    %v9583 = vunpack.c.h.b16 %v8182
    %v9584 = vunpack.c.l.b16 %v8183
    %v9585 = vunpack.c.h.b16 %v8183
    %v9586 = vunpack.c.l.b16 %v8184
    %v9587 = vunpack.c.h.b16 %v8184
    %v9588 = vunpack.c.l.b16 %v8185
    %v9589 = vunpack.c.h.b16 %v8185
    %v9590 = vunpack.c.l.b16 %v8186
    %v9591 = vunpack.c.h.b16 %v8186
    %v9592 = vunpack.c.l.b16 %v8187
    %v9593 = vunpack.c.h.b16 %v8187
    %v9594 = vunpack.c.l.b16 %v8188
    %v9595 = vunpack.c.h.b16 %v8188
    %v9596 = vunpack.c.l.b16 %v8189
    %v9597 = vunpack.c.h.b16 %v8189
    %v9598 = vunpack.c.l.b16 %v8190
    %v9599 = vunpack.c.h.b16 %v8190
    %v9600 = vunpack.c.l.b16 %v8191
    %v9601 = vunpack.c.h.b16 %v8191
    %v9602 = vunpack.c.l.b16 %v8192
    %v9603 = vunpack.c.h.b16 %v8192
    %v9604 = vunpack.c.l.b16 %v8193
    %v9605 = vunpack.c.h.b16 %v8193
    %v9606 = vunpack.c.l.b16 %v8194
    %v9607 = vunpack.c.h.b16 %v8194
    %v9608 = vunpack.c.l.b16 %v8195
    %v9609 = vunpack.c.h.b16 %v8195
    %v9610 = vunpack.c.l.b16 %v8196
    %v9611 = vunpack.c.h.b16 %v8196
    %v9612 = vunpack.c.l.b16 %v8197
    %v9613 = vunpack.c.h.b16 %v8197
    %v9614 = vunpack.c.l.b16 %v8198
    %v9615 = vunpack.c.h.b16 %v8198
    %v9616 = vunpack.c.l.b16 %v8199
    %v9617 = vunpack.c.h.b16 %v8199
    %v9618 = vunpack.c.l.b16 %v8200
    %v9619 = vunpack.c.h.b16 %v8200
    %v9620 = vunpack.c.l.b16 %v8201
    %v9621 = vunpack.c.h.b16 %v8201
    %v9622 = vunpack.c.l.b16 %v8202
    %v9623 = vunpack.c.h.b16 %v8202
    %v9624 = vunpack.c.l.b16 %v8203
    %v9625 = vunpack.c.h.b16 %v8203
    %v9626 = vunpack.c.l.b16 %v8204
    %v9627 = vunpack.c.h.b16 %v8204
    %v9628 = vunpack.c.l.b16 %v8205
    %v9629 = vunpack.c.h.b16 %v8205
    %v9630 = vunpack.c.l.b16 %v8206
    %v9631 = vunpack.c.h.b16 %v8206
    %v9632 = vunpack.c.l.b16 %v8207
    %v9633 = vunpack.c.h.b16 %v8207
    %v9634 = vunpack.c.l.b16 %v8208
    %v9635 = vunpack.c.h.b16 %v8208
    %v9636 = vunpack.c.l.b16 %v8209
    %v9637 = vunpack.c.h.b16 %v8209
    %v9638 = vunpack.c.l.b16 %v8210
    %v9639 = vunpack.c.h.b16 %v8210
    %v9640 = vunpack.c.l.b16 %v8211
    %v9641 = vunpack.c.h.b16 %v8211
    %v9642 = vunpack.c.l.b16 %v8212
    %v9643 = vunpack.c.h.b16 %v8212
    %v9644 = vunpack.c.l.b16 %v8213
    %v9645 = vunpack.c.h.b16 %v8213
    %v9646 = vunpack.c.l.b16 %v8214
    %v9647 = vunpack.c.h.b16 %v8214
    %v9648 = vunpack.c.l.b16 %v8215
    %v9649 = vunpack.c.h.b16 %v8215
    %v9650 = vunpack.c.l.b16 %v8216
    %v9651 = vunpack.c.h.b16 %v8216
    %v9652 = vunpack.c.l.b16 %v8217
    %v9653 = vunpack.c.h.b16 %v8217
    %v9654 = vunpack.c.l.b16 %v8218
    %v9655 = vunpack.c.h.b16 %v8218
    %v9656 = vunpack.c.l.b16 %v8219
    %v9657 = vunpack.c.h.b16 %v8219
    %v9658 = vunpack.c.l.b16 %v8220
    %v9659 = vunpack.c.h.b16 %v8220
    %v9660 = vunpack.c.l.b16 %v8221
    %v9661 = vunpack.c.h.b16 %v8221
    %v9662 = vunpack.c.l.b16 %v8222
    %v9663 = vunpack.c.h.b16 %v8222
    %v9664 = vunpack.c.l.b16 %v8223
    %v9665 = vunpack.c.h.b16 %v8223
    %v9666 = vunpack.c.l.b16 %v8224
    %v9667 = vunpack.c.h.b16 %v8224
    %v9668 = vunpack.c.l.b16 %v8225
    %v9669 = vunpack.c.h.b16 %v8225
    %v9670 = vunpack.c.l.b16 %v8226
    %v9671 = vunpack.c.h.b16 %v8226
    %v9672 = vunpack.c.l.b16 %v8227
    %v9673 = vunpack.c.h.b16 %v8227
    %v9674 = vunpack.c.l.b16 %v8228
    %v9675 = vunpack.c.h.b16 %v8228
    %v9676 = vunpack.c.l.b16 %v8229
    %v9677 = vunpack.c.h.b16 %v8229
    %v9678 = vunpack.c.l.b16 %v8230
    %v9679 = vunpack.c.h.b16 %v8230
    %v9680 = vunpack.c.l.b16 %v8231
    %v9681 = vunpack.c.h.b16 %v8231
    %v9682 = vunpack.c.l.b16 %v8232
    %v9683 = vunpack.c.h.b16 %v8232
    %v9684 = vunpack.c.l.b16 %v8233
    %v9685 = vunpack.c.h.b16 %v8233
    %v9686 = vunpack.c.l.b16 %v8234
    %v9687 = vunpack.c.h.b16 %v8234
    %v9688 = vunpack.c.l.b16 %v8235
    %v9689 = vunpack.c.h.b16 %v8235
    %v9690 = vunpack.c.l.b16 %v8236
    %v9691 = vunpack.c.h.b16 %v8236
    %v9692 = vunpack.c.l.b16 %v8237
    %v9693 = vunpack.c.h.b16 %v8237
    %v9694 = vunpack.c.l.b16 %v8238
    %v9695 = vunpack.c.h.b16 %v8238
    %v9696 = vunpack.c.l.b16 %v8239
    %v9697 = vunpack.c.h.b16 %v8239
    %v9698 = vunpack.c.l.b16 %v8240
    %v9699 = vunpack.c.h.b16 %v8240
    %v9700 = vunpack.c.l.b16 %v8241
    %v9701 = vunpack.c.h.b16 %v8241
    %v9702 = vunpack.c.l.b16 %v8242
    %v9703 = vunpack.c.h.b16 %v8242
    %v9704 = vunpack.c.l.b16 %v8243
    %v9705 = vunpack.c.h.b16 %v8243
    %v9706 = vunpack.c.l.b16 %v8244
    %v9707 = vunpack.c.h.b16 %v8244
    %v9708 = vunpack.c.l.b16 %v8245
    %v9709 = vunpack.c.h.b16 %v8245
    %v9710 = vunpack.c.l.b16 %v8246
    %v9711 = vunpack.c.h.b16 %v8246
    %v9712 = vunpack.c.l.b16 %v8247
    %v9713 = vunpack.c.h.b16 %v8247
    %v9714 = vunpack.c.l.b16 %v8248
    %v9715 = vunpack.c.h.b16 %v8248
    %v9716 = vunpack.c.l.b16 %v8249
    %v9717 = vunpack.c.h.b16 %v8249
    %v9718 = vunpack.c.l.b16 %v8250
    %v9719 = vunpack.c.h.b16 %v8250
    %v9720 = vunpack.c.l.b16 %v8251
    %v9721 = vunpack.c.h.b16 %v8251
    %v9722 = vunpack.c.l.b16 %v8252
    %v9723 = vunpack.c.h.b16 %v8252
    %v9724 = vunpack.c.l.b16 %v8253
    %v9725 = vunpack.c.h.b16 %v8253
    %v9726 = vunpack.c.l.b16 %v8254
    %v9727 = vunpack.c.h.b16 %v8254
    %v9728 = vunpack.c.l.b16 %v8255
    %v9729 = vunpack.c.h.b16 %v8255
    %v9730 = vunpack.c.l.b16 %v8256
    %v9731 = vunpack.c.h.b16 %v8256
    %v9732 = vunpack.c.l.b16 %v8257
    %v9733 = vunpack.c.h.b16 %v8257
    %v9734 = vunpack.c.l.b16 %v8258
    %v9735 = vunpack.c.h.b16 %v8258
    %v9736 = vunpack.c.l.b16 %v8259
    %v9737 = vunpack.c.h.b16 %v8259
    %v9738 = vunpack.c.l.b16 %v8260
    %v9739 = vunpack.c.h.b16 %v8260
    %v9740 = vunpack.c.l.b16 %v8261
    %v9741 = vunpack.c.h.b16 %v8261
    %v9742 = vunpack.c.l.b16 %v8262
    %v9743 = vunpack.c.h.b16 %v8262
    %v9744 = vunpack.c.l.b16 %v8263
    %v9745 = vunpack.c.h.b16 %v8263
    %v9746 = vunpack.c.l.b16 %v8264
    %v9747 = vunpack.c.h.b16 %v8264
    %v9748 = vunpack.c.l.b16 %v8265
    %v9749 = vunpack.c.h.b16 %v8265
    %v9750 = vunpack.c.l.b16 %v8266
    %v9751 = vunpack.c.h.b16 %v8266
    %v9752 = vunpack.c.l.b16 %v8267
    %v9753 = vunpack.c.h.b16 %v8267
    %v9754 = vunpack.c.l.b16 %v8268
    %v9755 = vunpack.c.h.b16 %v8268
    %v9756 = vunpack.c.l.b16 %v8269
    %v9757 = vunpack.c.h.b16 %v8269
    %v9758 = vunpack.c.l.b16 %v8270
    %v9759 = vunpack.c.h.b16 %v8270
    %v9760 = vunpack.c.l.b16 %v8271
    %v9761 = vunpack.c.h.b16 %v8271
    %v9762 = vunpack.c.l.b16 %v8272
    %v9763 = vunpack.c.h.b16 %v8272
    %v9764 = vunpack.c.l.b16 %v8273
    %v9765 = vunpack.c.h.b16 %v8273
    %v9766 = vunpack.c.l.b16 %v8274
    %v9767 = vunpack.c.h.b16 %v8274
    %v9768 = vunpack.c.l.b16 %v8275
    %v9769 = vunpack.c.h.b16 %v8275
    %v9770 = vunpack.c.l.b16 %v8276
    %v9771 = vunpack.c.h.b16 %v8276
    %v9772 = vunpack.c.l.b16 %v8277
    %v9773 = vunpack.c.h.b16 %v8277
    %v9774 = vunpack.c.l.b16 %v8278
    %v9775 = vunpack.c.h.b16 %v8278
    %v9776 = vunpack.c.l.b16 %v8279
    %v9777 = vunpack.c.h.b16 %v8279
    %v9778 = vunpack.c.l.b16 %v8280
    %v9779 = vunpack.c.h.b16 %v8280
    %v9780 = vunpack.c.l.b16 %v8281
    %v9781 = vunpack.c.h.b16 %v8281
    %v9782 = vunpack.c.l.b16 %v8282
    %v9783 = vunpack.c.h.b16 %v8282
    %v9784 = vunpack.c.l.b16 %v8283
    %v9785 = vunpack.c.h.b16 %v8283
    %v9786 = vunpack.c.l.b16 %v8284
    %v9787 = vunpack.c.h.b16 %v8284
    %v9788 = vunpack.c.l.b16 %v8285
    %v9789 = vunpack.c.h.b16 %v8285
    %v9790 = vunpack.c.l.b16 %v8286
    %v9791 = vunpack.c.h.b16 %v8286
    %v9792 = vunpack.c.l.b16 %v8287
    %v9793 = vunpack.c.h.b16 %v8287
    %v9794 = vunpack.c.l.b16 %v8288
    %v9795 = vunpack.c.h.b16 %v8288
    %v9796 = vunpack.c.l.b16 %v8289
    %v9797 = vunpack.c.h.b16 %v8289
    %v9798 = vunpack.c.l.b16 %v8290
    %v9799 = vunpack.c.h.b16 %v8290
    %v9800 = vunpack.c.l.b16 %v8291
    %v9801 = vunpack.c.h.b16 %v8291
    %v9802 = vunpack.c.l.b16 %v8292
    %v9803 = vunpack.c.h.b16 %v8292
    %v9804 = vunpack.c.l.b16 %v8293
    %v9805 = vunpack.c.h.b16 %v8293
    %v9806 = vunpack.c.l.b16 %v8294
    %v9807 = vunpack.c.h.b16 %v8294
    %v9808 = vunpack.c.l.b16 %v8295
    %v9809 = vunpack.c.h.b16 %v8295
    %v9810 = vunpack.c.l.b16 %v8296
    %v9811 = vunpack.c.h.b16 %v8296
    %v9812 = vunpack.c.l.b16 %v8297
    %v9813 = vunpack.c.h.b16 %v8297
    %v9814 = vunpack.c.l.b16 %v8298
    %v9815 = vunpack.c.h.b16 %v8298
    %v9816 = vunpack.c.l.b16 %v8299
    %v9817 = vunpack.c.h.b16 %v8299
    %v9818 = vunpack.c.l.b16 %v8300
    %v9819 = vunpack.c.h.b16 %v8300
    %v9820 = vunpack.c.l.b16 %v8301
    %v9821 = vunpack.c.h.b16 %v8301
    %v9822 = vunpack.c.l.b16 %v8302
    %v9823 = vunpack.c.h.b16 %v8302
    %v9824 = vunpack.c.l.b16 %v8303
    %v9825 = vunpack.c.h.b16 %v8303
    %v9826 = vunpack.c.l.b16 %v8304
    %v9827 = vunpack.c.h.b16 %v8304
    %v9828 = vunpack.c.l.b16 %v8305
    %v9829 = vunpack.c.h.b16 %v8305
    %v9830 = vunpack.c.l.b16 %v8306
    %v9831 = vunpack.c.h.b16 %v8306
    %v9832 = vunpack.c.l.b16 %v8307
    %v9833 = vunpack.c.h.b16 %v8307
    %v9834 = vunpack.c.l.b16 %v8308
    %v9835 = vunpack.c.h.b16 %v8308
    %v9836 = vunpack.c.l.b16 %v8309
    %v9837 = vunpack.c.h.b16 %v8309
    %v9838 = vunpack.c.l.b16 %v8310
    %v9839 = vunpack.c.h.b16 %v8310
    %v9840 = vunpack.c.l.b16 %v8311
    %v9841 = vunpack.c.h.b16 %v8311
    %v9842 = vunpack.c.l.b16 %v8312
    %v9843 = vunpack.c.h.b16 %v8312
    %v9844 = vunpack.c.l.b16 %v8313
    %v9845 = vunpack.c.h.b16 %v8313
    %v9846 = vunpack.c.l.b16 %v8314
    %v9847 = vunpack.c.h.b16 %v8314
    %v9848 = vunpack.c.l.b16 %v8315
    %v9849 = vunpack.c.h.b16 %v8315
    %v9850 = vunpack.c.l.b16 %v8316
    %v9851 = vunpack.c.h.b16 %v8316
    %v9852 = vunpack.c.l.b16 %v8317
    %v9853 = vunpack.c.h.b16 %v8317
    %v9854 = vunpack.c.l.b16 %v8318
    %v9855 = vunpack.c.h.b16 %v8318
    %v9856 = vunpack.c.l.b16 %v8319
    %v9857 = vunpack.c.h.b16 %v8319
    %v9858 = vunpack.c.l.b16 %v8320
    %v9859 = vunpack.c.h.b16 %v8320
    %v9860 = vunpack.c.l.b16 %v8321
    %v9861 = vunpack.c.h.b16 %v8321
    %v9862 = vunpack.c.l.b16 %v8322
    %v9863 = vunpack.c.h.b16 %v8322
    %v9864 = vunpack.c.l.b16 %v8323
    %v9865 = vunpack.c.h.b16 %v8323
    %v9866 = vunpack.c.l.b16 %v8324
    %v9867 = vunpack.c.h.b16 %v8324
    %v9868 = vunpack.c.l.b16 %v8325
    %v9869 = vunpack.c.h.b16 %v8325
    %v9870 = vunpack.c.l.b16 %v8326
    %v9871 = vunpack.c.h.b16 %v8326
    %v9872 = vunpack.c.l.b16 %v8327
    %v9873 = vunpack.c.h.b16 %v8327
    %v9874 = vunpack.c.l.b16 %v8328
    %v9875 = vunpack.c.h.b16 %v8328
    %v9876 = vunpack.c.l.b16 %v8329
    %v9877 = vunpack.c.h.b16 %v8329
    %v9878 = vunpack.c.l.b16 %v8330
    %v9879 = vunpack.c.h.b16 %v8330
    %v9880 = vunpack.c.l.b16 %v8331
    %v9881 = vunpack.c.h.b16 %v8331
    %v9882 = vunpack.c.l.b16 %v8332
    %v9883 = vunpack.c.h.b16 %v8332
    %v9884 = vunpack.c.l.b16 %v8333
    %v9885 = vunpack.c.h.b16 %v8333
    %v9886 = vunpack.c.l.b16 %v8334
    %v9887 = vunpack.c.h.b16 %v8334
    %v9888 = vunpack.c.l.b16 %v8335
    %v9889 = vunpack.c.h.b16 %v8335
    %v9890 = vunpack.c.l.b16 %v8336
    %v9891 = vunpack.c.h.b16 %v8336
    %v9892 = vunpack.c.l.b16 %v8337
    %v9893 = vunpack.c.h.b16 %v8337
    %v9894 = vunpack.c.l.b16 %v8338
    %v9895 = vunpack.c.h.b16 %v8338
    %v9896 = vunpack.c.l.b16 %v8339
    %v9897 = vunpack.c.h.b16 %v8339
    %v9898 = vunpack.c.l.b16 %v8340
    %v9899 = vunpack.c.h.b16 %v8340
    %v9900 = vunpack.c.l.b16 %v8341
    %v9901 = vunpack.c.h.b16 %v8341
    %v9902 = vunpack.c.l.b16 %v8342
    %v9903 = vunpack.c.h.b16 %v8342
    %v9904 = vunpack.c.l.b16 %v8343
    %v9905 = vunpack.c.h.b16 %v8343
    %v9906 = vunpack.c.l.b16 %v8344
    %v9907 = vunpack.c.h.b16 %v8344
    %v9908 = vunpack.c.l.b16 %v8345
    %v9909 = vunpack.c.h.b16 %v8345
    %v9910 = vunpack.c.l.b16 %v8346
    %v9911 = vunpack.c.h.b16 %v8346
    %v9912 = vunpack.c.l.b16 %v8347
    %v9913 = vunpack.c.h.b16 %v8347
    %v9914 = vunpack.c.l.b16 %v8348
    %v9915 = vunpack.c.h.b16 %v8348
    %v9916 = vunpack.c.l.b16 %v8349
    %v9917 = vunpack.c.h.b16 %v8349
    %v9918 = vunpack.c.l.b16 %v8350
    %v9919 = vunpack.c.h.b16 %v8350
    %v9920 = vunpack.c.l.b16 %v8351
    %v9921 = vunpack.c.h.b16 %v8351
    %v9922 = vunpack.c.l.b16 %v8352
    %v9923 = vunpack.c.h.b16 %v8352
    %v9924 = vunpack.c.l.b16 %v8353
    %v9925 = vunpack.c.h.b16 %v8353
    %v9926 = vunpack.c.l.b16 %v8354
    %v9927 = vunpack.c.h.b16 %v8354
    %v9928 = vunpack.c.l.b16 %v8355
    %v9929 = vunpack.c.h.b16 %v8355
    %v9930 = vunpack.c.l.b16 %v8356
    %v9931 = vunpack.c.h.b16 %v8356
    %v9932 = vunpack.c.l.b16 %v8357
    %v9933 = vunpack.c.h.b16 %v8357
    %v9934 = vunpack.c.l.b16 %v8358
    %v9935 = vunpack.c.h.b16 %v8358
    %v9936 = vunpack.c.l.b16 %v8359
    %v9937 = vunpack.c.h.b16 %v8359
    %v9938 = vpack.c.b16 %v8922, %v8914
    %v9939 = vpack.c.b16 %v8923, %v8915
    %v9940 = vpack.c.b16 %v8924, %v8916
    %v9941 = vpack.c.b16 %v8925, %v8917
    %v9942 = vpack.c.b16 %v8926, %v8918
    %v9943 = vpack.c.b16 %v8927, %v8919
    %v9944 = vpack.c.b16 %v8928, %v8920
    %v9945 = vpack.c.b16 %v8929, %v8921
    %v9946 = vpack.c.b16 %v8938, %v8930
    %v9947 = vpack.c.b16 %v8939, %v8931
    %v9948 = vpack.c.b16 %v8940, %v8932
    %v9949 = vpack.c.b16 %v8941, %v8933
    %v9950 = vpack.c.b16 %v8942, %v8934
    %v9951 = vpack.c.b16 %v8943, %v8935
    %v9952 = vpack.c.b16 %v8944, %v8936
    %v9953 = vpack.c.b16 %v8945, %v8937
    %v9954 = vpack.c.b16 %v8954, %v8946
    %v9955 = vpack.c.b16 %v8955, %v8947
    %v9956 = vpack.c.b16 %v8956, %v8948
    %v9957 = vpack.c.b16 %v8957, %v8949
    %v9958 = vpack.c.b16 %v8958, %v8950
    %v9959 = vpack.c.b16 %v8959, %v8951
    %v9960 = vpack.c.b16 %v8960, %v8952
    %v9961 = vpack.c.b16 %v8961, %v8953
    %v9962 = vpack.c.b16 %v8970, %v8962
    %v9963 = vpack.c.b16 %v8971, %v8963
    %v9964 = vpack.c.b16 %v8972, %v8964
    %v9965 = vpack.c.b16 %v8973, %v8965
    %v9966 = vpack.c.b16 %v8974, %v8966
    %v9967 = vpack.c.b16 %v8975, %v8967
    %v9968 = vpack.c.b16 %v8976, %v8968
    %v9969 = vpack.c.b16 %v8977, %v8969
    %v9970 = vpack.c.b16 %v8986, %v8978
    %v9971 = vpack.c.b16 %v8987, %v8979
    %v9972 = vpack.c.b16 %v8988, %v8980
    %v9973 = vpack.c.b16 %v8989, %v8981
    %v9974 = vpack.c.b16 %v8990, %v8982
    %v9975 = vpack.c.b16 %v8991, %v8983
    %v9976 = vpack.c.b16 %v8992, %v8984
    %v9977 = vpack.c.b16 %v8993, %v8985
    %v9978 = vpack.c.b16 %v9002, %v8994
    %v9979 = vpack.c.b16 %v9003, %v8995
    %v9980 = vpack.c.b16 %v9004, %v8996
    %v9981 = vpack.c.b16 %v9005, %v8997
    %v9982 = vpack.c.b16 %v9006, %v8998
    %v9983 = vpack.c.b16 %v9007, %v8999
    %v9984 = vpack.c.b16 %v9008, %v9000
    %v9985 = vpack.c.b16 %v9009, %v9001
    %v9986 = vpack.c.b16 %v9018, %v9010
    %v9987 = vpack.c.b16 %v9019, %v9011
    %v9988 = vpack.c.b16 %v9020, %v9012
    %v9989 = vpack.c.b16 %v9021, %v9013
    %v9990 = vpack.c.b16 %v9022, %v9014
    %v9991 = vpack.c.b16 %v9023, %v9015
    %v9992 = vpack.c.b16 %v9024, %v9016
    %v9993 = vpack.c.b16 %v9025, %v9017
    %v9994 = vpack.c.b16 %v9034, %v9026
    %v9995 = vpack.c.b16 %v9035, %v9027
    %v9996 = vpack.c.b16 %v9036, %v9028
    %v9997 = vpack.c.b16 %v9037, %v9029
    %v9998 = vpack.c.b16 %v9038, %v9030
    %v9999 = vpack.c.b16 %v9039, %v9031
    %v10000 = vpack.c.b16 %v9040, %v9032
    %v10001 = vpack.c.b16 %v9041, %v9033
    %v10002 = vpack.c.b16 %v9050, %v9042
    %v10003 = vpack.c.b16 %v9051, %v9043
    %v10004 = vpack.c.b16 %v9052, %v9044
    %v10005 = vpack.c.b16 %v9053, %v9045
    %v10006 = vpack.c.b16 %v9054, %v9046
    %v10007 = vpack.c.b16 %v9055, %v9047
    %v10008 = vpack.c.b16 %v9056, %v9048
    %v10009 = vpack.c.b16 %v9057, %v9049
    %v10010 = vpack.c.b16 %v9066, %v9058
    %v10011 = vpack.c.b16 %v9067, %v9059
    %v10012 = vpack.c.b16 %v9068, %v9060
    %v10013 = vpack.c.b16 %v9069, %v9061
    %v10014 = vpack.c.b16 %v9070, %v9062
    %v10015 = vpack.c.b16 %v9071, %v9063
    %v10016 = vpack.c.b16 %v9072, %v9064
    %v10017 = vpack.c.b16 %v9073, %v9065
    %v10018 = vpack.c.b16 %v9082, %v9074
    %v10019 = vpack.c.b16 %v9083, %v9075
    %v10020 = vpack.c.b16 %v9084, %v9076
    %v10021 = vpack.c.b16 %v9085, %v9077
    %v10022 = vpack.c.b16 %v9086, %v9078
    %v10023 = vpack.c.b16 %v9087, %v9079
    %v10024 = vpack.c.b16 %v9088, %v9080
    %v10025 = vpack.c.b16 %v9089, %v9081
    %v10026 = vpack.c.b16 %v9098, %v9090
    %v10027 = vpack.c.b16 %v9099, %v9091
    %v10028 = vpack.c.b16 %v9100, %v9092
    %v10029 = vpack.c.b16 %v9101, %v9093
    %v10030 = vpack.c.b16 %v9102, %v9094
    %v10031 = vpack.c.b16 %v9103, %v9095
    %v10032 = vpack.c.b16 %v9104, %v9096
    %v10033 = vpack.c.b16 %v9105, %v9097
    %v10034 = vpack.c.b16 %v9114, %v9106
    %v10035 = vpack.c.b16 %v9115, %v9107
    %v10036 = vpack.c.b16 %v9116, %v9108
    %v10037 = vpack.c.b16 %v9117, %v9109
    %v10038 = vpack.c.b16 %v9118, %v9110
    %v10039 = vpack.c.b16 %v9119, %v9111
    %v10040 = vpack.c.b16 %v9120, %v9112
    %v10041 = vpack.c.b16 %v9121, %v9113
    %v10042 = vpack.c.b16 %v9130, %v9122
    %v10043 = vpack.c.b16 %v9131, %v9123
    %v10044 = vpack.c.b16 %v9132, %v9124
    %v10045 = vpack.c.b16 %v9133, %v9125
    %v10046 = vpack.c.b16 %v9134, %v9126
    %v10047 = vpack.c.b16 %v9135, %v9127
    %v10048 = vpack.c.b16 %v9136, %v9128
    %v10049 = vpack.c.b16 %v9137, %v9129
    %v10050 = vpack.c.b16 %v9146, %v9138
    %v10051 = vpack.c.b16 %v9147, %v9139
    %v10052 = vpack.c.b16 %v9148, %v9140
    %v10053 = vpack.c.b16 %v9149, %v9141
    %v10054 = vpack.c.b16 %v9150, %v9142
    %v10055 = vpack.c.b16 %v9151, %v9143
    %v10056 = vpack.c.b16 %v9152, %v9144
    %v10057 = vpack.c.b16 %v9153, %v9145
    %v10058 = vpack.c.b16 %v9162, %v9154
    %v10059 = vpack.c.b16 %v9163, %v9155
    %v10060 = vpack.c.b16 %v9164, %v9156
    %v10061 = vpack.c.b16 %v9165, %v9157
    %v10062 = vpack.c.b16 %v9166, %v9158
    %v10063 = vpack.c.b16 %v9167, %v9159
    %v10064 = vpack.c.b16 %v9168, %v9160
    %v10065 = vpack.c.b16 %v9169, %v9161
    %v10066 = vpack.c.b16 %v9178, %v9170
    %v10067 = vpack.c.b16 %v9179, %v9171
    %v10068 = vpack.c.b16 %v9180, %v9172
    %v10069 = vpack.c.b16 %v9181, %v9173
    %v10070 = vpack.c.b16 %v9182, %v9174
    %v10071 = vpack.c.b16 %v9183, %v9175
    %v10072 = vpack.c.b16 %v9184, %v9176
    %v10073 = vpack.c.b16 %v9185, %v9177
    %v10074 = vpack.c.b16 %v9194, %v9186
    %v10075 = vpack.c.b16 %v9195, %v9187
    %v10076 = vpack.c.b16 %v9196, %v9188
    %v10077 = vpack.c.b16 %v9197, %v9189
    %v10078 = vpack.c.b16 %v9198, %v9190
    %v10079 = vpack.c.b16 %v9199, %v9191
    %v10080 = vpack.c.b16 %v9200, %v9192
    %v10081 = vpack.c.b16 %v9201, %v9193
    %v10082 = vpack.c.b16 %v9210, %v9202
    %v10083 = vpack.c.b16 %v9211, %v9203
    %v10084 = vpack.c.b16 %v9212, %v9204
    %v10085 = vpack.c.b16 %v9213, %v9205
    %v10086 = vpack.c.b16 %v9214, %v9206
    %v10087 = vpack.c.b16 %v9215, %v9207
    %v10088 = vpack.c.b16 %v9216, %v9208
    %v10089 = vpack.c.b16 %v9217, %v9209
    %v10090 = vpack.c.b16 %v9226, %v9218
    %v10091 = vpack.c.b16 %v9227, %v9219
    %v10092 = vpack.c.b16 %v9228, %v9220
    %v10093 = vpack.c.b16 %v9229, %v9221
    %v10094 = vpack.c.b16 %v9230, %v9222
    %v10095 = vpack.c.b16 %v9231, %v9223
    %v10096 = vpack.c.b16 %v9232, %v9224
    %v10097 = vpack.c.b16 %v9233, %v9225
    %v10098 = vpack.c.b16 %v9242, %v9234
    %v10099 = vpack.c.b16 %v9243, %v9235
    %v10100 = vpack.c.b16 %v9244, %v9236
    %v10101 = vpack.c.b16 %v9245, %v9237
    %v10102 = vpack.c.b16 %v9246, %v9238
    %v10103 = vpack.c.b16 %v9247, %v9239
    %v10104 = vpack.c.b16 %v9248, %v9240
    %v10105 = vpack.c.b16 %v9249, %v9241
    %v10106 = vpack.c.b16 %v9258, %v9250
    %v10107 = vpack.c.b16 %v9259, %v9251
    %v10108 = vpack.c.b16 %v9260, %v9252
    %v10109 = vpack.c.b16 %v9261, %v9253
    %v10110 = vpack.c.b16 %v9262, %v9254
    %v10111 = vpack.c.b16 %v9263, %v9255
    %v10112 = vpack.c.b16 %v9264, %v9256
    %v10113 = vpack.c.b16 %v9265, %v9257
    %v10114 = vpack.c.b16 %v9274, %v9266
    %v10115 = vpack.c.b16 %v9275, %v9267
    %v10116 = vpack.c.b16 %v9276, %v9268
    %v10117 = vpack.c.b16 %v9277, %v9269
    %v10118 = vpack.c.b16 %v9278, %v9270
    %v10119 = vpack.c.b16 %v9279, %v9271
    %v10120 = vpack.c.b16 %v9280, %v9272
    %v10121 = vpack.c.b16 %v9281, %v9273
    %v10122 = vpack.c.b16 %v9290, %v9282
    %v10123 = vpack.c.b16 %v9291, %v9283
    %v10124 = vpack.c.b16 %v9292, %v9284
    %v10125 = vpack.c.b16 %v9293, %v9285
    %v10126 = vpack.c.b16 %v9294, %v9286
    %v10127 = vpack.c.b16 %v9295, %v9287
    %v10128 = vpack.c.b16 %v9296, %v9288
    %v10129 = vpack.c.b16 %v9297, %v9289
    %v10130 = vpack.c.b16 %v9306, %v9298
    %v10131 = vpack.c.b16 %v9307, %v9299
    %v10132 = vpack.c.b16 %v9308, %v9300
    %v10133 = vpack.c.b16 %v9309, %v9301
    %v10134 = vpack.c.b16 %v9310, %v9302
    %v10135 = vpack.c.b16 %v9311, %v9303
    %v10136 = vpack.c.b16 %v9312, %v9304
    %v10137 = vpack.c.b16 %v9313, %v9305
    %v10138 = vpack.c.b16 %v9322, %v9314
    %v10139 = vpack.c.b16 %v9323, %v9315
    %v10140 = vpack.c.b16 %v9324, %v9316
    %v10141 = vpack.c.b16 %v9325, %v9317
    %v10142 = vpack.c.b16 %v9326, %v9318
    %v10143 = vpack.c.b16 %v9327, %v9319
    %v10144 = vpack.c.b16 %v9328, %v9320
    %v10145 = vpack.c.b16 %v9329, %v9321
    %v10146 = vpack.c.b16 %v9338, %v9330
    %v10147 = vpack.c.b16 %v9339, %v9331
    %v10148 = vpack.c.b16 %v9340, %v9332
    %v10149 = vpack.c.b16 %v9341, %v9333
    %v10150 = vpack.c.b16 %v9342, %v9334
    %v10151 = vpack.c.b16 %v9343, %v9335
    %v10152 = vpack.c.b16 %v9344, %v9336
    %v10153 = vpack.c.b16 %v9345, %v9337
    %v10154 = vpack.c.b16 %v9354, %v9346
    %v10155 = vpack.c.b16 %v9355, %v9347
    %v10156 = vpack.c.b16 %v9356, %v9348
    %v10157 = vpack.c.b16 %v9357, %v9349
    %v10158 = vpack.c.b16 %v9358, %v9350
    %v10159 = vpack.c.b16 %v9359, %v9351
    %v10160 = vpack.c.b16 %v9360, %v9352
    %v10161 = vpack.c.b16 %v9361, %v9353
    %v10162 = vpack.c.b16 %v9370, %v9362
    %v10163 = vpack.c.b16 %v9371, %v9363
    %v10164 = vpack.c.b16 %v9372, %v9364
    %v10165 = vpack.c.b16 %v9373, %v9365
    %v10166 = vpack.c.b16 %v9374, %v9366
    %v10167 = vpack.c.b16 %v9375, %v9367
    %v10168 = vpack.c.b16 %v9376, %v9368
    %v10169 = vpack.c.b16 %v9377, %v9369
    %v10170 = vpack.c.b16 %v9386, %v9378
    %v10171 = vpack.c.b16 %v9387, %v9379
    %v10172 = vpack.c.b16 %v9388, %v9380
    %v10173 = vpack.c.b16 %v9389, %v9381
    %v10174 = vpack.c.b16 %v9390, %v9382
    %v10175 = vpack.c.b16 %v9391, %v9383
    %v10176 = vpack.c.b16 %v9392, %v9384
    %v10177 = vpack.c.b16 %v9393, %v9385
    %v10178 = vpack.c.b16 %v9402, %v9394
    %v10179 = vpack.c.b16 %v9403, %v9395
    %v10180 = vpack.c.b16 %v9404, %v9396
    %v10181 = vpack.c.b16 %v9405, %v9397
    %v10182 = vpack.c.b16 %v9406, %v9398
    %v10183 = vpack.c.b16 %v9407, %v9399
    %v10184 = vpack.c.b16 %v9408, %v9400
    %v10185 = vpack.c.b16 %v9409, %v9401
    %v10186 = vpack.c.b16 %v9418, %v9410
    %v10187 = vpack.c.b16 %v9419, %v9411
    %v10188 = vpack.c.b16 %v9420, %v9412
    %v10189 = vpack.c.b16 %v9421, %v9413
    %v10190 = vpack.c.b16 %v9422, %v9414
    %v10191 = vpack.c.b16 %v9423, %v9415
    %v10192 = vpack.c.b16 %v9424, %v9416
    %v10193 = vpack.c.b16 %v9425, %v9417
    %v10194 = vpack.c.b16 %v9434, %v9426
    %v10195 = vpack.c.b16 %v9435, %v9427
    %v10196 = vpack.c.b16 %v9436, %v9428
    %v10197 = vpack.c.b16 %v9437, %v9429
    %v10198 = vpack.c.b16 %v9438, %v9430
    %v10199 = vpack.c.b16 %v9439, %v9431
    %v10200 = vpack.c.b16 %v9440, %v9432
    %v10201 = vpack.c.b16 %v9441, %v9433
    %v10202 = vpack.c.b16 %v9450, %v9442
    %v10203 = vpack.c.b16 %v9451, %v9443
    %v10204 = vpack.c.b16 %v9452, %v9444
    %v10205 = vpack.c.b16 %v9453, %v9445
    %v10206 = vpack.c.b16 %v9454, %v9446
    %v10207 = vpack.c.b16 %v9455, %v9447
    %v10208 = vpack.c.b16 %v9456, %v9448
    %v10209 = vpack.c.b16 %v9457, %v9449
    %v10210 = vpack.c.b16 %v9466, %v9458
    %v10211 = vpack.c.b16 %v9467, %v9459
    %v10212 = vpack.c.b16 %v9468, %v9460
    %v10213 = vpack.c.b16 %v9469, %v9461
    %v10214 = vpack.c.b16 %v9470, %v9462
    %v10215 = vpack.c.b16 %v9471, %v9463
    %v10216 = vpack.c.b16 %v9472, %v9464
    %v10217 = vpack.c.b16 %v9473, %v9465
    %v10218 = vpack.c.b16 %v9482, %v9474
    %v10219 = vpack.c.b16 %v9483, %v9475
    %v10220 = vpack.c.b16 %v9484, %v9476
    %v10221 = vpack.c.b16 %v9485, %v9477
    %v10222 = vpack.c.b16 %v9486, %v9478
    %v10223 = vpack.c.b16 %v9487, %v9479
    %v10224 = vpack.c.b16 %v9488, %v9480
    %v10225 = vpack.c.b16 %v9489, %v9481
    %v10226 = vpack.c.b16 %v9498, %v9490
    %v10227 = vpack.c.b16 %v9499, %v9491
    %v10228 = vpack.c.b16 %v9500, %v9492
    %v10229 = vpack.c.b16 %v9501, %v9493
    %v10230 = vpack.c.b16 %v9502, %v9494
    %v10231 = vpack.c.b16 %v9503, %v9495
    %v10232 = vpack.c.b16 %v9504, %v9496
    %v10233 = vpack.c.b16 %v9505, %v9497
    %v10234 = vpack.c.b16 %v9514, %v9506
    %v10235 = vpack.c.b16 %v9515, %v9507
    %v10236 = vpack.c.b16 %v9516, %v9508
    %v10237 = vpack.c.b16 %v9517, %v9509
    %v10238 = vpack.c.b16 %v9518, %v9510
    %v10239 = vpack.c.b16 %v9519, %v9511
    %v10240 = vpack.c.b16 %v9520, %v9512
    %v10241 = vpack.c.b16 %v9521, %v9513
    %v10242 = vpack.c.b16 %v9530, %v9522
    %v10243 = vpack.c.b16 %v9531, %v9523
    %v10244 = vpack.c.b16 %v9532, %v9524
    %v10245 = vpack.c.b16 %v9533, %v9525
    %v10246 = vpack.c.b16 %v9534, %v9526
    %v10247 = vpack.c.b16 %v9535, %v9527
    %v10248 = vpack.c.b16 %v9536, %v9528
    %v10249 = vpack.c.b16 %v9537, %v9529
    %v10250 = vpack.c.b16 %v9546, %v9538
    %v10251 = vpack.c.b16 %v9547, %v9539
    %v10252 = vpack.c.b16 %v9548, %v9540
    %v10253 = vpack.c.b16 %v9549, %v9541
    %v10254 = vpack.c.b16 %v9550, %v9542
    %v10255 = vpack.c.b16 %v9551, %v9543
    %v10256 = vpack.c.b16 %v9552, %v9544
    %v10257 = vpack.c.b16 %v9553, %v9545
    %v10258 = vpack.c.b16 %v9562, %v9554
    %v10259 = vpack.c.b16 %v9563, %v9555
    %v10260 = vpack.c.b16 %v9564, %v9556
    %v10261 = vpack.c.b16 %v9565, %v9557
    %v10262 = vpack.c.b16 %v9566, %v9558
    %v10263 = vpack.c.b16 %v9567, %v9559
    %v10264 = vpack.c.b16 %v9568, %v9560
    %v10265 = vpack.c.b16 %v9569, %v9561
    %v10266 = vpack.c.b16 %v9578, %v9570
    %v10267 = vpack.c.b16 %v9579, %v9571
    %v10268 = vpack.c.b16 %v9580, %v9572
    %v10269 = vpack.c.b16 %v9581, %v9573
    %v10270 = vpack.c.b16 %v9582, %v9574
    %v10271 = vpack.c.b16 %v9583, %v9575
    %v10272 = vpack.c.b16 %v9584, %v9576
    %v10273 = vpack.c.b16 %v9585, %v9577
    %v10274 = vpack.c.b16 %v9594, %v9586
    %v10275 = vpack.c.b16 %v9595, %v9587
    %v10276 = vpack.c.b16 %v9596, %v9588
    %v10277 = vpack.c.b16 %v9597, %v9589
    %v10278 = vpack.c.b16 %v9598, %v9590
    %v10279 = vpack.c.b16 %v9599, %v9591
    %v10280 = vpack.c.b16 %v9600, %v9592
    %v10281 = vpack.c.b16 %v9601, %v9593
    %v10282 = vpack.c.b16 %v9610, %v9602
    %v10283 = vpack.c.b16 %v9611, %v9603
    %v10284 = vpack.c.b16 %v9612, %v9604
    %v10285 = vpack.c.b16 %v9613, %v9605
    %v10286 = vpack.c.b16 %v9614, %v9606
    %v10287 = vpack.c.b16 %v9615, %v9607
    %v10288 = vpack.c.b16 %v9616, %v9608
    %v10289 = vpack.c.b16 %v9617, %v9609
    %v10290 = vpack.c.b16 %v9626, %v9618
    %v10291 = vpack.c.b16 %v9627, %v9619
    %v10292 = vpack.c.b16 %v9628, %v9620
    %v10293 = vpack.c.b16 %v9629, %v9621
    %v10294 = vpack.c.b16 %v9630, %v9622
    %v10295 = vpack.c.b16 %v9631, %v9623
    %v10296 = vpack.c.b16 %v9632, %v9624
    %v10297 = vpack.c.b16 %v9633, %v9625
    %v10298 = vpack.c.b16 %v9642, %v9634
    %v10299 = vpack.c.b16 %v9643, %v9635
    %v10300 = vpack.c.b16 %v9644, %v9636
    %v10301 = vpack.c.b16 %v9645, %v9637
    %v10302 = vpack.c.b16 %v9646, %v9638
    %v10303 = vpack.c.b16 %v9647, %v9639
    %v10304 = vpack.c.b16 %v9648, %v9640
    %v10305 = vpack.c.b16 %v9649, %v9641
    %v10306 = vpack.c.b16 %v9658, %v9650
    %v10307 = vpack.c.b16 %v9659, %v9651
    %v10308 = vpack.c.b16 %v9660, %v9652
    %v10309 = vpack.c.b16 %v9661, %v9653
    %v10310 = vpack.c.b16 %v9662, %v9654
    %v10311 = vpack.c.b16 %v9663, %v9655
    %v10312 = vpack.c.b16 %v9664, %v9656
    %v10313 = vpack.c.b16 %v9665, %v9657
    %v10314 = vpack.c.b16 %v9674, %v9666
    %v10315 = vpack.c.b16 %v9675, %v9667
    %v10316 = vpack.c.b16 %v9676, %v9668
    %v10317 = vpack.c.b16 %v9677, %v9669
    %v10318 = vpack.c.b16 %v9678, %v9670
    %v10319 = vpack.c.b16 %v9679, %v9671
    %v10320 = vpack.c.b16 %v9680, %v9672
    %v10321 = vpack.c.b16 %v9681, %v9673
    %v10322 = vpack.c.b16 %v9690, %v9682
    %v10323 = vpack.c.b16 %v9691, %v9683
    %v10324 = vpack.c.b16 %v9692, %v9684
    %v10325 = vpack.c.b16 %v9693, %v9685
    %v10326 = vpack.c.b16 %v9694, %v9686
    %v10327 = vpack.c.b16 %v9695, %v9687
    %v10328 = vpack.c.b16 %v9696, %v9688
    %v10329 = vpack.c.b16 %v9697, %v9689
    %v10330 = vpack.c.b16 %v9706, %v9698
    %v10331 = vpack.c.b16 %v9707, %v9699
    %v10332 = vpack.c.b16 %v9708, %v9700
    %v10333 = vpack.c.b16 %v9709, %v9701
    %v10334 = vpack.c.b16 %v9710, %v9702
    %v10335 = vpack.c.b16 %v9711, %v9703
    %v10336 = vpack.c.b16 %v9712, %v9704
    %v10337 = vpack.c.b16 %v9713, %v9705
    %v10338 = vpack.c.b16 %v9722, %v9714
    %v10339 = vpack.c.b16 %v9723, %v9715
    %v10340 = vpack.c.b16 %v9724, %v9716
    %v10341 = vpack.c.b16 %v9725, %v9717
    %v10342 = vpack.c.b16 %v9726, %v9718
    %v10343 = vpack.c.b16 %v9727, %v9719
    %v10344 = vpack.c.b16 %v9728, %v9720
    %v10345 = vpack.c.b16 %v9729, %v9721
    %v10346 = vpack.c.b16 %v9738, %v9730
    %v10347 = vpack.c.b16 %v9739, %v9731
    %v10348 = vpack.c.b16 %v9740, %v9732
    %v10349 = vpack.c.b16 %v9741, %v9733
    %v10350 = vpack.c.b16 %v9742, %v9734
    %v10351 = vpack.c.b16 %v9743, %v9735
    %v10352 = vpack.c.b16 %v9744, %v9736
    %v10353 = vpack.c.b16 %v9745, %v9737
    %v10354 = vpack.c.b16 %v9754, %v9746
    %v10355 = vpack.c.b16 %v9755, %v9747
    %v10356 = vpack.c.b16 %v9756, %v9748
    %v10357 = vpack.c.b16 %v9757, %v9749
    %v10358 = vpack.c.b16 %v9758, %v9750
    %v10359 = vpack.c.b16 %v9759, %v9751
    %v10360 = vpack.c.b16 %v9760, %v9752
    %v10361 = vpack.c.b16 %v9761, %v9753
    %v10362 = vpack.c.b16 %v9770, %v9762
    %v10363 = vpack.c.b16 %v9771, %v9763
    %v10364 = vpack.c.b16 %v9772, %v9764
    %v10365 = vpack.c.b16 %v9773, %v9765
    %v10366 = vpack.c.b16 %v9774, %v9766
    %v10367 = vpack.c.b16 %v9775, %v9767
    %v10368 = vpack.c.b16 %v9776, %v9768
    %v10369 = vpack.c.b16 %v9777, %v9769
    %v10370 = vpack.c.b16 %v9786, %v9778
    %v10371 = vpack.c.b16 %v9787, %v9779
    %v10372 = vpack.c.b16 %v9788, %v9780
    %v10373 = vpack.c.b16 %v9789, %v9781
    %v10374 = vpack.c.b16 %v9790, %v9782
    %v10375 = vpack.c.b16 %v9791, %v9783
    %v10376 = vpack.c.b16 %v9792, %v9784
    %v10377 = vpack.c.b16 %v9793, %v9785
    %v10378 = vpack.c.b16 %v9802, %v9794
    %v10379 = vpack.c.b16 %v9803, %v9795
    %v10380 = vpack.c.b16 %v9804, %v9796
    %v10381 = vpack.c.b16 %v9805, %v9797
    %v10382 = vpack.c.b16 %v9806, %v9798
    %v10383 = vpack.c.b16 %v9807, %v9799
    %v10384 = vpack.c.b16 %v9808, %v9800
    %v10385 = vpack.c.b16 %v9809, %v9801
    %v10386 = vpack.c.b16 %v9818, %v9810
    %v10387 = vpack.c.b16 %v9819, %v9811
    %v10388 = vpack.c.b16 %v9820, %v9812
    %v10389 = vpack.c.b16 %v9821, %v9813
    %v10390 = vpack.c.b16 %v9822, %v9814
    %v10391 = vpack.c.b16 %v9823, %v9815
    %v10392 = vpack.c.b16 %v9824, %v9816
    %v10393 = vpack.c.b16 %v9825, %v9817
    %v10394 = vpack.c.b16 %v9834, %v9826
    %v10395 = vpack.c.b16 %v9835, %v9827
    %v10396 = vpack.c.b16 %v9836, %v9828
    %v10397 = vpack.c.b16 %v9837, %v9829
    %v10398 = vpack.c.b16 %v9838, %v9830
    %v10399 = vpack.c.b16 %v9839, %v9831
    %v10400 = vpack.c.b16 %v9840, %v9832
    %v10401 = vpack.c.b16 %v9841, %v9833
    %v10402 = vpack.c.b16 %v9850, %v9842
    %v10403 = vpack.c.b16 %v9851, %v9843
    %v10404 = vpack.c.b16 %v9852, %v9844
    %v10405 = vpack.c.b16 %v9853, %v9845
    %v10406 = vpack.c.b16 %v9854, %v9846
    %v10407 = vpack.c.b16 %v9855, %v9847
    %v10408 = vpack.c.b16 %v9856, %v9848
    %v10409 = vpack.c.b16 %v9857, %v9849
    %v10410 = vpack.c.b16 %v9866, %v9858
    %v10411 = vpack.c.b16 %v9867, %v9859
    %v10412 = vpack.c.b16 %v9868, %v9860
    %v10413 = vpack.c.b16 %v9869, %v9861
    %v10414 = vpack.c.b16 %v9870, %v9862
    %v10415 = vpack.c.b16 %v9871, %v9863
    %v10416 = vpack.c.b16 %v9872, %v9864
    %v10417 = vpack.c.b16 %v9873, %v9865
    %v10418 = vpack.c.b16 %v9882, %v9874
    %v10419 = vpack.c.b16 %v9883, %v9875
    %v10420 = vpack.c.b16 %v9884, %v9876
    %v10421 = vpack.c.b16 %v9885, %v9877
    %v10422 = vpack.c.b16 %v9886, %v9878
    %v10423 = vpack.c.b16 %v9887, %v9879
    %v10424 = vpack.c.b16 %v9888, %v9880
    %v10425 = vpack.c.b16 %v9889, %v9881
    %v10426 = vpack.c.b16 %v9898, %v9890
    %v10427 = vpack.c.b16 %v9899, %v9891
    %v10428 = vpack.c.b16 %v9900, %v9892
    %v10429 = vpack.c.b16 %v9901, %v9893
    %v10430 = vpack.c.b16 %v9902, %v9894
    %v10431 = vpack.c.b16 %v9903, %v9895
    %v10432 = vpack.c.b16 %v9904, %v9896
    %v10433 = vpack.c.b16 %v9905, %v9897
    %v10434 = vpack.c.b16 %v9914, %v9906
    %v10435 = vpack.c.b16 %v9915, %v9907
    %v10436 = vpack.c.b16 %v9916, %v9908
    %v10437 = vpack.c.b16 %v9917, %v9909
    %v10438 = vpack.c.b16 %v9918, %v9910
    %v10439 = vpack.c.b16 %v9919, %v9911
    %v10440 = vpack.c.b16 %v9920, %v9912
    %v10441 = vpack.c.b16 %v9921, %v9913
    %v10442 = vpack.c.b16 %v9930, %v9922
    %v10443 = vpack.c.b16 %v9931, %v9923
    %v10444 = vpack.c.b16 %v9932, %v9924
    %v10445 = vpack.c.b16 %v9933, %v9925
    %v10446 = vpack.c.b16 %v9934, %v9926
    %v10447 = vpack.c.b16 %v9935, %v9927
    %v10448 = vpack.c.b16 %v9936, %v9928
    %v10449 = vpack.c.b16 %v9937, %v9929
    %10962 = vmatprep.subr.bf16.mxu0 %v9939
    %10963 = vmatpush1.bf16.msra.mxu0 %v9938
    %10964 = vmatprep.subr.bf16.mxu0 %v9947
    %10965 = vmatpush1.bf16.msra.mxu0 %v9946
    %10966 = vmatprep.subr.bf16.mxu0 %v9955
    %10967 = vmatpush1.bf16.msra.mxu0 %v9954
    %10968 = vmatprep.subr.bf16.mxu0 %v9963
    %10969 = vmatpush1.bf16.msra.mxu0 %v9962
    %10970 = vmatprep.subr.bf16.mxu0 %v9971
    %10971 = vmatpush1.bf16.msra.mxu0 %v9970
    %10972 = vmatprep.subr.bf16.mxu0 %v9979
    %10973 = vmatpush1.bf16.msra.mxu0 %v9978
    %10974 = vmatprep.subr.bf16.mxu0 %v9987
    %10975 = vmatpush1.bf16.msra.mxu0 %v9986
    %10976 = vmatprep.subr.bf16.mxu0 %v9995
    %10977 = vmatpush1.bf16.msra.mxu0 %v9994
    %10978 = vmatprep.subr.bf16.mxu0 %v10003
    %10979 = vmatpush1.bf16.msra.mxu0 %v10002
    %10980 = vmatprep.subr.bf16.mxu0 %v10011
    %10981 = vmatpush1.bf16.msra.mxu0 %v10010
    %10982 = vmatprep.subr.bf16.mxu0 %v10019
    %10983 = vmatpush1.bf16.msra.mxu0 %v10018
    %10984 = vmatprep.subr.bf16.mxu0 %v10027
    %10985 = vmatpush1.bf16.msra.mxu0 %v10026
    %10986 = vmatprep.subr.bf16.mxu0 %v10035
    %10987 = vmatpush1.bf16.msra.mxu0 %v10034
    %10988 = vmatprep.subr.bf16.mxu0 %v10043
    %10989 = vmatpush1.bf16.msra.mxu0 %v10042
    %10990 = vmatprep.subr.bf16.mxu0 %v10051
    %10991 = vmatpush1.bf16.msra.mxu0 %v10050
    %10992 = vmatprep.subr.bf16.mxu0 %v10059
    %10993 = vmatpush1.bf16.msra.mxu0 %v10058
    %10994 = vmatprep.mubr.bf16.mxu0 %v7841
    %10995 = vmatmul.mubr.bf16.gmra.mrb[0].mxu0 %v7840
    %v10996 = vpop.f32.mrb[0].mxu0
    %v10997 = vadd.f32 %v8365, %v10996
    %v10998 = vpop.f32.mrb[0].mxu0
    %v10999 = vadd.f32 %v8369, %v10998
    %v11000 = vpop.f32.mrb[0].mxu0
    %v11001 = vadd.f32 %v8365, %v11000
    %v11002 = vpop.f32.mrb[0].mxu0
    %v11003 = vadd.f32 %v8369, %v11002
    %11004 = vdwg.mxu0
    %11005 = vmatprep.subr.bf16.mxu0 %v10067
    %11006 = vmatpush1.bf16.msra.mxu0 %v10066
    %11007 = vmatprep.subr.bf16.mxu0 %v10075
    %11008 = vmatpush1.bf16.msra.mxu0 %v10074
    %11009 = vmatprep.subr.bf16.mxu0 %v10083
    %11010 = vmatpush1.bf16.msra.mxu0 %v10082
    %11011 = vmatprep.subr.bf16.mxu0 %v10091
    %11012 = vmatpush1.bf16.msra.mxu0 %v10090
    %11013 = vmatprep.subr.bf16.mxu0 %v10099
    %11014 = vmatpush1.bf16.msra.mxu0 %v10098
    %11015 = vmatprep.subr.bf16.mxu0 %v10107
    %11016 = vmatpush1.bf16.msra.mxu0 %v10106
    %11017 = vmatprep.subr.bf16.mxu0 %v10115
    %11018 = vmatpush1.bf16.msra.mxu0 %v10114
    %11019 = vmatprep.subr.bf16.mxu0 %v10123
    %11020 = vmatpush1.bf16.msra.mxu0 %v10122
    %11021 = vmatprep.subr.bf16.mxu0 %v10131
    %11022 = vmatpush1.bf16.msra.mxu0 %v10130
    %11023 = vmatprep.subr.bf16.mxu0 %v10139
    %11024 = vmatpush1.bf16.msra.mxu0 %v10138
    %11025 = vmatprep.subr.bf16.mxu0 %v10147
    %11026 = vmatpush1.bf16.msra.mxu0 %v10146
    %11027 = vmatprep.subr.bf16.mxu0 %v10155
    %11028 = vmatpush1.bf16.msra.mxu0 %v10154
    %11029 = vmatprep.subr.bf16.mxu0 %v10163
    %11030 = vmatpush1.bf16.msra.mxu0 %v10162
    %11031 = vmatprep.subr.bf16.mxu0 %v10171
    %11032 = vmatpush1.bf16.msra.mxu0 %v10170
    %11033 = vmatprep.subr.bf16.mxu0 %v10179
    %11034 = vmatpush1.bf16.msra.mxu0 %v10178
    %11035 = vmatprep.subr.bf16.mxu0 %v10187
    %11036 = vmatpush1.bf16.msra.mxu0 %v10186
    %11037 = vmatprep.mubr.bf16.mxu0 %v7843
    %11038 = vmatmul.mubr.bf16.gmra.mrb[0].mxu0 %v7842
    %v11039 = vpop.f32.mrb[0].mxu0
    %v11040 = vadd.f32 %v10997, %v11039
    %v11041 = vpop.f32.mrb[0].mxu0
    %v11042 = vadd.f32 %v10999, %v11041
    %v11043 = vpop.f32.mrb[0].mxu0
    %v11044 = vadd.f32 %v11001, %v11043
    %v11045 = vpop.f32.mrb[0].mxu0
    %v11046 = vadd.f32 %v11003, %v11045
    %11047 = vdwg.mxu0
    %11048 = vmatprep.subr.bf16.mxu0 %v10195
    %11049 = vmatpush1.bf16.msra.mxu0 %v10194
    %11050 = vmatprep.subr.bf16.mxu0 %v10203
    %11051 = vmatpush1.bf16.msra.mxu0 %v10202
    %11052 = vmatprep.subr.bf16.mxu0 %v10211
    %11053 = vmatpush1.bf16.msra.mxu0 %v10210
    %11054 = vmatprep.subr.bf16.mxu0 %v10219
    %11055 = vmatpush1.bf16.msra.mxu0 %v10218
    %11056 = vmatprep.subr.bf16.mxu0 %v10227
    %11057 = vmatpush1.bf16.msra.mxu0 %v10226
    %11058 = vmatprep.subr.bf16.mxu0 %v10235
    %11059 = vmatpush1.bf16.msra.mxu0 %v10234
    %11060 = vmatprep.subr.bf16.mxu0 %v10243
    %11061 = vmatpush1.bf16.msra.mxu0 %v10242
    %11062 = vmatprep.subr.bf16.mxu0 %v10251
    %11063 = vmatpush1.bf16.msra.mxu0 %v10250
    %11064 = vmatprep.subr.bf16.mxu0 %v10259
    %11065 = vmatpush1.bf16.msra.mxu0 %v10258
    %11066 = vmatprep.subr.bf16.mxu0 %v10267
    %11067 = vmatpush1.bf16.msra.mxu0 %v10266
    %11068 = vmatprep.subr.bf16.mxu0 %v10275
    %11069 = vmatpush1.bf16.msra.mxu0 %v10274
    %11070 = vmatprep.subr.bf16.mxu0 %v10283
    %11071 = vmatpush1.bf16.msra.mxu0 %v10282
    %11072 = vmatprep.subr.bf16.mxu0 %v10291
    %11073 = vmatpush1.bf16.msra.mxu0 %v10290
    %11074 = vmatprep.subr.bf16.mxu0 %v10299
    %11075 = vmatpush1.bf16.msra.mxu0 %v10298
    %11076 = vmatprep.subr.bf16.mxu0 %v10307
    %11077 = vmatpush1.bf16.msra.mxu0 %v10306
    %11078 = vmatprep.subr.bf16.mxu0 %v10315
    %11079 = vmatpush1.bf16.msra.mxu0 %v10314
    %11080 = vmatprep.mubr.bf16.mxu0 %v7845
    %11081 = vmatmul.mubr.bf16.gmra.mrb[0].mxu0 %v7844
    %v11082 = vpop.f32.mrb[0].mxu0
    %v11083 = vadd.f32 %v11040, %v11082
    %v11084 = vpop.f32.mrb[0].mxu0
    %v11085 = vadd.f32 %v11042, %v11084
    %v11086 = vpop.f32.mrb[0].mxu0
    %v11087 = vadd.f32 %v11044, %v11086
    %v11088 = vpop.f32.mrb[0].mxu0
    %v11089 = vadd.f32 %v11046, %v11088
    %11090 = vdwg.mxu0
    %11091 = vmatprep.subr.bf16.mxu0 %v10323
    %11092 = vmatpush1.bf16.msra.mxu0 %v10322
    %11093 = vmatprep.subr.bf16.mxu0 %v10331
    %11094 = vmatpush1.bf16.msra.mxu0 %v10330
    %11095 = vmatprep.subr.bf16.mxu0 %v10339
    %11096 = vmatpush1.bf16.msra.mxu0 %v10338
    %11097 = vmatprep.subr.bf16.mxu0 %v10347
    %11098 = vmatpush1.bf16.msra.mxu0 %v10346
    %11099 = vmatprep.subr.bf16.mxu0 %v10355
    %11100 = vmatpush1.bf16.msra.mxu0 %v10354
    %11101 = vmatprep.subr.bf16.mxu0 %v10363
    %11102 = vmatpush1.bf16.msra.mxu0 %v10362
    %11103 = vmatprep.subr.bf16.mxu0 %v10371
    %11104 = vmatpush1.bf16.msra.mxu0 %v10370
    %11105 = vmatprep.subr.bf16.mxu0 %v10379
    %11106 = vmatpush1.bf16.msra.mxu0 %v10378
    %11107 = vmatprep.subr.bf16.mxu0 %v10387
    %11108 = vmatpush1.bf16.msra.mxu0 %v10386
    %11109 = vmatprep.subr.bf16.mxu0 %v10395
    %11110 = vmatpush1.bf16.msra.mxu0 %v10394
    %11111 = vmatprep.subr.bf16.mxu0 %v10403
    %11112 = vmatpush1.bf16.msra.mxu0 %v10402
    %11113 = vmatprep.subr.bf16.mxu0 %v10411
    %11114 = vmatpush1.bf16.msra.mxu0 %v10410
    %11115 = vmatprep.subr.bf16.mxu0 %v10419
    %11116 = vmatpush1.bf16.msra.mxu0 %v10418
    %11117 = vmatprep.subr.bf16.mxu0 %v10427
    %11118 = vmatpush1.bf16.msra.mxu0 %v10426
    %11119 = vmatprep.subr.bf16.mxu0 %v10435
    %11120 = vmatpush1.bf16.msra.mxu0 %v10434
    %11121 = vmatprep.subr.bf16.mxu0 %v10443
    %11122 = vmatpush1.bf16.msra.mxu0 %v10442
    %11123 = vmatprep.mubr.bf16.mxu0 %v7847
    %11124 = vmatmul.mubr.bf16.gmra.mrb[0].mxu0 %v7846
    %v11125 = vpop.f32.mrb[0].mxu0
    %v11126 = vadd.f32 %v11083, %v11125
    %v11127 = vpop.f32.mrb[0].mxu0
    %v11128 = vadd.f32 %v11085, %v11127
    %v11129 = vpop.f32.mrb[0].mxu0
    %v11130 = vadd.f32 %v11087, %v11129
    %v11131 = vpop.f32.mrb[0].mxu0
    %v11132 = vadd.f32 %v11089, %v11131
    %11133 = vdwg.mxu0
    %11134 = vmatprep.subr.bf16.mxu0 %v9941
    %11135 = vmatpush1.bf16.msra.mxu0 %v9940
    %11136 = vmatprep.subr.bf16.mxu0 %v9949
    %11137 = vmatpush1.bf16.msra.mxu0 %v9948
    %11138 = vmatprep.subr.bf16.mxu0 %v9957
    %11139 = vmatpush1.bf16.msra.mxu0 %v9956
    %11140 = vmatprep.subr.bf16.mxu0 %v9965
    %11141 = vmatpush1.bf16.msra.mxu0 %v9964
    %11142 = vmatprep.subr.bf16.mxu0 %v9973
    %11143 = vmatpush1.bf16.msra.mxu0 %v9972
    %11144 = vmatprep.subr.bf16.mxu0 %v9981
    %11145 = vmatpush1.bf16.msra.mxu0 %v9980
    %11146 = vmatprep.subr.bf16.mxu0 %v9989
    %11147 = vmatpush1.bf16.msra.mxu0 %v9988
    %11148 = vmatprep.subr.bf16.mxu0 %v9997
    %11149 = vmatpush1.bf16.msra.mxu0 %v9996
    %11150 = vmatprep.subr.bf16.mxu0 %v10005
    %11151 = vmatpush1.bf16.msra.mxu0 %v10004
    %11152 = vmatprep.subr.bf16.mxu0 %v10013
    %11153 = vmatpush1.bf16.msra.mxu0 %v10012
    %11154 = vmatprep.subr.bf16.mxu0 %v10021
    %11155 = vmatpush1.bf16.msra.mxu0 %v10020
    %11156 = vmatprep.subr.bf16.mxu0 %v10029
    %11157 = vmatpush1.bf16.msra.mxu0 %v10028
    %11158 = vmatprep.subr.bf16.mxu0 %v10037
    %11159 = vmatpush1.bf16.msra.mxu0 %v10036
    %11160 = vmatprep.subr.bf16.mxu0 %v10045
    %11161 = vmatpush1.bf16.msra.mxu0 %v10044
    %11162 = vmatprep.subr.bf16.mxu0 %v10053
    %11163 = vmatpush1.bf16.msra.mxu0 %v10052
    %11164 = vmatprep.subr.bf16.mxu0 %v10061
    %11165 = vmatpush1.bf16.msra.mxu0 %v10060
    %11166 = vmatprep.mubr.bf16.mxu0 %v7841
    %11167 = vmatmul.mubr.bf16.gmra.mrb[0].mxu0 %v7840
    %v11168 = vpop.f32.mrb[0].mxu0
    %v11169 = vadd.f32 %v8373, %v11168
    %v11170 = vpop.f32.mrb[0].mxu0
    %v11171 = vadd.f32 %v8377, %v11170
    %v11172 = vpop.f32.mrb[0].mxu0
    %v11173 = vadd.f32 %v8373, %v11172
    %v11174 = vpop.f32.mrb[0].mxu0
    %v11175 = vadd.f32 %v8377, %v11174
    %11176 = vdwg.mxu0
    %11177 = vmatprep.subr.bf16.mxu0 %v10069
    %11178 = vmatpush1.bf16.msra.mxu0 %v10068
    %11179 = vmatprep.subr.bf16.mxu0 %v10077
    %11180 = vmatpush1.bf16.msra.mxu0 %v10076
    %11181 = vmatprep.subr.bf16.mxu0 %v10085
    %11182 = vmatpush1.bf16.msra.mxu0 %v10084
    %11183 = vmatprep.subr.bf16.mxu0 %v10093
    %11184 = vmatpush1.bf16.msra.mxu0 %v10092
    %11185 = vmatprep.subr.bf16.mxu0 %v10101
    %11186 = vmatpush1.bf16.msra.mxu0 %v10100
    %11187 = vmatprep.subr.bf16.mxu0 %v10109
    %11188 = vmatpush1.bf16.msra.mxu0 %v10108
    %11189 = vmatprep.subr.bf16.mxu0 %v10117
    %11190 = vmatpush1.bf16.msra.mxu0 %v10116
    %11191 = vmatprep.subr.bf16.mxu0 %v10125
    %11192 = vmatpush1.bf16.msra.mxu0 %v10124
    %11193 = vmatprep.subr.bf16.mxu0 %v10133
    %11194 = vmatpush1.bf16.msra.mxu0 %v10132
    %11195 = vmatprep.subr.bf16.mxu0 %v10141
    %11196 = vmatpush1.bf16.msra.mxu0 %v10140
    %11197 = vmatprep.subr.bf16.mxu0 %v10149
    %11198 = vmatpush1.bf16.msra.mxu0 %v10148
    %11199 = vmatprep.subr.bf16.mxu0 %v10157
    %11200 = vmatpush1.bf16.msra.mxu0 %v10156
    %11201 = vmatprep.subr.bf16.mxu0 %v10165
    %11202 = vmatpush1.bf16.msra.mxu0 %v10164
    %11203 = vmatprep.subr.bf16.mxu0 %v10173
    %11204 = vmatpush1.bf16.msra.mxu0 %v10172
    %11205 = vmatprep.subr.bf16.mxu0 %v10181
    %11206 = vmatpush1.bf16.msra.mxu0 %v10180
    %11207 = vmatprep.subr.bf16.mxu0 %v10189
    %11208 = vmatpush1.bf16.msra.mxu0 %v10188
    %11209 = vmatprep.mubr.bf16.mxu0 %v7843
    %11210 = vmatmul.mubr.bf16.gmra.mrb[0].mxu0 %v7842
    %v11211 = vpop.f32.mrb[0].mxu0
    %v11212 = vadd.f32 %v11169, %v11211
    %v11213 = vpop.f32.mrb[0].mxu0
    %v11214 = vadd.f32 %v11171, %v11213
    %v11215 = vpop.f32.mrb[0].mxu0
    %v11216 = vadd.f32 %v11173, %v11215
    %v11217 = vpop.f32.mrb[0].mxu0
    %v11218 = vadd.f32 %v11175, %v11217
    %11219 = vdwg.mxu0
    %11220 = vmatprep.subr.bf16.mxu0 %v10197
    %11221 = vmatpush1.bf16.msra.mxu0 %v10196
    %11222 = vmatprep.subr.bf16.mxu0 %v10205
    %11223 = vmatpush1.bf16.msra.mxu0 %v10204
    %11224 = vmatprep.subr.bf16.mxu0 %v10213
    %11225 = vmatpush1.bf16.msra.mxu0 %v10212
    %11226 = vmatprep.subr.bf16.mxu0 %v10221
    %11227 = vmatpush1.bf16.msra.mxu0 %v10220
    %11228 = vmatprep.subr.bf16.mxu0 %v10229
    %11229 = vmatpush1.bf16.msra.mxu0 %v10228
    %11230 = vmatprep.subr.bf16.mxu0 %v10237
    %11231 = vmatpush1.bf16.msra.mxu0 %v10236
    %11232 = vmatprep.subr.bf16.mxu0 %v10245
    %11233 = vmatpush1.bf16.msra.mxu0 %v10244
    %11234 = vmatprep.subr.bf16.mxu0 %v10253
    %11235 = vmatpush1.bf16.msra.mxu0 %v10252
    %11236 = vmatprep.subr.bf16.mxu0 %v10261
    %11237 = vmatpush1.bf16.msra.mxu0 %v10260
    %11238 = vmatprep.subr.bf16.mxu0 %v10269
    %11239 = vmatpush1.bf16.msra.mxu0 %v10268
    %11240 = vmatprep.subr.bf16.mxu0 %v10277
    %11241 = vmatpush1.bf16.msra.mxu0 %v10276
    %11242 = vmatprep.subr.bf16.mxu0 %v10285
    %11243 = vmatpush1.bf16.msra.mxu0 %v10284
    %11244 = vmatprep.subr.bf16.mxu0 %v10293
    %11245 = vmatpush1.bf16.msra.mxu0 %v10292
    %11246 = vmatprep.subr.bf16.mxu0 %v10301
    %11247 = vmatpush1.bf16.msra.mxu0 %v10300
    %11248 = vmatprep.subr.bf16.mxu0 %v10309
    %11249 = vmatpush1.bf16.msra.mxu0 %v10308
    %11250 = vmatprep.subr.bf16.mxu0 %v10317
    %11251 = vmatpush1.bf16.msra.mxu0 %v10316
    %11252 = vmatprep.mubr.bf16.mxu0 %v7845
    %11253 = vmatmul.mubr.bf16.gmra.mrb[0].mxu0 %v7844
    %v11254 = vpop.f32.mrb[0].mxu0
    %v11255 = vadd.f32 %v11212, %v11254
    %v11256 = vpop.f32.mrb[0].mxu0
    %v11257 = vadd.f32 %v11214, %v11256
    %v11258 = vpop.f32.mrb[0].mxu0
    %v11259 = vadd.f32 %v11216, %v11258
    %v11260 = vpop.f32.mrb[0].mxu0
    %v11261 = vadd.f32 %v11218, %v11260
    %11262 = vdwg.mxu0
    %11263 = vmatprep.subr.bf16.mxu0 %v10325
    %11264 = vmatpush1.bf16.msra.mxu0 %v10324
    %11265 = vmatprep.subr.bf16.mxu0 %v10333
    %11266 = vmatpush1.bf16.msra.mxu0 %v10332
    %11267 = vmatprep.subr.bf16.mxu0 %v10341
    %11268 = vmatpush1.bf16.msra.mxu0 %v10340
    %11269 = vmatprep.subr.bf16.mxu0 %v10349
    %11270 = vmatpush1.bf16.msra.mxu0 %v10348
    %11271 = vmatprep.subr.bf16.mxu0 %v10357
    %11272 = vmatpush1.bf16.msra.mxu0 %v10356
    %11273 = vmatprep.subr.bf16.mxu0 %v10365
    %11274 = vmatpush1.bf16.msra.mxu0 %v10364
    %11275 = vmatprep.subr.bf16.mxu0 %v10373
    %11276 = vmatpush1.bf16.msra.mxu0 %v10372
    %11277 = vmatprep.subr.bf16.mxu0 %v10381
    %11278 = vmatpush1.bf16.msra.mxu0 %v10380
    %11279 = vmatprep.subr.bf16.mxu0 %v10389
    %11280 = vmatpush1.bf16.msra.mxu0 %v10388
    %11281 = vmatprep.subr.bf16.mxu0 %v10397
    %11282 = vmatpush1.bf16.msra.mxu0 %v10396
    %11283 = vmatprep.subr.bf16.mxu0 %v10405
    %11284 = vmatpush1.bf16.msra.mxu0 %v10404
    %11285 = vmatprep.subr.bf16.mxu0 %v10413
    %11286 = vmatpush1.bf16.msra.mxu0 %v10412
    %11287 = vmatprep.subr.bf16.mxu0 %v10421
    %11288 = vmatpush1.bf16.msra.mxu0 %v10420
    %11289 = vmatprep.subr.bf16.mxu0 %v10429
    %11290 = vmatpush1.bf16.msra.mxu0 %v10428
    %11291 = vmatprep.subr.bf16.mxu0 %v10437
    %11292 = vmatpush1.bf16.msra.mxu0 %v10436
    %11293 = vmatprep.subr.bf16.mxu0 %v10445
    %11294 = vmatpush1.bf16.msra.mxu0 %v10444
    %11295 = vmatprep.mubr.bf16.mxu0 %v7847
    %11296 = vmatmul.mubr.bf16.gmra.mrb[0].mxu0 %v7846
    %v11297 = vpop.f32.mrb[0].mxu0
    %v11298 = vadd.f32 %v11255, %v11297
    %v11299 = vpop.f32.mrb[0].mxu0
    %v11300 = vadd.f32 %v11257, %v11299
    %v11301 = vpop.f32.mrb[0].mxu0
    %v11302 = vadd.f32 %v11259, %v11301
    %v11303 = vpop.f32.mrb[0].mxu0
    %v11304 = vadd.f32 %v11261, %v11303
    %11305 = vdwg.mxu0
    %11306 = vmatprep.subr.bf16.mxu0 %v9943
    %11307 = vmatpush1.bf16.msra.mxu0 %v9942
    %11308 = vmatprep.subr.bf16.mxu0 %v9951
    %11309 = vmatpush1.bf16.msra.mxu0 %v9950
    %11310 = vmatprep.subr.bf16.mxu0 %v9959
    %11311 = vmatpush1.bf16.msra.mxu0 %v9958
    %11312 = vmatprep.subr.bf16.mxu0 %v9967
    %11313 = vmatpush1.bf16.msra.mxu0 %v9966
    %11314 = vmatprep.subr.bf16.mxu0 %v9975
    %11315 = vmatpush1.bf16.msra.mxu0 %v9974
    %11316 = vmatprep.subr.bf16.mxu0 %v9983
    %11317 = vmatpush1.bf16.msra.mxu0 %v9982
    %11318 = vmatprep.subr.bf16.mxu0 %v9991
    %11319 = vmatpush1.bf16.msra.mxu0 %v9990
    %11320 = vmatprep.subr.bf16.mxu0 %v9999
    %11321 = vmatpush1.bf16.msra.mxu0 %v9998
    %11322 = vmatprep.subr.bf16.mxu0 %v10007
    %11323 = vmatpush1.bf16.msra.mxu0 %v10006
    %11324 = vmatprep.subr.bf16.mxu0 %v10015
    %11325 = vmatpush1.bf16.msra.mxu0 %v10014
    %11326 = vmatprep.subr.bf16.mxu0 %v10023
    %11327 = vmatpush1.bf16.msra.mxu0 %v10022
    %11328 = vmatprep.subr.bf16.mxu0 %v10031
    %11329 = vmatpush1.bf16.msra.mxu0 %v10030
    %11330 = vmatprep.subr.bf16.mxu0 %v10039
    %11331 = vmatpush1.bf16.msra.mxu0 %v10038
    %11332 = vmatprep.subr.bf16.mxu0 %v10047
    %11333 = vmatpush1.bf16.msra.mxu0 %v10046
    %11334 = vmatprep.subr.bf16.mxu0 %v10055
    %11335 = vmatpush1.bf16.msra.mxu0 %v10054
    %11336 = vmatprep.subr.bf16.mxu0 %v10063
    %11337 = vmatpush1.bf16.msra.mxu0 %v10062
    %11338 = vmatprep.mubr.bf16.mxu0 %v7841
    %11339 = vmatmul.mubr.bf16.gmra.mrb[0].mxu0 %v7840
    %v11340 = vpop.f32.mrb[0].mxu0
    %v11341 = vadd.f32 %v8381, %v11340
    %v11342 = vpop.f32.mrb[0].mxu0
    %v11343 = vadd.f32 %v8385, %v11342
    %v11344 = vpop.f32.mrb[0].mxu0
    %v11345 = vadd.f32 %v8381, %v11344
    %v11346 = vpop.f32.mrb[0].mxu0
    %v11347 = vadd.f32 %v8385, %v11346
    %11348 = vdwg.mxu0
    %11349 = vmatprep.subr.bf16.mxu0 %v10071
    %11350 = vmatpush1.bf16.msra.mxu0 %v10070
    %11351 = vmatprep.subr.bf16.mxu0 %v10079
    %11352 = vmatpush1.bf16.msra.mxu0 %v10078
    %11353 = vmatprep.subr.bf16.mxu0 %v10087
    %11354 = vmatpush1.bf16.msra.mxu0 %v10086
    %11355 = vmatprep.subr.bf16.mxu0 %v10095
    %11356 = vmatpush1.bf16.msra.mxu0 %v10094
    %11357 = vmatprep.subr.bf16.mxu0 %v10103
    %11358 = vmatpush1.bf16.msra.mxu0 %v10102
    %11359 = vmatprep.subr.bf16.mxu0 %v10111
    %11360 = vmatpush1.bf16.msra.mxu0 %v10110
    %11361 = vmatprep.subr.bf16.mxu0 %v10119
    %11362 = vmatpush1.bf16.msra.mxu0 %v10118
    %11363 = vmatprep.subr.bf16.mxu0 %v10127
    %11364 = vmatpush1.bf16.msra.mxu0 %v10126
    %11365 = vmatprep.subr.bf16.mxu0 %v10135
    %11366 = vmatpush1.bf16.msra.mxu0 %v10134
    %11367 = vmatprep.subr.bf16.mxu0 %v10143
    %11368 = vmatpush1.bf16.msra.mxu0 %v10142
    %11369 = vmatprep.subr.bf16.mxu0 %v10151
    %11370 = vmatpush1.bf16.msra.mxu0 %v10150
    %11371 = vmatprep.subr.bf16.mxu0 %v10159
    %11372 = vmatpush1.bf16.msra.mxu0 %v10158
    %11373 = vmatprep.subr.bf16.mxu0 %v10167
    %11374 = vmatpush1.bf16.msra.mxu0 %v10166
    %11375 = vmatprep.subr.bf16.mxu0 %v10175
    %11376 = vmatpush1.bf16.msra.mxu0 %v10174
    %11377 = vmatprep.subr.bf16.mxu0 %v10183
    %11378 = vmatpush1.bf16.msra.mxu0 %v10182
    %11379 = vmatprep.subr.bf16.mxu0 %v10191
    %11380 = vmatpush1.bf16.msra.mxu0 %v10190
    %11381 = vmatprep.mubr.bf16.mxu0 %v7843
    %11382 = vmatmul.mubr.bf16.gmra.mrb[0].mxu0 %v7842
    %v11383 = vpop.f32.mrb[0].mxu0
    %v11384 = vadd.f32 %v11341, %v11383
    %v11385 = vpop.f32.mrb[0].mxu0
    %v11386 = vadd.f32 %v11343, %v11385
    %v11387 = vpop.f32.mrb[0].mxu0
    %v11388 = vadd.f32 %v11345, %v11387
    %v11389 = vpop.f32.mrb[0].mxu0
    %v11390 = vadd.f32 %v11347, %v11389
    %11391 = vdwg.mxu0
    %11392 = vmatprep.subr.bf16.mxu0 %v10199
    %11393 = vmatpush1.bf16.msra.mxu0 %v10198
    %11394 = vmatprep.subr.bf16.mxu0 %v10207
    %11395 = vmatpush1.bf16.msra.mxu0 %v10206
    %11396 = vmatprep.subr.bf16.mxu0 %v10215
    %11397 = vmatpush1.bf16.msra.mxu0 %v10214
    %11398 = vmatprep.subr.bf16.mxu0 %v10223
    %11399 = vmatpush1.bf16.msra.mxu0 %v10222
    %11400 = vmatprep.subr.bf16.mxu0 %v10231
    %11401 = vmatpush1.bf16.msra.mxu0 %v10230
    %11402 = vmatprep.subr.bf16.mxu0 %v10239
    %11403 = vmatpush1.bf16.msra.mxu0 %v10238
    %11404 = vmatprep.subr.bf16.mxu0 %v10247
    %11405 = vmatpush1.bf16.msra.mxu0 %v10246
    %11406 = vmatprep.subr.bf16.mxu0 %v10255
    %11407 = vmatpush1.bf16.msra.mxu0 %v10254
    %11408 = vmatprep.subr.bf16.mxu0 %v10263
    %11409 = vmatpush1.bf16.msra.mxu0 %v10262
    %11410 = vmatprep.subr.bf16.mxu0 %v10271
    %11411 = vmatpush1.bf16.msra.mxu0 %v10270
    %11412 = vmatprep.subr.bf16.mxu0 %v10279
    %11413 = vmatpush1.bf16.msra.mxu0 %v10278
    %11414 = vmatprep.subr.bf16.mxu0 %v10287
    %11415 = vmatpush1.bf16.msra.mxu0 %v10286
    %11416 = vmatprep.subr.bf16.mxu0 %v10295
    %11417 = vmatpush1.bf16.msra.mxu0 %v10294
    %11418 = vmatprep.subr.bf16.mxu0 %v10303
    %11419 = vmatpush1.bf16.msra.mxu0 %v10302
    %11420 = vmatprep.subr.bf16.mxu0 %v10311
    %11421 = vmatpush1.bf16.msra.mxu0 %v10310
    %11422 = vmatprep.subr.bf16.mxu0 %v10319
    %11423 = vmatpush1.bf16.msra.mxu0 %v10318
    %11424 = vmatprep.mubr.bf16.mxu0 %v7845
    %11425 = vmatmul.mubr.bf16.gmra.mrb[0].mxu0 %v7844
    %v11426 = vpop.f32.mrb[0].mxu0
    %v11427 = vadd.f32 %v11384, %v11426
    %v11428 = vpop.f32.mrb[0].mxu0
    %v11429 = vadd.f32 %v11386, %v11428
    %v11430 = vpop.f32.mrb[0].mxu0
    %v11431 = vadd.f32 %v11388, %v11430
    %v11432 = vpop.f32.mrb[0].mxu0
    %v11433 = vadd.f32 %v11390, %v11432
    %11434 = vdwg.mxu0
    %11435 = vmatprep.subr.bf16.mxu0 %v10327
    %11436 = vmatpush1.bf16.msra.mxu0 %v10326
    %11437 = vmatprep.subr.bf16.mxu0 %v10335
    %11438 = vmatpush1.bf16.msra.mxu0 %v10334
    %11439 = vmatprep.subr.bf16.mxu0 %v10343
    %11440 = vmatpush1.bf16.msra.mxu0 %v10342
    %11441 = vmatprep.subr.bf16.mxu0 %v10351
    %11442 = vmatpush1.bf16.msra.mxu0 %v10350
    %11443 = vmatprep.subr.bf16.mxu0 %v10359
    %11444 = vmatpush1.bf16.msra.mxu0 %v10358
    %11445 = vmatprep.subr.bf16.mxu0 %v10367
    %11446 = vmatpush1.bf16.msra.mxu0 %v10366
    %11447 = vmatprep.subr.bf16.mxu0 %v10375
    %11448 = vmatpush1.bf16.msra.mxu0 %v10374
    %11449 = vmatprep.subr.bf16.mxu0 %v10383
    %11450 = vmatpush1.bf16.msra.mxu0 %v10382
    %11451 = vmatprep.subr.bf16.mxu0 %v10391
    %11452 = vmatpush1.bf16.msra.mxu0 %v10390
    %11453 = vmatprep.subr.bf16.mxu0 %v10399
    %11454 = vmatpush1.bf16.msra.mxu0 %v10398
    %11455 = vmatprep.subr.bf16.mxu0 %v10407
    %11456 = vmatpush1.bf16.msra.mxu0 %v10406
    %11457 = vmatprep.subr.bf16.mxu0 %v10415
    %11458 = vmatpush1.bf16.msra.mxu0 %v10414
    %11459 = vmatprep.subr.bf16.mxu0 %v10423
    %11460 = vmatpush1.bf16.msra.mxu0 %v10422
    %11461 = vmatprep.subr.bf16.mxu0 %v10431
    %11462 = vmatpush1.bf16.msra.mxu0 %v10430
    %11463 = vmatprep.subr.bf16.mxu0 %v10439
    %11464 = vmatpush1.bf16.msra.mxu0 %v10438
    %11465 = vmatprep.subr.bf16.mxu0 %v10447
    %11466 = vmatpush1.bf16.msra.mxu0 %v10446
    %11467 = vmatprep.mubr.bf16.mxu0 %v7847
    %11468 = vmatmul.mubr.bf16.gmra.mrb[0].mxu0 %v7846
    %v11469 = vpop.f32.mrb[0].mxu0
    %v11470 = vadd.f32 %v11427, %v11469
    %v11471 = vpop.f32.mrb[0].mxu0
    %v11472 = vadd.f32 %v11429, %v11471
    %v11473 = vpop.f32.mrb[0].mxu0
    %v11474 = vadd.f32 %v11431, %v11473
    %v11475 = vpop.f32.mrb[0].mxu0
    %v11476 = vadd.f32 %v11433, %v11475
    %11477 = vdwg.mxu0
    %11478 = vmatprep.subr.bf16.mxu0 %v9945
    %11479 = vmatpush1.bf16.msra.mxu0 %v9944
    %11480 = vmatprep.subr.bf16.mxu0 %v9953
    %11481 = vmatpush1.bf16.msra.mxu0 %v9952
    %11482 = vmatprep.subr.bf16.mxu0 %v9961
    %11483 = vmatpush1.bf16.msra.mxu0 %v9960
    %11484 = vmatprep.subr.bf16.mxu0 %v9969
    %11485 = vmatpush1.bf16.msra.mxu0 %v9968
    %11486 = vmatprep.subr.bf16.mxu0 %v9977
    %11487 = vmatpush1.bf16.msra.mxu0 %v9976
    %11488 = vmatprep.subr.bf16.mxu0 %v9985
    %11489 = vmatpush1.bf16.msra.mxu0 %v9984
    %11490 = vmatprep.subr.bf16.mxu0 %v9993
    %11491 = vmatpush1.bf16.msra.mxu0 %v9992
    %11492 = vmatprep.subr.bf16.mxu0 %v10001
    %11493 = vmatpush1.bf16.msra.mxu0 %v10000
    %11494 = vmatprep.subr.bf16.mxu0 %v10009
    %11495 = vmatpush1.bf16.msra.mxu0 %v10008
    %11496 = vmatprep.subr.bf16.mxu0 %v10017
    %11497 = vmatpush1.bf16.msra.mxu0 %v10016
    %11498 = vmatprep.subr.bf16.mxu0 %v10025
    %11499 = vmatpush1.bf16.msra.mxu0 %v10024
    %11500 = vmatprep.subr.bf16.mxu0 %v10033
    %11501 = vmatpush1.bf16.msra.mxu0 %v10032
    %11502 = vmatprep.subr.bf16.mxu0 %v10041
    %11503 = vmatpush1.bf16.msra.mxu0 %v10040
    %11504 = vmatprep.subr.bf16.mxu0 %v10049
    %11505 = vmatpush1.bf16.msra.mxu0 %v10048
    %11506 = vmatprep.subr.bf16.mxu0 %v10057
    %11507 = vmatpush1.bf16.msra.mxu0 %v10056
    %11508 = vmatprep.subr.bf16.mxu0 %v10065
    %11509 = vmatpush1.bf16.msra.mxu0 %v10064
    %11510 = vmatprep.mubr.bf16.mxu0 %v7841
    %11511 = vmatmul.mubr.bf16.gmra.mrb[0].mxu0 %v7840
    %v11512 = vpop.f32.mrb[0].mxu0
    %v11513 = vadd.f32 %v8389, %v11512
    %v11514 = vpop.f32.mrb[0].mxu0
    %v11515 = vadd.f32 %v8393, %v11514
    %v11516 = vpop.f32.mrb[0].mxu0
    %v11517 = vadd.f32 %v8389, %v11516
    %v11518 = vpop.f32.mrb[0].mxu0
    %v11519 = vadd.f32 %v8393, %v11518
    %11520 = vdwg.mxu0
    %11521 = vmatprep.subr.bf16.mxu0 %v10073
    %11522 = vmatpush1.bf16.msra.mxu0 %v10072
    %11523 = vmatprep.subr.bf16.mxu0 %v10081
    %11524 = vmatpush1.bf16.msra.mxu0 %v10080
    %11525 = vmatprep.subr.bf16.mxu0 %v10089
    %11526 = vmatpush1.bf16.msra.mxu0 %v10088
    %11527 = vmatprep.subr.bf16.mxu0 %v10097
    %11528 = vmatpush1.bf16.msra.mxu0 %v10096
    %11529 = vmatprep.subr.bf16.mxu0 %v10105
    %11530 = vmatpush1.bf16.msra.mxu0 %v10104
    %11531 = vmatprep.subr.bf16.mxu0 %v10113
    %11532 = vmatpush1.bf16.msra.mxu0 %v10112
    %11533 = vmatprep.subr.bf16.mxu0 %v10121
    %11534 = vmatpush1.bf16.msra.mxu0 %v10120
    %11535 = vmatprep.subr.bf16.mxu0 %v10129
    %11536 = vmatpush1.bf16.msra.mxu0 %v10128
    %11537 = vmatprep.subr.bf16.mxu0 %v10137
    %11538 = vmatpush1.bf16.msra.mxu0 %v10136
    %11539 = vmatprep.subr.bf16.mxu0 %v10145
    %11540 = vmatpush1.bf16.msra.mxu0 %v10144
    %11541 = vmatprep.subr.bf16.mxu0 %v10153
    %11542 = vmatpush1.bf16.msra.mxu0 %v10152
    %11543 = vmatprep.subr.bf16.mxu0 %v10161
    %11544 = vmatpush1.bf16.msra.mxu0 %v10160
    %11545 = vmatprep.subr.bf16.mxu0 %v10169
    %11546 = vmatpush1.bf16.msra.mxu0 %v10168
    %11547 = vmatprep.subr.bf16.mxu0 %v10177
    %11548 = vmatpush1.bf16.msra.mxu0 %v10176
    %11549 = vmatprep.subr.bf16.mxu0 %v10185
    %11550 = vmatpush1.bf16.msra.mxu0 %v10184
    %11551 = vmatprep.subr.bf16.mxu0 %v10193
    %11552 = vmatpush1.bf16.msra.mxu0 %v10192
    %11553 = vmatprep.mubr.bf16.mxu0 %v7843
    %11554 = vmatmul.mubr.bf16.gmra.mrb[0].mxu0 %v7842
    %v11555 = vpop.f32.mrb[0].mxu0
    %v11556 = vadd.f32 %v11513, %v11555
    %v11557 = vpop.f32.mrb[0].mxu0
    %v11558 = vadd.f32 %v11515, %v11557
    %v11559 = vpop.f32.mrb[0].mxu0
    %v11560 = vadd.f32 %v11517, %v11559
    %v11561 = vpop.f32.mrb[0].mxu0
    %v11562 = vadd.f32 %v11519, %v11561
    %11563 = vdwg.mxu0
    %11564 = vmatprep.subr.bf16.mxu0 %v10201
    %11565 = vmatpush1.bf16.msra.mxu0 %v10200
    %11566 = vmatprep.subr.bf16.mxu0 %v10209
    %11567 = vmatpush1.bf16.msra.mxu0 %v10208
    %11568 = vmatprep.subr.bf16.mxu0 %v10217
    %11569 = vmatpush1.bf16.msra.mxu0 %v10216
    %11570 = vmatprep.subr.bf16.mxu0 %v10225
    %11571 = vmatpush1.bf16.msra.mxu0 %v10224
    %11572 = vmatprep.subr.bf16.mxu0 %v10233
    %11573 = vmatpush1.bf16.msra.mxu0 %v10232
    %11574 = vmatprep.subr.bf16.mxu0 %v10241
    %11575 = vmatpush1.bf16.msra.mxu0 %v10240
    %11576 = vmatprep.subr.bf16.mxu0 %v10249
    %11577 = vmatpush1.bf16.msra.mxu0 %v10248
    %11578 = vmatprep.subr.bf16.mxu0 %v10257
    %11579 = vmatpush1.bf16.msra.mxu0 %v10256
    %11580 = vmatprep.subr.bf16.mxu0 %v10265
    %11581 = vmatpush1.bf16.msra.mxu0 %v10264
    %11582 = vmatprep.subr.bf16.mxu0 %v10273
    %11583 = vmatpush1.bf16.msra.mxu0 %v10272
    %11584 = vmatprep.subr.bf16.mxu0 %v10281
    %11585 = vmatpush1.bf16.msra.mxu0 %v10280
    %11586 = vmatprep.subr.bf16.mxu0 %v10289
    %11587 = vmatpush1.bf16.msra.mxu0 %v10288
    %11588 = vmatprep.subr.bf16.mxu0 %v10297
    %11589 = vmatpush1.bf16.msra.mxu0 %v10296
    %11590 = vmatprep.subr.bf16.mxu0 %v10305
    %11591 = vmatpush1.bf16.msra.mxu0 %v10304
    %11592 = vmatprep.subr.bf16.mxu0 %v10313
    %11593 = vmatpush1.bf16.msra.mxu0 %v10312
    %11594 = vmatprep.subr.bf16.mxu0 %v10321
    %11595 = vmatpush1.bf16.msra.mxu0 %v10320
    %11596 = vmatprep.mubr.bf16.mxu0 %v7845
    %11597 = vmatmul.mubr.bf16.gmra.mrb[0].mxu0 %v7844
    %v11598 = vpop.f32.mrb[0].mxu0
    %v11599 = vadd.f32 %v11556, %v11598
    %v11600 = vpop.f32.mrb[0].mxu0
    %v11601 = vadd.f32 %v11558, %v11600
    %v11602 = vpop.f32.mrb[0].mxu0
    %v11603 = vadd.f32 %v11560, %v11602
    %v11604 = vpop.f32.mrb[0].mxu0
    %v11605 = vadd.f32 %v11562, %v11604
    %11606 = vdwg.mxu0
    %11607 = vmatprep.subr.bf16.mxu0 %v10329
    %11608 = vmatpush1.bf16.msra.mxu0 %v10328
    %11609 = vmatprep.subr.bf16.mxu0 %v10337
    %11610 = vmatpush1.bf16.msra.mxu0 %v10336
    %11611 = vmatprep.subr.bf16.mxu0 %v10345
    %11612 = vmatpush1.bf16.msra.mxu0 %v10344
    %11613 = vmatprep.subr.bf16.mxu0 %v10353
    %11614 = vmatpush1.bf16.msra.mxu0 %v10352
    %11615 = vmatprep.subr.bf16.mxu0 %v10361
    %11616 = vmatpush1.bf16.msra.mxu0 %v10360
    %11617 = vmatprep.subr.bf16.mxu0 %v10369
    %11618 = vmatpush1.bf16.msra.mxu0 %v10368
    %11619 = vmatprep.subr.bf16.mxu0 %v10377
    %11620 = vmatpush1.bf16.msra.mxu0 %v10376
    %11621 = vmatprep.subr.bf16.mxu0 %v10385
    %11622 = vmatpush1.bf16.msra.mxu0 %v10384
    %11623 = vmatprep.subr.bf16.mxu0 %v10393
    %11624 = vmatpush1.bf16.msra.mxu0 %v10392
    %11625 = vmatprep.subr.bf16.mxu0 %v10401
    %11626 = vmatpush1.bf16.msra.mxu0 %v10400
    %11627 = vmatprep.subr.bf16.mxu0 %v10409
    %11628 = vmatpush1.bf16.msra.mxu0 %v10408
    %11629 = vmatprep.subr.bf16.mxu0 %v10417
    %11630 = vmatpush1.bf16.msra.mxu0 %v10416
    %11631 = vmatprep.subr.bf16.mxu0 %v10425
    %11632 = vmatpush1.bf16.msra.mxu0 %v10424
    %11633 = vmatprep.subr.bf16.mxu0 %v10433
    %11634 = vmatpush1.bf16.msra.mxu0 %v10432
    %11635 = vmatprep.subr.bf16.mxu0 %v10441
    %11636 = vmatpush1.bf16.msra.mxu0 %v10440
    %11637 = vmatprep.subr.bf16.mxu0 %v10449
    %11638 = vmatpush1.bf16.msra.mxu0 %v10448
    %11639 = vmatprep.mubr.bf16.mxu0 %v7847
    %11640 = vmatmul.mubr.bf16.gmra.mrb[0].mxu0 %v7846
    %v11641 = vpop.f32.mrb[0].mxu0
    %v11642 = vadd.f32 %v11599, %v11641
    %v11643 = vpop.f32.mrb[0].mxu0
    %v11644 = vadd.f32 %v11601, %v11643
    %v11645 = vpop.f32.mrb[0].mxu0
    %v11646 = vadd.f32 %v11603, %v11645
    %v11647 = vpop.f32.mrb[0].mxu0
    %v11648 = vadd.f32 %v11605, %v11647
    %11649 = vdwg.mxu0
    %v11650 = vmax.f32 %v11126, 0.0
    %v11651 = vmax.f32 %v11128, 0.0
    %v11652 = vmax.f32 %v11298, 0.0
    %v11653 = vmax.f32 %v11300, 0.0
    %v11654 = vmax.f32 %v11470, 0.0
    %v11655 = vmax.f32 %v11472, 0.0
    %v11656 = vmax.f32 %v11642, 0.0
    %v11657 = vmax.f32 %v11644, 0.0
    %v11658 = vmax.f32 %v11130, 0.0
    %v11659 = vmax.f32 %v11132, 0.0
    %v11660 = vmax.f32 %v11302, 0.0
    %v11661 = vmax.f32 %v11304, 0.0
    %v11662 = vmax.f32 %v11474, 0.0
    %v11663 = vmax.f32 %v11476, 0.0
    %v11664 = vmax.f32 %v11646, 0.0
    %v11665 = vmax.f32 %v11648, 0.0
    %v11666 = vpack.c.bf16 %v11658, %v11650
    %v11667 = vpack.c.bf16 %v11659, %v11651
    %v11668 = vpack.c.bf16 %v11660, %v11652
    %v11669 = vpack.c.bf16 %v11661, %v11653
    %v11670 = vpack.c.bf16 %v11662, %v11654
    %v11671 = vpack.c.bf16 %v11663, %v11655
    %v11672 = vpack.c.bf16 %v11664, %v11656
    %v11673 = vpack.c.bf16 %v11665, %v11657
    %v11674 = vld [vmem:[#allocation14] sm:$0xf]
    %v11675 = vld [vmem:[#allocation14 + $0x4] sm:$0xf]
    %v11676 = vld [vmem:[#allocation14 + $0x8] sm:$0xf]
    %v11677 = vld [vmem:[#allocation14 + $0xc] sm:$0xf]
    %v11678 = vld [vmem:[#allocation14 + $0x10] sm:$0xf]
    %v11679 = vld [vmem:[#allocation14 + $0x14] sm:$0xf]
    %v11680 = vld [vmem:[#allocation14 + $0x18] sm:$0xf]
    %v11681 = vld [vmem:[#allocation14 + $0x1c] sm:$0xf]
    %v11682 = vld [vmem:[#allocation14 + $0x20] sm:$0xf]
    %v11683 = vld [vmem:[#allocation14 + $0x24] sm:$0xf]
    %v11684 = vld [vmem:[#allocation14 + $0x28] sm:$0xf]
    %v11685 = vld [vmem:[#allocation14 + $0x2c] sm:$0xf]
    %v11686 = vld [vmem:[#allocation14 + $0x30] sm:$0xf]
    %v11687 = vld [vmem:[#allocation14 + $0x34] sm:$0xf]
    %v11688 = vld [vmem:[#allocation14 + $0x38] sm:$0xf]
    %v11689 = vld [vmem:[#allocation14 + $0x3c] sm:$0xf]
    %v11690 = vld [vmem:[#allocation14 + $0x40] sm:$0xf]
    %v11691 = vld [vmem:[#allocation14 + $0x44] sm:$0xf]
    %v11692 = vld [vmem:[#allocation14 + $0x48] sm:$0xf]
    %v11693 = vld [vmem:[#allocation14 + $0x4c] sm:$0xf]
    %v11694 = vld [vmem:[#allocation14 + $0x50] sm:$0xf]
    %v11695 = vld [vmem:[#allocation14 + $0x54] sm:$0xf]
    %v11696 = vld [vmem:[#allocation14 + $0x58] sm:$0xf]
    %v11697 = vld [vmem:[#allocation14 + $0x5c] sm:$0xf]
    %v11698 = vld [vmem:[#allocation14 + $0x60] sm:$0xf]
    %v11699 = vld [vmem:[#allocation14 + $0x64] sm:$0xf]
    %v11700 = vld [vmem:[#allocation14 + $0x68] sm:$0xf]
    %v11701 = vld [vmem:[#allocation14 + $0x6c] sm:$0xf]
    %v11702 = vld [vmem:[#allocation14 + $0x70] sm:$0xf]
    %v11703 = vld [vmem:[#allocation14 + $0x74] sm:$0xf]
    %v11704 = vld [vmem:[#allocation14 + $0x78] sm:$0xf]
    %v11705 = vld [vmem:[#allocation14 + $0x7c] sm:$0xf]
    %v11706 = vld [vmem:[#allocation14 + $0x80] sm:$0xf]
    %v11707 = vld [vmem:[#allocation14 + $0x84] sm:$0xf]
    %v11708 = vld [vmem:[#allocation14 + $0x88] sm:$0xf]
    %v11709 = vld [vmem:[#allocation14 + $0x8c] sm:$0xf]
    %v11710 = vld [vmem:[#allocation14 + $0x90] sm:$0xf]
    %v11711 = vld [vmem:[#allocation14 + $0x94] sm:$0xf]
    %v11712 = vld [vmem:[#allocation14 + $0x98] sm:$0xf]
    %v11713 = vld [vmem:[#allocation14 + $0x9c] sm:$0xf]
    %v11714 = vld [vmem:[#allocation14 + $0xa0] sm:$0xf]
    %v11715 = vld [vmem:[#allocation14 + $0xa4] sm:$0xf]
    %v11716 = vld [vmem:[#allocation14 + $0xa8] sm:$0xf]
    %v11717 = vld [vmem:[#allocation14 + $0xac] sm:$0xf]
    %v11718 = vld [vmem:[#allocation14 + $0xb0] sm:$0xf]
    %v11719 = vld [vmem:[#allocation14 + $0xb4] sm:$0xf]
    %v11720 = vld [vmem:[#allocation14 + $0xb8] sm:$0xf]
    %v11721 = vld [vmem:[#allocation14 + $0xbc] sm:$0xf]
    %v11722 = vld [vmem:[#allocation14 + $0xc0] sm:$0xf]
    %v11723 = vld [vmem:[#allocation14 + $0xc4] sm:$0xf]
    %v11724 = vld [vmem:[#allocation14 + $0xc8] sm:$0xf]
    %v11725 = vld [vmem:[#allocation14 + $0xcc] sm:$0xf]
    %v11726 = vld [vmem:[#allocation14 + $0xd0] sm:$0xf]
    %v11727 = vld [vmem:[#allocation14 + $0xd4] sm:$0xf]
    %v11728 = vld [vmem:[#allocation14 + $0xd8] sm:$0xf]
    %v11729 = vld [vmem:[#allocation14 + $0xdc] sm:$0xf]
    %v11730 = vld [vmem:[#allocation14 + $0xe0] sm:$0xf]
    %v11731 = vld [vmem:[#allocation14 + $0xe4] sm:$0xf]
    %v11732 = vld [vmem:[#allocation14 + $0xe8] sm:$0xf]
    %v11733 = vld [vmem:[#allocation14 + $0xec] sm:$0xf]
    %v11734 = vld [vmem:[#allocation14 + $0xf0] sm:$0xf]
    %v11735 = vld [vmem:[#allocation14 + $0xf4] sm:$0xf]
    %v11736 = vld [vmem:[#allocation14 + $0xf8] sm:$0xf]
    %v11737 = vld [vmem:[#allocation14 + $0xfc] sm:$0xf]
    %v11738 = vld [vmem:[#allocation14 + $0x100] sm:$0xf]
    %v11739 = vld [vmem:[#allocation14 + $0x104] sm:$0xf]
    %v11740 = vld [vmem:[#allocation14 + $0x108] sm:$0xf]
    %v11741 = vld [vmem:[#allocation14 + $0x10c] sm:$0xf]
    %v11742 = vld [vmem:[#allocation14 + $0x110] sm:$0xf]
    %v11743 = vld [vmem:[#allocation14 + $0x114] sm:$0xf]
    %v11744 = vld [vmem:[#allocation14 + $0x118] sm:$0xf]
    %v11745 = vld [vmem:[#allocation14 + $0x11c] sm:$0xf]
    %v11746 = vld [vmem:[#allocation14 + $0x120] sm:$0xf]
    %v11747 = vld [vmem:[#allocation14 + $0x124] sm:$0xf]
    %v11748 = vld [vmem:[#allocation14 + $0x128] sm:$0xf]
    %v11749 = vld [vmem:[#allocation14 + $0x12c] sm:$0xf]
    %v11750 = vld [vmem:[#allocation14 + $0x130] sm:$0xf]
    %v11751 = vld [vmem:[#allocation14 + $0x134] sm:$0xf]
    %v11752 = vld [vmem:[#allocation14 + $0x138] sm:$0xf]
    %v11753 = vld [vmem:[#allocation14 + $0x13c] sm:$0xf]
    %v11754 = vld [vmem:[#allocation14 + $0x140] sm:$0xf]
    %v11755 = vld [vmem:[#allocation14 + $0x144] sm:$0xf]
    %v11756 = vld [vmem:[#allocation14 + $0x148] sm:$0xf]
    %v11757 = vld [vmem:[#allocation14 + $0x14c] sm:$0xf]
    %v11758 = vld [vmem:[#allocation14 + $0x150] sm:$0xf]
    %v11759 = vld [vmem:[#allocation14 + $0x154] sm:$0xf]
    %v11760 = vld [vmem:[#allocation14 + $0x158] sm:$0xf]
    %v11761 = vld [vmem:[#allocation14 + $0x15c] sm:$0xf]
    %v11762 = vld [vmem:[#allocation14 + $0x160] sm:$0xf]
    %v11763 = vld [vmem:[#allocation14 + $0x164] sm:$0xf]
    %v11764 = vld [vmem:[#allocation14 + $0x168] sm:$0xf]
    %v11765 = vld [vmem:[#allocation14 + $0x16c] sm:$0xf]
    %v11766 = vld [vmem:[#allocation14 + $0x170] sm:$0xf]
    %v11767 = vld [vmem:[#allocation14 + $0x174] sm:$0xf]
    %v11768 = vld [vmem:[#allocation14 + $0x178] sm:$0xf]
    %v11769 = vld [vmem:[#allocation14 + $0x17c] sm:$0xf]
    %v11770 = vld [vmem:[#allocation14 + $0x180] sm:$0xf]
    %v11771 = vld [vmem:[#allocation14 + $0x184] sm:$0xf]
    %v11772 = vld [vmem:[#allocation14 + $0x188] sm:$0xf]
    %v11773 = vld [vmem:[#allocation14 + $0x18c] sm:$0xf]
    %v11774 = vld [vmem:[#allocation14 + $0x190] sm:$0xf]
    %v11775 = vld [vmem:[#allocation14 + $0x194] sm:$0xf]
    %v11776 = vld [vmem:[#allocation14 + $0x198] sm:$0xf]
    %v11777 = vld [vmem:[#allocation14 + $0x19c] sm:$0xf]
    %v11778 = vld [vmem:[#allocation14 + $0x1a0] sm:$0xf]
    %v11779 = vld [vmem:[#allocation14 + $0x1a4] sm:$0xf]
    %v11780 = vld [vmem:[#allocation14 + $0x1a8] sm:$0xf]
    %v11781 = vld [vmem:[#allocation14 + $0x1ac] sm:$0xf]
    %v11782 = vld [vmem:[#allocation14 + $0x1b0] sm:$0xf]
    %v11783 = vld [vmem:[#allocation14 + $0x1b4] sm:$0xf]
    %v11784 = vld [vmem:[#allocation14 + $0x1b8] sm:$0xf]
    %v11785 = vld [vmem:[#allocation14 + $0x1bc] sm:$0xf]
    %v11786 = vld [vmem:[#allocation14 + $0x1c0] sm:$0xf]
    %v11787 = vld [vmem:[#allocation14 + $0x1c4] sm:$0xf]
    %v11788 = vld [vmem:[#allocation14 + $0x1c8] sm:$0xf]
    %v11789 = vld [vmem:[#allocation14 + $0x1cc] sm:$0xf]
    %v11790 = vld [vmem:[#allocation14 + $0x1d0] sm:$0xf]
    %v11791 = vld [vmem:[#allocation14 + $0x1d4] sm:$0xf]
    %v11792 = vld [vmem:[#allocation14 + $0x1d8] sm:$0xf]
    %v11793 = vld [vmem:[#allocation14 + $0x1dc] sm:$0xf]
    %v11794 = vld [vmem:[#allocation14 + $0x1e0] sm:$0xf]
    %v11795 = vld [vmem:[#allocation14 + $0x1e4] sm:$0xf]
    %v11796 = vld [vmem:[#allocation14 + $0x1e8] sm:$0xf]
    %v11797 = vld [vmem:[#allocation14 + $0x1ec] sm:$0xf]
    %v11798 = vld [vmem:[#allocation14 + $0x1f0] sm:$0xf]
    %v11799 = vld [vmem:[#allocation14 + $0x1f4] sm:$0xf]
    %v11800 = vld [vmem:[#allocation14 + $0x1f8] sm:$0xf]
    %v11801 = vld [vmem:[#allocation14 + $0x1fc] sm:$0xf]
    %v11802 = vld [vmem:[#allocation16] sm:$0x1]
    %v11804 = vlaneseq
    %v11805 = vshrl.u32 %v11804, 7
    %v11806 = vsub.s32 0, %v11805
    %v11807 = vrot.slane %v11802, %v11806
    %v11937 = vunpack.c.l.b16 %v11674
    %v11938 = vunpack.c.l.b16 %v11675
    %v11939 = vunpack.c.l.b16 %v11676
    %v11940 = vunpack.c.l.b16 %v11677
    %v11941 = vunpack.c.l.b16 %v11678
    %v11942 = vunpack.c.l.b16 %v11679
    %v11943 = vunpack.c.l.b16 %v11680
    %v11944 = vunpack.c.l.b16 %v11681
    %v11945 = vunpack.c.l.b16 %v11682
    %v11946 = vunpack.c.l.b16 %v11683
    %v11947 = vunpack.c.l.b16 %v11684
    %v11948 = vunpack.c.l.b16 %v11685
    %v11949 = vunpack.c.l.b16 %v11686
    %v11950 = vunpack.c.l.b16 %v11687
    %v11951 = vunpack.c.l.b16 %v11688
    %v11952 = vunpack.c.l.b16 %v11689
    %v11953 = vunpack.c.l.b16 %v11690
    %v11954 = vunpack.c.l.b16 %v11691
    %v11955 = vunpack.c.l.b16 %v11692
    %v11956 = vunpack.c.l.b16 %v11693
    %v11957 = vunpack.c.l.b16 %v11694
    %v11958 = vunpack.c.l.b16 %v11695
    %v11959 = vunpack.c.l.b16 %v11696
    %v11960 = vunpack.c.l.b16 %v11697
    %v11961 = vunpack.c.l.b16 %v11698
    %v11962 = vunpack.c.l.b16 %v11699
    %v11963 = vunpack.c.l.b16 %v11700
    %v11964 = vunpack.c.l.b16 %v11701
    %v11965 = vunpack.c.l.b16 %v11702
    %v11966 = vunpack.c.l.b16 %v11703
    %v11967 = vunpack.c.l.b16 %v11704
    %v11968 = vunpack.c.l.b16 %v11705
    %v11969 = vunpack.c.l.b16 %v11706
    %v11970 = vunpack.c.l.b16 %v11707
    %v11971 = vunpack.c.l.b16 %v11708
    %v11972 = vunpack.c.l.b16 %v11709
    %v11973 = vunpack.c.l.b16 %v11710
    %v11974 = vunpack.c.l.b16 %v11711
    %v11975 = vunpack.c.l.b16 %v11712
    %v11976 = vunpack.c.l.b16 %v11713
    %v11977 = vunpack.c.l.b16 %v11714
    %v11978 = vunpack.c.l.b16 %v11715
    %v11979 = vunpack.c.l.b16 %v11716
    %v11980 = vunpack.c.l.b16 %v11717
    %v11981 = vunpack.c.l.b16 %v11718
    %v11982 = vunpack.c.l.b16 %v11719
    %v11983 = vunpack.c.l.b16 %v11720
    %v11984 = vunpack.c.l.b16 %v11721
    %v11985 = vunpack.c.l.b16 %v11722
    %v11986 = vunpack.c.l.b16 %v11723
    %v11987 = vunpack.c.l.b16 %v11724
    %v11988 = vunpack.c.l.b16 %v11725
    %v11989 = vunpack.c.l.b16 %v11726
    %v11990 = vunpack.c.l.b16 %v11727
    %v11991 = vunpack.c.l.b16 %v11728
    %v11992 = vunpack.c.l.b16 %v11729
    %v11993 = vunpack.c.l.b16 %v11730
    %v11994 = vunpack.c.l.b16 %v11731
    %v11995 = vunpack.c.l.b16 %v11732
    %v11996 = vunpack.c.l.b16 %v11733
    %v11997 = vunpack.c.l.b16 %v11734
    %v11998 = vunpack.c.l.b16 %v11735
    %v11999 = vunpack.c.l.b16 %v11736
    %v12000 = vunpack.c.l.b16 %v11737
    %v12001 = vunpack.c.l.b16 %v11738
    %v12002 = vunpack.c.l.b16 %v11739
    %v12003 = vunpack.c.l.b16 %v11740
    %v12004 = vunpack.c.l.b16 %v11741
    %v12005 = vunpack.c.l.b16 %v11742
    %v12006 = vunpack.c.l.b16 %v11743
    %v12007 = vunpack.c.l.b16 %v11744
    %v12008 = vunpack.c.l.b16 %v11745
    %v12009 = vunpack.c.l.b16 %v11746
    %v12010 = vunpack.c.l.b16 %v11747
    %v12011 = vunpack.c.l.b16 %v11748
    %v12012 = vunpack.c.l.b16 %v11749
    %v12013 = vunpack.c.l.b16 %v11750
    %v12014 = vunpack.c.l.b16 %v11751
    %v12015 = vunpack.c.l.b16 %v11752
    %v12016 = vunpack.c.l.b16 %v11753
    %v12017 = vunpack.c.l.b16 %v11754
    %v12018 = vunpack.c.l.b16 %v11755
    %v12019 = vunpack.c.l.b16 %v11756
    %v12020 = vunpack.c.l.b16 %v11757
    %v12021 = vunpack.c.l.b16 %v11758
    %v12022 = vunpack.c.l.b16 %v11759
    %v12023 = vunpack.c.l.b16 %v11760
    %v12024 = vunpack.c.l.b16 %v11761
    %v12025 = vunpack.c.l.b16 %v11762
    %v12026 = vunpack.c.l.b16 %v11763
    %v12027 = vunpack.c.l.b16 %v11764
    %v12028 = vunpack.c.l.b16 %v11765
    %v12029 = vunpack.c.l.b16 %v11766
    %v12030 = vunpack.c.l.b16 %v11767
    %v12031 = vunpack.c.l.b16 %v11768
    %v12032 = vunpack.c.l.b16 %v11769
    %v12033 = vunpack.c.l.b16 %v11770
    %v12034 = vunpack.c.l.b16 %v11771
    %v12035 = vunpack.c.l.b16 %v11772
    %v12036 = vunpack.c.l.b16 %v11773
    %v12037 = vunpack.c.l.b16 %v11774
    %v12038 = vunpack.c.l.b16 %v11775
    %v12039 = vunpack.c.l.b16 %v11776
    %v12040 = vunpack.c.l.b16 %v11777
    %v12041 = vunpack.c.l.b16 %v11778
    %v12042 = vunpack.c.l.b16 %v11779
    %v12043 = vunpack.c.l.b16 %v11780
    %v12044 = vunpack.c.l.b16 %v11781
    %v12045 = vunpack.c.l.b16 %v11782
    %v12046 = vunpack.c.l.b16 %v11783
    %v12047 = vunpack.c.l.b16 %v11784
    %v12048 = vunpack.c.l.b16 %v11785
    %v12049 = vunpack.c.l.b16 %v11786
    %v12050 = vunpack.c.l.b16 %v11787
    %v12051 = vunpack.c.l.b16 %v11788
    %v12052 = vunpack.c.l.b16 %v11789
    %v12053 = vunpack.c.l.b16 %v11790
    %v12054 = vunpack.c.l.b16 %v11791
    %v12055 = vunpack.c.l.b16 %v11792
    %v12056 = vunpack.c.l.b16 %v11793
    %v12057 = vunpack.c.l.b16 %v11794
    %v12058 = vunpack.c.l.b16 %v11795
    %v12059 = vunpack.c.l.b16 %v11796
    %v12060 = vunpack.c.l.b16 %v11797
    %v12061 = vunpack.c.l.b16 %v11798
    %v12062 = vunpack.c.l.b16 %v11799
    %v12063 = vunpack.c.l.b16 %v11800
    %v12064 = vunpack.c.l.b16 %v11801
    %v12065 = vpack.c.b16 %v11938, %v11937
    %v12066 = vpack.c.b16 %v11940, %v11939
    %v12067 = vpack.c.b16 %v11942, %v11941
    %v12068 = vpack.c.b16 %v11944, %v11943
    %v12069 = vpack.c.b16 %v11946, %v11945
    %v12070 = vpack.c.b16 %v11948, %v11947
    %v12071 = vpack.c.b16 %v11950, %v11949
    %v12072 = vpack.c.b16 %v11952, %v11951
    %v12073 = vpack.c.b16 %v11954, %v11953
    %v12074 = vpack.c.b16 %v11956, %v11955
    %v12075 = vpack.c.b16 %v11958, %v11957
    %v12076 = vpack.c.b16 %v11960, %v11959
    %v12077 = vpack.c.b16 %v11962, %v11961
    %v12078 = vpack.c.b16 %v11964, %v11963
    %v12079 = vpack.c.b16 %v11966, %v11965
    %v12080 = vpack.c.b16 %v11968, %v11967
    %v12081 = vpack.c.b16 %v11970, %v11969
    %v12082 = vpack.c.b16 %v11972, %v11971
    %v12083 = vpack.c.b16 %v11974, %v11973
    %v12084 = vpack.c.b16 %v11976, %v11975
    %v12085 = vpack.c.b16 %v11978, %v11977
    %v12086 = vpack.c.b16 %v11980, %v11979
    %v12087 = vpack.c.b16 %v11982, %v11981
    %v12088 = vpack.c.b16 %v11984, %v11983
    %v12089 = vpack.c.b16 %v11986, %v11985
    %v12090 = vpack.c.b16 %v11988, %v11987
    %v12091 = vpack.c.b16 %v11990, %v11989
    %v12092 = vpack.c.b16 %v11992, %v11991
    %v12093 = vpack.c.b16 %v11994, %v11993
    %v12094 = vpack.c.b16 %v11996, %v11995
    %v12095 = vpack.c.b16 %v11998, %v11997
    %v12096 = vpack.c.b16 %v12000, %v11999
    %v12097 = vpack.c.b16 %v12002, %v12001
    %v12098 = vpack.c.b16 %v12004, %v12003
    %v12099 = vpack.c.b16 %v12006, %v12005
    %v12100 = vpack.c.b16 %v12008, %v12007
    %v12101 = vpack.c.b16 %v12010, %v12009
    %v12102 = vpack.c.b16 %v12012, %v12011
    %v12103 = vpack.c.b16 %v12014, %v12013
    %v12104 = vpack.c.b16 %v12016, %v12015
    %v12105 = vpack.c.b16 %v12018, %v12017
    %v12106 = vpack.c.b16 %v12020, %v12019
    %v12107 = vpack.c.b16 %v12022, %v12021
    %v12108 = vpack.c.b16 %v12024, %v12023
    %v12109 = vpack.c.b16 %v12026, %v12025
    %v12110 = vpack.c.b16 %v12028, %v12027
    %v12111 = vpack.c.b16 %v12030, %v12029
    %v12112 = vpack.c.b16 %v12032, %v12031
    %v12113 = vpack.c.b16 %v12034, %v12033
    %v12114 = vpack.c.b16 %v12036, %v12035
    %v12115 = vpack.c.b16 %v12038, %v12037
    %v12116 = vpack.c.b16 %v12040, %v12039
    %v12117 = vpack.c.b16 %v12042, %v12041
    %v12118 = vpack.c.b16 %v12044, %v12043
    %v12119 = vpack.c.b16 %v12046, %v12045
    %v12120 = vpack.c.b16 %v12048, %v12047
    %v12121 = vpack.c.b16 %v12050, %v12049
    %v12122 = vpack.c.b16 %v12052, %v12051
    %v12123 = vpack.c.b16 %v12054, %v12053
    %v12124 = vpack.c.b16 %v12056, %v12055
    %v12125 = vpack.c.b16 %v12058, %v12057
    %v12126 = vpack.c.b16 %v12060, %v12059
    %v12127 = vpack.c.b16 %v12062, %v12061
    %v12128 = vpack.c.b16 %v12064, %v12063
    %12193 = vmatprep.subr.bf16.mxu0 0
    %12194 = vmatpush1.bf16.msra.mxu0 %v12065
    %12195 = vmatprep.subr.bf16.mxu0 0
    %12196 = vmatpush1.bf16.msra.mxu0 %v12066
    %12197 = vmatprep.subr.bf16.mxu0 0
    %12198 = vmatpush1.bf16.msra.mxu0 %v12067
    %12199 = vmatprep.subr.bf16.mxu0 0
    %12200 = vmatpush1.bf16.msra.mxu0 %v12068
    %12201 = vmatprep.subr.bf16.mxu0 0
    %12202 = vmatpush1.bf16.msra.mxu0 %v12069
    %12203 = vmatprep.subr.bf16.mxu0 0
    %12204 = vmatpush1.bf16.msra.mxu0 %v12070
    %12205 = vmatprep.subr.bf16.mxu0 0
    %12206 = vmatpush1.bf16.msra.mxu0 %v12071
    %12207 = vmatprep.subr.bf16.mxu0 0
    %12208 = vmatpush1.bf16.msra.mxu0 %v12072
    %12209 = vmatprep.subr.bf16.mxu0 0
    %12210 = vmatpush1.bf16.msra.mxu0 %v12073
    %12211 = vmatprep.subr.bf16.mxu0 0
    %12212 = vmatpush1.bf16.msra.mxu0 %v12074
    %12213 = vmatprep.subr.bf16.mxu0 0
    %12214 = vmatpush1.bf16.msra.mxu0 %v12075
    %12215 = vmatprep.subr.bf16.mxu0 0
    %12216 = vmatpush1.bf16.msra.mxu0 %v12076
    %12217 = vmatprep.subr.bf16.mxu0 0
    %12218 = vmatpush1.bf16.msra.mxu0 %v12077
    %12219 = vmatprep.subr.bf16.mxu0 0
    %12220 = vmatpush1.bf16.msra.mxu0 %v12078
    %12221 = vmatprep.subr.bf16.mxu0 0
    %12222 = vmatpush1.bf16.msra.mxu0 %v12079
    %12223 = vmatprep.subr.bf16.mxu0 0
    %12224 = vmatpush1.bf16.msra.mxu0 %v12080
    %12225 = vmatprep.mubr.bf16.mxu0 %v11667
    %12226 = vmatmul.mubr.bf16.gmra.mrb[0].mxu0 %v11666
    %v12227 = vpop.f32.mrb[0].mxu0
    %v12228 = vadd.f32 %v11807, %v12227
    %v12229 = vpop.f32.mrb[0].mxu0
    %v12230 = vpop.f32.mrb[0].mxu0
    %v12231 = vadd.f32 %v11807, %v12230
    %v12232 = vpop.f32.mrb[0].mxu0
    %12233 = vdwg.mxu0
    %12234 = vmatprep.subr.bf16.mxu0 0
    %12235 = vmatpush1.bf16.msra.mxu0 %v12081
    %12236 = vmatprep.subr.bf16.mxu0 0
    %12237 = vmatpush1.bf16.msra.mxu0 %v12082
    %12238 = vmatprep.subr.bf16.mxu0 0
    %12239 = vmatpush1.bf16.msra.mxu0 %v12083
    %12240 = vmatprep.subr.bf16.mxu0 0
    %12241 = vmatpush1.bf16.msra.mxu0 %v12084
    %12242 = vmatprep.subr.bf16.mxu0 0
    %12243 = vmatpush1.bf16.msra.mxu0 %v12085
    %12244 = vmatprep.subr.bf16.mxu0 0
    %12245 = vmatpush1.bf16.msra.mxu0 %v12086
    %12246 = vmatprep.subr.bf16.mxu0 0
    %12247 = vmatpush1.bf16.msra.mxu0 %v12087
    %12248 = vmatprep.subr.bf16.mxu0 0
    %12249 = vmatpush1.bf16.msra.mxu0 %v12088
    %12250 = vmatprep.subr.bf16.mxu0 0
    %12251 = vmatpush1.bf16.msra.mxu0 %v12089
    %12252 = vmatprep.subr.bf16.mxu0 0
    %12253 = vmatpush1.bf16.msra.mxu0 %v12090
    %12254 = vmatprep.subr.bf16.mxu0 0
    %12255 = vmatpush1.bf16.msra.mxu0 %v12091
    %12256 = vmatprep.subr.bf16.mxu0 0
    %12257 = vmatpush1.bf16.msra.mxu0 %v12092
    %12258 = vmatprep.subr.bf16.mxu0 0
    %12259 = vmatpush1.bf16.msra.mxu0 %v12093
    %12260 = vmatprep.subr.bf16.mxu0 0
    %12261 = vmatpush1.bf16.msra.mxu0 %v12094
    %12262 = vmatprep.subr.bf16.mxu0 0
    %12263 = vmatpush1.bf16.msra.mxu0 %v12095
    %12264 = vmatprep.subr.bf16.mxu0 0
    %12265 = vmatpush1.bf16.msra.mxu0 %v12096
    %12266 = vmatprep.mubr.bf16.mxu0 %v11669
    %12267 = vmatmul.mubr.bf16.gmra.mrb[0].mxu0 %v11668
    %v12268 = vpop.f32.mrb[0].mxu0
    %v12269 = vadd.f32 %v12228, %v12268
    %v12270 = vpop.f32.mrb[0].mxu0
    %v12271 = vpop.f32.mrb[0].mxu0
    %v12272 = vadd.f32 %v12231, %v12271
    %v12273 = vpop.f32.mrb[0].mxu0
    %12274 = vdwg.mxu0
    %12275 = vmatprep.subr.bf16.mxu0 0
    %12276 = vmatpush1.bf16.msra.mxu0 %v12097
    %12277 = vmatprep.subr.bf16.mxu0 0
    %12278 = vmatpush1.bf16.msra.mxu0 %v12098
    %12279 = vmatprep.subr.bf16.mxu0 0
    %12280 = vmatpush1.bf16.msra.mxu0 %v12099
    %12281 = vmatprep.subr.bf16.mxu0 0
    %12282 = vmatpush1.bf16.msra.mxu0 %v12100
    %12283 = vmatprep.subr.bf16.mxu0 0
    %12284 = vmatpush1.bf16.msra.mxu0 %v12101
    %12285 = vmatprep.subr.bf16.mxu0 0
    %12286 = vmatpush1.bf16.msra.mxu0 %v12102
    %12287 = vmatprep.subr.bf16.mxu0 0
    %12288 = vmatpush1.bf16.msra.mxu0 %v12103
    %12289 = vmatprep.subr.bf16.mxu0 0
    %12290 = vmatpush1.bf16.msra.mxu0 %v12104
    %12291 = vmatprep.subr.bf16.mxu0 0
    %12292 = vmatpush1.bf16.msra.mxu0 %v12105
    %12293 = vmatprep.subr.bf16.mxu0 0
    %12294 = vmatpush1.bf16.msra.mxu0 %v12106
    %12295 = vmatprep.subr.bf16.mxu0 0
    %12296 = vmatpush1.bf16.msra.mxu0 %v12107
    %12297 = vmatprep.subr.bf16.mxu0 0
    %12298 = vmatpush1.bf16.msra.mxu0 %v12108
    %12299 = vmatprep.subr.bf16.mxu0 0
    %12300 = vmatpush1.bf16.msra.mxu0 %v12109
    %12301 = vmatprep.subr.bf16.mxu0 0
    %12302 = vmatpush1.bf16.msra.mxu0 %v12110
    %12303 = vmatprep.subr.bf16.mxu0 0
    %12304 = vmatpush1.bf16.msra.mxu0 %v12111
    %12305 = vmatprep.subr.bf16.mxu0 0
    %12306 = vmatpush1.bf16.msra.mxu0 %v12112
    %12307 = vmatprep.mubr.bf16.mxu0 %v11671
    %12308 = vmatmul.mubr.bf16.gmra.mrb[0].mxu0 %v11670
    %v12309 = vpop.f32.mrb[0].mxu0
    %v12310 = vadd.f32 %v12269, %v12309
    %v12311 = vpop.f32.mrb[0].mxu0
    %v12312 = vpop.f32.mrb[0].mxu0
    %v12313 = vadd.f32 %v12272, %v12312
    %v12314 = vpop.f32.mrb[0].mxu0
    %12315 = vdwg.mxu0
    %12316 = vmatprep.subr.bf16.mxu0 0
    %12317 = vmatpush1.bf16.msra.mxu0 %v12113
    %12318 = vmatprep.subr.bf16.mxu0 0
    %12319 = vmatpush1.bf16.msra.mxu0 %v12114
    %12320 = vmatprep.subr.bf16.mxu0 0
    %12321 = vmatpush1.bf16.msra.mxu0 %v12115
    %12322 = vmatprep.subr.bf16.mxu0 0
    %12323 = vmatpush1.bf16.msra.mxu0 %v12116
    %12324 = vmatprep.subr.bf16.mxu0 0
    %12325 = vmatpush1.bf16.msra.mxu0 %v12117
    %12326 = vmatprep.subr.bf16.mxu0 0
    %12327 = vmatpush1.bf16.msra.mxu0 %v12118
    %12328 = vmatprep.subr.bf16.mxu0 0
    %12329 = vmatpush1.bf16.msra.mxu0 %v12119
    %12330 = vmatprep.subr.bf16.mxu0 0
    %12331 = vmatpush1.bf16.msra.mxu0 %v12120
    %12332 = vmatprep.subr.bf16.mxu0 0
    %12333 = vmatpush1.bf16.msra.mxu0 %v12121
    %12334 = vmatprep.subr.bf16.mxu0 0
    %12335 = vmatpush1.bf16.msra.mxu0 %v12122
    %12336 = vmatprep.subr.bf16.mxu0 0
    %12337 = vmatpush1.bf16.msra.mxu0 %v12123
    %12338 = vmatprep.subr.bf16.mxu0 0
    %12339 = vmatpush1.bf16.msra.mxu0 %v12124
    %12340 = vmatprep.subr.bf16.mxu0 0
    %12341 = vmatpush1.bf16.msra.mxu0 %v12125
    %12342 = vmatprep.subr.bf16.mxu0 0
    %12343 = vmatpush1.bf16.msra.mxu0 %v12126
    %12344 = vmatprep.subr.bf16.mxu0 0
    %12345 = vmatpush1.bf16.msra.mxu0 %v12127
    %12346 = vmatprep.subr.bf16.mxu0 0
    %12347 = vmatpush1.bf16.msra.mxu0 %v12128
    %12348 = vmatprep.mubr.bf16.mxu0 %v11673
    %12349 = vmatmul.mubr.bf16.gmra.mrb[0].mxu0 %v11672
    %v12350 = vpop.f32.mrb[0].mxu0
    %v12351 = vadd.f32 %v12310, %v12350
    %v12352 = vpop.f32.mrb[0].mxu0
    %v12353 = vpop.f32.mrb[0].mxu0
    %v12354 = vadd.f32 %v12313, %v12353
    %v12355 = vpop.f32.mrb[0].mxu0
    %12356 = vdwg.mxu0
    %v12357 = vlaneseq
    %v12358 = vand.u32 %v12357, 127
    %vm12359 = vcmp.lt.s32.totalorder %v12358, 2
    %v12360 = vsel %vm12359, %v12351, -1e+30
    %v12361 = vsel %vm12359, %v12354, -1e+30
    %12362 = vmax.xlane.f32.xlu0 %v12360
    %v12363 = vpop.xlane.xlu0 %12362
    %12364 = vmax.xlane.f32.xlu0 %v12361
    %v12365 = vpop.xlane.xlu0 %12364
    %v12366 = vsub.f32 %v12360, %v12363
    %v12367 = vsub.f32 %v12361, %v12365
    %v12368 = vmul.f32 %v12366, 1.442695
    %v12369 = vpow.pop %v12368
    %v12370 = vmul.f32 %v12367, 1.442695
    %v12371 = vpow.pop %v12370
    %v12372 = vsel %vm12359, %v12369, 0.0
    %v12373 = vsel %vm12359, %v12371, 0.0
    %12374 = vadd.xlane.f32.xlu0 %v12372
    %v12375 = vpop.xlane.xlu0 %12374
    %12376 = vadd.xlane.f32.xlu0 %v12373
    %v12377 = vpop.xlane.xlu0 %12376
    %v12378 = vrcp.pop %v12375
    %v12379 = vrcp.pop %v12377
    %v12380 = vmul.f32 %v12372, %v12378
    %v12381 = vmul.f32 %v12373, %v12379
    %12382 = vst [vmem:[#allocation17] sm:$0xff] %v12380
    %12383 = vst [vmem:[#allocation17 + $0x8] sm:$0xff] %v12381
    // Predicated region
    $region74: #{tpu_custom_call.1} parent=1 // pred_check
      _
    $region75: #{tpu_custom_call.1} parent=1 // pred_check_branch
      %12385 = sbr.rel (0) target = $region77
    $region76: #{tpu_custom_call.1} parent=1 // pred_region
      %s12387 = ssub.s32 256, 256
      %12388 = vsyncadd [#allocation4], %s12387
      %s12389 = sshll.u32 [#allocation17], 4
      %s12390 = int_to_ptr.vmem [resolvable:$true] %s12389
      %12395 = dma.vmem_to_hbm [thread:$0]  %s12390, 256, %s9, [#allocation4], 128, 128, 8
    $region77: #{tpu_custom_call.1} parent=1 // pred_fallthru
      _
    // Predicated region
    $region78: #{tpu_custom_call.1} parent=1 // pred_check
      _
    $region79: #{tpu_custom_call.1} parent=1 // pred_check_branch
      %12397 = sbr.rel (0) target = $region81
    $region80: #{tpu_custom_call.1} parent=1 // pred_region
      %12398 = dma.done [#allocation4], 256
    $region81: #{tpu_custom_call.1} parent=1 // pred_fallthru
      _
    %12399 = vsyncpa [#allocation3], 1
    %12400 = vsyncpa [#allocation6], 1
    %12401 = vsyncpa [#allocation9], 1
    %12402 = vsyncpa [#allocation12], 1
    %12403 = vsyncpa [#allocation15], 1
    %12404 = vsyncpa [#allocation4], 1

</llo_original>
